<compile_context>
chip_gen: v7x
topology: tpu7x:2x2x1
jax: 0.10.0
libtpu: 0.0.40
codegen_flags: <defaults>
</compile_context>

<pallas_src>
import functools

import numpy as np
import jax
import jax.numpy as jnp
from jax.experimental import pallas as pl
from jax.experimental.pallas import tpu as pltpu

_VMEM_LIMIT = 32 * 1024 * 1024
_HALO = 16  # left-halo width of the padded conv2 image (one bf16 sublane pack)


def _layout(h, w):
    """Padded, row-flattened layout constants for the 3x3 (pad=1) conv."""
    assert w % 16 == 0 and h >= 1
    wp = w + _HALO                          # padded row pitch (multiple of 16)
    top = ((w + 1 + 15) // 16) * 16         # top halo rows (>= w+1, 16-aligned)
    prows = h * wp                          # padded output rows fed to the MXU
    d0 = top - w - 1                        # LHS row offset of the kx=0 matmul
    q3 = max(d0 + 2 + prows, top + h * wp)  # rows that are read or hold data
    q3 = ((q3 + 15) // 16) * 16
    assert d0 >= 0 and d0 + 2 + prows <= q3
    return wp, top, prows, d0, q3


def _bottleneck_kernel(x_ref, w1t_ref, s1_ref, b1_ref, w2_ref, s2_ref, b2_ref,
                       w3_ref, s3_ref, b3_ref, f1w_ref, f1b_ref, f2w_ref,
                       f2b_ref, out_ref, xpad_ref, acc_ref, out2_ref,
                       *, H, W, C, C4):
    """One image: x (C4, H*W) NCHW-rows in, out (C4, H*W) NCHW-rows out."""
    HW = H * W
    WP, TOP, PROWS, D0, Q3 = _layout(H, W)

    # ---- conv1 (1x1) + bn1 + relu --------------------------------------
    # Channels-first matmul so the NCHW input needs no transpose; bf16 MXU
    # inputs, f32 accumulation, f32 BN/ReLU.
    x_bf = x_ref[...].astype(jnp.bfloat16)                       # (C4, HW)
    o1 = jnp.dot(w1t_ref[...], x_bf, preferred_element_type=jnp.float32)
    o1 = jnp.maximum(o1 * s1_ref[...] + b1_ref[...], 0.0)        # (C, HW)
    o1cl = jnp.transpose(o1).astype(jnp.bfloat16)                # (HW, C)

    # ---- build the padded, ky-concatenated conv2 image in VMEM ----------
    # Group ky holds the image shifted by ky padded rows, so the three kx
    # matmuls read a single contiguous (PROWS, 3*C) slab.  Every store is a
    # whole, 16-row-aligned block; only halo blocks are written as zeros.
    zero_blk = jnp.zeros((16, C), jnp.bfloat16)
    for ky in range(3):
        cs = ky * C
        data = {}
        for hh in range(H):
            start = TOP + (hh - ky) * WP + _HALO
            for off in range(0, W, 16):
                r0 = start + off
                if 0 <= r0 and r0 + 16 <= Q3:
                    data[r0] = hh * W + off
        for r0 in range(0, Q3, 16):
            src = data.get(r0)
            if src is None:
                xpad_ref[r0:r0 + 16, cs:cs + C] = zero_blk
            else:
                xpad_ref[r0:r0 + 16, cs:cs + C] = o1cl[src:src + 16, :]

    # ---- conv2 (3x3, groups folded into block-diagonal weights) ---------
    # 3 matmuls with K = 3*C, accumulated into a VMEM scratch.
    for kx in range(3):
        lhs = xpad_ref[D0 + kx:D0 + kx + PROWS, :]               # (PROWS, 3C)
        r = jnp.dot(lhs, w2_ref[kx], preferred_element_type=jnp.float32)
        if kx == 0:
            acc_ref[...] = r
        else:
            acc_ref[...] += r

    # ---- bn2 + relu + drop halo columns -> compact channels-last out2 ---
    for hh in range(H):
        v = acc_ref[hh * WP:hh * WP + W, :] * s2_ref[...] + b2_ref[...]
        out2_ref[hh * W:hh * W + W, :] = jnp.maximum(v, 0.0).astype(jnp.bfloat16)

    # ---- SE gate ---------------------------------------------------------
    # 1x1 conv3 + affine BN commute with the spatial mean, so the pool is
    # taken on out2 and pushed through w3/bn3 as a single row -> no second
    # pass over out3 and no out3 materialisation.
    pooled2 = jnp.sum(out2_ref[...].astype(jnp.float32), axis=0,
                      keepdims=True) * (1.0 / float(HW))          # (1, C)
    pooled3 = (jnp.dot(pooled2, w3_ref[...].astype(jnp.float32),
                       preferred_element_type=jnp.float32)
               * s3_ref[...] + b3_ref[...])                       # (1, C4)
    hgate = jnp.maximum(
        jnp.dot(pooled3, f1w_ref[...], preferred_element_type=jnp.float32)
        + f1b_ref[...], 0.0)
    ygate = (jnp.dot(hgate, f2w_ref[...], preferred_element_type=jnp.float32)
             + f2b_ref[...])
    gate = jnp.clip((ygate + 3.0) / 6.0, 0.0, 1.0)                # hardsigmoid

    # ---- conv3 + bn3 + SE scale + residual + relu, streamed over C4 -----
    # 128-channel chunks keep values small; the in-kernel transpose emits the
    # output directly in NCHW layout, and the residual uses the NCHW input.
    for ci in range(C4 // 128):
        cs, ce = ci * 128, (ci + 1) * 128
        t = jnp.dot(out2_ref[...], w3_ref[:, cs:ce],
                    preferred_element_type=jnp.float32)           # (HW, 128)
        t = (t * s3_ref[:, cs:ce] + b3_ref[:, cs:ce]) * gate[:, cs:ce]
        t_cf = jnp.transpose(t)                                   # (128, HW)
        out_ref[cs:ce, :] = jnp.maximum(t_cf + x_ref[cs:ce, :], 0.0)


def se_resnext_bottleneck(x_nchw, params, stride=1):
    assert stride == 1, "only stride=1 / downsample=None is implemented"
    N, Cin, H, W = x_nchw.shape
    planes = params["w1"].shape[1]
    c4 = params["w3"].shape[1]
    assert Cin == c4, "identity residual requires in_planes == 4 * planes"
    assert planes % 128 == 0 and c4 % 128 == 0 and W % 16 == 0

    HW = H * W
    x2d = x_nchw.astype(jnp.float32).reshape(N * Cin, HW)         # free reshape

    # Parameter prep (tiny, one HBM pass over the weights only).
    w1t = jnp.transpose(params["w1"]).astype(jnp.bfloat16)        # (planes, Cin)
    s1 = params["bn1_s"].reshape(planes, 1)
    b1 = params["bn1_b"].reshape(planes, 1)
    # (3, 3*planes, planes): the three ky taps concatenated along K, per kx.
    w2k = jnp.stack(
        [jnp.concatenate([params["w2_taps"][3 * ky + kx] for ky in range(3)],
                         axis=0) for kx in range(3)],
        axis=0).astype(jnp.bfloat16)
    s2 = params["bn2_s"].reshape(1, planes)
    b2 = params["bn2_b"].reshape(1, planes)
    w3 = params["w3"].astype(jnp.bfloat16)                        # (planes, c4)
    s3 = params["bn3_s"].reshape(1, c4)
    b3 = params["bn3_b"].reshape(1, c4)
    f1w = params["fc1_w"]
    f1b = params["fc1_b"].reshape(1, -1)
    f2w = params["fc2_w"]
    f2b = params["fc2_b"].reshape(1, c4)
    cr = f1w.shape[1]

    _, _, prows, _, q3 = _layout(H, W)

    out2d = pl.pallas_call(
        functools.partial(_bottleneck_kernel, H=H, W=W, C=planes, C4=c4),
        out_shape=jax.ShapeDtypeStruct((N * c4, HW), jnp.float32),
        grid=(N,),
        in_specs=[
            pl.BlockSpec((Cin, HW), lambda n: (n, 0)),            # x (per image)
            pl.BlockSpec((planes, Cin), lambda n: (0, 0)),        # w1^T resident
            pl.BlockSpec((planes, 1), lambda n: (0, 0)),          # bn1 scale
            pl.BlockSpec((planes, 1), lambda n: (0, 0)),          # bn1 bias
            pl.BlockSpec((3, 3 * planes, planes), lambda n: (0, 0, 0)),  # w2
            pl.BlockSpec((1, planes), lambda n: (0, 0)),          # bn2 scale
            pl.BlockSpec((1, planes), lambda n: (0, 0)),          # bn2 bias
            pl.BlockSpec((planes, c4), lambda n: (0, 0)),         # w3
            pl.BlockSpec((1, c4), lambda n: (0, 0)),              # bn3 scale
            pl.BlockSpec((1, c4), lambda n: (0, 0)),              # bn3 bias
            pl.BlockSpec((c4, cr), lambda n: (0, 0)),             # fc1 w
            pl.BlockSpec((1, cr), lambda n: (0, 0)),              # fc1 b
            pl.BlockSpec((cr, c4), lambda n: (0, 0)),             # fc2 w
            pl.BlockSpec((1, c4), lambda n: (0, 0)),              # fc2 b
        ],
        out_specs=pl.BlockSpec((c4, HW), lambda n: (n, 0)),
        scratch_shapes=[
            pltpu.VMEM((q3, 3 * planes), jnp.bfloat16),           # padded image
            pltpu.VMEM((prows, planes), jnp.float32),             # conv2 acc
            pltpu.VMEM((HW, planes), jnp.bfloat16),               # out2
        ],
        compiler_params=pltpu.CompilerParams(
            dimension_semantics=("parallel",),
            vmem_limit_bytes=_VMEM_LIMIT),
    )(x2d, w1t, s1, b1, w2k, s2, b2, w3, s3, b3, f1w, f1b, f2w, f2b)

    return out2d.reshape(N, c4, H, W)                             # NCHW, free


# ----------------------------------------------------------------------------
# Parameter init (deterministic, synthetic; BN running stats folded).
# ----------------------------------------------------------------------------
def init_params(key, in_planes, planes, reduction=16):
    mul = 4
    c4 = planes * mul
    G = 32
    assert planes % G == 0, "conv2 requires planes divisible by 32 (groups=32)"
    gs = planes // G
    ks = list(jax.random.split(key, 12))

    def nrm(k, shape, s=0.05):
        return jax.random.normal(k, shape, jnp.float32) * s

    def folded_bn(k, c):
        kg, kb, km, kv = jax.random.split(k, 4)
        gamma = jax.random.uniform(kg, (c,), jnp.float32, 0.5, 1.5)
        beta = jax.random.normal(kb, (c,), jnp.float32) * 0.1
        rmean = jax.random.normal(km, (c,), jnp.float32) * 0.1
        rvar = jax.random.uniform(kv, (c,), jnp.float32, 0.5, 1.5)
        s = gamma / jnp.sqrt(rvar + 1e-5)
        return s, beta - rmean * s

    params = {}
    params["w1"] = nrm(ks[0], (in_planes, planes))
    params["bn1_s"], params["bn1_b"] = folded_bn(ks[1], planes)
    # grouped 3x3 weight (3,3,G,gs,gs) -> block-diagonal dense (9, C, C)
    w2_g = nrm(ks[2], (3, 3, G, gs, gs), 0.15)
    eye = jnp.eye(G, dtype=jnp.float32)
    params["w2_taps"] = jnp.einsum("klgio,gh->klgiho", w2_g, eye).reshape(
        9, planes, planes)
    params["bn2_s"], params["bn2_b"] = folded_bn(ks[3], planes)
    params["w3"] = nrm(ks[4], (planes, c4))
    params["bn3_s"], params["bn3_b"] = folded_bn(ks[5], c4)
    cr = c4 // reduction
    params["fc1_w"] = nrm(ks[6], (c4, cr))
    params["fc1_b"] = nrm(ks[7], (cr,))
    params["fc2_w"] = nrm(ks[8], (cr, c4))
    params["fc2_b"] = nrm(ks[9], (c4,))
    return params


# ----------------------------------------------------------------------------
# Pure-jnp reference (same math, same bf16 matmul inputs) for the check.
# ----------------------------------------------------------------------------
def reference(x_nchw, params):
    f32, bf = jnp.float32, jnp.bfloat16
    x = jnp.transpose(x_nchw.astype(f32), (0, 2, 3, 1))           # NHWC
    N, H, W, _ = x.shape
    out1 = jnp.einsum("nhwc,cd->nhwd", x.astype(bf),
                      params["w1"].astype(bf), preferred_element_type=f32)
    out1 = jnp.maximum(out1 * params["bn1_s"] + params["bn1_b"], 0.0)
    C = out1.shape[-1]
    xp = jnp.pad(out1.astype(bf), ((0, 0), (1, 1), (1, 1), (0, 0)))
    acc = jnp.zeros((N, H, W, C), f32)
    for ky in range(3):
        for kx in range(3):
            acc = acc + jnp.einsum(
                "nhwc,cd->nhwd", xp[:, ky:ky + H, kx:kx + W, :],
                params["w2_taps"][3 * ky + kx].astype(bf),
                preferred_element_type=f32)
    out2 = jnp.maximum(acc * params["bn2_s"] + params["bn2_b"], 0.0)
    out3 = (jnp.einsum("nhwc,cd->nhwd", out2.astype(bf),
                       params["w3"].astype(bf), preferred_element_type=f32)
            * params["bn3_s"] + params["bn3_b"])
    pooled = jnp.mean(out3, axis=(1, 2))
    h = jnp.maximum(pooled @ params["fc1_w"] + params["fc1_b"], 0.0)
    y = h @ params["fc2_w"] + params["fc2_b"]
    gate = jnp.clip((y + 3.0) / 6.0, 0.0, 1.0)                    # hardsigmoid
    out = jnp.maximum(out3 * gate[:, None, None, :] + x, 0.0)
    return jnp.transpose(out, (0, 3, 1, 2))                       # NCHW


if __name__ == "__main__":
    # Canonical SE-ResNeXt (32x4d) stage config: planes=128 keeps every channel
    # dim a multiple of 128 (lane-dense), groups=32 -> 4 channels/group, and
    # in_planes = 4*planes so the identity residual is valid without downsample.
    in_planes, planes = 512, 128
    batch, spatial = 2, 16

    key = jax.random.PRNGKey(0)
    kx_, kp = jax.random.split(key)
    x = jax.random.normal(kx_, (batch, in_planes, spatial, spatial), jnp.float32)
    params = init_params(kp, in_planes, planes)

    fwd = jax.jit(lambda a, p: se_resnext_bottleneck(a, p, stride=1))
    out = jax.block_until_ready(fwd(x, params))
    ref = jax.block_until_ready(reference(x, params))

    assert out.shape == (batch, planes * 4, spatial, spatial), out.shape
    # bf16 matmul inputs (matched in the reference) -> 1e-2 tolerance.
    np.testing.assert_allclose(np.asarray(out), np.asarray(ref),
                               rtol=1e-2, atol=1e-2)
    print("KERNEL_OK")
</pallas_src>

<mosaic_0001>
module attributes {stable_mosaic.version = 11 : i64} {
  func.func @_bottleneck_kernel(%arg0: i32, %arg1: memref<512x256xf32, #tpu.memory_space<vmem>>, %arg2: memref<128x512xbf16, #tpu.memory_space<vmem>>, %arg3: memref<128x1xf32, #tpu.memory_space<vmem>>, %arg4: memref<128x1xf32, #tpu.memory_space<vmem>>, %arg5: memref<3x384x128xbf16, #tpu.memory_space<vmem>>, %arg6: memref<1x128xf32, #tpu.memory_space<vmem>>, %arg7: memref<1x128xf32, #tpu.memory_space<vmem>>, %arg8: memref<128x512xbf16, #tpu.memory_space<vmem>>, %arg9: memref<1x512xf32, #tpu.memory_space<vmem>>, %arg10: memref<1x512xf32, #tpu.memory_space<vmem>>, %arg11: memref<512x32xf32, #tpu.memory_space<vmem>>, %arg12: memref<1x32xf32, #tpu.memory_space<vmem>>, %arg13: memref<32x512xf32, #tpu.memory_space<vmem>>, %arg14: memref<1x512xf32, #tpu.memory_space<vmem>>, %arg15: memref<512x256xf32, #tpu.memory_space<vmem>>, %arg16: memref<544x384xbf16, #tpu.memory_space<vmem>>, %arg17: memref<512x128xf32, #tpu.memory_space<vmem>>, %arg18: memref<256x128xbf16, #tpu.memory_space<vmem>>) attributes {dimension_semantics = [#tpu.dimension_semantics<parallel>], iteration_bounds = array<i64: 2>, scalar_prefetch = 0 : i64, scratch_operands = 3 : i64, tpu.core_type = #tpu.core_type<tc>, window_params = [{transform_indices = @transform_0, window_bounds = array<i64: 512, 256>}, {pipeline_mode = #tpu.pipeline_mode<synchronous>, transform_indices = @transform_1, window_bounds = array<i64: 128, 512>}, {pipeline_mode = #tpu.pipeline_mode<synchronous>, transform_indices = @transform_2, window_bounds = array<i64: 128, 1>}, {pipeline_mode = #tpu.pipeline_mode<synchronous>, transform_indices = @transform_3, window_bounds = array<i64: 128, 1>}, {pipeline_mode = #tpu.pipeline_mode<synchronous>, transform_indices = @transform_4, window_bounds = array<i64: 3, 384, 128>}, {pipeline_mode = #tpu.pipeline_mode<synchronous>, transform_indices = @transform_5, window_bounds = array<i64: 1, 128>}, {pipeline_mode = #tpu.pipeline_mode<synchronous>, transform_indices = @transform_6, window_bounds = array<i64: 1, 128>}, {pipeline_mode = #tpu.pipeline_mode<synchronous>, transform_indices = @transform_7, window_bounds = array<i64: 128, 512>}, {pipeline_mode = #tpu.pipeline_mode<synchronous>, transform_indices = @transform_8, window_bounds = array<i64: 1, 512>}, {pipeline_mode = #tpu.pipeline_mode<synchronous>, transform_indices = @transform_9, window_bounds = array<i64: 1, 512>}, {pipeline_mode = #tpu.pipeline_mode<synchronous>, transform_indices = @transform_10, window_bounds = array<i64: 512, 32>}, {pipeline_mode = #tpu.pipeline_mode<synchronous>, transform_indices = @transform_11, window_bounds = array<i64: 1, 32>}, {pipeline_mode = #tpu.pipeline_mode<synchronous>, transform_indices = @transform_12, window_bounds = array<i64: 32, 512>}, {pipeline_mode = #tpu.pipeline_mode<synchronous>, transform_indices = @transform_13, window_bounds = array<i64: 1, 512>}, {transform_indices = @transform_14, window_bounds = array<i64: 512, 256>}]} {
    %c0 = arith.constant 0 : index
    %c0_0 = arith.constant 0 : index
    %0 = vector.load %arg1[%c0, %c0_0] : memref<512x256xf32, #tpu.memory_space<vmem>>, vector<512x256xf32>
    %1 = arith.truncf %0 : vector<512x256xf32> to vector<512x256xbf16>
    %c0_1 = arith.constant 0 : index
    %c0_2 = arith.constant 0 : index
    %2 = vector.load %arg2[%c0_1, %c0_2] : memref<128x512xbf16, #tpu.memory_space<vmem>>, vector<128x512xbf16>
    %cst = arith.constant dense<0.000000e+00> : vector<128x256xf32>
    %3 = tpu.matmul %2, %1, %cst {dimension_numbers = #tpu.dot_dimension_numbers<[1], [0], [0], [1], [0, 0, 1, 1], [], []>} : vector<128x512xbf16>, vector<512x256xbf16>, vector<128x256xf32> -> vector<128x256xf32>
    %c0_3 = arith.constant 0 : index
    %c0_4 = arith.constant 0 : index
    %4 = vector.load %arg3[%c0_3, %c0_4] : memref<128x1xf32, #tpu.memory_space<vmem>>, vector<128x1xf32>
    %5 = vector.broadcast %4 : vector<128x1xf32> to vector<128x256xf32>
    %6 = arith.mulf %3, %5 : vector<128x256xf32>
    %c0_5 = arith.constant 0 : index
    %c0_6 = arith.constant 0 : index
    %7 = vector.load %arg4[%c0_5, %c0_6] : memref<128x1xf32, #tpu.memory_space<vmem>>, vector<128x1xf32>
    %8 = vector.broadcast %7 : vector<128x1xf32> to vector<128x256xf32>
    %9 = arith.addf %6, %8 : vector<128x256xf32>
    %cst_7 = arith.constant 0.000000e+00 : f32
    %10 = vector.broadcast %cst_7 : f32 to vector<128x256xf32>
    %11 = arith.maximumf %9, %10 : vector<128x256xf32>
    %12 = tpu.transpose %11, [1, 0] : vector<128x256xf32> -> vector<256x128xf32>
    %13 = arith.truncf %12 : vector<256x128xf32> to vector<256x128xbf16>
    %cst_8 = arith.constant 0.000000e+00 : bf16
    %14 = vector.broadcast %cst_8 : bf16 to vector<16x128xbf16>
    %c0_9 = arith.constant 0 : index
    %c0_10 = arith.constant 0 : index
    %15 = vector.load %arg16[%c0_9, %c0_10] : memref<544x384xbf16, #tpu.memory_space<vmem>>, vector<16x128xbf16>
    tpu.vector_store %arg16[%c0_9, %c0_10], %14 {strides = array<i32>} : memref<544x384xbf16, #tpu.memory_space<vmem>>, vector<16x128xbf16>,
    %c16 = arith.constant 16 : index
    %c0_11 = arith.constant 0 : index
    %16 = vector.load %arg16[%c16, %c0_11] : memref<544x384xbf16, #tpu.memory_space<vmem>>, vector<16x128xbf16>
    tpu.vector_store %arg16[%c16, %c0_11], %14 {strides = array<i32>} : memref<544x384xbf16, #tpu.memory_space<vmem>>, vector<16x128xbf16>,
    %c32 = arith.constant 32 : index
    %c0_12 = arith.constant 0 : index
    %17 = vector.load %arg16[%c32, %c0_12] : memref<544x384xbf16, #tpu.memory_space<vmem>>, vector<16x128xbf16>
    tpu.vector_store %arg16[%c32, %c0_12], %14 {strides = array<i32>} : memref<544x384xbf16, #tpu.memory_space<vmem>>, vector<16x128xbf16>,
    %18 = vector.extract_strided_slice %13 {offsets = [0, 0], sizes = [16, 128], strides = [1, 1]} : vector<256x128xbf16> to vector<16x128xbf16>
    %c48 = arith.constant 48 : index
    %c0_13 = arith.constant 0 : index
    %19 = vector.load %arg16[%c48, %c0_13] : memref<544x384xbf16, #tpu.memory_space<vmem>>, vector<16x128xbf16>
    tpu.vector_store %arg16[%c48, %c0_13], %18 {strides = array<i32>} : memref<544x384xbf16, #tpu.memory_space<vmem>>, vector<16x128xbf16>,
    %c64 = arith.constant 64 : index
    %c0_14 = arith.constant 0 : index
    %20 = vector.load %arg16[%c64, %c0_14] : memref<544x384xbf16, #tpu.memory_space<vmem>>, vector<16x128xbf16>
    tpu.vector_store %arg16[%c64, %c0_14], %14 {strides = array<i32>} : memref<544x384xbf16, #tpu.memory_space<vmem>>, vector<16x128xbf16>,
    %21 = vector.extract_strided_slice %13 {offsets = [16, 0], sizes = [16, 128], strides = [1, 1]} : vector<256x128xbf16> to vector<16x128xbf16>
    %c80 = arith.constant 80 : index
    %c0_15 = arith.constant 0 : index
    %22 = vector.load %arg16[%c80, %c0_15] : memref<544x384xbf16, #tpu.memory_space<vmem>>, vector<16x128xbf16>
    tpu.vector_store %arg16[%c80, %c0_15], %21 {strides = array<i32>} : memref<544x384xbf16, #tpu.memory_space<vmem>>, vector<16x128xbf16>,
    %c96 = arith.constant 96 : index
    %c0_16 = arith.constant 0 : index
    %23 = vector.load %arg16[%c96, %c0_16] : memref<544x384xbf16, #tpu.memory_space<vmem>>, vector<16x128xbf16>
    tpu.vector_store %arg16[%c96, %c0_16], %14 {strides = array<i32>} : memref<544x384xbf16, #tpu.memory_space<vmem>>, vector<16x128xbf16>,
    %24 = vector.extract_strided_slice %13 {offsets = [32, 0], sizes = [16, 128], strides = [1, 1]} : vector<256x128xbf16> to vector<16x128xbf16>
    %c112 = arith.constant 112 : index
    %c0_17 = arith.constant 0 : index
    %25 = vector.load %arg16[%c112, %c0_17] : memref<544x384xbf16, #tpu.memory_space<vmem>>, vector<16x128xbf16>
    tpu.vector_store %arg16[%c112, %c0_17], %24 {strides = array<i32>} : memref<544x384xbf16, #tpu.memory_space<vmem>>, vector<16x128xbf16>,
    %c128 = arith.constant 128 : index
    %c0_18 = arith.constant 0 : index
    %26 = vector.load %arg16[%c128, %c0_18] : memref<544x384xbf16, #tpu.memory_space<vmem>>, vector<16x128xbf16>
    tpu.vector_store %arg16[%c128, %c0_18], %14 {strides = array<i32>} : memref<544x384xbf16, #tpu.memory_space<vmem>>, vector<16x128xbf16>,
    %27 = vector.extract_strided_slice %13 {offsets = [48, 0], sizes = [16, 128], strides = [1, 1]} : vector<256x128xbf16> to vector<16x128xbf16>
    %c144 = arith.constant 144 : index
    %c0_19 = arith.constant 0 : index
    %28 = vector.load %arg16[%c144, %c0_19] : memref<544x384xbf16, #tpu.memory_space<vmem>>, vector<16x128xbf16>
    tpu.vector_store %arg16[%c144, %c0_19], %27 {strides = array<i32>} : memref<544x384xbf16, #tpu.memory_space<vmem>>, vector<16x128xbf16>,
    %c160 = arith.constant 160 : index
    %c0_20 = arith.constant 0 : index
    %29 = vector.load %arg16[%c160, %c0_20] : memref<544x384xbf16, #tpu.memory_space<vmem>>, vector<16x128xbf16>
    tpu.vector_store %arg16[%c160, %c0_20], %14 {strides = array<i32>} : memref<544x384xbf16, #tpu.memory_space<vmem>>, vector<16x128xbf16>,
    %30 = vector.extract_strided_slice %13 {offsets = [64, 0], sizes = [16, 128], strides = [1, 1]} : vector<256x128xbf16> to vector<16x128xbf16>
    %c176 = arith.constant 176 : index
    %c0_21 = arith.constant 0 : index
    %31 = vector.load %arg16[%c176, %c0_21] : memref<544x384xbf16, #tpu.memory_space<vmem>>, vector<16x128xbf16>
    tpu.vector_store %arg16[%c176, %c0_21], %30 {strides = array<i32>} : memref<544x384xbf16, #tpu.memory_space<vmem>>, vector<16x128xbf16>,
    %c192 = arith.constant 192 : index
    %c0_22 = arith.constant 0 : index
    %32 = vector.load %arg16[%c192, %c0_22] : memref<544x384xbf16, #tpu.memory_space<vmem>>, vector<16x128xbf16>
    tpu.vector_store %arg16[%c192, %c0_22], %14 {strides = array<i32>} : memref<544x384xbf16, #tpu.memory_space<vmem>>, vector<16x128xbf16>,
    %33 = vector.extract_strided_slice %13 {offsets = [80, 0], sizes = [16, 128], strides = [1, 1]} : vector<256x128xbf16> to vector<16x128xbf16>
    %c208 = arith.constant 208 : index
    %c0_23 = arith.constant 0 : index
    %34 = vector.load %arg16[%c208, %c0_23] : memref<544x384xbf16, #tpu.memory_space<vmem>>, vector<16x128xbf16>
    tpu.vector_store %arg16[%c208, %c0_23], %33 {strides = array<i32>} : memref<544x384xbf16, #tpu.memory_space<vmem>>, vector<16x128xbf16>,
    %c224 = arith.constant 224 : index
    %c0_24 = arith.constant 0 : index
    %35 = vector.load %arg16[%c224, %c0_24] : memref<544x384xbf16, #tpu.memory_space<vmem>>, vector<16x128xbf16>
    tpu.vector_store %arg16[%c224, %c0_24], %14 {strides = array<i32>} : memref<544x384xbf16, #tpu.memory_space<vmem>>, vector<16x128xbf16>,
    %36 = vector.extract_strided_slice %13 {offsets = [96, 0], sizes = [16, 128], strides = [1, 1]} : vector<256x128xbf16> to vector<16x128xbf16>
    %c240 = arith.constant 240 : index
    %c0_25 = arith.constant 0 : index
    %37 = vector.load %arg16[%c240, %c0_25] : memref<544x384xbf16, #tpu.memory_space<vmem>>, vector<16x128xbf16>
    tpu.vector_store %arg16[%c240, %c0_25], %36 {strides = array<i32>} : memref<544x384xbf16, #tpu.memory_space<vmem>>, vector<16x128xbf16>,
    %c256 = arith.constant 256 : index
    %c0_26 = arith.constant 0 : index
    %38 = vector.load %arg16[%c256, %c0_26] : memref<544x384xbf16, #tpu.memory_space<vmem>>, vector<16x128xbf16>
    tpu.vector_store %arg16[%c256, %c0_26], %14 {strides = array<i32>} : memref<544x384xbf16, #tpu.memory_space<vmem>>, vector<16x128xbf16>,
    %39 = vector.extract_strided_slice %13 {offsets = [112, 0], sizes = [16, 128], strides = [1, 1]} : vector<256x128xbf16> to vector<16x128xbf16>
    %c272 = arith.constant 272 : index
    %c0_27 = arith.constant 0 : index
    %40 = vector.load %arg16[%c272, %c0_27] : memref<544x384xbf16, #tpu.memory_space<vmem>>, vector<16x128xbf16>
    tpu.vector_store %arg16[%c272, %c0_27], %39 {strides = array<i32>} : memref<544x384xbf16, #tpu.memory_space<vmem>>, vector<16x128xbf16>,
    %c288 = arith.constant 288 : index
    %c0_28 = arith.constant 0 : index
    %41 = vector.load %arg16[%c288, %c0_28] : memref<544x384xbf16, #tpu.memory_space<vmem>>, vector<16x128xbf16>
    tpu.vector_store %arg16[%c288, %c0_28], %14 {strides = array<i32>} : memref<544x384xbf16, #tpu.memory_space<vmem>>, vector<16x128xbf16>,
    %42 = vector.extract_strided_slice %13 {offsets = [128, 0], sizes = [16, 128], strides = [1, 1]} : vector<256x128xbf16> to vector<16x128xbf16>
    %c304 = arith.constant 304 : index
    %c0_29 = arith.constant 0 : index
    %43 = vector.load %arg16[%c304, %c0_29] : memref<544x384xbf16, #tpu.memory_space<vmem>>, vector<16x128xbf16>
    tpu.vector_store %arg16[%c304, %c0_29], %42 {strides = array<i32>} : memref<544x384xbf16, #tpu.memory_space<vmem>>, vector<16x128xbf16>,
    %c320 = arith.constant 320 : index
    %c0_30 = arith.constant 0 : index
    %44 = vector.load %arg16[%c320, %c0_30] : memref<544x384xbf16, #tpu.memory_space<vmem>>, vector<16x128xbf16>
    tpu.vector_store %arg16[%c320, %c0_30], %14 {strides = array<i32>} : memref<544x384xbf16, #tpu.memory_space<vmem>>, vector<16x128xbf16>,
    %45 = vector.extract_strided_slice %13 {offsets = [144, 0], sizes = [16, 128], strides = [1, 1]} : vector<256x128xbf16> to vector<16x128xbf16>
    %c336 = arith.constant 336 : index
    %c0_31 = arith.constant 0 : index
    %46 = vector.load %arg16[%c336, %c0_31] : memref<544x384xbf16, #tpu.memory_space<vmem>>, vector<16x128xbf16>
    tpu.vector_store %arg16[%c336, %c0_31], %45 {strides = array<i32>} : memref<544x384xbf16, #tpu.memory_space<vmem>>, vector<16x128xbf16>,
    %c352 = arith.constant 352 : index
    %c0_32 = arith.constant 0 : index
    %47 = vector.load %arg16[%c352, %c0_32] : memref<544x384xbf16, #tpu.memory_space<vmem>>, vector<16x128xbf16>
    tpu.vector_store %arg16[%c352, %c0_32], %14 {strides = array<i32>} : memref<544x384xbf16, #tpu.memory_space<vmem>>, vector<16x128xbf16>,
    %48 = vector.extract_strided_slice %13 {offsets = [160, 0], sizes = [16, 128], strides = [1, 1]} : vector<256x128xbf16> to vector<16x128xbf16>
    %c368 = arith.constant 368 : index
    %c0_33 = arith.constant 0 : index
    %49 = vector.load %arg16[%c368, %c0_33] : memref<544x384xbf16, #tpu.memory_space<vmem>>, vector<16x128xbf16>
    tpu.vector_store %arg16[%c368, %c0_33], %48 {strides = array<i32>} : memref<544x384xbf16, #tpu.memory_space<vmem>>, vector<16x128xbf16>,
    %c384 = arith.constant 384 : index
    %c0_34 = arith.constant 0 : index
    %50 = vector.load %arg16[%c384, %c0_34] : memref<544x384xbf16, #tpu.memory_space<vmem>>, vector<16x128xbf16>
    tpu.vector_store %arg16[%c384, %c0_34], %14 {strides = array<i32>} : memref<544x384xbf16, #tpu.memory_space<vmem>>, vector<16x128xbf16>,
    %51 = vector.extract_strided_slice %13 {offsets = [176, 0], sizes = [16, 128], strides = [1, 1]} : vector<256x128xbf16> to vector<16x128xbf16>
    %c400 = arith.constant 400 : index
    %c0_35 = arith.constant 0 : index
    %52 = vector.load %arg16[%c400, %c0_35] : memref<544x384xbf16, #tpu.memory_space<vmem>>, vector<16x128xbf16>
    tpu.vector_store %arg16[%c400, %c0_35], %51 {strides = array<i32>} : memref<544x384xbf16, #tpu.memory_space<vmem>>, vector<16x128xbf16>,
    %c416 = arith.constant 416 : index
    %c0_36 = arith.constant 0 : index
    %53 = vector.load %arg16[%c416, %c0_36] : memref<544x384xbf16, #tpu.memory_space<vmem>>, vector<16x128xbf16>
    tpu.vector_store %arg16[%c416, %c0_36], %14 {strides = array<i32>} : memref<544x384xbf16, #tpu.memory_space<vmem>>, vector<16x128xbf16>,
    %54 = vector.extract_strided_slice %13 {offsets = [192, 0], sizes = [16, 128], strides = [1, 1]} : vector<256x128xbf16> to vector<16x128xbf16>
    %c432 = arith.constant 432 : index
    %c0_37 = arith.constant 0 : index
    %55 = vector.load %arg16[%c432, %c0_37] : memref<544x384xbf16, #tpu.memory_space<vmem>>, vector<16x128xbf16>
    tpu.vector_store %arg16[%c432, %c0_37], %54 {strides = array<i32>} : memref<544x384xbf16, #tpu.memory_space<vmem>>, vector<16x128xbf16>,
    %c448 = arith.constant 448 : index
    %c0_38 = arith.constant 0 : index
    %56 = vector.load %arg16[%c448, %c0_38] : memref<544x384xbf16, #tpu.memory_space<vmem>>, vector<16x128xbf16>
    tpu.vector_store %arg16[%c448, %c0_38], %14 {strides = array<i32>} : memref<544x384xbf16, #tpu.memory_space<vmem>>, vector<16x128xbf16>,
    %57 = vector.extract_strided_slice %13 {offsets = [208, 0], sizes = [16, 128], strides = [1, 1]} : vector<256x128xbf16> to vector<16x128xbf16>
    %c464 = arith.constant 464 : index
    %c0_39 = arith.constant 0 : index
    %58 = vector.load %arg16[%c464, %c0_39] : memref<544x384xbf16, #tpu.memory_space<vmem>>, vector<16x128xbf16>
    tpu.vector_store %arg16[%c464, %c0_39], %57 {strides = array<i32>} : memref<544x384xbf16, #tpu.memory_space<vmem>>, vector<16x128xbf16>,
    %c480 = arith.constant 480 : index
    %c0_40 = arith.constant 0 : index
    %59 = vector.load %arg16[%c480, %c0_40] : memref<544x384xbf16, #tpu.memory_space<vmem>>, vector<16x128xbf16>
    tpu.vector_store %arg16[%c480, %c0_40], %14 {strides = array<i32>} : memref<544x384xbf16, #tpu.memory_space<vmem>>, vector<16x128xbf16>,
    %60 = vector.extract_strided_slice %13 {offsets = [224, 0], sizes = [16, 128], strides = [1, 1]} : vector<256x128xbf16> to vector<16x128xbf16>
    %c496 = arith.constant 496 : index
    %c0_41 = arith.constant 0 : index
    %61 = vector.load %arg16[%c496, %c0_41] : memref<544x384xbf16, #tpu.memory_space<vmem>>, vector<16x128xbf16>
    tpu.vector_store %arg16[%c496, %c0_41], %60 {strides = array<i32>} : memref<544x384xbf16, #tpu.memory_space<vmem>>, vector<16x128xbf16>,
    %c512 = arith.constant 512 : index
    %c0_42 = arith.constant 0 : index
    %62 = vector.load %arg16[%c512, %c0_42] : memref<544x384xbf16, #tpu.memory_space<vmem>>, vector<16x128xbf16>
    tpu.vector_store %arg16[%c512, %c0_42], %14 {strides = array<i32>} : memref<544x384xbf16, #tpu.memory_space<vmem>>, vector<16x128xbf16>,
    %63 = vector.extract_strided_slice %13 {offsets = [240, 0], sizes = [16, 128], strides = [1, 1]} : vector<256x128xbf16> to vector<16x128xbf16>
    %c528 = arith.constant 528 : index
    %c0_43 = arith.constant 0 : index
    %64 = vector.load %arg16[%c528, %c0_43] : memref<544x384xbf16, #tpu.memory_space<vmem>>, vector<16x128xbf16>
    tpu.vector_store %arg16[%c528, %c0_43], %63 {strides = array<i32>} : memref<544x384xbf16, #tpu.memory_space<vmem>>, vector<16x128xbf16>,
    %c0_44 = arith.constant 0 : index
    %c128_45 = arith.constant 128 : index
    %65 = vector.load %arg16[%c0_44, %c128_45] : memref<544x384xbf16, #tpu.memory_space<vmem>>, vector<16x128xbf16>
    tpu.vector_store %arg16[%c0_44, %c128_45], %14 {strides = array<i32>} : memref<544x384xbf16, #tpu.memory_space<vmem>>, vector<16x128xbf16>,
    %66 = vector.extract_strided_slice %13 {offsets = [0, 0], sizes = [16, 128], strides = [1, 1]} : vector<256x128xbf16> to vector<16x128xbf16>
    %c16_46 = arith.constant 16 : index
    %c128_47 = arith.constant 128 : index
    %67 = vector.load %arg16[%c16_46, %c128_47] : memref<544x384xbf16, #tpu.memory_space<vmem>>, vector<16x128xbf16>
    tpu.vector_store %arg16[%c16_46, %c128_47], %66 {strides = array<i32>} : memref<544x384xbf16, #tpu.memory_space<vmem>>, vector<16x128xbf16>,
    %c32_48 = arith.constant 32 : index
    %c128_49 = arith.constant 128 : index
    %68 = vector.load %arg16[%c32_48, %c128_49] : memref<544x384xbf16, #tpu.memory_space<vmem>>, vector<16x128xbf16>
    tpu.vector_store %arg16[%c32_48, %c128_49], %14 {strides = array<i32>} : memref<544x384xbf16, #tpu.memory_space<vmem>>, vector<16x128xbf16>,
    %69 = vector.extract_strided_slice %13 {offsets = [16, 0], sizes = [16, 128], strides = [1, 1]} : vector<256x128xbf16> to vector<16x128xbf16>
    %c48_50 = arith.constant 48 : index
    %c128_51 = arith.constant 128 : index
    %70 = vector.load %arg16[%c48_50, %c128_51] : memref<544x384xbf16, #tpu.memory_space<vmem>>, vector<16x128xbf16>
    tpu.vector_store %arg16[%c48_50, %c128_51], %69 {strides = array<i32>} : memref<544x384xbf16, #tpu.memory_space<vmem>>, vector<16x128xbf16>,
    %c64_52 = arith.constant 64 : index
    %c128_53 = arith.constant 128 : index
    %71 = vector.load %arg16[%c64_52, %c128_53] : memref<544x384xbf16, #tpu.memory_space<vmem>>, vector<16x128xbf16>
    tpu.vector_store %arg16[%c64_52, %c128_53], %14 {strides = array<i32>} : memref<544x384xbf16, #tpu.memory_space<vmem>>, vector<16x128xbf16>,
    %72 = vector.extract_strided_slice %13 {offsets = [32, 0], sizes = [16, 128], strides = [1, 1]} : vector<256x128xbf16> to vector<16x128xbf16>
    %c80_54 = arith.constant 80 : index
    %c128_55 = arith.constant 128 : index
    %73 = vector.load %arg16[%c80_54, %c128_55] : memref<544x384xbf16, #tpu.memory_space<vmem>>, vector<16x128xbf16>
    tpu.vector_store %arg16[%c80_54, %c128_55], %72 {strides = array<i32>} : memref<544x384xbf16, #tpu.memory_space<vmem>>, vector<16x128xbf16>,
    %c96_56 = arith.constant 96 : index
    %c128_57 = arith.constant 128 : index
    %74 = vector.load %arg16[%c96_56, %c128_57] : memref<544x384xbf16, #tpu.memory_space<vmem>>, vector<16x128xbf16>
    tpu.vector_store %arg16[%c96_56, %c128_57], %14 {strides = array<i32>} : memref<544x384xbf16, #tpu.memory_space<vmem>>, vector<16x128xbf16>,
    %75 = vector.extract_strided_slice %13 {offsets = [48, 0], sizes = [16, 128], strides = [1, 1]} : vector<256x128xbf16> to vector<16x128xbf16>
    %c112_58 = arith.constant 112 : index
    %c128_59 = arith.constant 128 : index
    %76 = vector.load %arg16[%c112_58, %c128_59] : memref<544x384xbf16, #tpu.memory_space<vmem>>, vector<16x128xbf16>
    tpu.vector_store %arg16[%c112_58, %c128_59], %75 {strides = array<i32>} : memref<544x384xbf16, #tpu.memory_space<vmem>>, vector<16x128xbf16>,
    %c128_60 = arith.constant 128 : index
    %c128_61 = arith.constant 128 : index
    %77 = vector.load %arg16[%c128_60, %c128_61] : memref<544x384xbf16, #tpu.memory_space<vmem>>, vector<16x128xbf16>
    tpu.vector_store %arg16[%c128_60, %c128_61], %14 {strides = array<i32>} : memref<544x384xbf16, #tpu.memory_space<vmem>>, vector<16x128xbf16>,
    %78 = vector.extract_strided_slice %13 {offsets = [64, 0], sizes = [16, 128], strides = [1, 1]} : vector<256x128xbf16> to vector<16x128xbf16>
    %c144_62 = arith.constant 144 : index
    %c128_63 = arith.constant 128 : index
    %79 = vector.load %arg16[%c144_62, %c128_63] : memref<544x384xbf16, #tpu.memory_space<vmem>>, vector<16x128xbf16>
    tpu.vector_store %arg16[%c144_62, %c128_63], %78 {strides = array<i32>} : memref<544x384xbf16, #tpu.memory_space<vmem>>, vector<16x128xbf16>,
    %c160_64 = arith.constant 160 : index
    %c128_65 = arith.constant 128 : index
    %80 = vector.load %arg16[%c160_64, %c128_65] : memref<544x384xbf16, #tpu.memory_space<vmem>>, vector<16x128xbf16>
    tpu.vector_store %arg16[%c160_64, %c128_65], %14 {strides = array<i32>} : memref<544x384xbf16, #tpu.memory_space<vmem>>, vector<16x128xbf16>,
    %81 = vector.extract_strided_slice %13 {offsets = [80, 0], sizes = [16, 128], strides = [1, 1]} : vector<256x128xbf16> to vector<16x128xbf16>
    %c176_66 = arith.constant 176 : index
    %c128_67 = arith.constant 128 : index
    %82 = vector.load %arg16[%c176_66, %c128_67] : memref<544x384xbf16, #tpu.memory_space<vmem>>, vector<16x128xbf16>
    tpu.vector_store %arg16[%c176_66, %c128_67], %81 {strides = array<i32>} : memref<544x384xbf16, #tpu.memory_space<vmem>>, vector<16x128xbf16>,
    %c192_68 = arith.constant 192 : index
    %c128_69 = arith.constant 128 : index
    %83 = vector.load %arg16[%c192_68, %c128_69] : memref<544x384xbf16, #tpu.memory_space<vmem>>, vector<16x128xbf16>
    tpu.vector_store %arg16[%c192_68, %c128_69], %14 {strides = array<i32>} : memref<544x384xbf16, #tpu.memory_space<vmem>>, vector<16x128xbf16>,
    %84 = vector.extract_strided_slice %13 {offsets = [96, 0], sizes = [16, 128], strides = [1, 1]} : vector<256x128xbf16> to vector<16x128xbf16>
    %c208_70 = arith.constant 208 : index
    %c128_71 = arith.constant 128 : index
    %85 = vector.load %arg16[%c208_70, %c128_71] : memref<544x384xbf16, #tpu.memory_space<vmem>>, vector<16x128xbf16>
    tpu.vector_store %arg16[%c208_70, %c128_71], %84 {strides = array<i32>} : memref<544x384xbf16, #tpu.memory_space<vmem>>, vector<16x128xbf16>,
    %c224_72 = arith.constant 224 : index
    %c128_73 = arith.constant 128 : index
    %86 = vector.load %arg16[%c224_72, %c128_73] : memref<544x384xbf16, #tpu.memory_space<vmem>>, vector<16x128xbf16>
    tpu.vector_store %arg16[%c224_72, %c128_73], %14 {strides = array<i32>} : memref<544x384xbf16, #tpu.memory_space<vmem>>, vector<16x128xbf16>,
    %87 = vector.extract_strided_slice %13 {offsets = [112, 0], sizes = [16, 128], strides = [1, 1]} : vector<256x128xbf16> to vector<16x128xbf16>
    %c240_74 = arith.constant 240 : index
    %c128_75 = arith.constant 128 : index
    %88 = vector.load %arg16[%c240_74, %c128_75] : memref<544x384xbf16, #tpu.memory_space<vmem>>, vector<16x128xbf16>
    tpu.vector_store %arg16[%c240_74, %c128_75], %87 {strides = array<i32>} : memref<544x384xbf16, #tpu.memory_space<vmem>>, vector<16x128xbf16>,
    %c256_76 = arith.constant 256 : index
    %c128_77 = arith.constant 128 : index
    %89 = vector.load %arg16[%c256_76, %c128_77] : memref<544x384xbf16, #tpu.memory_space<vmem>>, vector<16x128xbf16>
    tpu.vector_store %arg16[%c256_76, %c128_77], %14 {strides = array<i32>} : memref<544x384xbf16, #tpu.memory_space<vmem>>, vector<16x128xbf16>,
    %90 = vector.extract_strided_slice %13 {offsets = [128, 0], sizes = [16, 128], strides = [1, 1]} : vector<256x128xbf16> to vector<16x128xbf16>
    %c272_78 = arith.constant 272 : index
    %c128_79 = arith.constant 128 : index
    %91 = vector.load %arg16[%c272_78, %c128_79] : memref<544x384xbf16, #tpu.memory_space<vmem>>, vector<16x128xbf16>
    tpu.vector_store %arg16[%c272_78, %c128_79], %90 {strides = array<i32>} : memref<544x384xbf16, #tpu.memory_space<vmem>>, vector<16x128xbf16>,
    %c288_80 = arith.constant 288 : index
    %c128_81 = arith.constant 128 : index
    %92 = vector.load %arg16[%c288_80, %c128_81] : memref<544x384xbf16, #tpu.memory_space<vmem>>, vector<16x128xbf16>
    tpu.vector_store %arg16[%c288_80, %c128_81], %14 {strides = array<i32>} : memref<544x384xbf16, #tpu.memory_space<vmem>>, vector<16x128xbf16>,
    %93 = vector.extract_strided_slice %13 {offsets = [144, 0], sizes = [16, 128], strides = [1, 1]} : vector<256x128xbf16> to vector<16x128xbf16>
    %c304_82 = arith.constant 304 : index
    %c128_83 = arith.constant 128 : index
    %94 = vector.load %arg16[%c304_82, %c128_83] : memref<544x384xbf16, #tpu.memory_space<vmem>>, vector<16x128xbf16>
    tpu.vector_store %arg16[%c304_82, %c128_83], %93 {strides = array<i32>} : memref<544x384xbf16, #tpu.memory_space<vmem>>, vector<16x128xbf16>,
    %c320_84 = arith.constant 320 : index
    %c128_85 = arith.constant 128 : index
    %95 = vector.load %arg16[%c320_84, %c128_85] : memref<544x384xbf16, #tpu.memory_space<vmem>>, vector<16x128xbf16>
    tpu.vector_store %arg16[%c320_84, %c128_85], %14 {strides = array<i32>} : memref<544x384xbf16, #tpu.memory_space<vmem>>, vector<16x128xbf16>,
    %96 = vector.extract_strided_slice %13 {offsets = [160, 0], sizes = [16, 128], strides = [1, 1]} : vector<256x128xbf16> to vector<16x128xbf16>
    %c336_86 = arith.constant 336 : index
    %c128_87 = arith.constant 128 : index
    %97 = vector.load %arg16[%c336_86, %c128_87] : memref<544x384xbf16, #tpu.memory_space<vmem>>, vector<16x128xbf16>
    tpu.vector_store %arg16[%c336_86, %c128_87], %96 {strides = array<i32>} : memref<544x384xbf16, #tpu.memory_space<vmem>>, vector<16x128xbf16>,
    %c352_88 = arith.constant 352 : index
    %c128_89 = arith.constant 128 : index
    %98 = vector.load %arg16[%c352_88, %c128_89] : memref<544x384xbf16, #tpu.memory_space<vmem>>, vector<16x128xbf16>
    tpu.vector_store %arg16[%c352_88, %c128_89], %14 {strides = array<i32>} : memref<544x384xbf16, #tpu.memory_space<vmem>>, vector<16x128xbf16>,
    %99 = vector.extract_strided_slice %13 {offsets = [176, 0], sizes = [16, 128], strides = [1, 1]} : vector<256x128xbf16> to vector<16x128xbf16>
    %c368_90 = arith.constant 368 : index
    %c128_91 = arith.constant 128 : index
    %100 = vector.load %arg16[%c368_90, %c128_91] : memref<544x384xbf16, #tpu.memory_space<vmem>>, vector<16x128xbf16>
    tpu.vector_store %arg16[%c368_90, %c128_91], %99 {strides = array<i32>} : memref<544x384xbf16, #tpu.memory_space<vmem>>, vector<16x128xbf16>,
    %c384_92 = arith.constant 384 : index
    %c128_93 = arith.constant 128 : index
    %101 = vector.load %arg16[%c384_92, %c128_93] : memref<544x384xbf16, #tpu.memory_space<vmem>>, vector<16x128xbf16>
    tpu.vector_store %arg16[%c384_92, %c128_93], %14 {strides = array<i32>} : memref<544x384xbf16, #tpu.memory_space<vmem>>, vector<16x128xbf16>,
    %102 = vector.extract_strided_slice %13 {offsets = [192, 0], sizes = [16, 128], strides = [1, 1]} : vector<256x128xbf16> to vector<16x128xbf16>
    %c400_94 = arith.constant 400 : index
    %c128_95 = arith.constant 128 : index
    %103 = vector.load %arg16[%c400_94, %c128_95] : memref<544x384xbf16, #tpu.memory_space<vmem>>, vector<16x128xbf16>
    tpu.vector_store %arg16[%c400_94, %c128_95], %102 {strides = array<i32>} : memref<544x384xbf16, #tpu.memory_space<vmem>>, vector<16x128xbf16>,
    %c416_96 = arith.constant 416 : index
    %c128_97 = arith.constant 128 : index
    %104 = vector.load %arg16[%c416_96, %c128_97] : memref<544x384xbf16, #tpu.memory_space<vmem>>, vector<16x128xbf16>
    tpu.vector_store %arg16[%c416_96, %c128_97], %14 {strides = array<i32>} : memref<544x384xbf16, #tpu.memory_space<vmem>>, vector<16x128xbf16>,
    %105 = vector.extract_strided_slice %13 {offsets = [208, 0], sizes = [16, 128], strides = [1, 1]} : vector<256x128xbf16> to vector<16x128xbf16>
    %c432_98 = arith.constant 432 : index
    %c128_99 = arith.constant 128 : index
    %106 = vector.load %arg16[%c432_98, %c128_99] : memref<544x384xbf16, #tpu.memory_space<vmem>>, vector<16x128xbf16>
    tpu.vector_store %arg16[%c432_98, %c128_99], %105 {strides = array<i32>} : memref<544x384xbf16, #tpu.memory_space<vmem>>, vector<16x128xbf16>,
    %c448_100 = arith.constant 448 : index
    %c128_101 = arith.constant 128 : index
    %107 = vector.load %arg16[%c448_100, %c128_101] : memref<544x384xbf16, #tpu.memory_space<vmem>>, vector<16x128xbf16>
    tpu.vector_store %arg16[%c448_100, %c128_101], %14 {strides = array<i32>} : memref<544x384xbf16, #tpu.memory_space<vmem>>, vector<16x128xbf16>,
    %108 = vector.extract_strided_slice %13 {offsets = [224, 0], sizes = [16, 128], strides = [1, 1]} : vector<256x128xbf16> to vector<16x128xbf16>
    %c464_102 = arith.constant 464 : index
    %c128_103 = arith.constant 128 : index
    %109 = vector.load %arg16[%c464_102, %c128_103] : memref<544x384xbf16, #tpu.memory_space<vmem>>, vector<16x128xbf16>
    tpu.vector_store %arg16[%c464_102, %c128_103], %108 {strides = array<i32>} : memref<544x384xbf16, #tpu.memory_space<vmem>>, vector<16x128xbf16>,
    %c480_104 = arith.constant 480 : index
    %c128_105 = arith.constant 128 : index
    %110 = vector.load %arg16[%c480_104, %c128_105] : memref<544x384xbf16, #tpu.memory_space<vmem>>, vector<16x128xbf16>
    tpu.vector_store %arg16[%c480_104, %c128_105], %14 {strides = array<i32>} : memref<544x384xbf16, #tpu.memory_space<vmem>>, vector<16x128xbf16>,
    %111 = vector.extract_strided_slice %13 {offsets = [240, 0], sizes = [16, 128], strides = [1, 1]} : vector<256x128xbf16> to vector<16x128xbf16>
    %c496_106 = arith.constant 496 : index
    %c128_107 = arith.constant 128 : index
    %112 = vector.load %arg16[%c496_106, %c128_107] : memref<544x384xbf16, #tpu.memory_space<vmem>>, vector<16x128xbf16>
    tpu.vector_store %arg16[%c496_106, %c128_107], %111 {strides = array<i32>} : memref<544x384xbf16, #tpu.memory_space<vmem>>, vector<16x128xbf16>,
    %c512_108 = arith.constant 512 : index
    %c128_109 = arith.constant 128 : index
    %113 = vector.load %arg16[%c512_108, %c128_109] : memref<544x384xbf16, #tpu.memory_space<vmem>>, vector<16x128xbf16>
    tpu.vector_store %arg16[%c512_108, %c128_109], %14 {strides = array<i32>} : memref<544x384xbf16, #tpu.memory_space<vmem>>, vector<16x128xbf16>,
    %c528_110 = arith.constant 528 : index
    %c128_111 = arith.constant 128 : index
    %114 = vector.load %arg16[%c528_110, %c128_111] : memref<544x384xbf16, #tpu.memory_space<vmem>>, vector<16x128xbf16>
    tpu.vector_store %arg16[%c528_110, %c128_111], %14 {strides = array<i32>} : memref<544x384xbf16, #tpu.memory_space<vmem>>, vector<16x128xbf16>,
    %c0_112 = arith.constant 0 : index
    %c256_113 = arith.constant 256 : index
    %115 = vector.load %arg16[%c0_112, %c256_113] : memref<544x384xbf16, #tpu.memory_space<vmem>>, vector<16x128xbf16>
    tpu.vector_store %arg16[%c0_112, %c256_113], %14 {strides = array<i32>} : memref<544x384xbf16, #tpu.memory_space<vmem>>, vector<16x128xbf16>,
    %116 = vector.extract_strided_slice %13 {offsets = [16, 0], sizes = [16, 128], strides = [1, 1]} : vector<256x128xbf16> to vector<16x128xbf16>
    %c16_114 = arith.constant 16 : index
    %c256_115 = arith.constant 256 : index
    %117 = vector.load %arg16[%c16_114, %c256_115] : memref<544x384xbf16, #tpu.memory_space<vmem>>, vector<16x128xbf16>
    tpu.vector_store %arg16[%c16_114, %c256_115], %116 {strides = array<i32>} : memref<544x384xbf16, #tpu.memory_space<vmem>>, vector<16x128xbf16>,
    %c32_116 = arith.constant 32 : index
    %c256_117 = arith.constant 256 : index
    %118 = vector.load %arg16[%c32_116, %c256_117] : memref<544x384xbf16, #tpu.memory_space<vmem>>, vector<16x128xbf16>
    tpu.vector_store %arg16[%c32_116, %c256_117], %14 {strides = array<i32>} : memref<544x384xbf16, #tpu.memory_space<vmem>>, vector<16x128xbf16>,
    %119 = vector.extract_strided_slice %13 {offsets = [32, 0], sizes = [16, 128], strides = [1, 1]} : vector<256x128xbf16> to vector<16x128xbf16>
    %c48_118 = arith.constant 48 : index
    %c256_119 = arith.constant 256 : index
    %120 = vector.load %arg16[%c48_118, %c256_119] : memref<544x384xbf16, #tpu.memory_space<vmem>>, vector<16x128xbf16>
    tpu.vector_store %arg16[%c48_118, %c256_119], %119 {strides = array<i32>} : memref<544x384xbf16, #tpu.memory_space<vmem>>, vector<16x128xbf16>,
    %c64_120 = arith.constant 64 : index
    %c256_121 = arith.constant 256 : index
    %121 = vector.load %arg16[%c64_120, %c256_121] : memref<544x384xbf16, #tpu.memory_space<vmem>>, vector<16x128xbf16>
    tpu.vector_store %arg16[%c64_120, %c256_121], %14 {strides = array<i32>} : memref<544x384xbf16, #tpu.memory_space<vmem>>, vector<16x128xbf16>,
    %122 = vector.extract_strided_slice %13 {offsets = [48, 0], sizes = [16, 128], strides = [1, 1]} : vector<256x128xbf16> to vector<16x128xbf16>
    %c80_122 = arith.constant 80 : index
    %c256_123 = arith.constant 256 : index
    %123 = vector.load %arg16[%c80_122, %c256_123] : memref<544x384xbf16, #tpu.memory_space<vmem>>, vector<16x128xbf16>
    tpu.vector_store %arg16[%c80_122, %c256_123], %122 {strides = array<i32>} : memref<544x384xbf16, #tpu.memory_space<vmem>>, vector<16x128xbf16>,
    %c96_124 = arith.constant 96 : index
    %c256_125 = arith.constant 256 : index
    %124 = vector.load %arg16[%c96_124, %c256_125] : memref<544x384xbf16, #tpu.memory_space<vmem>>, vector<16x128xbf16>
    tpu.vector_store %arg16[%c96_124, %c256_125], %14 {strides = array<i32>} : memref<544x384xbf16, #tpu.memory_space<vmem>>, vector<16x128xbf16>,
    %125 = vector.extract_strided_slice %13 {offsets = [64, 0], sizes = [16, 128], strides = [1, 1]} : vector<256x128xbf16> to vector<16x128xbf16>
    %c112_126 = arith.constant 112 : index
    %c256_127 = arith.constant 256 : index
    %126 = vector.load %arg16[%c112_126, %c256_127] : memref<544x384xbf16, #tpu.memory_space<vmem>>, vector<16x128xbf16>
    tpu.vector_store %arg16[%c112_126, %c256_127], %125 {strides = array<i32>} : memref<544x384xbf16, #tpu.memory_space<vmem>>, vector<16x128xbf16>,
    %c128_128 = arith.constant 128 : index
    %c256_129 = arith.constant 256 : index
    %127 = vector.load %arg16[%c128_128, %c256_129] : memref<544x384xbf16, #tpu.memory_space<vmem>>, vector<16x128xbf16>
    tpu.vector_store %arg16[%c128_128, %c256_129], %14 {strides = array<i32>} : memref<544x384xbf16, #tpu.memory_space<vmem>>, vector<16x128xbf16>,
    %128 = vector.extract_strided_slice %13 {offsets = [80, 0], sizes = [16, 128], strides = [1, 1]} : vector<256x128xbf16> to vector<16x128xbf16>
    %c144_130 = arith.constant 144 : index
    %c256_131 = arith.constant 256 : index
    %129 = vector.load %arg16[%c144_130, %c256_131] : memref<544x384xbf16, #tpu.memory_space<vmem>>, vector<16x128xbf16>
    tpu.vector_store %arg16[%c144_130, %c256_131], %128 {strides = array<i32>} : memref<544x384xbf16, #tpu.memory_space<vmem>>, vector<16x128xbf16>,
    %c160_132 = arith.constant 160 : index
    %c256_133 = arith.constant 256 : index
    %130 = vector.load %arg16[%c160_132, %c256_133] : memref<544x384xbf16, #tpu.memory_space<vmem>>, vector<16x128xbf16>
    tpu.vector_store %arg16[%c160_132, %c256_133], %14 {strides = array<i32>} : memref<544x384xbf16, #tpu.memory_space<vmem>>, vector<16x128xbf16>,
    %131 = vector.extract_strided_slice %13 {offsets = [96, 0], sizes = [16, 128], strides = [1, 1]} : vector<256x128xbf16> to vector<16x128xbf16>
    %c176_134 = arith.constant 176 : index
    %c256_135 = arith.constant 256 : index
    %132 = vector.load %arg16[%c176_134, %c256_135] : memref<544x384xbf16, #tpu.memory_space<vmem>>, vector<16x128xbf16>
    tpu.vector_store %arg16[%c176_134, %c256_135], %131 {strides = array<i32>} : memref<544x384xbf16, #tpu.memory_space<vmem>>, vector<16x128xbf16>,
    %c192_136 = arith.constant 192 : index
    %c256_137 = arith.constant 256 : index
    %133 = vector.load %arg16[%c192_136, %c256_137] : memref<544x384xbf16, #tpu.memory_space<vmem>>, vector<16x128xbf16>
    tpu.vector_store %arg16[%c192_136, %c256_137], %14 {strides = array<i32>} : memref<544x384xbf16, #tpu.memory_space<vmem>>, vector<16x128xbf16>,
    %134 = vector.extract_strided_slice %13 {offsets = [112, 0], sizes = [16, 128], strides = [1, 1]} : vector<256x128xbf16> to vector<16x128xbf16>
    %c208_138 = arith.constant 208 : index
    %c256_139 = arith.constant 256 : index
    %135 = vector.load %arg16[%c208_138, %c256_139] : memref<544x384xbf16, #tpu.memory_space<vmem>>, vector<16x128xbf16>
    tpu.vector_store %arg16[%c208_138, %c256_139], %134 {strides = array<i32>} : memref<544x384xbf16, #tpu.memory_space<vmem>>, vector<16x128xbf16>,
    %c224_140 = arith.constant 224 : index
    %c256_141 = arith.constant 256 : index
    %136 = vector.load %arg16[%c224_140, %c256_141] : memref<544x384xbf16, #tpu.memory_space<vmem>>, vector<16x128xbf16>
    tpu.vector_store %arg16[%c224_140, %c256_141], %14 {strides = array<i32>} : memref<544x384xbf16, #tpu.memory_space<vmem>>, vector<16x128xbf16>,
    %137 = vector.extract_strided_slice %13 {offsets = [128, 0], sizes = [16, 128], strides = [1, 1]} : vector<256x128xbf16> to vector<16x128xbf16>
    %c240_142 = arith.constant 240 : index
    %c256_143 = arith.constant 256 : index
    %138 = vector.load %arg16[%c240_142, %c256_143] : memref<544x384xbf16, #tpu.memory_space<vmem>>, vector<16x128xbf16>
    tpu.vector_store %arg16[%c240_142, %c256_143], %137 {strides = array<i32>} : memref<544x384xbf16, #tpu.memory_space<vmem>>, vector<16x128xbf16>,
    %c256_144 = arith.constant 256 : index
    %c256_145 = arith.constant 256 : index
    %139 = vector.load %arg16[%c256_144, %c256_145] : memref<544x384xbf16, #tpu.memory_space<vmem>>, vector<16x128xbf16>
    tpu.vector_store %arg16[%c256_144, %c256_145], %14 {strides = array<i32>} : memref<544x384xbf16, #tpu.memory_space<vmem>>, vector<16x128xbf16>,
    %140 = vector.extract_strided_slice %13 {offsets = [144, 0], sizes = [16, 128], strides = [1, 1]} : vector<256x128xbf16> to vector<16x128xbf16>
    %c272_146 = arith.constant 272 : index
    %c256_147 = arith.constant 256 : index
    %141 = vector.load %arg16[%c272_146, %c256_147] : memref<544x384xbf16, #tpu.memory_space<vmem>>, vector<16x128xbf16>
    tpu.vector_store %arg16[%c272_146, %c256_147], %140 {strides = array<i32>} : memref<544x384xbf16, #tpu.memory_space<vmem>>, vector<16x128xbf16>,
    %c288_148 = arith.constant 288 : index
    %c256_149 = arith.constant 256 : index
    %142 = vector.load %arg16[%c288_148, %c256_149] : memref<544x384xbf16, #tpu.memory_space<vmem>>, vector<16x128xbf16>
    tpu.vector_store %arg16[%c288_148, %c256_149], %14 {strides = array<i32>} : memref<544x384xbf16, #tpu.memory_space<vmem>>, vector<16x128xbf16>,
    %143 = vector.extract_strided_slice %13 {offsets = [160, 0], sizes = [16, 128], strides = [1, 1]} : vector<256x128xbf16> to vector<16x128xbf16>
    %c304_150 = arith.constant 304 : index
    %c256_151 = arith.constant 256 : index
    %144 = vector.load %arg16[%c304_150, %c256_151] : memref<544x384xbf16, #tpu.memory_space<vmem>>, vector<16x128xbf16>
    tpu.vector_store %arg16[%c304_150, %c256_151], %143 {strides = array<i32>} : memref<544x384xbf16, #tpu.memory_space<vmem>>, vector<16x128xbf16>,
    %c320_152 = arith.constant 320 : index
    %c256_153 = arith.constant 256 : index
    %145 = vector.load %arg16[%c320_152, %c256_153] : memref<544x384xbf16, #tpu.memory_space<vmem>>, vector<16x128xbf16>
    tpu.vector_store %arg16[%c320_152, %c256_153], %14 {strides = array<i32>} : memref<544x384xbf16, #tpu.memory_space<vmem>>, vector<16x128xbf16>,
    %146 = vector.extract_strided_slice %13 {offsets = [176, 0], sizes = [16, 128], strides = [1, 1]} : vector<256x128xbf16> to vector<16x128xbf16>
    %c336_154 = arith.constant 336 : index
    %c256_155 = arith.constant 256 : index
    %147 = vector.load %arg16[%c336_154, %c256_155] : memref<544x384xbf16, #tpu.memory_space<vmem>>, vector<16x128xbf16>
    tpu.vector_store %arg16[%c336_154, %c256_155], %146 {strides = array<i32>} : memref<544x384xbf16, #tpu.memory_space<vmem>>, vector<16x128xbf16>,
    %c352_156 = arith.constant 352 : index
    %c256_157 = arith.constant 256 : index
    %148 = vector.load %arg16[%c352_156, %c256_157] : memref<544x384xbf16, #tpu.memory_space<vmem>>, vector<16x128xbf16>
    tpu.vector_store %arg16[%c352_156, %c256_157], %14 {strides = array<i32>} : memref<544x384xbf16, #tpu.memory_space<vmem>>, vector<16x128xbf16>,
    %149 = vector.extract_strided_slice %13 {offsets = [192, 0], sizes = [16, 128], strides = [1, 1]} : vector<256x128xbf16> to vector<16x128xbf16>
    %c368_158 = arith.constant 368 : index
    %c256_159 = arith.constant 256 : index
    %150 = vector.load %arg16[%c368_158, %c256_159] : memref<544x384xbf16, #tpu.memory_space<vmem>>, vector<16x128xbf16>
    tpu.vector_store %arg16[%c368_158, %c256_159], %149 {strides = array<i32>} : memref<544x384xbf16, #tpu.memory_space<vmem>>, vector<16x128xbf16>,
    %c384_160 = arith.constant 384 : index
    %c256_161 = arith.constant 256 : index
    %151 = vector.load %arg16[%c384_160, %c256_161] : memref<544x384xbf16, #tpu.memory_space<vmem>>, vector<16x128xbf16>
    tpu.vector_store %arg16[%c384_160, %c256_161], %14 {strides = array<i32>} : memref<544x384xbf16, #tpu.memory_space<vmem>>, vector<16x128xbf16>,
    %152 = vector.extract_strided_slice %13 {offsets = [208, 0], sizes = [16, 128], strides = [1, 1]} : vector<256x128xbf16> to vector<16x128xbf16>
    %c400_162 = arith.constant 400 : index
    %c256_163 = arith.constant 256 : index
    %153 = vector.load %arg16[%c400_162, %c256_163] : memref<544x384xbf16, #tpu.memory_space<vmem>>, vector<16x128xbf16>
    tpu.vector_store %arg16[%c400_162, %c256_163], %152 {strides = array<i32>} : memref<544x384xbf16, #tpu.memory_space<vmem>>, vector<16x128xbf16>,
    %c416_164 = arith.constant 416 : index
    %c256_165 = arith.constant 256 : index
    %154 = vector.load %arg16[%c416_164, %c256_165] : memref<544x384xbf16, #tpu.memory_space<vmem>>, vector<16x128xbf16>
    tpu.vector_store %arg16[%c416_164, %c256_165], %14 {strides = array<i32>} : memref<544x384xbf16, #tpu.memory_space<vmem>>, vector<16x128xbf16>,
    %155 = vector.extract_strided_slice %13 {offsets = [224, 0], sizes = [16, 128], strides = [1, 1]} : vector<256x128xbf16> to vector<16x128xbf16>
    %c432_166 = arith.constant 432 : index
    %c256_167 = arith.constant 256 : index
    %156 = vector.load %arg16[%c432_166, %c256_167] : memref<544x384xbf16, #tpu.memory_space<vmem>>, vector<16x128xbf16>
    tpu.vector_store %arg16[%c432_166, %c256_167], %155 {strides = array<i32>} : memref<544x384xbf16, #tpu.memory_space<vmem>>, vector<16x128xbf16>,
    %c448_168 = arith.constant 448 : index
    %c256_169 = arith.constant 256 : index
    %157 = vector.load %arg16[%c448_168, %c256_169] : memref<544x384xbf16, #tpu.memory_space<vmem>>, vector<16x128xbf16>
    tpu.vector_store %arg16[%c448_168, %c256_169], %14 {strides = array<i32>} : memref<544x384xbf16, #tpu.memory_space<vmem>>, vector<16x128xbf16>,
    %158 = vector.extract_strided_slice %13 {offsets = [240, 0], sizes = [16, 128], strides = [1, 1]} : vector<256x128xbf16> to vector<16x128xbf16>
    %c464_170 = arith.constant 464 : index
    %c256_171 = arith.constant 256 : index
    %159 = vector.load %arg16[%c464_170, %c256_171] : memref<544x384xbf16, #tpu.memory_space<vmem>>, vector<16x128xbf16>
    tpu.vector_store %arg16[%c464_170, %c256_171], %158 {strides = array<i32>} : memref<544x384xbf16, #tpu.memory_space<vmem>>, vector<16x128xbf16>,
    %c480_172 = arith.constant 480 : index
    %c256_173 = arith.constant 256 : index
    %160 = vector.load %arg16[%c480_172, %c256_173] : memref<544x384xbf16, #tpu.memory_space<vmem>>, vector<16x128xbf16>
    tpu.vector_store %arg16[%c480_172, %c256_173], %14 {strides = array<i32>} : memref<544x384xbf16, #tpu.memory_space<vmem>>, vector<16x128xbf16>,
    %c496_174 = arith.constant 496 : index
    %c256_175 = arith.constant 256 : index
    %161 = vector.load %arg16[%c496_174, %c256_175] : memref<544x384xbf16, #tpu.memory_space<vmem>>, vector<16x128xbf16>
    tpu.vector_store %arg16[%c496_174, %c256_175], %14 {strides = array<i32>} : memref<544x384xbf16, #tpu.memory_space<vmem>>, vector<16x128xbf16>,
    %c512_176 = arith.constant 512 : index
    %c256_177 = arith.constant 256 : index
    %162 = vector.load %arg16[%c512_176, %c256_177] : memref<544x384xbf16, #tpu.memory_space<vmem>>, vector<16x128xbf16>
    tpu.vector_store %arg16[%c512_176, %c256_177], %14 {strides = array<i32>} : memref<544x384xbf16, #tpu.memory_space<vmem>>, vector<16x128xbf16>,
    %c528_178 = arith.constant 528 : index
    %c256_179 = arith.constant 256 : index
    %163 = vector.load %arg16[%c528_178, %c256_179] : memref<544x384xbf16, #tpu.memory_space<vmem>>, vector<16x128xbf16>
    tpu.vector_store %arg16[%c528_178, %c256_179], %14 {strides = array<i32>} : memref<544x384xbf16, #tpu.memory_space<vmem>>, vector<16x128xbf16>,
    %c15 = arith.constant 15 : index
    %c0_180 = arith.constant 0 : index
    %164 = vector.load %arg16[%c15, %c0_180] : memref<544x384xbf16, #tpu.memory_space<vmem>>, vector<512x384xbf16>
    %c0_181 = arith.constant 0 : index
    %c0_182 = arith.constant 0 : index
    %c0_183 = arith.constant 0 : index
    %165 = vector.load %arg5[%c0_181, %c0_182, %c0_183] : memref<3x384x128xbf16, #tpu.memory_space<vmem>>, vector<1x384x128xbf16>
    %166 = vector.shape_cast %165 : vector<1x384x128xbf16> to vector<384x128xbf16>
    %cst_184 = arith.constant dense<0.000000e+00> : vector<512x128xf32>
    %167 = tpu.matmul %164, %166, %cst_184 {dimension_numbers = #tpu.dot_dimension_numbers<[1], [0], [0], [1], [0, 0, 1, 1], [], []>} : vector<512x384xbf16>, vector<384x128xbf16>, vector<512x128xf32> -> vector<512x128xf32>
    %c0_185 = arith.constant 0 : index
    %c0_186 = arith.constant 0 : index
    %168 = vector.load %arg17[%c0_185, %c0_186] : memref<512x128xf32, #tpu.memory_space<vmem>>, vector<512x128xf32>
    tpu.vector_store %arg17[%c0_185, %c0_186], %167 {strides = array<i32>} : memref<512x128xf32, #tpu.memory_space<vmem>>, vector<512x128xf32>,
    %c16_187 = arith.constant 16 : index
    %c0_188 = arith.constant 0 : index
    %169 = vector.load %arg16[%c16_187, %c0_188] : memref<544x384xbf16, #tpu.memory_space<vmem>>, vector<512x384xbf16>
    %c1 = arith.constant 1 : index
    %c0_189 = arith.constant 0 : index
    %c0_190 = arith.constant 0 : index
    %170 = vector.load %arg5[%c1, %c0_189, %c0_190] : memref<3x384x128xbf16, #tpu.memory_space<vmem>>, vector<1x384x128xbf16>
    %171 = vector.shape_cast %170 : vector<1x384x128xbf16> to vector<384x128xbf16>
    %cst_191 = arith.constant dense<0.000000e+00> : vector<512x128xf32>
    %172 = tpu.matmul %169, %171, %cst_191 {dimension_numbers = #tpu.dot_dimension_numbers<[1], [0], [0], [1], [0, 0, 1, 1], [], []>} : vector<512x384xbf16>, vector<384x128xbf16>, vector<512x128xf32> -> vector<512x128xf32>
    %c0_192 = arith.constant 0 : index
    %c0_193 = arith.constant 0 : index
    %173 = vector.load %arg17[%c0_192, %c0_193] : memref<512x128xf32, #tpu.memory_space<vmem>>, vector<512x128xf32>
    %174 = arith.addf %173, %172 : vector<512x128xf32>
    %c0_194 = arith.constant 0 : index
    %c0_195 = arith.constant 0 : index
    %175 = vector.load %arg17[%c0_194, %c0_195] : memref<512x128xf32, #tpu.memory_space<vmem>>, vector<512x128xf32>
    tpu.vector_store %arg17[%c0_194, %c0_195], %174 {strides = array<i32>} : memref<512x128xf32, #tpu.memory_space<vmem>>, vector<512x128xf32>,
    %c17 = arith.constant 17 : index
    %c0_196 = arith.constant 0 : index
    %176 = vector.load %arg16[%c17, %c0_196] : memref<544x384xbf16, #tpu.memory_space<vmem>>, vector<512x384xbf16>
    %c2 = arith.constant 2 : index
    %c0_197 = arith.constant 0 : index
    %c0_198 = arith.constant 0 : index
    %177 = vector.load %arg5[%c2, %c0_197, %c0_198] : memref<3x384x128xbf16, #tpu.memory_space<vmem>>, vector<1x384x128xbf16>
    %178 = vector.shape_cast %177 : vector<1x384x128xbf16> to vector<384x128xbf16>
    %cst_199 = arith.constant dense<0.000000e+00> : vector<512x128xf32>
    %179 = tpu.matmul %176, %178, %cst_199 {dimension_numbers = #tpu.dot_dimension_numbers<[1], [0], [0], [1], [0, 0, 1, 1], [], []>} : vector<512x384xbf16>, vector<384x128xbf16>, vector<512x128xf32> -> vector<512x128xf32>
    %c0_200 = arith.constant 0 : index
    %c0_201 = arith.constant 0 : index
    %180 = vector.load %arg17[%c0_200, %c0_201] : memref<512x128xf32, #tpu.memory_space<vmem>>, vector<512x128xf32>
    %181 = arith.addf %180, %179 : vector<512x128xf32>
    %c0_202 = arith.constant 0 : index
    %c0_203 = arith.constant 0 : index
    %182 = vector.load %arg17[%c0_202, %c0_203] : memref<512x128xf32, #tpu.memory_space<vmem>>, vector<512x128xf32>
    tpu.vector_store %arg17[%c0_202, %c0_203], %181 {strides = array<i32>} : memref<512x128xf32, #tpu.memory_space<vmem>>, vector<512x128xf32>,
    %c0_204 = arith.constant 0 : index
    %c0_205 = arith.constant 0 : index
    %183 = vector.load %arg17[%c0_204, %c0_205] : memref<512x128xf32, #tpu.memory_space<vmem>>, vector<16x128xf32>
    %c0_206 = arith.constant 0 : index
    %c0_207 = arith.constant 0 : index
    %184 = vector.load %arg6[%c0_206, %c0_207] : memref<1x128xf32, #tpu.memory_space<vmem>>, vector<1x128xf32>
    %185 = vector.broadcast %184 : vector<1x128xf32> to vector<16x128xf32>
    %186 = arith.mulf %183, %185 : vector<16x128xf32>
    %c0_208 = arith.constant 0 : index
    %c0_209 = arith.constant 0 : index
    %187 = vector.load %arg7[%c0_208, %c0_209] : memref<1x128xf32, #tpu.memory_space<vmem>>, vector<1x128xf32>
    %188 = vector.broadcast %187 : vector<1x128xf32> to vector<16x128xf32>
    %189 = arith.addf %186, %188 : vector<16x128xf32>
    %cst_210 = arith.constant 0.000000e+00 : f32
    %190 = vector.broadcast %cst_210 : f32 to vector<16x128xf32>
    %191 = arith.maximumf %189, %190 : vector<16x128xf32>
    %192 = arith.truncf %191 : vector<16x128xf32> to vector<16x128xbf16>
    %c0_211 = arith.constant 0 : index
    %c0_212 = arith.constant 0 : index
    %193 = vector.load %arg18[%c0_211, %c0_212] : memref<256x128xbf16, #tpu.memory_space<vmem>>, vector<16x128xbf16>
    tpu.vector_store %arg18[%c0_211, %c0_212], %192 {strides = array<i32>} : memref<256x128xbf16, #tpu.memory_space<vmem>>, vector<16x128xbf16>,
    %c32_213 = arith.constant 32 : index
    %c0_214 = arith.constant 0 : index
    %194 = vector.load %arg17[%c32_213, %c0_214] : memref<512x128xf32, #tpu.memory_space<vmem>>, vector<16x128xf32>
    %c0_215 = arith.constant 0 : index
    %c0_216 = arith.constant 0 : index
    %195 = vector.load %arg6[%c0_215, %c0_216] : memref<1x128xf32, #tpu.memory_space<vmem>>, vector<1x128xf32>
    %196 = vector.broadcast %195 : vector<1x128xf32> to vector<16x128xf32>
    %197 = arith.mulf %194, %196 : vector<16x128xf32>
    %c0_217 = arith.constant 0 : index
    %c0_218 = arith.constant 0 : index
    %198 = vector.load %arg7[%c0_217, %c0_218] : memref<1x128xf32, #tpu.memory_space<vmem>>, vector<1x128xf32>
    %199 = vector.broadcast %198 : vector<1x128xf32> to vector<16x128xf32>
    %200 = arith.addf %197, %199 : vector<16x128xf32>
    %cst_219 = arith.constant 0.000000e+00 : f32
    %201 = vector.broadcast %cst_219 : f32 to vector<16x128xf32>
    %202 = arith.maximumf %200, %201 : vector<16x128xf32>
    %203 = arith.truncf %202 : vector<16x128xf32> to vector<16x128xbf16>
    %c16_220 = arith.constant 16 : index
    %c0_221 = arith.constant 0 : index
    %204 = vector.load %arg18[%c16_220, %c0_221] : memref<256x128xbf16, #tpu.memory_space<vmem>>, vector<16x128xbf16>
    tpu.vector_store %arg18[%c16_220, %c0_221], %203 {strides = array<i32>} : memref<256x128xbf16, #tpu.memory_space<vmem>>, vector<16x128xbf16>,
    %c64_222 = arith.constant 64 : index
    %c0_223 = arith.constant 0 : index
    %205 = vector.load %arg17[%c64_222, %c0_223] : memref<512x128xf32, #tpu.memory_space<vmem>>, vector<16x128xf32>
    %c0_224 = arith.constant 0 : index
    %c0_225 = arith.constant 0 : index
    %206 = vector.load %arg6[%c0_224, %c0_225] : memref<1x128xf32, #tpu.memory_space<vmem>>, vector<1x128xf32>
    %207 = vector.broadcast %206 : vector<1x128xf32> to vector<16x128xf32>
    %208 = arith.mulf %205, %207 : vector<16x128xf32>
    %c0_226 = arith.constant 0 : index
    %c0_227 = arith.constant 0 : index
    %209 = vector.load %arg7[%c0_226, %c0_227] : memref<1x128xf32, #tpu.memory_space<vmem>>, vector<1x128xf32>
    %210 = vector.broadcast %209 : vector<1x128xf32> to vector<16x128xf32>
    %211 = arith.addf %208, %210 : vector<16x128xf32>
    %cst_228 = arith.constant 0.000000e+00 : f32
    %212 = vector.broadcast %cst_228 : f32 to vector<16x128xf32>
    %213 = arith.maximumf %211, %212 : vector<16x128xf32>
    %214 = arith.truncf %213 : vector<16x128xf32> to vector<16x128xbf16>
    %c32_229 = arith.constant 32 : index
    %c0_230 = arith.constant 0 : index
    %215 = vector.load %arg18[%c32_229, %c0_230] : memref<256x128xbf16, #tpu.memory_space<vmem>>, vector<16x128xbf16>
    tpu.vector_store %arg18[%c32_229, %c0_230], %214 {strides = array<i32>} : memref<256x128xbf16, #tpu.memory_space<vmem>>, vector<16x128xbf16>,
    %c96_231 = arith.constant 96 : index
    %c0_232 = arith.constant 0 : index
    %216 = vector.load %arg17[%c96_231, %c0_232] : memref<512x128xf32, #tpu.memory_space<vmem>>, vector<16x128xf32>
    %c0_233 = arith.constant 0 : index
    %c0_234 = arith.constant 0 : index
    %217 = vector.load %arg6[%c0_233, %c0_234] : memref<1x128xf32, #tpu.memory_space<vmem>>, vector<1x128xf32>
    %218 = vector.broadcast %217 : vector<1x128xf32> to vector<16x128xf32>
    %219 = arith.mulf %216, %218 : vector<16x128xf32>
    %c0_235 = arith.constant 0 : index
    %c0_236 = arith.constant 0 : index
    %220 = vector.load %arg7[%c0_235, %c0_236] : memref<1x128xf32, #tpu.memory_space<vmem>>, vector<1x128xf32>
    %221 = vector.broadcast %220 : vector<1x128xf32> to vector<16x128xf32>
    %222 = arith.addf %219, %221 : vector<16x128xf32>
    %cst_237 = arith.constant 0.000000e+00 : f32
    %223 = vector.broadcast %cst_237 : f32 to vector<16x128xf32>
    %224 = arith.maximumf %222, %223 : vector<16x128xf32>
    %225 = arith.truncf %224 : vector<16x128xf32> to vector<16x128xbf16>
    %c48_238 = arith.constant 48 : index
    %c0_239 = arith.constant 0 : index
    %226 = vector.load %arg18[%c48_238, %c0_239] : memref<256x128xbf16, #tpu.memory_space<vmem>>, vector<16x128xbf16>
    tpu.vector_store %arg18[%c48_238, %c0_239], %225 {strides = array<i32>} : memref<256x128xbf16, #tpu.memory_space<vmem>>, vector<16x128xbf16>,
    %c128_240 = arith.constant 128 : index
    %c0_241 = arith.constant 0 : index
    %227 = vector.load %arg17[%c128_240, %c0_241] : memref<512x128xf32, #tpu.memory_space<vmem>>, vector<16x128xf32>
    %c0_242 = arith.constant 0 : index
    %c0_243 = arith.constant 0 : index
    %228 = vector.load %arg6[%c0_242, %c0_243] : memref<1x128xf32, #tpu.memory_space<vmem>>, vector<1x128xf32>
    %229 = vector.broadcast %228 : vector<1x128xf32> to vector<16x128xf32>
    %230 = arith.mulf %227, %229 : vector<16x128xf32>
    %c0_244 = arith.constant 0 : index
    %c0_245 = arith.constant 0 : index
    %231 = vector.load %arg7[%c0_244, %c0_245] : memref<1x128xf32, #tpu.memory_space<vmem>>, vector<1x128xf32>
    %232 = vector.broadcast %231 : vector<1x128xf32> to vector<16x128xf32>
    %233 = arith.addf %230, %232 : vector<16x128xf32>
    %cst_246 = arith.constant 0.000000e+00 : f32
    %234 = vector.broadcast %cst_246 : f32 to vector<16x128xf32>
    %235 = arith.maximumf %233, %234 : vector<16x128xf32>
    %236 = arith.truncf %235 : vector<16x128xf32> to vector<16x128xbf16>
    %c64_247 = arith.constant 64 : index
    %c0_248 = arith.constant 0 : index
    %237 = vector.load %arg18[%c64_247, %c0_248] : memref<256x128xbf16, #tpu.memory_space<vmem>>, vector<16x128xbf16>
    tpu.vector_store %arg18[%c64_247, %c0_248], %236 {strides = array<i32>} : memref<256x128xbf16, #tpu.memory_space<vmem>>, vector<16x128xbf16>,
    %c160_249 = arith.constant 160 : index
    %c0_250 = arith.constant 0 : index
    %238 = vector.load %arg17[%c160_249, %c0_250] : memref<512x128xf32, #tpu.memory_space<vmem>>, vector<16x128xf32>
    %c0_251 = arith.constant 0 : index
    %c0_252 = arith.constant 0 : index
    %239 = vector.load %arg6[%c0_251, %c0_252] : memref<1x128xf32, #tpu.memory_space<vmem>>, vector<1x128xf32>
    %240 = vector.broadcast %239 : vector<1x128xf32> to vector<16x128xf32>
    %241 = arith.mulf %238, %240 : vector<16x128xf32>
    %c0_253 = arith.constant 0 : index
    %c0_254 = arith.constant 0 : index
    %242 = vector.load %arg7[%c0_253, %c0_254] : memref<1x128xf32, #tpu.memory_space<vmem>>, vector<1x128xf32>
    %243 = vector.broadcast %242 : vector<1x128xf32> to vector<16x128xf32>
    %244 = arith.addf %241, %243 : vector<16x128xf32>
    %cst_255 = arith.constant 0.000000e+00 : f32
    %245 = vector.broadcast %cst_255 : f32 to vector<16x128xf32>
    %246 = arith.maximumf %244, %245 : vector<16x128xf32>
    %247 = arith.truncf %246 : vector<16x128xf32> to vector<16x128xbf16>
    %c80_256 = arith.constant 80 : index
    %c0_257 = arith.constant 0 : index
    %248 = vector.load %arg18[%c80_256, %c0_257] : memref<256x128xbf16, #tpu.memory_space<vmem>>, vector<16x128xbf16>
    tpu.vector_store %arg18[%c80_256, %c0_257], %247 {strides = array<i32>} : memref<256x128xbf16, #tpu.memory_space<vmem>>, vector<16x128xbf16>,
    %c192_258 = arith.constant 192 : index
    %c0_259 = arith.constant 0 : index
    %249 = vector.load %arg17[%c192_258, %c0_259] : memref<512x128xf32, #tpu.memory_space<vmem>>, vector<16x128xf32>
    %c0_260 = arith.constant 0 : index
    %c0_261 = arith.constant 0 : index
    %250 = vector.load %arg6[%c0_260, %c0_261] : memref<1x128xf32, #tpu.memory_space<vmem>>, vector<1x128xf32>
    %251 = vector.broadcast %250 : vector<1x128xf32> to vector<16x128xf32>
    %252 = arith.mulf %249, %251 : vector<16x128xf32>
    %c0_262 = arith.constant 0 : index
    %c0_263 = arith.constant 0 : index
    %253 = vector.load %arg7[%c0_262, %c0_263] : memref<1x128xf32, #tpu.memory_space<vmem>>, vector<1x128xf32>
    %254 = vector.broadcast %253 : vector<1x128xf32> to vector<16x128xf32>
    %255 = arith.addf %252, %254 : vector<16x128xf32>
    %cst_264 = arith.constant 0.000000e+00 : f32
    %256 = vector.broadcast %cst_264 : f32 to vector<16x128xf32>
    %257 = arith.maximumf %255, %256 : vector<16x128xf32>
    %258 = arith.truncf %257 : vector<16x128xf32> to vector<16x128xbf16>
    %c96_265 = arith.constant 96 : index
    %c0_266 = arith.constant 0 : index
    %259 = vector.load %arg18[%c96_265, %c0_266] : memref<256x128xbf16, #tpu.memory_space<vmem>>, vector<16x128xbf16>
    tpu.vector_store %arg18[%c96_265, %c0_266], %258 {strides = array<i32>} : memref<256x128xbf16, #tpu.memory_space<vmem>>, vector<16x128xbf16>,
    %c224_267 = arith.constant 224 : index
    %c0_268 = arith.constant 0 : index
    %260 = vector.load %arg17[%c224_267, %c0_268] : memref<512x128xf32, #tpu.memory_space<vmem>>, vector<16x128xf32>
    %c0_269 = arith.constant 0 : index
    %c0_270 = arith.constant 0 : index
    %261 = vector.load %arg6[%c0_269, %c0_270] : memref<1x128xf32, #tpu.memory_space<vmem>>, vector<1x128xf32>
    %262 = vector.broadcast %261 : vector<1x128xf32> to vector<16x128xf32>
    %263 = arith.mulf %260, %262 : vector<16x128xf32>
    %c0_271 = arith.constant 0 : index
    %c0_272 = arith.constant 0 : index
    %264 = vector.load %arg7[%c0_271, %c0_272] : memref<1x128xf32, #tpu.memory_space<vmem>>, vector<1x128xf32>
    %265 = vector.broadcast %264 : vector<1x128xf32> to vector<16x128xf32>
    %266 = arith.addf %263, %265 : vector<16x128xf32>
    %cst_273 = arith.constant 0.000000e+00 : f32
    %267 = vector.broadcast %cst_273 : f32 to vector<16x128xf32>
    %268 = arith.maximumf %266, %267 : vector<16x128xf32>
    %269 = arith.truncf %268 : vector<16x128xf32> to vector<16x128xbf16>
    %c112_274 = arith.constant 112 : index
    %c0_275 = arith.constant 0 : index
    %270 = vector.load %arg18[%c112_274, %c0_275] : memref<256x128xbf16, #tpu.memory_space<vmem>>, vector<16x128xbf16>
    tpu.vector_store %arg18[%c112_274, %c0_275], %269 {strides = array<i32>} : memref<256x128xbf16, #tpu.memory_space<vmem>>, vector<16x128xbf16>,
    %c256_276 = arith.constant 256 : index
    %c0_277 = arith.constant 0 : index
    %271 = vector.load %arg17[%c256_276, %c0_277] : memref<512x128xf32, #tpu.memory_space<vmem>>, vector<16x128xf32>
    %c0_278 = arith.constant 0 : index
    %c0_279 = arith.constant 0 : index
    %272 = vector.load %arg6[%c0_278, %c0_279] : memref<1x128xf32, #tpu.memory_space<vmem>>, vector<1x128xf32>
    %273 = vector.broadcast %272 : vector<1x128xf32> to vector<16x128xf32>
    %274 = arith.mulf %271, %273 : vector<16x128xf32>
    %c0_280 = arith.constant 0 : index
    %c0_281 = arith.constant 0 : index
    %275 = vector.load %arg7[%c0_280, %c0_281] : memref<1x128xf32, #tpu.memory_space<vmem>>, vector<1x128xf32>
    %276 = vector.broadcast %275 : vector<1x128xf32> to vector<16x128xf32>
    %277 = arith.addf %274, %276 : vector<16x128xf32>
    %cst_282 = arith.constant 0.000000e+00 : f32
    %278 = vector.broadcast %cst_282 : f32 to vector<16x128xf32>
    %279 = arith.maximumf %277, %278 : vector<16x128xf32>
    %280 = arith.truncf %279 : vector<16x128xf32> to vector<16x128xbf16>
    %c128_283 = arith.constant 128 : index
    %c0_284 = arith.constant 0 : index
    %281 = vector.load %arg18[%c128_283, %c0_284] : memref<256x128xbf16, #tpu.memory_space<vmem>>, vector<16x128xbf16>
    tpu.vector_store %arg18[%c128_283, %c0_284], %280 {strides = array<i32>} : memref<256x128xbf16, #tpu.memory_space<vmem>>, vector<16x128xbf16>,
    %c288_285 = arith.constant 288 : index
    %c0_286 = arith.constant 0 : index
    %282 = vector.load %arg17[%c288_285, %c0_286] : memref<512x128xf32, #tpu.memory_space<vmem>>, vector<16x128xf32>
    %c0_287 = arith.constant 0 : index
    %c0_288 = arith.constant 0 : index
    %283 = vector.load %arg6[%c0_287, %c0_288] : memref<1x128xf32, #tpu.memory_space<vmem>>, vector<1x128xf32>
    %284 = vector.broadcast %283 : vector<1x128xf32> to vector<16x128xf32>
    %285 = arith.mulf %282, %284 : vector<16x128xf32>
    %c0_289 = arith.constant 0 : index
    %c0_290 = arith.constant 0 : index
    %286 = vector.load %arg7[%c0_289, %c0_290] : memref<1x128xf32, #tpu.memory_space<vmem>>, vector<1x128xf32>
    %287 = vector.broadcast %286 : vector<1x128xf32> to vector<16x128xf32>
    %288 = arith.addf %285, %287 : vector<16x128xf32>
    %cst_291 = arith.constant 0.000000e+00 : f32
    %289 = vector.broadcast %cst_291 : f32 to vector<16x128xf32>
    %290 = arith.maximumf %288, %289 : vector<16x128xf32>
    %291 = arith.truncf %290 : vector<16x128xf32> to vector<16x128xbf16>
    %c144_292 = arith.constant 144 : index
    %c0_293 = arith.constant 0 : index
    %292 = vector.load %arg18[%c144_292, %c0_293] : memref<256x128xbf16, #tpu.memory_space<vmem>>, vector<16x128xbf16>
    tpu.vector_store %arg18[%c144_292, %c0_293], %291 {strides = array<i32>} : memref<256x128xbf16, #tpu.memory_space<vmem>>, vector<16x128xbf16>,
    %c320_294 = arith.constant 320 : index
    %c0_295 = arith.constant 0 : index
    %293 = vector.load %arg17[%c320_294, %c0_295] : memref<512x128xf32, #tpu.memory_space<vmem>>, vector<16x128xf32>
    %c0_296 = arith.constant 0 : index
    %c0_297 = arith.constant 0 : index
    %294 = vector.load %arg6[%c0_296, %c0_297] : memref<1x128xf32, #tpu.memory_space<vmem>>, vector<1x128xf32>
    %295 = vector.broadcast %294 : vector<1x128xf32> to vector<16x128xf32>
    %296 = arith.mulf %293, %295 : vector<16x128xf32>
    %c0_298 = arith.constant 0 : index
    %c0_299 = arith.constant 0 : index
    %297 = vector.load %arg7[%c0_298, %c0_299] : memref<1x128xf32, #tpu.memory_space<vmem>>, vector<1x128xf32>
    %298 = vector.broadcast %297 : vector<1x128xf32> to vector<16x128xf32>
    %299 = arith.addf %296, %298 : vector<16x128xf32>
    %cst_300 = arith.constant 0.000000e+00 : f32
    %300 = vector.broadcast %cst_300 : f32 to vector<16x128xf32>
    %301 = arith.maximumf %299, %300 : vector<16x128xf32>
    %302 = arith.truncf %301 : vector<16x128xf32> to vector<16x128xbf16>
    %c160_301 = arith.constant 160 : index
    %c0_302 = arith.constant 0 : index
    %303 = vector.load %arg18[%c160_301, %c0_302] : memref<256x128xbf16, #tpu.memory_space<vmem>>, vector<16x128xbf16>
    tpu.vector_store %arg18[%c160_301, %c0_302], %302 {strides = array<i32>} : memref<256x128xbf16, #tpu.memory_space<vmem>>, vector<16x128xbf16>,
    %c352_303 = arith.constant 352 : index
    %c0_304 = arith.constant 0 : index
    %304 = vector.load %arg17[%c352_303, %c0_304] : memref<512x128xf32, #tpu.memory_space<vmem>>, vector<16x128xf32>
    %c0_305 = arith.constant 0 : index
    %c0_306 = arith.constant 0 : index
    %305 = vector.load %arg6[%c0_305, %c0_306] : memref<1x128xf32, #tpu.memory_space<vmem>>, vector<1x128xf32>
    %306 = vector.broadcast %305 : vector<1x128xf32> to vector<16x128xf32>
    %307 = arith.mulf %304, %306 : vector<16x128xf32>
    %c0_307 = arith.constant 0 : index
    %c0_308 = arith.constant 0 : index
    %308 = vector.load %arg7[%c0_307, %c0_308] : memref<1x128xf32, #tpu.memory_space<vmem>>, vector<1x128xf32>
    %309 = vector.broadcast %308 : vector<1x128xf32> to vector<16x128xf32>
    %310 = arith.addf %307, %309 : vector<16x128xf32>
    %cst_309 = arith.constant 0.000000e+00 : f32
    %311 = vector.broadcast %cst_309 : f32 to vector<16x128xf32>
    %312 = arith.maximumf %310, %311 : vector<16x128xf32>
    %313 = arith.truncf %312 : vector<16x128xf32> to vector<16x128xbf16>
    %c176_310 = arith.constant 176 : index
    %c0_311 = arith.constant 0 : index
    %314 = vector.load %arg18[%c176_310, %c0_311] : memref<256x128xbf16, #tpu.memory_space<vmem>>, vector<16x128xbf16>
    tpu.vector_store %arg18[%c176_310, %c0_311], %313 {strides = array<i32>} : memref<256x128xbf16, #tpu.memory_space<vmem>>, vector<16x128xbf16>,
    %c384_312 = arith.constant 384 : index
    %c0_313 = arith.constant 0 : index
    %315 = vector.load %arg17[%c384_312, %c0_313] : memref<512x128xf32, #tpu.memory_space<vmem>>, vector<16x128xf32>
    %c0_314 = arith.constant 0 : index
    %c0_315 = arith.constant 0 : index
    %316 = vector.load %arg6[%c0_314, %c0_315] : memref<1x128xf32, #tpu.memory_space<vmem>>, vector<1x128xf32>
    %317 = vector.broadcast %316 : vector<1x128xf32> to vector<16x128xf32>
    %318 = arith.mulf %315, %317 : vector<16x128xf32>
    %c0_316 = arith.constant 0 : index
    %c0_317 = arith.constant 0 : index
    %319 = vector.load %arg7[%c0_316, %c0_317] : memref<1x128xf32, #tpu.memory_space<vmem>>, vector<1x128xf32>
    %320 = vector.broadcast %319 : vector<1x128xf32> to vector<16x128xf32>
    %321 = arith.addf %318, %320 : vector<16x128xf32>
    %cst_318 = arith.constant 0.000000e+00 : f32
    %322 = vector.broadcast %cst_318 : f32 to vector<16x128xf32>
    %323 = arith.maximumf %321, %322 : vector<16x128xf32>
    %324 = arith.truncf %323 : vector<16x128xf32> to vector<16x128xbf16>
    %c192_319 = arith.constant 192 : index
    %c0_320 = arith.constant 0 : index
    %325 = vector.load %arg18[%c192_319, %c0_320] : memref<256x128xbf16, #tpu.memory_space<vmem>>, vector<16x128xbf16>
    tpu.vector_store %arg18[%c192_319, %c0_320], %324 {strides = array<i32>} : memref<256x128xbf16, #tpu.memory_space<vmem>>, vector<16x128xbf16>,
    %c416_321 = arith.constant 416 : index
    %c0_322 = arith.constant 0 : index
    %326 = vector.load %arg17[%c416_321, %c0_322] : memref<512x128xf32, #tpu.memory_space<vmem>>, vector<16x128xf32>
    %c0_323 = arith.constant 0 : index
    %c0_324 = arith.constant 0 : index
    %327 = vector.load %arg6[%c0_323, %c0_324] : memref<1x128xf32, #tpu.memory_space<vmem>>, vector<1x128xf32>
    %328 = vector.broadcast %327 : vector<1x128xf32> to vector<16x128xf32>
    %329 = arith.mulf %326, %328 : vector<16x128xf32>
    %c0_325 = arith.constant 0 : index
    %c0_326 = arith.constant 0 : index
    %330 = vector.load %arg7[%c0_325, %c0_326] : memref<1x128xf32, #tpu.memory_space<vmem>>, vector<1x128xf32>
    %331 = vector.broadcast %330 : vector<1x128xf32> to vector<16x128xf32>
    %332 = arith.addf %329, %331 : vector<16x128xf32>
    %cst_327 = arith.constant 0.000000e+00 : f32
    %333 = vector.broadcast %cst_327 : f32 to vector<16x128xf32>
    %334 = arith.maximumf %332, %333 : vector<16x128xf32>
    %335 = arith.truncf %334 : vector<16x128xf32> to vector<16x128xbf16>
    %c208_328 = arith.constant 208 : index
    %c0_329 = arith.constant 0 : index
    %336 = vector.load %arg18[%c208_328, %c0_329] : memref<256x128xbf16, #tpu.memory_space<vmem>>, vector<16x128xbf16>
    tpu.vector_store %arg18[%c208_328, %c0_329], %335 {strides = array<i32>} : memref<256x128xbf16, #tpu.memory_space<vmem>>, vector<16x128xbf16>,
    %c448_330 = arith.constant 448 : index
    %c0_331 = arith.constant 0 : index
    %337 = vector.load %arg17[%c448_330, %c0_331] : memref<512x128xf32, #tpu.memory_space<vmem>>, vector<16x128xf32>
    %c0_332 = arith.constant 0 : index
    %c0_333 = arith.constant 0 : index
    %338 = vector.load %arg6[%c0_332, %c0_333] : memref<1x128xf32, #tpu.memory_space<vmem>>, vector<1x128xf32>
    %339 = vector.broadcast %338 : vector<1x128xf32> to vector<16x128xf32>
    %340 = arith.mulf %337, %339 : vector<16x128xf32>
    %c0_334 = arith.constant 0 : index
    %c0_335 = arith.constant 0 : index
    %341 = vector.load %arg7[%c0_334, %c0_335] : memref<1x128xf32, #tpu.memory_space<vmem>>, vector<1x128xf32>
    %342 = vector.broadcast %341 : vector<1x128xf32> to vector<16x128xf32>
    %343 = arith.addf %340, %342 : vector<16x128xf32>
    %cst_336 = arith.constant 0.000000e+00 : f32
    %344 = vector.broadcast %cst_336 : f32 to vector<16x128xf32>
    %345 = arith.maximumf %343, %344 : vector<16x128xf32>
    %346 = arith.truncf %345 : vector<16x128xf32> to vector<16x128xbf16>
    %c224_337 = arith.constant 224 : index
    %c0_338 = arith.constant 0 : index
    %347 = vector.load %arg18[%c224_337, %c0_338] : memref<256x128xbf16, #tpu.memory_space<vmem>>, vector<16x128xbf16>
    tpu.vector_store %arg18[%c224_337, %c0_338], %346 {strides = array<i32>} : memref<256x128xbf16, #tpu.memory_space<vmem>>, vector<16x128xbf16>,
    %c480_339 = arith.constant 480 : index
    %c0_340 = arith.constant 0 : index
    %348 = vector.load %arg17[%c480_339, %c0_340] : memref<512x128xf32, #tpu.memory_space<vmem>>, vector<16x128xf32>
    %c0_341 = arith.constant 0 : index
    %c0_342 = arith.constant 0 : index
    %349 = vector.load %arg6[%c0_341, %c0_342] : memref<1x128xf32, #tpu.memory_space<vmem>>, vector<1x128xf32>
    %350 = vector.broadcast %349 : vector<1x128xf32> to vector<16x128xf32>
    %351 = arith.mulf %348, %350 : vector<16x128xf32>
    %c0_343 = arith.constant 0 : index
    %c0_344 = arith.constant 0 : index
    %352 = vector.load %arg7[%c0_343, %c0_344] : memref<1x128xf32, #tpu.memory_space<vmem>>, vector<1x128xf32>
    %353 = vector.broadcast %352 : vector<1x128xf32> to vector<16x128xf32>
    %354 = arith.addf %351, %353 : vector<16x128xf32>
    %cst_345 = arith.constant 0.000000e+00 : f32
    %355 = vector.broadcast %cst_345 : f32 to vector<16x128xf32>
    %356 = arith.maximumf %354, %355 : vector<16x128xf32>
    %357 = arith.truncf %356 : vector<16x128xf32> to vector<16x128xbf16>
    %c240_346 = arith.constant 240 : index
    %c0_347 = arith.constant 0 : index
    %358 = vector.load %arg18[%c240_346, %c0_347] : memref<256x128xbf16, #tpu.memory_space<vmem>>, vector<16x128xbf16>
    tpu.vector_store %arg18[%c240_346, %c0_347], %357 {strides = array<i32>} : memref<256x128xbf16, #tpu.memory_space<vmem>>, vector<16x128xbf16>,
    %c0_348 = arith.constant 0 : index
    %c0_349 = arith.constant 0 : index
    %359 = vector.load %arg18[%c0_348, %c0_349] : memref<256x128xbf16, #tpu.memory_space<vmem>>, vector<256x128xbf16>
    %360 = arith.extf %359 : vector<256x128xbf16> to vector<256x128xf32>
    %cst_350 = arith.constant dense<0.000000e+00> : vector<128xf32>
    %361 = vector.multi_reduction <add>, %360, %cst_350 [0] : vector<256x128xf32> to vector<128xf32>
    %362 = vector.shape_cast %361 : vector<128xf32> to vector<1x128xf32>
    %cst_351 = arith.constant 3.906250e-03 : f32
    %363 = vector.broadcast %cst_351 : f32 to vector<1x128xf32>
    %364 = arith.mulf %362, %363 : vector<1x128xf32>
    %c0_352 = arith.constant 0 : index
    %c0_353 = arith.constant 0 : index
    %365 = vector.load %arg8[%c0_352, %c0_353] : memref<128x512xbf16, #tpu.memory_space<vmem>>, vector<128x512xbf16>
    %366 = arith.extf %365 : vector<128x512xbf16> to vector<128x512xf32>
    %cst_354 = arith.constant dense<0.000000e+00> : vector<1x512xf32>
    %367 = tpu.matmul %364, %366, %cst_354 {dimension_numbers = #tpu.dot_dimension_numbers<[1], [0], [0], [1], [0, 0, 1, 1], [], []>} : vector<1x128xf32>, vector<128x512xf32>, vector<1x512xf32> -> vector<1x512xf32>
    %c0_355 = arith.constant 0 : index
    %c0_356 = arith.constant 0 : index
    %368 = vector.load %arg9[%c0_355, %c0_356] : memref<1x512xf32, #tpu.memory_space<vmem>>, vector<1x512xf32>
    %369 = arith.mulf %367, %368 : vector<1x512xf32>
    %c0_357 = arith.constant 0 : index
    %c0_358 = arith.constant 0 : index
    %370 = vector.load %arg10[%c0_357, %c0_358] : memref<1x512xf32, #tpu.memory_space<vmem>>, vector<1x512xf32>
    %371 = arith.addf %369, %370 : vector<1x512xf32>
    %c0_359 = arith.constant 0 : index
    %c0_360 = arith.constant 0 : index
    %372 = vector.load %arg11[%c0_359, %c0_360] : memref<512x32xf32, #tpu.memory_space<vmem>>, vector<512x32xf32>
    %cst_361 = arith.constant dense<0.000000e+00> : vector<1x32xf32>
    %373 = tpu.matmul %371, %372, %cst_361 {dimension_numbers = #tpu.dot_dimension_numbers<[1], [0], [0], [1], [0, 0, 1, 1], [], []>} : vector<1x512xf32>, vector<512x32xf32>, vector<1x32xf32> -> vector<1x32xf32>
    %c0_362 = arith.constant 0 : index
    %c0_363 = arith.constant 0 : index
    %374 = vector.load %arg12[%c0_362, %c0_363] : memref<1x32xf32, #tpu.memory_space<vmem>>, vector<1x32xf32>
    %375 = arith.addf %373, %374 : vector<1x32xf32>
    %cst_364 = arith.constant 0.000000e+00 : f32
    %376 = vector.broadcast %cst_364 : f32 to vector<1x32xf32>
    %377 = arith.maximumf %375, %376 : vector<1x32xf32>
    %c0_365 = arith.constant 0 : index
    %c0_366 = arith.constant 0 : index
    %378 = vector.load %arg13[%c0_365, %c0_366] : memref<32x512xf32, #tpu.memory_space<vmem>>, vector<32x512xf32>
    %cst_367 = arith.constant dense<0.000000e+00> : vector<1x512xf32>
    %379 = tpu.matmul %377, %378, %cst_367 {dimension_numbers = #tpu.dot_dimension_numbers<[1], [0], [0], [1], [0, 0, 1, 1], [], []>} : vector<1x32xf32>, vector<32x512xf32>, vector<1x512xf32> -> vector<1x512xf32>
    %c0_368 = arith.constant 0 : index
    %c0_369 = arith.constant 0 : index
    %380 = vector.load %arg14[%c0_368, %c0_369] : memref<1x512xf32, #tpu.memory_space<vmem>>, vector<1x512xf32>
    %381 = arith.addf %379, %380 : vector<1x512xf32>
    %cst_370 = arith.constant 3.000000e+00 : f32
    %382 = vector.broadcast %cst_370 : f32 to vector<1x512xf32>
    %383 = arith.addf %381, %382 : vector<1x512xf32>
    %cst_371 = arith.constant 6.000000e+00 : f32
    %384 = vector.broadcast %cst_371 : f32 to vector<1x512xf32>
    %385 = arith.divf %383, %384 : vector<1x512xf32>
    %cst_372 = arith.constant 0.000000e+00 : f32
    %cst_373 = arith.constant 1.000000e+00 : f32
    %386 = vector.broadcast %cst_372 : f32 to vector<1x512xf32>
    %387 = arith.maximumf %386, %385 : vector<1x512xf32>
    %388 = vector.broadcast %cst_373 : f32 to vector<1x512xf32>
    %389 = arith.minimumf %388, %387 : vector<1x512xf32>
    %c0_374 = arith.constant 0 : index
    %c0_375 = arith.constant 0 : index
    %390 = vector.load %arg18[%c0_374, %c0_375] : memref<256x128xbf16, #tpu.memory_space<vmem>>, vector<256x128xbf16>
    %c0_376 = arith.constant 0 : index
    %c0_377 = arith.constant 0 : index
    %391 = vector.load %arg8[%c0_376, %c0_377] : memref<128x512xbf16, #tpu.memory_space<vmem>>, vector<128x128xbf16>
    %cst_378 = arith.constant dense<0.000000e+00> : vector<256x128xf32>
    %392 = tpu.matmul %390, %391, %cst_378 {dimension_numbers = #tpu.dot_dimension_numbers<[1], [0], [0], [1], [0, 0, 1, 1], [], []>} : vector<256x128xbf16>, vector<128x128xbf16>, vector<256x128xf32> -> vector<256x128xf32>
    %c0_379 = arith.constant 0 : index
    %c0_380 = arith.constant 0 : index
    %393 = vector.load %arg9[%c0_379, %c0_380] : memref<1x512xf32, #tpu.memory_space<vmem>>, vector<1x128xf32>
    %394 = vector.broadcast %393 : vector<1x128xf32> to vector<256x128xf32>
    %395 = arith.mulf %392, %394 : vector<256x128xf32>
    %c0_381 = arith.constant 0 : index
    %c0_382 = arith.constant 0 : index
    %396 = vector.load %arg10[%c0_381, %c0_382] : memref<1x512xf32, #tpu.memory_space<vmem>>, vector<1x128xf32>
    %397 = vector.broadcast %396 : vector<1x128xf32> to vector<256x128xf32>
    %398 = arith.addf %395, %397 : vector<256x128xf32>
    %399 = vector.extract_strided_slice %389 {offsets = [0, 0], sizes = [1, 128], strides = [1, 1]} : vector<1x512xf32> to vector<1x128xf32>
    %400 = vector.broadcast %399 : vector<1x128xf32> to vector<256x128xf32>
    %401 = arith.mulf %398, %400 : vector<256x128xf32>
    %402 = tpu.transpose %401, [1, 0] : vector<256x128xf32> -> vector<128x256xf32>
    %c0_383 = arith.constant 0 : index
    %c0_384 = arith.constant 0 : index
    %403 = vector.load %arg1[%c0_383, %c0_384] : memref<512x256xf32, #tpu.memory_space<vmem>>, vector<128x256xf32>
    %404 = arith.addf %402, %403 : vector<128x256xf32>
    %cst_385 = arith.constant 0.000000e+00 : f32
    %405 = vector.broadcast %cst_385 : f32 to vector<128x256xf32>
    %406 = arith.maximumf %404, %405 : vector<128x256xf32>
    %c0_386 = arith.constant 0 : index
    %c0_387 = arith.constant 0 : index
    %407 = vector.load %arg15[%c0_386, %c0_387] : memref<512x256xf32, #tpu.memory_space<vmem>>, vector<128x256xf32>
    tpu.vector_store %arg15[%c0_386, %c0_387], %406 {strides = array<i32>} : memref<512x256xf32, #tpu.memory_space<vmem>>, vector<128x256xf32>,
    %c0_388 = arith.constant 0 : index
    %c0_389 = arith.constant 0 : index
    %408 = vector.load %arg18[%c0_388, %c0_389] : memref<256x128xbf16, #tpu.memory_space<vmem>>, vector<256x128xbf16>
    %c0_390 = arith.constant 0 : index
    %c128_391 = arith.constant 128 : index
    %409 = vector.load %arg8[%c0_390, %c128_391] : memref<128x512xbf16, #tpu.memory_space<vmem>>, vector<128x128xbf16>
    %cst_392 = arith.constant dense<0.000000e+00> : vector<256x128xf32>
    %410 = tpu.matmul %408, %409, %cst_392 {dimension_numbers = #tpu.dot_dimension_numbers<[1], [0], [0], [1], [0, 0, 1, 1], [], []>} : vector<256x128xbf16>, vector<128x128xbf16>, vector<256x128xf32> -> vector<256x128xf32>
    %c0_393 = arith.constant 0 : index
    %c128_394 = arith.constant 128 : index
    %411 = vector.load %arg9[%c0_393, %c128_394] : memref<1x512xf32, #tpu.memory_space<vmem>>, vector<1x128xf32>
    %412 = vector.broadcast %411 : vector<1x128xf32> to vector<256x128xf32>
    %413 = arith.mulf %410, %412 : vector<256x128xf32>
    %c0_395 = arith.constant 0 : index
    %c128_396 = arith.constant 128 : index
    %414 = vector.load %arg10[%c0_395, %c128_396] : memref<1x512xf32, #tpu.memory_space<vmem>>, vector<1x128xf32>
    %415 = vector.broadcast %414 : vector<1x128xf32> to vector<256x128xf32>
    %416 = arith.addf %413, %415 : vector<256x128xf32>
    %417 = vector.extract_strided_slice %389 {offsets = [0, 128], sizes = [1, 128], strides = [1, 1]} : vector<1x512xf32> to vector<1x128xf32>
    %418 = vector.broadcast %417 : vector<1x128xf32> to vector<256x128xf32>
    %419 = arith.mulf %416, %418 : vector<256x128xf32>
    %420 = tpu.transpose %419, [1, 0] : vector<256x128xf32> -> vector<128x256xf32>
    %c128_397 = arith.constant 128 : index
    %c0_398 = arith.constant 0 : index
    %421 = vector.load %arg1[%c128_397, %c0_398] : memref<512x256xf32, #tpu.memory_space<vmem>>, vector<128x256xf32>
    %422 = arith.addf %420, %421 : vector<128x256xf32>
    %cst_399 = arith.constant 0.000000e+00 : f32
    %423 = vector.broadcast %cst_399 : f32 to vector<128x256xf32>
    %424 = arith.maximumf %422, %423 : vector<128x256xf32>
    %c128_400 = arith.constant 128 : index
    %c0_401 = arith.constant 0 : index
    %425 = vector.load %arg15[%c128_400, %c0_401] : memref<512x256xf32, #tpu.memory_space<vmem>>, vector<128x256xf32>
    tpu.vector_store %arg15[%c128_400, %c0_401], %424 {strides = array<i32>} : memref<512x256xf32, #tpu.memory_space<vmem>>, vector<128x256xf32>,
    %c0_402 = arith.constant 0 : index
    %c0_403 = arith.constant 0 : index
    %426 = vector.load %arg18[%c0_402, %c0_403] : memref<256x128xbf16, #tpu.memory_space<vmem>>, vector<256x128xbf16>
    %c0_404 = arith.constant 0 : index
    %c256_405 = arith.constant 256 : index
    %427 = vector.load %arg8[%c0_404, %c256_405] : memref<128x512xbf16, #tpu.memory_space<vmem>>, vector<128x128xbf16>
    %cst_406 = arith.constant dense<0.000000e+00> : vector<256x128xf32>
    %428 = tpu.matmul %426, %427, %cst_406 {dimension_numbers = #tpu.dot_dimension_numbers<[1], [0], [0], [1], [0, 0, 1, 1], [], []>} : vector<256x128xbf16>, vector<128x128xbf16>, vector<256x128xf32> -> vector<256x128xf32>
    %c0_407 = arith.constant 0 : index
    %c256_408 = arith.constant 256 : index
    %429 = vector.load %arg9[%c0_407, %c256_408] : memref<1x512xf32, #tpu.memory_space<vmem>>, vector<1x128xf32>
    %430 = vector.broadcast %429 : vector<1x128xf32> to vector<256x128xf32>
    %431 = arith.mulf %428, %430 : vector<256x128xf32>
    %c0_409 = arith.constant 0 : index
    %c256_410 = arith.constant 256 : index
    %432 = vector.load %arg10[%c0_409, %c256_410] : memref<1x512xf32, #tpu.memory_space<vmem>>, vector<1x128xf32>
    %433 = vector.broadcast %432 : vector<1x128xf32> to vector<256x128xf32>
    %434 = arith.addf %431, %433 : vector<256x128xf32>
    %435 = vector.extract_strided_slice %389 {offsets = [0, 256], sizes = [1, 128], strides = [1, 1]} : vector<1x512xf32> to vector<1x128xf32>
    %436 = vector.broadcast %435 : vector<1x128xf32> to vector<256x128xf32>
    %437 = arith.mulf %434, %436 : vector<256x128xf32>
    %438 = tpu.transpose %437, [1, 0] : vector<256x128xf32> -> vector<128x256xf32>
    %c256_411 = arith.constant 256 : index
    %c0_412 = arith.constant 0 : index
    %439 = vector.load %arg1[%c256_411, %c0_412] : memref<512x256xf32, #tpu.memory_space<vmem>>, vector<128x256xf32>
    %440 = arith.addf %438, %439 : vector<128x256xf32>
    %cst_413 = arith.constant 0.000000e+00 : f32
    %441 = vector.broadcast %cst_413 : f32 to vector<128x256xf32>
    %442 = arith.maximumf %440, %441 : vector<128x256xf32>
    %c256_414 = arith.constant 256 : index
    %c0_415 = arith.constant 0 : index
    %443 = vector.load %arg15[%c256_414, %c0_415] : memref<512x256xf32, #tpu.memory_space<vmem>>, vector<128x256xf32>
    tpu.vector_store %arg15[%c256_414, %c0_415], %442 {strides = array<i32>} : memref<512x256xf32, #tpu.memory_space<vmem>>, vector<128x256xf32>,
    %c0_416 = arith.constant 0 : index
    %c0_417 = arith.constant 0 : index
    %444 = vector.load %arg18[%c0_416, %c0_417] : memref<256x128xbf16, #tpu.memory_space<vmem>>, vector<256x128xbf16>
    %c0_418 = arith.constant 0 : index
    %c384_419 = arith.constant 384 : index
    %445 = vector.load %arg8[%c0_418, %c384_419] : memref<128x512xbf16, #tpu.memory_space<vmem>>, vector<128x128xbf16>
    %cst_420 = arith.constant dense<0.000000e+00> : vector<256x128xf32>
    %446 = tpu.matmul %444, %445, %cst_420 {dimension_numbers = #tpu.dot_dimension_numbers<[1], [0], [0], [1], [0, 0, 1, 1], [], []>} : vector<256x128xbf16>, vector<128x128xbf16>, vector<256x128xf32> -> vector<256x128xf32>
    %c0_421 = arith.constant 0 : index
    %c384_422 = arith.constant 384 : index
    %447 = vector.load %arg9[%c0_421, %c384_422] : memref<1x512xf32, #tpu.memory_space<vmem>>, vector<1x128xf32>
    %448 = vector.broadcast %447 : vector<1x128xf32> to vector<256x128xf32>
    %449 = arith.mulf %446, %448 : vector<256x128xf32>
    %c0_423 = arith.constant 0 : index
    %c384_424 = arith.constant 384 : index
    %450 = vector.load %arg10[%c0_423, %c384_424] : memref<1x512xf32, #tpu.memory_space<vmem>>, vector<1x128xf32>
    %451 = vector.broadcast %450 : vector<1x128xf32> to vector<256x128xf32>
    %452 = arith.addf %449, %451 : vector<256x128xf32>
    %453 = vector.extract_strided_slice %389 {offsets = [0, 384], sizes = [1, 128], strides = [1, 1]} : vector<1x512xf32> to vector<1x128xf32>
    %454 = vector.broadcast %453 : vector<1x128xf32> to vector<256x128xf32>
    %455 = arith.mulf %452, %454 : vector<256x128xf32>
    %456 = tpu.transpose %455, [1, 0] : vector<256x128xf32> -> vector<128x256xf32>
    %c384_425 = arith.constant 384 : index
    %c0_426 = arith.constant 0 : index
    %457 = vector.load %arg1[%c384_425, %c0_426] : memref<512x256xf32, #tpu.memory_space<vmem>>, vector<128x256xf32>
    %458 = arith.addf %456, %457 : vector<128x256xf32>
    %cst_427 = arith.constant 0.000000e+00 : f32
    %459 = vector.broadcast %cst_427 : f32 to vector<128x256xf32>
    %460 = arith.maximumf %458, %459 : vector<128x256xf32>
    %c384_428 = arith.constant 384 : index
    %c0_429 = arith.constant 0 : index
    %461 = vector.load %arg15[%c384_428, %c0_429] : memref<512x256xf32, #tpu.memory_space<vmem>>, vector<128x256xf32>
    tpu.vector_store %arg15[%c384_428, %c0_429], %460 {strides = array<i32>} : memref<512x256xf32, #tpu.memory_space<vmem>>, vector<128x256xf32>,
    return
  }
  func.func @transform_0(%arg0: i32) -> (i32, i32) {
    %c0_i32 = arith.constant 0 : i32
    %c0_i32_0 = arith.constant 0 : i32
    return %arg0, %c0_i32 : i32, i32
  }
  func.func @transform_1(%arg0: i32) -> (i32, i32) {
    %c0_i32 = arith.constant 0 : i32
    %c0_i32_0 = arith.constant 0 : i32
    %c0_i32_1 = arith.constant 0 : i32
    return %c0_i32, %c0_i32_0 : i32, i32
  }
  func.func @transform_2(%arg0: i32) -> (i32, i32) {
    %c0_i32 = arith.constant 0 : i32
    %c0_i32_0 = arith.constant 0 : i32
    %c0_i32_1 = arith.constant 0 : i32
    return %c0_i32, %c0_i32_0 : i32, i32
  }
  func.func @transform_3(%arg0: i32) -> (i32, i32) {
    %c0_i32 = arith.constant 0 : i32
    %c0_i32_0 = arith.constant 0 : i32
    %c0_i32_1 = arith.constant 0 : i32
    return %c0_i32, %c0_i32_0 : i32, i32
  }
  func.func @transform_4(%arg0: i32) -> (i32, i32, i32) {
    %c0_i32 = arith.constant 0 : i32
    %c0_i32_0 = arith.constant 0 : i32
    %c0_i32_1 = arith.constant 0 : i32
    %c0_i32_2 = arith.constant 0 : i32
    return %c0_i32, %c0_i32_0, %c0_i32_1 : i32, i32, i32
  }
  func.func @transform_5(%arg0: i32) -> (i32, i32) {
    %c0_i32 = arith.constant 0 : i32
    %c0_i32_0 = arith.constant 0 : i32
    %c0_i32_1 = arith.constant 0 : i32
    return %c0_i32, %c0_i32_0 : i32, i32
  }
  func.func @transform_6(%arg0: i32) -> (i32, i32) {
    %c0_i32 = arith.constant 0 : i32
    %c0_i32_0 = arith.constant 0 : i32
    %c0_i32_1 = arith.constant 0 : i32
    return %c0_i32, %c0_i32_0 : i32, i32
  }
  func.func @transform_7(%arg0: i32) -> (i32, i32) {
    %c0_i32 = arith.constant 0 : i32
    %c0_i32_0 = arith.constant 0 : i32
    %c0_i32_1 = arith.constant 0 : i32
    return %c0_i32, %c0_i32_0 : i32, i32
  }
  func.func @transform_8(%arg0: i32) -> (i32, i32) {
    %c0_i32 = arith.constant 0 : i32
    %c0_i32_0 = arith.constant 0 : i32
    %c0_i32_1 = arith.constant 0 : i32
    return %c0_i32, %c0_i32_0 : i32, i32
  }
  func.func @transform_9(%arg0: i32) -> (i32, i32) {
    %c0_i32 = arith.constant 0 : i32
    %c0_i32_0 = arith.constant 0 : i32
    %c0_i32_1 = arith.constant 0 : i32
    return %c0_i32, %c0_i32_0 : i32, i32
  }
  func.func @transform_10(%arg0: i32) -> (i32, i32) {
    %c0_i32 = arith.constant 0 : i32
    %c0_i32_0 = arith.constant 0 : i32
    %c0_i32_1 = arith.constant 0 : i32
    return %c0_i32, %c0_i32_0 : i32, i32
  }
  func.func @transform_11(%arg0: i32) -> (i32, i32) {
    %c0_i32 = arith.constant 0 : i32
    %c0_i32_0 = arith.constant 0 : i32
    %c0_i32_1 = arith.constant 0 : i32
    return %c0_i32, %c0_i32_0 : i32, i32
  }
  func.func @transform_12(%arg0: i32) -> (i32, i32) {
    %c0_i32 = arith.constant 0 : i32
    %c0_i32_0 = arith.constant 0 : i32
    %c0_i32_1 = arith.constant 0 : i32
    return %c0_i32, %c0_i32_0 : i32, i32
  }
  func.func @transform_13(%arg0: i32) -> (i32, i32) {
    %c0_i32 = arith.constant 0 : i32
    %c0_i32_0 = arith.constant 0 : i32
    %c0_i32_1 = arith.constant 0 : i32
    return %c0_i32, %c0_i32_0 : i32, i32
  }
  func.func @transform_14(%arg0: i32) -> (i32, i32) {
    %c0_i32 = arith.constant 0 : i32
    %c0_i32_0 = arith.constant 0 : i32
    return %arg0, %c0_i32 : i32, i32
  }
}

</mosaic_0001>

<llo_original>
// kernel: _lambda_.1
$region0: #{_lambda_.1}
  #allocation0 [shape = 'u32[]', space=smem, size = 0x4, offset = 0x4, fixed_abs, tag = 'smem constant byte address 0x4 - core index']
  #allocation1 [shape = 'u32[144,128]{1,0:T(1,128)}', space=vmem, size = 0x12000, scoped, tag = 'internal scratch']
  #allocation2 [shape = 'bf16[544,384]{1,0:T(16,128)(2,1)}', space=vmem, size = 0x66000, scoped, tag = 'scratch operand']
  #allocation3 [shape = 'f32[512,128]{1,0:T(8,128)}', space=vmem, size = 0x40000, scoped, tag = 'scratch operand']
  #allocation4 [shape = 'bf16[256,128]{1,0:T(16,128)(2,1)}', space=vmem, size = 0x10000, scoped, tag = 'scratch operand']
  %s0 = inlined_call_operand.vmem [shape: f32[1024,256], index: 0, kind: input, shape index: {}]
  %s1 = inlined_call_operand.vmem [shape: bf16[128,512], index: 1, kind: input, shape index: {}]
  %s2 = inlined_call_operand.vmem [shape: f32[128,1], index: 2, kind: input, shape index: {}]
  %s3 = inlined_call_operand.vmem [shape: f32[128,1], index: 3, kind: input, shape index: {}]
  %s4 = inlined_call_operand.vmem [shape: bf16[3,384,128], index: 4, kind: input, shape index: {}]
  %s5 = inlined_call_operand.vmem [shape: f32[1,128], index: 5, kind: input, shape index: {}]
  %s6 = inlined_call_operand.vmem [shape: f32[1,128], index: 6, kind: input, shape index: {}]
  %s7 = inlined_call_operand.vmem [shape: bf16[128,512], index: 7, kind: input, shape index: {}]
  %s8 = inlined_call_operand.vmem [shape: f32[1,512], index: 8, kind: input, shape index: {}]
  %s9 = inlined_call_operand.vmem [shape: f32[1,512], index: 9, kind: input, shape index: {}]
  %s10 = inlined_call_operand.vmem [shape: f32[512,32], index: 10, kind: input, shape index: {}]
  %s11 = inlined_call_operand.vmem [shape: f32[1,32], index: 11, kind: input, shape index: {}]
  %s12 = inlined_call_operand.vmem [shape: f32[32,512], index: 12, kind: input, shape index: {}]
  %s13 = inlined_call_operand.vmem [shape: f32[1,512], index: 13, kind: input, shape index: {}]
  %s14 = inlined_call_operand.vmem [shape: f32[1024,256], index: 14, kind: output, shape index: {}]
  %s15 = sld [smem:[#allocation0]]
  $region89: #{_lambda_.1} parent=0
    _
  %s17 = ssub.s32 1, %s15
  %s18 = scalar_select 0, %s17, %s15
  loop: start=0, step=1, limit=4
  $region2: #{_lambda_.1} parent=0 // loop_pre_header
    _
  $region3: #{_lambda_.1} parent=0 // loop_header
    %s20 = sphi 0, %s24
    %p21 = scmp.ge.s32.totalorder %s20, 4
    %s30 = sphi 0, %s32
    %s33 = sphi 0, %s30
    %s34 = sphi 0, %s33
    %s50 = sphi 0, %s34
    %s54 = sphi 0, %s54
    %s56 = sphi 0, %s54
    %s57 = sphi 0, %s56
    %s71 = sphi 0, %s57
    %s75 = sphi 0, %s75
    %s77 = sphi 0, %s75
    %s78 = sphi 0, %s77
    %s92 = sphi 0, %s78
    %s96 = sphi 0, %s96
    %s98 = sphi 0, %s96
    %s99 = sphi 0, %s98
    %s113 = sphi 0, %s99
    %s117 = sphi 0, %s117
    %s119 = sphi 0, %s117
    %s120 = sphi 0, %s119
    %s134 = sphi 0, %s120
    %s138 = sphi 0, %s138
    %s140 = sphi 0, %s138
    %s141 = sphi 0, %s140
    %s155 = sphi 0, %s141
    %s159 = sphi 0, %s159
    %s161 = sphi 0, %s159
    %s162 = sphi 0, %s161
    %s176 = sphi 0, %s162
    %s180 = sphi 0, %s180
    %s182 = sphi 0, %s180
    %s183 = sphi 0, %s182
    %s197 = sphi 0, %s183
    %s201 = sphi 0, %s201
    %s203 = sphi 0, %s201
    %s204 = sphi 0, %s203
    %s218 = sphi 0, %s204
    %s222 = sphi 0, %s222
    %s224 = sphi 0, %s222
    %s225 = sphi 0, %s224
    %s239 = sphi 0, %s225
    %s243 = sphi 0, %s243
    %s245 = sphi 0, %s243
    %s246 = sphi 0, %s245
    %s260 = sphi 0, %s246
    %s264 = sphi 0, %s264
    %s266 = sphi 0, %s264
    %s267 = sphi 0, %s266
    %s281 = sphi 0, %s267
    %s285 = sphi 0, %s285
    %s287 = sphi 0, %s285
    %s288 = sphi 0, %s287
    %s302 = sphi 0, %s288
    %s306 = sphi 0, %s306
    %s308 = sphi 0, %s306
    %s309 = sphi 0, %s308
    %s323 = sphi 0, %s309
    %s329 = sphi 0, %s331
    %s332 = sphi 0, %s329
    %s333 = sphi 0, %s332
    %s349 = sphi 0, %s333
  $region4: #{_lambda_.1} parent=0 // loop_header_branch
    %23 = sbr.rel (%p21) target = $region8
  $region5: #{_lambda_.1} parent=0 // loop_body
    %s25 = ssub.s32 %s20, 1
    %s26 = ssub.s32 %s20, 2
    %s27 = sadd.s32 %s20, 1
    %s28 = ssub.s32 %s20, %s27
    %p29 = scmp.eq.s32.totalorder %s28, 0
    %s31 = sadd.s32 %s30, 1
    %s32 = scalar_select %p29, %s30, %s31
    %p35 = pneg %p29
    %p36 = scmp.eq.s32.totalorder %s20, 1
    %p37 = por %p35, %p36
    %p38 = scmp.ne.s32.totalorder %s30, %s33
    %p39 = scmp.eq.s32.totalorder %s20, 0
    %p40 = por %p38, %p39
    %p41 = scmp.ne.s32.totalorder %s30, %s33
    %p42 = scmp.eq.s32.totalorder %s25, 1
    %p43 = por %p41, %p42
    %p44 = scmp.ne.s32.totalorder %s33, %s34
    %p45 = scmp.eq.s32.totalorder %s25, 0
    %p46 = por %p44, %p45
    %p47 = scmp.ne.s32.totalorder %s33, %s34
    %p48 = scmp.eq.s32.totalorder %s26, 1
    %p49 = por %p47, %p48
    %p51 = scmp.ne.s32.totalorder %s34, %s50
    %p52 = scmp.eq.s32.totalorder %s26, 0
    %p53 = por %p51, %p52
    %s55 = sadd.s32 %s54, 1
    %p58 = scmp.eq.s32.totalorder %s20, 1
    %p59 = scmp.ne.s32.totalorder %s54, %s56
    %p60 = scmp.eq.s32.totalorder %s20, 0
    %p61 = por %p59, %p60
    %p62 = scmp.ne.s32.totalorder %s54, %s56
    %p63 = scmp.eq.s32.totalorder %s25, 1
    %p64 = por %p62, %p63
    %p65 = scmp.ne.s32.totalorder %s56, %s57
    %p66 = scmp.eq.s32.totalorder %s25, 0
    %p67 = por %p65, %p66
    %p68 = scmp.ne.s32.totalorder %s56, %s57
    %p69 = scmp.eq.s32.totalorder %s26, 1
    %p70 = por %p68, %p69
    %p72 = scmp.ne.s32.totalorder %s57, %s71
    %p73 = scmp.eq.s32.totalorder %s26, 0
    %p74 = por %p72, %p73
    %s76 = sadd.s32 %s75, 1
    %p79 = scmp.eq.s32.totalorder %s20, 1
    %p80 = scmp.ne.s32.totalorder %s75, %s77
    %p81 = scmp.eq.s32.totalorder %s20, 0
    %p82 = por %p80, %p81
    %p83 = scmp.ne.s32.totalorder %s75, %s77
    %p84 = scmp.eq.s32.totalorder %s25, 1
    %p85 = por %p83, %p84
    %p86 = scmp.ne.s32.totalorder %s77, %s78
    %p87 = scmp.eq.s32.totalorder %s25, 0
    %p88 = por %p86, %p87
    %p89 = scmp.ne.s32.totalorder %s77, %s78
    %p90 = scmp.eq.s32.totalorder %s26, 1
    %p91 = por %p89, %p90
    %p93 = scmp.ne.s32.totalorder %s78, %s92
    %p94 = scmp.eq.s32.totalorder %s26, 0
    %p95 = por %p93, %p94
    %s97 = sadd.s32 %s96, 1
    %p100 = scmp.eq.s32.totalorder %s20, 1
    %p101 = scmp.ne.s32.totalorder %s96, %s98
    %p102 = scmp.eq.s32.totalorder %s20, 0
    %p103 = por %p101, %p102
    %p104 = scmp.ne.s32.totalorder %s96, %s98
    %p105 = scmp.eq.s32.totalorder %s25, 1
    %p106 = por %p104, %p105
    %p107 = scmp.ne.s32.totalorder %s98, %s99
    %p108 = scmp.eq.s32.totalorder %s25, 0
    %p109 = por %p107, %p108
    %p110 = scmp.ne.s32.totalorder %s98, %s99
    %p111 = scmp.eq.s32.totalorder %s26, 1
    %p112 = por %p110, %p111
    %p114 = scmp.ne.s32.totalorder %s99, %s113
    %p115 = scmp.eq.s32.totalorder %s26, 0
    %p116 = por %p114, %p115
    %s118 = sadd.s32 %s117, 1
    %p121 = scmp.eq.s32.totalorder %s20, 1
    %p122 = scmp.ne.s32.totalorder %s117, %s119
    %p123 = scmp.eq.s32.totalorder %s20, 0
    %p124 = por %p122, %p123
    %p125 = scmp.ne.s32.totalorder %s117, %s119
    %p126 = scmp.eq.s32.totalorder %s25, 1
    %p127 = por %p125, %p126
    %p128 = scmp.ne.s32.totalorder %s119, %s120
    %p129 = scmp.eq.s32.totalorder %s25, 0
    %p130 = por %p128, %p129
    %p131 = scmp.ne.s32.totalorder %s119, %s120
    %p132 = scmp.eq.s32.totalorder %s26, 1
    %p133 = por %p131, %p132
    %p135 = scmp.ne.s32.totalorder %s120, %s134
    %p136 = scmp.eq.s32.totalorder %s26, 0
    %p137 = por %p135, %p136
    %s139 = sadd.s32 %s138, 1
    %p142 = scmp.eq.s32.totalorder %s20, 1
    %p143 = scmp.ne.s32.totalorder %s138, %s140
    %p144 = scmp.eq.s32.totalorder %s20, 0
    %p145 = por %p143, %p144
    %p146 = scmp.ne.s32.totalorder %s138, %s140
    %p147 = scmp.eq.s32.totalorder %s25, 1
    %p148 = por %p146, %p147
    %p149 = scmp.ne.s32.totalorder %s140, %s141
    %p150 = scmp.eq.s32.totalorder %s25, 0
    %p151 = por %p149, %p150
    %p152 = scmp.ne.s32.totalorder %s140, %s141
    %p153 = scmp.eq.s32.totalorder %s26, 1
    %p154 = por %p152, %p153
    %p156 = scmp.ne.s32.totalorder %s141, %s155
    %p157 = scmp.eq.s32.totalorder %s26, 0
    %p158 = por %p156, %p157
    %s160 = sadd.s32 %s159, 1
    %p163 = scmp.eq.s32.totalorder %s20, 1
    %p164 = scmp.ne.s32.totalorder %s159, %s161
    %p165 = scmp.eq.s32.totalorder %s20, 0
    %p166 = por %p164, %p165
    %p167 = scmp.ne.s32.totalorder %s159, %s161
    %p168 = scmp.eq.s32.totalorder %s25, 1
    %p169 = por %p167, %p168
    %p170 = scmp.ne.s32.totalorder %s161, %s162
    %p171 = scmp.eq.s32.totalorder %s25, 0
    %p172 = por %p170, %p171
    %p173 = scmp.ne.s32.totalorder %s161, %s162
    %p174 = scmp.eq.s32.totalorder %s26, 1
    %p175 = por %p173, %p174
    %p177 = scmp.ne.s32.totalorder %s162, %s176
    %p178 = scmp.eq.s32.totalorder %s26, 0
    %p179 = por %p177, %p178
    %s181 = sadd.s32 %s180, 1
    %p184 = scmp.eq.s32.totalorder %s20, 1
    %p185 = scmp.ne.s32.totalorder %s180, %s182
    %p186 = scmp.eq.s32.totalorder %s20, 0
    %p187 = por %p185, %p186
    %p188 = scmp.ne.s32.totalorder %s180, %s182
    %p189 = scmp.eq.s32.totalorder %s25, 1
    %p190 = por %p188, %p189
    %p191 = scmp.ne.s32.totalorder %s182, %s183
    %p192 = scmp.eq.s32.totalorder %s25, 0
    %p193 = por %p191, %p192
    %p194 = scmp.ne.s32.totalorder %s182, %s183
    %p195 = scmp.eq.s32.totalorder %s26, 1
    %p196 = por %p194, %p195
    %p198 = scmp.ne.s32.totalorder %s183, %s197
    %p199 = scmp.eq.s32.totalorder %s26, 0
    %p200 = por %p198, %p199
    %s202 = sadd.s32 %s201, 1
    %p205 = scmp.eq.s32.totalorder %s20, 1
    %p206 = scmp.ne.s32.totalorder %s201, %s203
    %p207 = scmp.eq.s32.totalorder %s20, 0
    %p208 = por %p206, %p207
    %p209 = scmp.ne.s32.totalorder %s201, %s203
    %p210 = scmp.eq.s32.totalorder %s25, 1
    %p211 = por %p209, %p210
    %p212 = scmp.ne.s32.totalorder %s203, %s204
    %p213 = scmp.eq.s32.totalorder %s25, 0
    %p214 = por %p212, %p213
    %p215 = scmp.ne.s32.totalorder %s203, %s204
    %p216 = scmp.eq.s32.totalorder %s26, 1
    %p217 = por %p215, %p216
    %p219 = scmp.ne.s32.totalorder %s204, %s218
    %p220 = scmp.eq.s32.totalorder %s26, 0
    %p221 = por %p219, %p220
    %s223 = sadd.s32 %s222, 1
    %p226 = scmp.eq.s32.totalorder %s20, 1
    %p227 = scmp.ne.s32.totalorder %s222, %s224
    %p228 = scmp.eq.s32.totalorder %s20, 0
    %p229 = por %p227, %p228
    %p230 = scmp.ne.s32.totalorder %s222, %s224
    %p231 = scmp.eq.s32.totalorder %s25, 1
    %p232 = por %p230, %p231
    %p233 = scmp.ne.s32.totalorder %s224, %s225
    %p234 = scmp.eq.s32.totalorder %s25, 0
    %p235 = por %p233, %p234
    %p236 = scmp.ne.s32.totalorder %s224, %s225
    %p237 = scmp.eq.s32.totalorder %s26, 1
    %p238 = por %p236, %p237
    %p240 = scmp.ne.s32.totalorder %s225, %s239
    %p241 = scmp.eq.s32.totalorder %s26, 0
    %p242 = por %p240, %p241
    %s244 = sadd.s32 %s243, 1
    %p247 = scmp.eq.s32.totalorder %s20, 1
    %p248 = scmp.ne.s32.totalorder %s243, %s245
    %p249 = scmp.eq.s32.totalorder %s20, 0
    %p250 = por %p248, %p249
    %p251 = scmp.ne.s32.totalorder %s243, %s245
    %p252 = scmp.eq.s32.totalorder %s25, 1
    %p253 = por %p251, %p252
    %p254 = scmp.ne.s32.totalorder %s245, %s246
    %p255 = scmp.eq.s32.totalorder %s25, 0
    %p256 = por %p254, %p255
    %p257 = scmp.ne.s32.totalorder %s245, %s246
    %p258 = scmp.eq.s32.totalorder %s26, 1
    %p259 = por %p257, %p258
    %p261 = scmp.ne.s32.totalorder %s246, %s260
    %p262 = scmp.eq.s32.totalorder %s26, 0
    %p263 = por %p261, %p262
    %s265 = sadd.s32 %s264, 1
    %p268 = scmp.eq.s32.totalorder %s20, 1
    %p269 = scmp.ne.s32.totalorder %s264, %s266
    %p270 = scmp.eq.s32.totalorder %s20, 0
    %p271 = por %p269, %p270
    %p272 = scmp.ne.s32.totalorder %s264, %s266
    %p273 = scmp.eq.s32.totalorder %s25, 1
    %p274 = por %p272, %p273
    %p275 = scmp.ne.s32.totalorder %s266, %s267
    %p276 = scmp.eq.s32.totalorder %s25, 0
    %p277 = por %p275, %p276
    %p278 = scmp.ne.s32.totalorder %s266, %s267
    %p279 = scmp.eq.s32.totalorder %s26, 1
    %p280 = por %p278, %p279
    %p282 = scmp.ne.s32.totalorder %s267, %s281
    %p283 = scmp.eq.s32.totalorder %s26, 0
    %p284 = por %p282, %p283
    %s286 = sadd.s32 %s285, 1
    %p289 = scmp.eq.s32.totalorder %s20, 1
    %p290 = scmp.ne.s32.totalorder %s285, %s287
    %p291 = scmp.eq.s32.totalorder %s20, 0
    %p292 = por %p290, %p291
    %p293 = scmp.ne.s32.totalorder %s285, %s287
    %p294 = scmp.eq.s32.totalorder %s25, 1
    %p295 = por %p293, %p294
    %p296 = scmp.ne.s32.totalorder %s287, %s288
    %p297 = scmp.eq.s32.totalorder %s25, 0
    %p298 = por %p296, %p297
    %p299 = scmp.ne.s32.totalorder %s287, %s288
    %p300 = scmp.eq.s32.totalorder %s26, 1
    %p301 = por %p299, %p300
    %p303 = scmp.ne.s32.totalorder %s288, %s302
    %p304 = scmp.eq.s32.totalorder %s26, 0
    %p305 = por %p303, %p304
    %s307 = sadd.s32 %s306, 1
    %p310 = scmp.eq.s32.totalorder %s20, 1
    %p311 = scmp.ne.s32.totalorder %s306, %s308
    %p312 = scmp.eq.s32.totalorder %s20, 0
    %p313 = por %p311, %p312
    %p314 = scmp.ne.s32.totalorder %s306, %s308
    %p315 = scmp.eq.s32.totalorder %s25, 1
    %p316 = por %p314, %p315
    %p317 = scmp.ne.s32.totalorder %s308, %s309
    %p318 = scmp.eq.s32.totalorder %s25, 0
    %p319 = por %p317, %p318
    %p320 = scmp.ne.s32.totalorder %s308, %s309
    %p321 = scmp.eq.s32.totalorder %s26, 1
    %p322 = por %p320, %p321
    %p324 = scmp.ne.s32.totalorder %s309, %s323
    %p325 = scmp.eq.s32.totalorder %s26, 0
    %p326 = por %p324, %p325
    %s327 = ssub.s32 %s20, %s27
    %p328 = scmp.eq.s32.totalorder %s327, 0
    %s330 = sadd.s32 %s329, 1
    %s331 = scalar_select %p328, %s329, %s330
    %p334 = pneg %p328
    %p335 = scmp.eq.s32.totalorder %s20, 1
    %p336 = por %p334, %p335
    %p337 = scmp.ne.s32.totalorder %s329, %s332
    %p338 = scmp.eq.s32.totalorder %s20, 0
    %p339 = por %p337, %p338
    %p340 = scmp.ne.s32.totalorder %s329, %s332
    %p341 = scmp.eq.s32.totalorder %s25, 1
    %p342 = por %p340, %p341
    %p343 = scmp.ne.s32.totalorder %s332, %s333
    %p344 = scmp.eq.s32.totalorder %s25, 0
    %p345 = por %p343, %p344
    %p346 = scmp.ne.s32.totalorder %s332, %s333
    %p347 = scmp.eq.s32.totalorder %s26, 1
    %p348 = por %p346, %p347
    %p350 = scmp.ne.s32.totalorder %s333, %s349
    %p351 = scmp.eq.s32.totalorder %s26, 0
    %p352 = por %p350, %p351
    %p353 = scmp.le.s32.totalorder 1, %s20
    %p354 = scmp.lt.s32.totalorder %s20, 3
    %p355 = pnand %p353, %p354
    %p356 = pneg %p355
    // Predicated region
    $region9: #{_lambda_.1} parent=5 // pred_check
      _
    $region10: #{_lambda_.1} parent=5 // pred_check_branch
      %358 = sbr.rel (%p355) target = $region12
    $region11: #{_lambda_.1} parent=5 // pred_region
      %s359 = ssub.s32 %s20, 1
      // Predicated region
      $region13: #{_lambda_.1} parent=11 // pred_check
        %p360 = pneg %p67
      $region14: #{_lambda_.1} parent=11 // pred_check_branch
        %362 = sbr.rel (%p360) target = $region16
      $region15: #{_lambda_.1} parent=11 // pred_region
        _
      $region16: #{_lambda_.1} parent=11 // pred_fallthru
        _
      // Predicated region
      $region17: #{_lambda_.1} parent=11 // pred_check
        %p363 = pneg %p88
      $region18: #{_lambda_.1} parent=11 // pred_check_branch
        %365 = sbr.rel (%p363) target = $region20
      $region19: #{_lambda_.1} parent=11 // pred_region
        _
      $region20: #{_lambda_.1} parent=11 // pred_fallthru
        _
      // Predicated region
      $region21: #{_lambda_.1} parent=11 // pred_check
        %p366 = pneg %p109
      $region22: #{_lambda_.1} parent=11 // pred_check_branch
        %368 = sbr.rel (%p366) target = $region24
      $region23: #{_lambda_.1} parent=11 // pred_region
        _
      $region24: #{_lambda_.1} parent=11 // pred_fallthru
        _
      // Predicated region
      $region25: #{_lambda_.1} parent=11 // pred_check
        %p369 = pneg %p130
      $region26: #{_lambda_.1} parent=11 // pred_check_branch
        %371 = sbr.rel (%p369) target = $region28
      $region27: #{_lambda_.1} parent=11 // pred_region
        _
      $region28: #{_lambda_.1} parent=11 // pred_fallthru
        _
      // Predicated region
      $region29: #{_lambda_.1} parent=11 // pred_check
        %p372 = pneg %p151
      $region30: #{_lambda_.1} parent=11 // pred_check_branch
        %374 = sbr.rel (%p372) target = $region32
      $region31: #{_lambda_.1} parent=11 // pred_region
        _
      $region32: #{_lambda_.1} parent=11 // pred_fallthru
        _
      // Predicated region
      $region33: #{_lambda_.1} parent=11 // pred_check
        %p375 = pneg %p172
      $region34: #{_lambda_.1} parent=11 // pred_check_branch
        %377 = sbr.rel (%p375) target = $region36
      $region35: #{_lambda_.1} parent=11 // pred_region
        _
      $region36: #{_lambda_.1} parent=11 // pred_fallthru
        _
      // Predicated region
      $region37: #{_lambda_.1} parent=11 // pred_check
        %p378 = pneg %p193
      $region38: #{_lambda_.1} parent=11 // pred_check_branch
        %380 = sbr.rel (%p378) target = $region40
      $region39: #{_lambda_.1} parent=11 // pred_region
        _
      $region40: #{_lambda_.1} parent=11 // pred_fallthru
        _
      // Predicated region
      $region41: #{_lambda_.1} parent=11 // pred_check
        %p381 = pneg %p214
      $region42: #{_lambda_.1} parent=11 // pred_check_branch
        %383 = sbr.rel (%p381) target = $region44
      $region43: #{_lambda_.1} parent=11 // pred_region
        _
      $region44: #{_lambda_.1} parent=11 // pred_fallthru
        _
      // Predicated region
      $region45: #{_lambda_.1} parent=11 // pred_check
        %p384 = pneg %p235
      $region46: #{_lambda_.1} parent=11 // pred_check_branch
        %386 = sbr.rel (%p384) target = $region48
      $region47: #{_lambda_.1} parent=11 // pred_region
        _
      $region48: #{_lambda_.1} parent=11 // pred_fallthru
        _
      // Predicated region
      $region49: #{_lambda_.1} parent=11 // pred_check
        %p387 = pneg %p256
      $region50: #{_lambda_.1} parent=11 // pred_check_branch
        %389 = sbr.rel (%p387) target = $region52
      $region51: #{_lambda_.1} parent=11 // pred_region
        _
      $region52: #{_lambda_.1} parent=11 // pred_fallthru
        _
      // Predicated region
      $region53: #{_lambda_.1} parent=11 // pred_check
        %p390 = pneg %p277
      $region54: #{_lambda_.1} parent=11 // pred_check_branch
        %392 = sbr.rel (%p390) target = $region56
      $region55: #{_lambda_.1} parent=11 // pred_region
        _
      $region56: #{_lambda_.1} parent=11 // pred_fallthru
        _
      // Predicated region
      $region57: #{_lambda_.1} parent=11 // pred_check
        %p393 = pneg %p298
      $region58: #{_lambda_.1} parent=11 // pred_check_branch
        %395 = sbr.rel (%p393) target = $region60
      $region59: #{_lambda_.1} parent=11 // pred_region
        _
      $region60: #{_lambda_.1} parent=11 // pred_fallthru
        _
      // Predicated region
      $region61: #{_lambda_.1} parent=11 // pred_check
        %p396 = pneg %p319
      $region62: #{_lambda_.1} parent=11 // pred_check_branch
        %398 = sbr.rel (%p396) target = $region64
      $region63: #{_lambda_.1} parent=11 // pred_region
        _
      $region64: #{_lambda_.1} parent=11 // pred_fallthru
        _
    $region12: #{_lambda_.1} parent=5 // pred_fallthru
      _
    %p399 = scmp.lt.s32.totalorder %s20, 2
    // Predicated region
    $region65: #{_lambda_.1} parent=5 // pred_check
      %p400 = pneg %p399
    $region66: #{_lambda_.1} parent=5 // pred_check_branch
      %402 = sbr.rel (%p400) target = $region68
    $region67: #{_lambda_.1} parent=5 // pred_region
      // Predicated region
      $region69: #{_lambda_.1} parent=67 // pred_check
        %p403 = pneg %p40
      $region70: #{_lambda_.1} parent=67 // pred_check_branch
        %405 = sbr.rel (%p403) target = $region72
      $region71: #{_lambda_.1} parent=67 // pred_region
        %s406 = smul.u32 64, %s20
        %p407 = scmp.lt.s32.totalorder %s406, 127
        %s408 = scalar_select %p407, %s406, 127
        %s409 = smul.addr %s408, 2
        %s410 = smul.addr %s409, 8
        %s411 = scalar_lea.vmem %s0, %s410
        %s412 = smul.u32 64, %s20
      $region72: #{_lambda_.1} parent=67 // pred_fallthru
        _
    $region68: #{_lambda_.1} parent=5 // pred_fallthru
      _
    %p413 = scmp.le.s32.totalorder 1, %s20
    %p414 = scmp.lt.s32.totalorder %s20, 3
    %p415 = pnand %p413, %p414
    %p416 = pneg %p415
    // Predicated region
    $region73: #{_lambda_.1} parent=5 // pred_check
      _
    $region74: #{_lambda_.1} parent=5 // pred_check_branch
      %418 = sbr.rel (%p415) target = $region76
    $region75: #{_lambda_.1} parent=5 // pred_region
      %s419 = ssub.s32 %s20, 1
      %s420 = smul.u32 64, %s25
      %p421 = scmp.lt.s32.totalorder %s420, 127
      %s422 = scalar_select %p421, %s420, 127
      %s423 = smul.addr %s422, 2
      %s424 = smul.addr %s423, 8
      %s425 = scalar_lea.vmem %s0, %s424
      %p426 = pneg %p46
      %p427 = pneg %p43
      %p428 = pneg %p67
      %p429 = pneg %p64
      %p430 = pneg %p88
      %p431 = pneg %p85
      %p432 = pneg %p109
      %p433 = pneg %p106
      %p434 = pneg %p130
      %p435 = pneg %p127
      %p436 = pneg %p151
      %p437 = pneg %p148
      %p438 = pneg %p172
      %p439 = pneg %p169
      %p440 = pneg %p193
      %p441 = pneg %p190
      %p442 = pneg %p214
      %p443 = pneg %p211
      %p444 = pneg %p235
      %p445 = pneg %p232
      %p446 = pneg %p256
      %p447 = pneg %p253
      %p448 = pneg %p277
      %p449 = pneg %p274
      %p450 = pneg %p298
      %p451 = pneg %p295
      %p452 = pneg %p319
      %p453 = pneg %p316
      %p454 = pneg %p345
      %p455 = pneg %p342
      %s456 = smul.u32 64, %s25
      %p457 = scmp.lt.s32.totalorder %s456, 127
      %s458 = scalar_select %p457, %s456, 127
      %s459 = smul.addr %s458, 2
      %s460 = smul.addr %s459, 8
      %s461 = scalar_lea.vmem %s14, %s460
      %s462 = smul.u32 64, %s25
      %p463 = scmp.lt.s32.totalorder %s462, 127
      %s464 = scalar_select %p463, %s462, 127
      %s465 = smul.addr %s464, 2
      %s466 = smul.addr %s465, 8
      %s467 = scalar_lea.vmem %s0, %s466
      %s468 = smul.u32 64, %s25
      %s469 = smul.u32 64, %s25
      %p470 = scmp.lt.s32.totalorder %s469, 127
      %s471 = scalar_select %p470, %s469, 127
      %s472 = smul.addr %s471, 2
      %s473 = smul.addr %s472, 8
      %s474 = scalar_lea.vmem %s14, %s473
      %s475 = smul.u32 64, %s25
      %v477 = vld [vmem:[%s467] sm:$0xff]
      %v478 = vld [vmem:[%s467 + $0x8] sm:$0xff]
      %v479 = vld [vmem:[%s467 + $0x10] sm:$0xff]
      %v480 = vld [vmem:[%s467 + $0x18] sm:$0xff]
      %v481 = vld [vmem:[%s467 + $0x20] sm:$0xff]
      %v482 = vld [vmem:[%s467 + $0x28] sm:$0xff]
      %v483 = vld [vmem:[%s467 + $0x30] sm:$0xff]
      %v484 = vld [vmem:[%s467 + $0x38] sm:$0xff]
      %v485 = vld [vmem:[%s467 + $0x40] sm:$0xff]
      %v486 = vld [vmem:[%s467 + $0x48] sm:$0xff]
      %v487 = vld [vmem:[%s467 + $0x50] sm:$0xff]
      %v488 = vld [vmem:[%s467 + $0x58] sm:$0xff]
      %v489 = vld [vmem:[%s467 + $0x60] sm:$0xff]
      %v490 = vld [vmem:[%s467 + $0x68] sm:$0xff]
      %v491 = vld [vmem:[%s467 + $0x70] sm:$0xff]
      %v492 = vld [vmem:[%s467 + $0x78] sm:$0xff]
      %v493 = vld [vmem:[%s467 + $0x80] sm:$0xff]
      %v494 = vld [vmem:[%s467 + $0x88] sm:$0xff]
      %v495 = vld [vmem:[%s467 + $0x90] sm:$0xff]
      %v496 = vld [vmem:[%s467 + $0x98] sm:$0xff]
      %v497 = vld [vmem:[%s467 + $0xa0] sm:$0xff]
      %v498 = vld [vmem:[%s467 + $0xa8] sm:$0xff]
      %v499 = vld [vmem:[%s467 + $0xb0] sm:$0xff]
      %v500 = vld [vmem:[%s467 + $0xb8] sm:$0xff]
      %v501 = vld [vmem:[%s467 + $0xc0] sm:$0xff]
      %v502 = vld [vmem:[%s467 + $0xc8] sm:$0xff]
      %v503 = vld [vmem:[%s467 + $0xd0] sm:$0xff]
      %v504 = vld [vmem:[%s467 + $0xd8] sm:$0xff]
      %v505 = vld [vmem:[%s467 + $0xe0] sm:$0xff]
      %v506 = vld [vmem:[%s467 + $0xe8] sm:$0xff]
      %v507 = vld [vmem:[%s467 + $0xf0] sm:$0xff]
      %v508 = vld [vmem:[%s467 + $0xf8] sm:$0xff]
      %v509 = vld [vmem:[%s467 + $0x100] sm:$0xff]
      %v510 = vld [vmem:[%s467 + $0x108] sm:$0xff]
      %v511 = vld [vmem:[%s467 + $0x110] sm:$0xff]
      %v512 = vld [vmem:[%s467 + $0x118] sm:$0xff]
      %v513 = vld [vmem:[%s467 + $0x120] sm:$0xff]
      %v514 = vld [vmem:[%s467 + $0x128] sm:$0xff]
      %v515 = vld [vmem:[%s467 + $0x130] sm:$0xff]
      %v516 = vld [vmem:[%s467 + $0x138] sm:$0xff]
      %v517 = vld [vmem:[%s467 + $0x140] sm:$0xff]
      %v518 = vld [vmem:[%s467 + $0x148] sm:$0xff]
      %v519 = vld [vmem:[%s467 + $0x150] sm:$0xff]
      %v520 = vld [vmem:[%s467 + $0x158] sm:$0xff]
      %v521 = vld [vmem:[%s467 + $0x160] sm:$0xff]
      %v522 = vld [vmem:[%s467 + $0x168] sm:$0xff]
      %v523 = vld [vmem:[%s467 + $0x170] sm:$0xff]
      %v524 = vld [vmem:[%s467 + $0x178] sm:$0xff]
      %v525 = vld [vmem:[%s467 + $0x180] sm:$0xff]
      %v526 = vld [vmem:[%s467 + $0x188] sm:$0xff]
      %v527 = vld [vmem:[%s467 + $0x190] sm:$0xff]
      %v528 = vld [vmem:[%s467 + $0x198] sm:$0xff]
      %v529 = vld [vmem:[%s467 + $0x1a0] sm:$0xff]
      %v530 = vld [vmem:[%s467 + $0x1a8] sm:$0xff]
      %v531 = vld [vmem:[%s467 + $0x1b0] sm:$0xff]
      %v532 = vld [vmem:[%s467 + $0x1b8] sm:$0xff]
      %v533 = vld [vmem:[%s467 + $0x1c0] sm:$0xff]
      %v534 = vld [vmem:[%s467 + $0x1c8] sm:$0xff]
      %v535 = vld [vmem:[%s467 + $0x1d0] sm:$0xff]
      %v536 = vld [vmem:[%s467 + $0x1d8] sm:$0xff]
      %v537 = vld [vmem:[%s467 + $0x1e0] sm:$0xff]
      %v538 = vld [vmem:[%s467 + $0x1e8] sm:$0xff]
      %v539 = vld [vmem:[%s467 + $0x1f0] sm:$0xff]
      %v540 = vld [vmem:[%s467 + $0x1f8] sm:$0xff]
      %v541 = vld [vmem:[%s467 + $0x200] sm:$0xff]
      %v542 = vld [vmem:[%s467 + $0x208] sm:$0xff]
      %v543 = vld [vmem:[%s467 + $0x210] sm:$0xff]
      %v544 = vld [vmem:[%s467 + $0x218] sm:$0xff]
      %v545 = vld [vmem:[%s467 + $0x220] sm:$0xff]
      %v546 = vld [vmem:[%s467 + $0x228] sm:$0xff]
      %v547 = vld [vmem:[%s467 + $0x230] sm:$0xff]
      %v548 = vld [vmem:[%s467 + $0x238] sm:$0xff]
      %v549 = vld [vmem:[%s467 + $0x240] sm:$0xff]
      %v550 = vld [vmem:[%s467 + $0x248] sm:$0xff]
      %v551 = vld [vmem:[%s467 + $0x250] sm:$0xff]
      %v552 = vld [vmem:[%s467 + $0x258] sm:$0xff]
      %v553 = vld [vmem:[%s467 + $0x260] sm:$0xff]
      %v554 = vld [vmem:[%s467 + $0x268] sm:$0xff]
      %v555 = vld [vmem:[%s467 + $0x270] sm:$0xff]
      %v556 = vld [vmem:[%s467 + $0x278] sm:$0xff]
      %v557 = vld [vmem:[%s467 + $0x280] sm:$0xff]
      %v558 = vld [vmem:[%s467 + $0x288] sm:$0xff]
      %v559 = vld [vmem:[%s467 + $0x290] sm:$0xff]
      %v560 = vld [vmem:[%s467 + $0x298] sm:$0xff]
      %v561 = vld [vmem:[%s467 + $0x2a0] sm:$0xff]
      %v562 = vld [vmem:[%s467 + $0x2a8] sm:$0xff]
      %v563 = vld [vmem:[%s467 + $0x2b0] sm:$0xff]
      %v564 = vld [vmem:[%s467 + $0x2b8] sm:$0xff]
      %v565 = vld [vmem:[%s467 + $0x2c0] sm:$0xff]
      %v566 = vld [vmem:[%s467 + $0x2c8] sm:$0xff]
      %v567 = vld [vmem:[%s467 + $0x2d0] sm:$0xff]
      %v568 = vld [vmem:[%s467 + $0x2d8] sm:$0xff]
      %v569 = vld [vmem:[%s467 + $0x2e0] sm:$0xff]
      %v570 = vld [vmem:[%s467 + $0x2e8] sm:$0xff]
      %v571 = vld [vmem:[%s467 + $0x2f0] sm:$0xff]
      %v572 = vld [vmem:[%s467 + $0x2f8] sm:$0xff]
      %v573 = vld [vmem:[%s467 + $0x300] sm:$0xff]
      %v574 = vld [vmem:[%s467 + $0x308] sm:$0xff]
      %v575 = vld [vmem:[%s467 + $0x310] sm:$0xff]
      %v576 = vld [vmem:[%s467 + $0x318] sm:$0xff]
      %v577 = vld [vmem:[%s467 + $0x320] sm:$0xff]
      %v578 = vld [vmem:[%s467 + $0x328] sm:$0xff]
      %v579 = vld [vmem:[%s467 + $0x330] sm:$0xff]
      %v580 = vld [vmem:[%s467 + $0x338] sm:$0xff]
      %v581 = vld [vmem:[%s467 + $0x340] sm:$0xff]
      %v582 = vld [vmem:[%s467 + $0x348] sm:$0xff]
      %v583 = vld [vmem:[%s467 + $0x350] sm:$0xff]
      %v584 = vld [vmem:[%s467 + $0x358] sm:$0xff]
      %v585 = vld [vmem:[%s467 + $0x360] sm:$0xff]
      %v586 = vld [vmem:[%s467 + $0x368] sm:$0xff]
      %v587 = vld [vmem:[%s467 + $0x370] sm:$0xff]
      %v588 = vld [vmem:[%s467 + $0x378] sm:$0xff]
      %v589 = vld [vmem:[%s467 + $0x380] sm:$0xff]
      %v590 = vld [vmem:[%s467 + $0x388] sm:$0xff]
      %v591 = vld [vmem:[%s467 + $0x390] sm:$0xff]
      %v592 = vld [vmem:[%s467 + $0x398] sm:$0xff]
      %v593 = vld [vmem:[%s467 + $0x3a0] sm:$0xff]
      %v594 = vld [vmem:[%s467 + $0x3a8] sm:$0xff]
      %v595 = vld [vmem:[%s467 + $0x3b0] sm:$0xff]
      %v596 = vld [vmem:[%s467 + $0x3b8] sm:$0xff]
      %v597 = vld [vmem:[%s467 + $0x3c0] sm:$0xff]
      %v598 = vld [vmem:[%s467 + $0x3c8] sm:$0xff]
      %v599 = vld [vmem:[%s467 + $0x3d0] sm:$0xff]
      %v600 = vld [vmem:[%s467 + $0x3d8] sm:$0xff]
      %v601 = vld [vmem:[%s467 + $0x3e0] sm:$0xff]
      %v602 = vld [vmem:[%s467 + $0x3e8] sm:$0xff]
      %v603 = vld [vmem:[%s467 + $0x3f0] sm:$0xff]
      %v604 = vld [vmem:[%s467 + $0x3f8] sm:$0xff]
      %v605 = vpack.c.bf16 %v479, %v477
      %v606 = vpack.c.bf16 %v480, %v478
      %v607 = vpack.c.bf16 %v483, %v481
      %v608 = vpack.c.bf16 %v484, %v482
      %v609 = vpack.c.bf16 %v487, %v485
      %v610 = vpack.c.bf16 %v488, %v486
      %v611 = vpack.c.bf16 %v491, %v489
      %v612 = vpack.c.bf16 %v492, %v490
      %v613 = vpack.c.bf16 %v495, %v493
      %v614 = vpack.c.bf16 %v496, %v494
      %v615 = vpack.c.bf16 %v499, %v497
      %v616 = vpack.c.bf16 %v500, %v498
      %v617 = vpack.c.bf16 %v503, %v501
      %v618 = vpack.c.bf16 %v504, %v502
      %v619 = vpack.c.bf16 %v507, %v505
      %v620 = vpack.c.bf16 %v508, %v506
      %v621 = vpack.c.bf16 %v511, %v509
      %v622 = vpack.c.bf16 %v512, %v510
      %v623 = vpack.c.bf16 %v515, %v513
      %v624 = vpack.c.bf16 %v516, %v514
      %v625 = vpack.c.bf16 %v519, %v517
      %v626 = vpack.c.bf16 %v520, %v518
      %v627 = vpack.c.bf16 %v523, %v521
      %v628 = vpack.c.bf16 %v524, %v522
      %v629 = vpack.c.bf16 %v527, %v525
      %v630 = vpack.c.bf16 %v528, %v526
      %v631 = vpack.c.bf16 %v531, %v529
      %v632 = vpack.c.bf16 %v532, %v530
      %v633 = vpack.c.bf16 %v535, %v533
      %v634 = vpack.c.bf16 %v536, %v534
      %v635 = vpack.c.bf16 %v539, %v537
      %v636 = vpack.c.bf16 %v540, %v538
      %v637 = vpack.c.bf16 %v543, %v541
      %v638 = vpack.c.bf16 %v544, %v542
      %v639 = vpack.c.bf16 %v547, %v545
      %v640 = vpack.c.bf16 %v548, %v546
      %v641 = vpack.c.bf16 %v551, %v549
      %v642 = vpack.c.bf16 %v552, %v550
      %v643 = vpack.c.bf16 %v555, %v553
      %v644 = vpack.c.bf16 %v556, %v554
      %v645 = vpack.c.bf16 %v559, %v557
      %v646 = vpack.c.bf16 %v560, %v558
      %v647 = vpack.c.bf16 %v563, %v561
      %v648 = vpack.c.bf16 %v564, %v562
      %v649 = vpack.c.bf16 %v567, %v565
      %v650 = vpack.c.bf16 %v568, %v566
      %v651 = vpack.c.bf16 %v571, %v569
      %v652 = vpack.c.bf16 %v572, %v570
      %v653 = vpack.c.bf16 %v575, %v573
      %v654 = vpack.c.bf16 %v576, %v574
      %v655 = vpack.c.bf16 %v579, %v577
      %v656 = vpack.c.bf16 %v580, %v578
      %v657 = vpack.c.bf16 %v583, %v581
      %v658 = vpack.c.bf16 %v584, %v582
      %v659 = vpack.c.bf16 %v587, %v585
      %v660 = vpack.c.bf16 %v588, %v586
      %v661 = vpack.c.bf16 %v591, %v589
      %v662 = vpack.c.bf16 %v592, %v590
      %v663 = vpack.c.bf16 %v595, %v593
      %v664 = vpack.c.bf16 %v596, %v594
      %v665 = vpack.c.bf16 %v599, %v597
      %v666 = vpack.c.bf16 %v600, %v598
      %v667 = vpack.c.bf16 %v603, %v601
      %v668 = vpack.c.bf16 %v604, %v602
      %v669 = vld [vmem:[%s1] sm:$0xff]
      %v670 = vld [vmem:[%s1 + $0x8] sm:$0xff]
      %v671 = vld [vmem:[%s1 + $0x10] sm:$0xff]
      %v672 = vld [vmem:[%s1 + $0x18] sm:$0xff]
      %v673 = vld [vmem:[%s1 + $0x20] sm:$0xff]
      %v674 = vld [vmem:[%s1 + $0x28] sm:$0xff]
      %v675 = vld [vmem:[%s1 + $0x30] sm:$0xff]
      %v676 = vld [vmem:[%s1 + $0x38] sm:$0xff]
      %v677 = vld [vmem:[%s1 + $0x40] sm:$0xff]
      %v678 = vld [vmem:[%s1 + $0x48] sm:$0xff]
      %v679 = vld [vmem:[%s1 + $0x50] sm:$0xff]
      %v680 = vld [vmem:[%s1 + $0x58] sm:$0xff]
      %v681 = vld [vmem:[%s1 + $0x60] sm:$0xff]
      %v682 = vld [vmem:[%s1 + $0x68] sm:$0xff]
      %v683 = vld [vmem:[%s1 + $0x70] sm:$0xff]
      %v684 = vld [vmem:[%s1 + $0x78] sm:$0xff]
      %v685 = vld [vmem:[%s1 + $0x80] sm:$0xff]
      %v686 = vld [vmem:[%s1 + $0x88] sm:$0xff]
      %v687 = vld [vmem:[%s1 + $0x90] sm:$0xff]
      %v688 = vld [vmem:[%s1 + $0x98] sm:$0xff]
      %v689 = vld [vmem:[%s1 + $0xa0] sm:$0xff]
      %v690 = vld [vmem:[%s1 + $0xa8] sm:$0xff]
      %v691 = vld [vmem:[%s1 + $0xb0] sm:$0xff]
      %v692 = vld [vmem:[%s1 + $0xb8] sm:$0xff]
      %v693 = vld [vmem:[%s1 + $0xc0] sm:$0xff]
      %v694 = vld [vmem:[%s1 + $0xc8] sm:$0xff]
      %v695 = vld [vmem:[%s1 + $0xd0] sm:$0xff]
      %v696 = vld [vmem:[%s1 + $0xd8] sm:$0xff]
      %v697 = vld [vmem:[%s1 + $0xe0] sm:$0xff]
      %v698 = vld [vmem:[%s1 + $0xe8] sm:$0xff]
      %v699 = vld [vmem:[%s1 + $0xf0] sm:$0xff]
      %v700 = vld [vmem:[%s1 + $0xf8] sm:$0xff]
      %v733 = vunpack.c.l.b16 %v669
      %v734 = vunpack.c.h.b16 %v669
      %v735 = vunpack.c.l.b16 %v670
      %v736 = vunpack.c.h.b16 %v670
      %v737 = vunpack.c.l.b16 %v671
      %v738 = vunpack.c.h.b16 %v671
      %v739 = vunpack.c.l.b16 %v672
      %v740 = vunpack.c.h.b16 %v672
      %v741 = vunpack.c.l.b16 %v673
      %v742 = vunpack.c.h.b16 %v673
      %v743 = vunpack.c.l.b16 %v674
      %v744 = vunpack.c.h.b16 %v674
      %v745 = vunpack.c.l.b16 %v675
      %v746 = vunpack.c.h.b16 %v675
      %v747 = vunpack.c.l.b16 %v676
      %v748 = vunpack.c.h.b16 %v676
      %v749 = vunpack.c.l.b16 %v677
      %v750 = vunpack.c.h.b16 %v677
      %v751 = vunpack.c.l.b16 %v678
      %v752 = vunpack.c.h.b16 %v678
      %v753 = vunpack.c.l.b16 %v679
      %v754 = vunpack.c.h.b16 %v679
      %v755 = vunpack.c.l.b16 %v680
      %v756 = vunpack.c.h.b16 %v680
      %v757 = vunpack.c.l.b16 %v681
      %v758 = vunpack.c.h.b16 %v681
      %v759 = vunpack.c.l.b16 %v682
      %v760 = vunpack.c.h.b16 %v682
      %v761 = vunpack.c.l.b16 %v683
      %v762 = vunpack.c.h.b16 %v683
      %v763 = vunpack.c.l.b16 %v684
      %v764 = vunpack.c.h.b16 %v684
      %v765 = vunpack.c.l.b16 %v685
      %v766 = vunpack.c.h.b16 %v685
      %v767 = vunpack.c.l.b16 %v686
      %v768 = vunpack.c.h.b16 %v686
      %v769 = vunpack.c.l.b16 %v687
      %v770 = vunpack.c.h.b16 %v687
      %v771 = vunpack.c.l.b16 %v688
      %v772 = vunpack.c.h.b16 %v688
      %v773 = vunpack.c.l.b16 %v689
      %v774 = vunpack.c.h.b16 %v689
      %v775 = vunpack.c.l.b16 %v690
      %v776 = vunpack.c.h.b16 %v690
      %v777 = vunpack.c.l.b16 %v691
      %v778 = vunpack.c.h.b16 %v691
      %v779 = vunpack.c.l.b16 %v692
      %v780 = vunpack.c.h.b16 %v692
      %v781 = vunpack.c.l.b16 %v693
      %v782 = vunpack.c.h.b16 %v693
      %v783 = vunpack.c.l.b16 %v694
      %v784 = vunpack.c.h.b16 %v694
      %v785 = vunpack.c.l.b16 %v695
      %v786 = vunpack.c.h.b16 %v695
      %v787 = vunpack.c.l.b16 %v696
      %v788 = vunpack.c.h.b16 %v696
      %v789 = vunpack.c.l.b16 %v697
      %v790 = vunpack.c.h.b16 %v697
      %v791 = vunpack.c.l.b16 %v698
      %v792 = vunpack.c.h.b16 %v698
      %v793 = vunpack.c.l.b16 %v699
      %v794 = vunpack.c.h.b16 %v699
      %v795 = vunpack.c.l.b16 %v700
      %v796 = vunpack.c.h.b16 %v700
      %v797 = vpack.c.b16 %v737, %v733
      %v798 = vpack.c.b16 %v738, %v734
      %v799 = vpack.c.b16 %v739, %v735
      %v800 = vpack.c.b16 %v740, %v736
      %v801 = vpack.c.b16 %v745, %v741
      %v802 = vpack.c.b16 %v746, %v742
      %v803 = vpack.c.b16 %v747, %v743
      %v804 = vpack.c.b16 %v748, %v744
      %v805 = vpack.c.b16 %v753, %v749
      %v806 = vpack.c.b16 %v754, %v750
      %v807 = vpack.c.b16 %v755, %v751
      %v808 = vpack.c.b16 %v756, %v752
      %v809 = vpack.c.b16 %v761, %v757
      %v810 = vpack.c.b16 %v762, %v758
      %v811 = vpack.c.b16 %v763, %v759
      %v812 = vpack.c.b16 %v764, %v760
      %v813 = vpack.c.b16 %v769, %v765
      %v814 = vpack.c.b16 %v770, %v766
      %v815 = vpack.c.b16 %v771, %v767
      %v816 = vpack.c.b16 %v772, %v768
      %v817 = vpack.c.b16 %v777, %v773
      %v818 = vpack.c.b16 %v778, %v774
      %v819 = vpack.c.b16 %v779, %v775
      %v820 = vpack.c.b16 %v780, %v776
      %v821 = vpack.c.b16 %v785, %v781
      %v822 = vpack.c.b16 %v786, %v782
      %v823 = vpack.c.b16 %v787, %v783
      %v824 = vpack.c.b16 %v788, %v784
      %v825 = vpack.c.b16 %v793, %v789
      %v826 = vpack.c.b16 %v794, %v790
      %v827 = vpack.c.b16 %v795, %v791
      %v828 = vpack.c.b16 %v796, %v792
      %861 = vmatprep.subr.bf16.mxu0 %v606
      %862 = vmatpush1.bf16.msra.mxu0 %v605
      %863 = vmatprep.subr.bf16.mxu0 %v608
      %864 = vmatpush1.bf16.msra.mxu0 %v607
      %865 = vmatprep.subr.bf16.mxu0 %v610
      %866 = vmatpush1.bf16.msra.mxu0 %v609
      %867 = vmatprep.subr.bf16.mxu0 %v612
      %868 = vmatpush1.bf16.msra.mxu0 %v611
      %869 = vmatprep.subr.bf16.mxu0 %v614
      %870 = vmatpush1.bf16.msra.mxu0 %v613
      %871 = vmatprep.subr.bf16.mxu0 %v616
      %872 = vmatpush1.bf16.msra.mxu0 %v615
      %873 = vmatprep.subr.bf16.mxu0 %v618
      %874 = vmatpush1.bf16.msra.mxu0 %v617
      %875 = vmatprep.subr.bf16.mxu0 %v620
      %876 = vmatpush1.bf16.msra.mxu0 %v619
      %877 = vmatprep.subr.bf16.mxu0 %v622
      %878 = vmatpush1.bf16.msra.mxu0 %v621
      %879 = vmatprep.subr.bf16.mxu0 %v624
      %880 = vmatpush1.bf16.msra.mxu0 %v623
      %881 = vmatprep.subr.bf16.mxu0 %v626
      %882 = vmatpush1.bf16.msra.mxu0 %v625
      %883 = vmatprep.subr.bf16.mxu0 %v628
      %884 = vmatpush1.bf16.msra.mxu0 %v627
      %885 = vmatprep.subr.bf16.mxu0 %v630
      %886 = vmatpush1.bf16.msra.mxu0 %v629
      %887 = vmatprep.subr.bf16.mxu0 %v632
      %888 = vmatpush1.bf16.msra.mxu0 %v631
      %889 = vmatprep.subr.bf16.mxu0 %v634
      %890 = vmatpush1.bf16.msra.mxu0 %v633
      %891 = vmatprep.subr.bf16.mxu0 %v636
      %892 = vmatpush1.bf16.msra.mxu0 %v635
      %893 = vmatprep.mubr.bf16.mxu0 %v798
      %894 = vmatmul.mubr.bf16.gmra.mrb[0].mxu0 %v797
      %v895 = vpop.f32.mrb[0].mxu0
      %v896 = vadd.f32 0.0, %v895
      %v897 = vpop.f32.mrb[0].mxu0
      %v898 = vadd.f32 0.0, %v897
      %v899 = vpop.f32.mrb[0].mxu0
      %v900 = vadd.f32 0.0, %v899
      %v901 = vpop.f32.mrb[0].mxu0
      %v902 = vadd.f32 0.0, %v901
      %903 = vmatprep.mubr.bf16.mxu0 %v802
      %904 = vmatmul.mubr.bf16.gmra.mrb[0].mxu0 %v801
      %v905 = vpop.f32.mrb[0].mxu0
      %v906 = vadd.f32 0.0, %v905
      %v907 = vpop.f32.mrb[0].mxu0
      %v908 = vadd.f32 0.0, %v907
      %v909 = vpop.f32.mrb[0].mxu0
      %v910 = vadd.f32 0.0, %v909
      %v911 = vpop.f32.mrb[0].mxu0
      %v912 = vadd.f32 0.0, %v911
      %913 = vmatprep.mubr.bf16.mxu0 %v806
      %914 = vmatmul.mubr.bf16.gmra.mrb[0].mxu0 %v805
      %v915 = vpop.f32.mrb[0].mxu0
      %v916 = vadd.f32 0.0, %v915
      %v917 = vpop.f32.mrb[0].mxu0
      %v918 = vadd.f32 0.0, %v917
      %v919 = vpop.f32.mrb[0].mxu0
      %v920 = vadd.f32 0.0, %v919
      %v921 = vpop.f32.mrb[0].mxu0
      %v922 = vadd.f32 0.0, %v921
      %923 = vmatprep.mubr.bf16.mxu0 %v810
      %924 = vmatmul.mubr.bf16.gmra.mrb[0].mxu0 %v809
      %v925 = vpop.f32.mrb[0].mxu0
      %v926 = vadd.f32 0.0, %v925
      %v927 = vpop.f32.mrb[0].mxu0
      %v928 = vadd.f32 0.0, %v927
      %v929 = vpop.f32.mrb[0].mxu0
      %v930 = vadd.f32 0.0, %v929
      %v931 = vpop.f32.mrb[0].mxu0
      %v932 = vadd.f32 0.0, %v931
      %933 = vmatprep.mubr.bf16.mxu0 %v814
      %934 = vmatmul.mubr.bf16.gmra.mrb[0].mxu0 %v813
      %v935 = vpop.f32.mrb[0].mxu0
      %v936 = vadd.f32 0.0, %v935
      %v937 = vpop.f32.mrb[0].mxu0
      %v938 = vadd.f32 0.0, %v937
      %v939 = vpop.f32.mrb[0].mxu0
      %v940 = vadd.f32 0.0, %v939
      %v941 = vpop.f32.mrb[0].mxu0
      %v942 = vadd.f32 0.0, %v941
      %943 = vmatprep.mubr.bf16.mxu0 %v818
      %944 = vmatmul.mubr.bf16.gmra.mrb[0].mxu0 %v817
      %v945 = vpop.f32.mrb[0].mxu0
      %v946 = vadd.f32 0.0, %v945
      %v947 = vpop.f32.mrb[0].mxu0
      %v948 = vadd.f32 0.0, %v947
      %v949 = vpop.f32.mrb[0].mxu0
      %v950 = vadd.f32 0.0, %v949
      %v951 = vpop.f32.mrb[0].mxu0
      %v952 = vadd.f32 0.0, %v951
      %953 = vmatprep.mubr.bf16.mxu0 %v822
      %954 = vmatmul.mubr.bf16.gmra.mrb[0].mxu0 %v821
      %v955 = vpop.f32.mrb[0].mxu0
      %v956 = vadd.f32 0.0, %v955
      %v957 = vpop.f32.mrb[0].mxu0
      %v958 = vadd.f32 0.0, %v957
      %v959 = vpop.f32.mrb[0].mxu0
      %v960 = vadd.f32 0.0, %v959
      %v961 = vpop.f32.mrb[0].mxu0
      %v962 = vadd.f32 0.0, %v961
      %963 = vmatprep.mubr.bf16.mxu0 %v826
      %964 = vmatmul.mubr.bf16.gmra.mrb[0].mxu0 %v825
      %v965 = vpop.f32.mrb[0].mxu0
      %v966 = vadd.f32 0.0, %v965
      %v967 = vpop.f32.mrb[0].mxu0
      %v968 = vadd.f32 0.0, %v967
      %v969 = vpop.f32.mrb[0].mxu0
      %v970 = vadd.f32 0.0, %v969
      %v971 = vpop.f32.mrb[0].mxu0
      %v972 = vadd.f32 0.0, %v971
      %973 = vdwg.mxu0
      %974 = vmatprep.subr.bf16.mxu0 %v638
      %975 = vmatpush1.bf16.msra.mxu0 %v637
      %976 = vmatprep.subr.bf16.mxu0 %v640
      %977 = vmatpush1.bf16.msra.mxu0 %v639
      %978 = vmatprep.subr.bf16.mxu0 %v642
      %979 = vmatpush1.bf16.msra.mxu0 %v641
      %980 = vmatprep.subr.bf16.mxu0 %v644
      %981 = vmatpush1.bf16.msra.mxu0 %v643
      %982 = vmatprep.subr.bf16.mxu0 %v646
      %983 = vmatpush1.bf16.msra.mxu0 %v645
      %984 = vmatprep.subr.bf16.mxu0 %v648
      %985 = vmatpush1.bf16.msra.mxu0 %v647
      %986 = vmatprep.subr.bf16.mxu0 %v650
      %987 = vmatpush1.bf16.msra.mxu0 %v649
      %988 = vmatprep.subr.bf16.mxu0 %v652
      %989 = vmatpush1.bf16.msra.mxu0 %v651
      %990 = vmatprep.subr.bf16.mxu0 %v654
      %991 = vmatpush1.bf16.msra.mxu0 %v653
      %992 = vmatprep.subr.bf16.mxu0 %v656
      %993 = vmatpush1.bf16.msra.mxu0 %v655
      %994 = vmatprep.subr.bf16.mxu0 %v658
      %995 = vmatpush1.bf16.msra.mxu0 %v657
      %996 = vmatprep.subr.bf16.mxu0 %v660
      %997 = vmatpush1.bf16.msra.mxu0 %v659
      %998 = vmatprep.subr.bf16.mxu0 %v662
      %999 = vmatpush1.bf16.msra.mxu0 %v661
      %1000 = vmatprep.subr.bf16.mxu0 %v664
      %1001 = vmatpush1.bf16.msra.mxu0 %v663
      %1002 = vmatprep.subr.bf16.mxu0 %v666
      %1003 = vmatpush1.bf16.msra.mxu0 %v665
      %1004 = vmatprep.subr.bf16.mxu0 %v668
      %1005 = vmatpush1.bf16.msra.mxu0 %v667
      %1006 = vmatprep.mubr.bf16.mxu0 %v800
      %1007 = vmatmul.mubr.bf16.gmra.mrb[0].mxu0 %v799
      %v1008 = vpop.f32.mrb[0].mxu0
      %v1009 = vadd.f32 %v896, %v1008
      %v1010 = vpop.f32.mrb[0].mxu0
      %v1011 = vadd.f32 %v898, %v1010
      %v1012 = vpop.f32.mrb[0].mxu0
      %v1013 = vadd.f32 %v900, %v1012
      %v1014 = vpop.f32.mrb[0].mxu0
      %v1015 = vadd.f32 %v902, %v1014
      %1016 = vmatprep.mubr.bf16.mxu0 %v804
      %1017 = vmatmul.mubr.bf16.gmra.mrb[0].mxu0 %v803
      %v1018 = vpop.f32.mrb[0].mxu0
      %v1019 = vadd.f32 %v906, %v1018
      %v1020 = vpop.f32.mrb[0].mxu0
      %v1021 = vadd.f32 %v908, %v1020
      %v1022 = vpop.f32.mrb[0].mxu0
      %v1023 = vadd.f32 %v910, %v1022
      %v1024 = vpop.f32.mrb[0].mxu0
      %v1025 = vadd.f32 %v912, %v1024
      %1026 = vmatprep.mubr.bf16.mxu0 %v808
      %1027 = vmatmul.mubr.bf16.gmra.mrb[0].mxu0 %v807
      %v1028 = vpop.f32.mrb[0].mxu0
      %v1029 = vadd.f32 %v916, %v1028
      %v1030 = vpop.f32.mrb[0].mxu0
      %v1031 = vadd.f32 %v918, %v1030
      %v1032 = vpop.f32.mrb[0].mxu0
      %v1033 = vadd.f32 %v920, %v1032
      %v1034 = vpop.f32.mrb[0].mxu0
      %v1035 = vadd.f32 %v922, %v1034
      %1036 = vmatprep.mubr.bf16.mxu0 %v812
      %1037 = vmatmul.mubr.bf16.gmra.mrb[0].mxu0 %v811
      %v1038 = vpop.f32.mrb[0].mxu0
      %v1039 = vadd.f32 %v926, %v1038
      %v1040 = vpop.f32.mrb[0].mxu0
      %v1041 = vadd.f32 %v928, %v1040
      %v1042 = vpop.f32.mrb[0].mxu0
      %v1043 = vadd.f32 %v930, %v1042
      %v1044 = vpop.f32.mrb[0].mxu0
      %v1045 = vadd.f32 %v932, %v1044
      %1046 = vmatprep.mubr.bf16.mxu0 %v816
      %1047 = vmatmul.mubr.bf16.gmra.mrb[0].mxu0 %v815
      %v1048 = vpop.f32.mrb[0].mxu0
      %v1049 = vadd.f32 %v936, %v1048
      %v1050 = vpop.f32.mrb[0].mxu0
      %v1051 = vadd.f32 %v938, %v1050
      %v1052 = vpop.f32.mrb[0].mxu0
      %v1053 = vadd.f32 %v940, %v1052
      %v1054 = vpop.f32.mrb[0].mxu0
      %v1055 = vadd.f32 %v942, %v1054
      %1056 = vmatprep.mubr.bf16.mxu0 %v820
      %1057 = vmatmul.mubr.bf16.gmra.mrb[0].mxu0 %v819
      %v1058 = vpop.f32.mrb[0].mxu0
      %v1059 = vadd.f32 %v946, %v1058
      %v1060 = vpop.f32.mrb[0].mxu0
      %v1061 = vadd.f32 %v948, %v1060
      %v1062 = vpop.f32.mrb[0].mxu0
      %v1063 = vadd.f32 %v950, %v1062
      %v1064 = vpop.f32.mrb[0].mxu0
      %v1065 = vadd.f32 %v952, %v1064
      %1066 = vmatprep.mubr.bf16.mxu0 %v824
      %1067 = vmatmul.mubr.bf16.gmra.mrb[0].mxu0 %v823
      %v1068 = vpop.f32.mrb[0].mxu0
      %v1069 = vadd.f32 %v956, %v1068
      %v1070 = vpop.f32.mrb[0].mxu0
      %v1071 = vadd.f32 %v958, %v1070
      %v1072 = vpop.f32.mrb[0].mxu0
      %v1073 = vadd.f32 %v960, %v1072
      %v1074 = vpop.f32.mrb[0].mxu0
      %v1075 = vadd.f32 %v962, %v1074
      %1076 = vmatprep.mubr.bf16.mxu0 %v828
      %1077 = vmatmul.mubr.bf16.gmra.mrb[0].mxu0 %v827
      %v1078 = vpop.f32.mrb[0].mxu0
      %v1079 = vadd.f32 %v966, %v1078
      %v1080 = vpop.f32.mrb[0].mxu0
      %v1081 = vadd.f32 %v968, %v1080
      %v1082 = vpop.f32.mrb[0].mxu0
      %v1083 = vadd.f32 %v970, %v1082
      %v1084 = vpop.f32.mrb[0].mxu0
      %v1085 = vadd.f32 %v972, %v1084
      %1086 = vdwg.mxu0
      %v1087 = vld [vmem:[%s2] sm:$0xff]
      %v1088 = vld [vmem:[%s2 + $0x8] sm:$0xff]
      %v1089 = vld [vmem:[%s2 + $0x10] sm:$0xff]
      %v1090 = vld [vmem:[%s2 + $0x18] sm:$0xff]
      %v1091 = vld [vmem:[%s2 + $0x20] sm:$0xff]
      %v1092 = vld [vmem:[%s2 + $0x28] sm:$0xff]
      %v1093 = vld [vmem:[%s2 + $0x30] sm:$0xff]
      %v1094 = vld [vmem:[%s2 + $0x38] sm:$0xff]
      %v1095 = vld [vmem:[%s2 + $0x40] sm:$0xff]
      %v1096 = vld [vmem:[%s2 + $0x48] sm:$0xff]
      %v1097 = vld [vmem:[%s2 + $0x50] sm:$0xff]
      %v1098 = vld [vmem:[%s2 + $0x58] sm:$0xff]
      %v1099 = vld [vmem:[%s2 + $0x60] sm:$0xff]
      %v1100 = vld [vmem:[%s2 + $0x68] sm:$0xff]
      %v1101 = vld [vmem:[%s2 + $0x70] sm:$0xff]
      %v1102 = vld [vmem:[%s2 + $0x78] sm:$0xff]
      %1104 = vset.pattern.permute.xlu0 0
      %1105 = vperm.xlu0 %1104, %v1087
      %v1106 = vpop.permute.xlu0 %1105
      %1109 = vset.pattern.permute.xlu0 0
      %1110 = vperm.xlu0 %1109, %v1088
      %v1111 = vpop.permute.xlu0 %1110
      %1114 = vset.pattern.permute.xlu0 0
      %1115 = vperm.xlu0 %1114, %v1089
      %v1116 = vpop.permute.xlu0 %1115
      %1119 = vset.pattern.permute.xlu0 0
      %1120 = vperm.xlu0 %1119, %v1090
      %v1121 = vpop.permute.xlu0 %1120
      %1124 = vset.pattern.permute.xlu0 0
      %1125 = vperm.xlu0 %1124, %v1091
      %v1126 = vpop.permute.xlu0 %1125
      %1129 = vset.pattern.permute.xlu0 0
      %1130 = vperm.xlu0 %1129, %v1092
      %v1131 = vpop.permute.xlu0 %1130
      %1134 = vset.pattern.permute.xlu0 0
      %1135 = vperm.xlu0 %1134, %v1093
      %v1136 = vpop.permute.xlu0 %1135
      %1139 = vset.pattern.permute.xlu0 0
      %1140 = vperm.xlu0 %1139, %v1094
      %v1141 = vpop.permute.xlu0 %1140
      %1144 = vset.pattern.permute.xlu0 0
      %1145 = vperm.xlu0 %1144, %v1095
      %v1146 = vpop.permute.xlu0 %1145
      %1149 = vset.pattern.permute.xlu0 0
      %1150 = vperm.xlu0 %1149, %v1096
      %v1151 = vpop.permute.xlu0 %1150
      %1154 = vset.pattern.permute.xlu0 0
      %1155 = vperm.xlu0 %1154, %v1097
      %v1156 = vpop.permute.xlu0 %1155
      %1159 = vset.pattern.permute.xlu0 0
      %1160 = vperm.xlu0 %1159, %v1098
      %v1161 = vpop.permute.xlu0 %1160
      %1164 = vset.pattern.permute.xlu0 0
      %1165 = vperm.xlu0 %1164, %v1099
      %v1166 = vpop.permute.xlu0 %1165
      %1169 = vset.pattern.permute.xlu0 0
      %1170 = vperm.xlu0 %1169, %v1100
      %v1171 = vpop.permute.xlu0 %1170
      %1174 = vset.pattern.permute.xlu0 0
      %1175 = vperm.xlu0 %1174, %v1101
      %v1176 = vpop.permute.xlu0 %1175
      %1179 = vset.pattern.permute.xlu0 0
      %1180 = vperm.xlu0 %1179, %v1102
      %v1181 = vpop.permute.xlu0 %1180
      %v1183 = vmul.f32 %v1009, %v1106
      %v1184 = vmul.f32 %v1011, %v1106
      %v1185 = vmul.f32 %v1013, %v1111
      %v1186 = vmul.f32 %v1015, %v1111
      %v1187 = vmul.f32 %v1019, %v1116
      %v1188 = vmul.f32 %v1021, %v1116
      %v1189 = vmul.f32 %v1023, %v1121
      %v1190 = vmul.f32 %v1025, %v1121
      %v1191 = vmul.f32 %v1029, %v1126
      %v1192 = vmul.f32 %v1031, %v1126
      %v1193 = vmul.f32 %v1033, %v1131
      %v1194 = vmul.f32 %v1035, %v1131
      %v1195 = vmul.f32 %v1039, %v1136
      %v1196 = vmul.f32 %v1041, %v1136
      %v1197 = vmul.f32 %v1043, %v1141
      %v1198 = vmul.f32 %v1045, %v1141
      %v1199 = vmul.f32 %v1049, %v1146
      %v1200 = vmul.f32 %v1051, %v1146
      %v1201 = vmul.f32 %v1053, %v1151
      %v1202 = vmul.f32 %v1055, %v1151
      %v1203 = vmul.f32 %v1059, %v1156
      %v1204 = vmul.f32 %v1061, %v1156
      %v1205 = vmul.f32 %v1063, %v1161
      %v1206 = vmul.f32 %v1065, %v1161
      %v1207 = vmul.f32 %v1069, %v1166
      %v1208 = vmul.f32 %v1071, %v1166
      %v1209 = vmul.f32 %v1073, %v1171
      %v1210 = vmul.f32 %v1075, %v1171
      %v1211 = vmul.f32 %v1079, %v1176
      %v1212 = vmul.f32 %v1081, %v1176
      %v1213 = vmul.f32 %v1083, %v1181
      %v1214 = vmul.f32 %v1085, %v1181
      %v1215 = vld [vmem:[%s3] sm:$0xff]
      %v1216 = vld [vmem:[%s3 + $0x8] sm:$0xff]
      %v1217 = vld [vmem:[%s3 + $0x10] sm:$0xff]
      %v1218 = vld [vmem:[%s3 + $0x18] sm:$0xff]
      %v1219 = vld [vmem:[%s3 + $0x20] sm:$0xff]
      %v1220 = vld [vmem:[%s3 + $0x28] sm:$0xff]
      %v1221 = vld [vmem:[%s3 + $0x30] sm:$0xff]
      %v1222 = vld [vmem:[%s3 + $0x38] sm:$0xff]
      %v1223 = vld [vmem:[%s3 + $0x40] sm:$0xff]
      %v1224 = vld [vmem:[%s3 + $0x48] sm:$0xff]
      %v1225 = vld [vmem:[%s3 + $0x50] sm:$0xff]
      %v1226 = vld [vmem:[%s3 + $0x58] sm:$0xff]
      %v1227 = vld [vmem:[%s3 + $0x60] sm:$0xff]
      %v1228 = vld [vmem:[%s3 + $0x68] sm:$0xff]
      %v1229 = vld [vmem:[%s3 + $0x70] sm:$0xff]
      %v1230 = vld [vmem:[%s3 + $0x78] sm:$0xff]
      %1232 = vset.pattern.permute.xlu0 0
      %1233 = vperm.xlu0 %1232, %v1215
      %v1234 = vpop.permute.xlu0 %1233
      %1237 = vset.pattern.permute.xlu0 0
      %1238 = vperm.xlu0 %1237, %v1216
      %v1239 = vpop.permute.xlu0 %1238
      %1242 = vset.pattern.permute.xlu0 0
      %1243 = vperm.xlu0 %1242, %v1217
      %v1244 = vpop.permute.xlu0 %1243
      %1247 = vset.pattern.permute.xlu0 0
      %1248 = vperm.xlu0 %1247, %v1218
      %v1249 = vpop.permute.xlu0 %1248
      %1252 = vset.pattern.permute.xlu0 0
      %1253 = vperm.xlu0 %1252, %v1219
      %v1254 = vpop.permute.xlu0 %1253
      %1257 = vset.pattern.permute.xlu0 0
      %1258 = vperm.xlu0 %1257, %v1220
      %v1259 = vpop.permute.xlu0 %1258
      %1262 = vset.pattern.permute.xlu0 0
      %1263 = vperm.xlu0 %1262, %v1221
      %v1264 = vpop.permute.xlu0 %1263
      %1267 = vset.pattern.permute.xlu0 0
      %1268 = vperm.xlu0 %1267, %v1222
      %v1269 = vpop.permute.xlu0 %1268
      %1272 = vset.pattern.permute.xlu0 0
      %1273 = vperm.xlu0 %1272, %v1223
      %v1274 = vpop.permute.xlu0 %1273
      %1277 = vset.pattern.permute.xlu0 0
      %1278 = vperm.xlu0 %1277, %v1224
      %v1279 = vpop.permute.xlu0 %1278
      %1282 = vset.pattern.permute.xlu0 0
      %1283 = vperm.xlu0 %1282, %v1225
      %v1284 = vpop.permute.xlu0 %1283
      %1287 = vset.pattern.permute.xlu0 0
      %1288 = vperm.xlu0 %1287, %v1226
      %v1289 = vpop.permute.xlu0 %1288
      %1292 = vset.pattern.permute.xlu0 0
      %1293 = vperm.xlu0 %1292, %v1227
      %v1294 = vpop.permute.xlu0 %1293
      %1297 = vset.pattern.permute.xlu0 0
      %1298 = vperm.xlu0 %1297, %v1228
      %v1299 = vpop.permute.xlu0 %1298
      %1302 = vset.pattern.permute.xlu0 0
      %1303 = vperm.xlu0 %1302, %v1229
      %v1304 = vpop.permute.xlu0 %1303
      %1307 = vset.pattern.permute.xlu0 0
      %1308 = vperm.xlu0 %1307, %v1230
      %v1309 = vpop.permute.xlu0 %1308
      %v1311 = vadd.f32 %v1183, %v1234
      %v1312 = vadd.f32 %v1184, %v1234
      %v1313 = vadd.f32 %v1185, %v1239
      %v1314 = vadd.f32 %v1186, %v1239
      %v1315 = vadd.f32 %v1187, %v1244
      %v1316 = vadd.f32 %v1188, %v1244
      %v1317 = vadd.f32 %v1189, %v1249
      %v1318 = vadd.f32 %v1190, %v1249
      %v1319 = vadd.f32 %v1191, %v1254
      %v1320 = vadd.f32 %v1192, %v1254
      %v1321 = vadd.f32 %v1193, %v1259
      %v1322 = vadd.f32 %v1194, %v1259
      %v1323 = vadd.f32 %v1195, %v1264
      %v1324 = vadd.f32 %v1196, %v1264
      %v1325 = vadd.f32 %v1197, %v1269
      %v1326 = vadd.f32 %v1198, %v1269
      %v1327 = vadd.f32 %v1199, %v1274
      %v1328 = vadd.f32 %v1200, %v1274
      %v1329 = vadd.f32 %v1201, %v1279
      %v1330 = vadd.f32 %v1202, %v1279
      %v1331 = vadd.f32 %v1203, %v1284
      %v1332 = vadd.f32 %v1204, %v1284
      %v1333 = vadd.f32 %v1205, %v1289
      %v1334 = vadd.f32 %v1206, %v1289
      %v1335 = vadd.f32 %v1207, %v1294
      %v1336 = vadd.f32 %v1208, %v1294
      %v1337 = vadd.f32 %v1209, %v1299
      %v1338 = vadd.f32 %v1210, %v1299
      %v1339 = vadd.f32 %v1211, %v1304
      %v1340 = vadd.f32 %v1212, %v1304
      %v1341 = vadd.f32 %v1213, %v1309
      %v1342 = vadd.f32 %v1214, %v1309
      %v1343 = vmax.f32 %v1311, 0.0
      %v1344 = vmax.f32 %v1312, 0.0
      %v1345 = vmax.f32 %v1313, 0.0
      %v1346 = vmax.f32 %v1314, 0.0
      %v1347 = vmax.f32 %v1315, 0.0
      %v1348 = vmax.f32 %v1316, 0.0
      %v1349 = vmax.f32 %v1317, 0.0
      %v1350 = vmax.f32 %v1318, 0.0
      %v1351 = vmax.f32 %v1319, 0.0
      %v1352 = vmax.f32 %v1320, 0.0
      %v1353 = vmax.f32 %v1321, 0.0
      %v1354 = vmax.f32 %v1322, 0.0
      %v1355 = vmax.f32 %v1323, 0.0
      %v1356 = vmax.f32 %v1324, 0.0
      %v1357 = vmax.f32 %v1325, 0.0
      %v1358 = vmax.f32 %v1326, 0.0
      %v1359 = vmax.f32 %v1327, 0.0
      %v1360 = vmax.f32 %v1328, 0.0
      %v1361 = vmax.f32 %v1329, 0.0
      %v1362 = vmax.f32 %v1330, 0.0
      %v1363 = vmax.f32 %v1331, 0.0
      %v1364 = vmax.f32 %v1332, 0.0
      %v1365 = vmax.f32 %v1333, 0.0
      %v1366 = vmax.f32 %v1334, 0.0
      %v1367 = vmax.f32 %v1335, 0.0
      %v1368 = vmax.f32 %v1336, 0.0
      %v1369 = vmax.f32 %v1337, 0.0
      %v1370 = vmax.f32 %v1338, 0.0
      %v1371 = vmax.f32 %v1339, 0.0
      %v1372 = vmax.f32 %v1340, 0.0
      %v1373 = vmax.f32 %v1341, 0.0
      %v1374 = vmax.f32 %v1342, 0.0
      %1375 = vxpose.xlu0.b32.start [1/16] %v1343, 128
      %1376 = vxpose.xlu0.b32.cont [2/16] %v1345, 128
      %1377 = vxpose.xlu0.b32.cont [3/16] %v1347, 128
      %1378 = vxpose.xlu0.b32.cont [4/16] %v1349, 128
      %1379 = vxpose.xlu0.b32.cont [5/16] %v1351, 128
      %1380 = vxpose.xlu0.b32.cont [6/16] %v1353, 128
      %1381 = vxpose.xlu0.b32.cont [7/16] %v1355, 128
      %1382 = vxpose.xlu0.b32.cont [8/16] %v1357, 128
      %1383 = vxpose.xlu0.b32.cont [9/16] %v1359, 128
      %1384 = vxpose.xlu0.b32.cont [10/16] %v1361, 128
      %1385 = vxpose.xlu0.b32.cont [11/16] %v1363, 128
      %1386 = vxpose.xlu0.b32.cont [12/16] %v1365, 128
      %1387 = vxpose.xlu0.b32.cont [13/16] %v1367, 128
      %1388 = vxpose.xlu0.b32.cont [14/16] %v1369, 128
      %1389 = vxpose.xlu0.b32.cont [15/16] %v1371, 128
      %1390 = vxpose.xlu0.b32.end [16/16] %v1373, 128
      %v1391 = vpop.trf.xlu0
      %v1392 = vpop.trf.xlu0
      %v1393 = vpop.trf.xlu0
      %v1394 = vpop.trf.xlu0
      %v1395 = vpop.trf.xlu0
      %v1396 = vpop.trf.xlu0
      %v1397 = vpop.trf.xlu0
      %v1398 = vpop.trf.xlu0
      %v1399 = vpop.trf.xlu0
      %v1400 = vpop.trf.xlu0
      %v1401 = vpop.trf.xlu0
      %v1402 = vpop.trf.xlu0
      %v1403 = vpop.trf.xlu0
      %v1404 = vpop.trf.xlu0
      %v1405 = vpop.trf.xlu0
      %v1406 = vpop.trf.xlu0
      %1407 = vxpose.xlu0.b32.start [1/16] %v1344, 128
      %1408 = vxpose.xlu0.b32.cont [2/16] %v1346, 128
      %1409 = vxpose.xlu0.b32.cont [3/16] %v1348, 128
      %1410 = vxpose.xlu0.b32.cont [4/16] %v1350, 128
      %1411 = vxpose.xlu0.b32.cont [5/16] %v1352, 128
      %1412 = vxpose.xlu0.b32.cont [6/16] %v1354, 128
      %1413 = vxpose.xlu0.b32.cont [7/16] %v1356, 128
      %1414 = vxpose.xlu0.b32.cont [8/16] %v1358, 128
      %1415 = vxpose.xlu0.b32.cont [9/16] %v1360, 128
      %1416 = vxpose.xlu0.b32.cont [10/16] %v1362, 128
      %1417 = vxpose.xlu0.b32.cont [11/16] %v1364, 128
      %1418 = vxpose.xlu0.b32.cont [12/16] %v1366, 128
      %1419 = vxpose.xlu0.b32.cont [13/16] %v1368, 128
      %1420 = vxpose.xlu0.b32.cont [14/16] %v1370, 128
      %1421 = vxpose.xlu0.b32.cont [15/16] %v1372, 128
      %1422 = vxpose.xlu0.b32.end [16/16] %v1374, 128
      %v1423 = vpop.trf.xlu0
      %v1424 = vpop.trf.xlu0
      %v1425 = vpop.trf.xlu0
      %v1426 = vpop.trf.xlu0
      %v1427 = vpop.trf.xlu0
      %v1428 = vpop.trf.xlu0
      %v1429 = vpop.trf.xlu0
      %v1430 = vpop.trf.xlu0
      %v1431 = vpop.trf.xlu0
      %v1432 = vpop.trf.xlu0
      %v1433 = vpop.trf.xlu0
      %v1434 = vpop.trf.xlu0
      %v1435 = vpop.trf.xlu0
      %v1436 = vpop.trf.xlu0
      %v1437 = vpop.trf.xlu0
      %v1438 = vpop.trf.xlu0
      %v1439 = vpack.c.bf16 %v1392, %v1391
      %v1440 = vpack.c.bf16 %v1394, %v1393
      %v1441 = vpack.c.bf16 %v1396, %v1395
      %v1442 = vpack.c.bf16 %v1398, %v1397
      %v1443 = vpack.c.bf16 %v1400, %v1399
      %v1444 = vpack.c.bf16 %v1402, %v1401
      %v1445 = vpack.c.bf16 %v1404, %v1403
      %v1446 = vpack.c.bf16 %v1406, %v1405
      %v1447 = vpack.c.bf16 %v1424, %v1423
      %v1448 = vpack.c.bf16 %v1426, %v1425
      %v1449 = vpack.c.bf16 %v1428, %v1427
      %v1450 = vpack.c.bf16 %v1430, %v1429
      %v1451 = vpack.c.bf16 %v1432, %v1431
      %v1452 = vpack.c.bf16 %v1434, %v1433
      %v1453 = vpack.c.bf16 %v1436, %v1435
      %v1454 = vpack.c.bf16 %v1438, %v1437
      %1455 = vst [vmem:[#allocation2] sm:$0xff] 0
      %1456 = vst [vmem:[#allocation2 + $0x18] sm:$0xff] 0
      %1457 = vst [vmem:[#allocation2 + $0x30] sm:$0xff] 0
      %1458 = vst [vmem:[#allocation2 + $0x48] sm:$0xff] %v1439
      %1459 = vst [vmem:[#allocation2 + $0x60] sm:$0xff] 0
      %1460 = vst [vmem:[#allocation2 + $0x78] sm:$0xff] %v1440
      %1461 = vst [vmem:[#allocation2 + $0x90] sm:$0xff] 0
      %1462 = vst [vmem:[#allocation2 + $0xa8] sm:$0xff] %v1441
      %1463 = vst [vmem:[#allocation2 + $0xc0] sm:$0xff] 0
      %1464 = vst [vmem:[#allocation2 + $0xd8] sm:$0xff] %v1442
      %1465 = vst [vmem:[#allocation2 + $0xf0] sm:$0xff] 0
      %1466 = vst [vmem:[#allocation2 + $0x108] sm:$0xff] %v1443
      %1467 = vst [vmem:[#allocation2 + $0x120] sm:$0xff] 0
      %1468 = vst [vmem:[#allocation2 + $0x138] sm:$0xff] %v1444
      %1469 = vst [vmem:[#allocation2 + $0x150] sm:$0xff] 0
      %1470 = vst [vmem:[#allocation2 + $0x168] sm:$0xff] %v1445
      %1471 = vst [vmem:[#allocation2 + $0x180] sm:$0xff] 0
      %1472 = vst [vmem:[#allocation2 + $0x198] sm:$0xff] %v1446
      %1473 = vst [vmem:[#allocation2 + $0x1b0] sm:$0xff] 0
      %1474 = vst [vmem:[#allocation2 + $0x1c8] sm:$0xff] %v1447
      %1475 = vst [vmem:[#allocation2 + $0x1e0] sm:$0xff] 0
      %1476 = vst [vmem:[#allocation2 + $0x1f8] sm:$0xff] %v1448
      %1477 = vst [vmem:[#allocation2 + $0x210] sm:$0xff] 0
      %1478 = vst [vmem:[#allocation2 + $0x228] sm:$0xff] %v1449
      %1479 = vst [vmem:[#allocation2 + $0x240] sm:$0xff] 0
      %1480 = vst [vmem:[#allocation2 + $0x258] sm:$0xff] %v1450
      %1481 = vst [vmem:[#allocation2 + $0x270] sm:$0xff] 0
      %1482 = vst [vmem:[#allocation2 + $0x288] sm:$0xff] %v1451
      %1483 = vst [vmem:[#allocation2 + $0x2a0] sm:$0xff] 0
      %1484 = vst [vmem:[#allocation2 + $0x2b8] sm:$0xff] %v1452
      %1485 = vst [vmem:[#allocation2 + $0x2d0] sm:$0xff] 0
      %1486 = vst [vmem:[#allocation2 + $0x2e8] sm:$0xff] %v1453
      %1487 = vst [vmem:[#allocation2 + $0x300] sm:$0xff] 0
      %1488 = vst [vmem:[#allocation2 + $0x318] sm:$0xff] %v1454
      %1489 = vst [vmem:[#allocation2 + $0x8] sm:$0xff] 0
      %1490 = vst [vmem:[#allocation2 + $0x20] sm:$0xff] %v1439
      %1491 = vst [vmem:[#allocation2 + $0x38] sm:$0xff] 0
      %1492 = vst [vmem:[#allocation2 + $0x50] sm:$0xff] %v1440
      %1493 = vst [vmem:[#allocation2 + $0x68] sm:$0xff] 0
      %1494 = vst [vmem:[#allocation2 + $0x80] sm:$0xff] %v1441
      %1495 = vst [vmem:[#allocation2 + $0x98] sm:$0xff] 0
      %1496 = vst [vmem:[#allocation2 + $0xb0] sm:$0xff] %v1442
      %1497 = vst [vmem:[#allocation2 + $0xc8] sm:$0xff] 0
      %1498 = vst [vmem:[#allocation2 + $0xe0] sm:$0xff] %v1443
      %1499 = vst [vmem:[#allocation2 + $0xf8] sm:$0xff] 0
      %1500 = vst [vmem:[#allocation2 + $0x110] sm:$0xff] %v1444
      %1501 = vst [vmem:[#allocation2 + $0x128] sm:$0xff] 0
      %1502 = vst [vmem:[#allocation2 + $0x140] sm:$0xff] %v1445
      %1503 = vst [vmem:[#allocation2 + $0x158] sm:$0xff] 0
      %1504 = vst [vmem:[#allocation2 + $0x170] sm:$0xff] %v1446
      %1505 = vst [vmem:[#allocation2 + $0x188] sm:$0xff] 0
      %1506 = vst [vmem:[#allocation2 + $0x1a0] sm:$0xff] %v1447
      %1507 = vst [vmem:[#allocation2 + $0x1b8] sm:$0xff] 0
      %1508 = vst [vmem:[#allocation2 + $0x1d0] sm:$0xff] %v1448
      %1509 = vst [vmem:[#allocation2 + $0x1e8] sm:$0xff] 0
      %1510 = vst [vmem:[#allocation2 + $0x200] sm:$0xff] %v1449
      %1511 = vst [vmem:[#allocation2 + $0x218] sm:$0xff] 0
      %1512 = vst [vmem:[#allocation2 + $0x230] sm:$0xff] %v1450
      %1513 = vst [vmem:[#allocation2 + $0x248] sm:$0xff] 0
      %1514 = vst [vmem:[#allocation2 + $0x260] sm:$0xff] %v1451
      %1515 = vst [vmem:[#allocation2 + $0x278] sm:$0xff] 0
      %1516 = vst [vmem:[#allocation2 + $0x290] sm:$0xff] %v1452
      %1517 = vst [vmem:[#allocation2 + $0x2a8] sm:$0xff] 0
      %1518 = vst [vmem:[#allocation2 + $0x2c0] sm:$0xff] %v1453
      %1519 = vst [vmem:[#allocation2 + $0x2d8] sm:$0xff] 0
      %1520 = vst [vmem:[#allocation2 + $0x2f0] sm:$0xff] %v1454
      %1521 = vst [vmem:[#allocation2 + $0x308] sm:$0xff] 0
      %1522 = vst [vmem:[#allocation2 + $0x320] sm:$0xff] 0
      %1523 = vst [vmem:[#allocation2 + $0x10] sm:$0xff] 0
      %1524 = vst [vmem:[#allocation2 + $0x28] sm:$0xff] %v1440
      %1525 = vst [vmem:[#allocation2 + $0x40] sm:$0xff] 0
      %1526 = vst [vmem:[#allocation2 + $0x58] sm:$0xff] %v1441
      %1527 = vst [vmem:[#allocation2 + $0x70] sm:$0xff] 0
      %1528 = vst [vmem:[#allocation2 + $0x88] sm:$0xff] %v1442
      %1529 = vst [vmem:[#allocation2 + $0xa0] sm:$0xff] 0
      %1530 = vst [vmem:[#allocation2 + $0xb8] sm:$0xff] %v1443
      %1531 = vst [vmem:[#allocation2 + $0xd0] sm:$0xff] 0
      %1532 = vst [vmem:[#allocation2 + $0xe8] sm:$0xff] %v1444
      %1533 = vst [vmem:[#allocation2 + $0x100] sm:$0xff] 0
      %1534 = vst [vmem:[#allocation2 + $0x118] sm:$0xff] %v1445
      %1535 = vst [vmem:[#allocation2 + $0x130] sm:$0xff] 0
      %1536 = vst [vmem:[#allocation2 + $0x148] sm:$0xff] %v1446
      %1537 = vst [vmem:[#allocation2 + $0x160] sm:$0xff] 0
      %1538 = vst [vmem:[#allocation2 + $0x178] sm:$0xff] %v1447
      %1539 = vst [vmem:[#allocation2 + $0x190] sm:$0xff] 0
      %1540 = vst [vmem:[#allocation2 + $0x1a8] sm:$0xff] %v1448
      %1541 = vst [vmem:[#allocation2 + $0x1c0] sm:$0xff] 0
      %1542 = vst [vmem:[#allocation2 + $0x1d8] sm:$0xff] %v1449
      %1543 = vst [vmem:[#allocation2 + $0x1f0] sm:$0xff] 0
      %1544 = vst [vmem:[#allocation2 + $0x208] sm:$0xff] %v1450
      %1545 = vst [vmem:[#allocation2 + $0x220] sm:$0xff] 0
      %1546 = vst [vmem:[#allocation2 + $0x238] sm:$0xff] %v1451
      %1547 = vst [vmem:[#allocation2 + $0x250] sm:$0xff] 0
      %1548 = vst [vmem:[#allocation2 + $0x268] sm:$0xff] %v1452
      %1549 = vst [vmem:[#allocation2 + $0x280] sm:$0xff] 0
      %1550 = vst [vmem:[#allocation2 + $0x298] sm:$0xff] %v1453
      %1551 = vst [vmem:[#allocation2 + $0x2b0] sm:$0xff] 0
      %1552 = vst [vmem:[#allocation2 + $0x2c8] sm:$0xff] %v1454
      %1553 = vst [vmem:[#allocation2 + $0x2e0] sm:$0xff] 0
      %1554 = vst [vmem:[#allocation2 + $0x2f8] sm:$0xff] 0
      %1555 = vst [vmem:[#allocation2 + $0x310] sm:$0xff] 0
      %1556 = vst [vmem:[#allocation2 + $0x328] sm:$0xff] 0
      %v1557 = vld [vmem:[#allocation2] sm:$0x80]
      %v1558 = vld [vmem:[#allocation2 + $0x8] sm:$0x80]
      %v1559 = vld [vmem:[#allocation2 + $0x10] sm:$0x80]
      %v1560 = vld [vmem:[#allocation2 + $0x18] sm:$0xff]
      %v1561 = vld [vmem:[#allocation2 + $0x20] sm:$0xff]
      %v1562 = vld [vmem:[#allocation2 + $0x28] sm:$0xff]
      %v1563 = vld [vmem:[#allocation2 + $0x30] sm:$0xff]
      %v1564 = vld [vmem:[#allocation2 + $0x38] sm:$0xff]
      %v1565 = vld [vmem:[#allocation2 + $0x40] sm:$0xff]
      %v1566 = vld [vmem:[#allocation2 + $0x48] sm:$0xff]
      %v1567 = vld [vmem:[#allocation2 + $0x50] sm:$0xff]
      %v1568 = vld [vmem:[#allocation2 + $0x58] sm:$0xff]
      %v1569 = vld [vmem:[#allocation2 + $0x60] sm:$0xff]
      %v1570 = vld [vmem:[#allocation2 + $0x68] sm:$0xff]
      %v1571 = vld [vmem:[#allocation2 + $0x70] sm:$0xff]
      %v1572 = vld [vmem:[#allocation2 + $0x78] sm:$0xff]
      %v1573 = vld [vmem:[#allocation2 + $0x80] sm:$0xff]
      %v1574 = vld [vmem:[#allocation2 + $0x88] sm:$0xff]
      %v1575 = vld [vmem:[#allocation2 + $0x90] sm:$0xff]
      %v1576 = vld [vmem:[#allocation2 + $0x98] sm:$0xff]
      %v1577 = vld [vmem:[#allocation2 + $0xa0] sm:$0xff]
      %v1578 = vld [vmem:[#allocation2 + $0xa8] sm:$0xff]
      %v1579 = vld [vmem:[#allocation2 + $0xb0] sm:$0xff]
      %v1580 = vld [vmem:[#allocation2 + $0xb8] sm:$0xff]
      %v1581 = vld [vmem:[#allocation2 + $0xc0] sm:$0xff]
      %v1582 = vld [vmem:[#allocation2 + $0xc8] sm:$0xff]
      %v1583 = vld [vmem:[#allocation2 + $0xd0] sm:$0xff]
      %v1584 = vld [vmem:[#allocation2 + $0xd8] sm:$0xff]
      %v1585 = vld [vmem:[#allocation2 + $0xe0] sm:$0xff]
      %v1586 = vld [vmem:[#allocation2 + $0xe8] sm:$0xff]
      %v1587 = vld [vmem:[#allocation2 + $0xf0] sm:$0xff]
      %v1588 = vld [vmem:[#allocation2 + $0xf8] sm:$0xff]
      %v1589 = vld [vmem:[#allocation2 + $0x100] sm:$0xff]
      %v1590 = vld [vmem:[#allocation2 + $0x108] sm:$0xff]
      %v1591 = vld [vmem:[#allocation2 + $0x110] sm:$0xff]
      %v1592 = vld [vmem:[#allocation2 + $0x118] sm:$0xff]
      %v1593 = vld [vmem:[#allocation2 + $0x120] sm:$0xff]
      %v1594 = vld [vmem:[#allocation2 + $0x128] sm:$0xff]
      %v1595 = vld [vmem:[#allocation2 + $0x130] sm:$0xff]
      %v1596 = vld [vmem:[#allocation2 + $0x138] sm:$0xff]
      %v1597 = vld [vmem:[#allocation2 + $0x140] sm:$0xff]
      %v1598 = vld [vmem:[#allocation2 + $0x148] sm:$0xff]
      %v1599 = vld [vmem:[#allocation2 + $0x150] sm:$0xff]
      %v1600 = vld [vmem:[#allocation2 + $0x158] sm:$0xff]
      %v1601 = vld [vmem:[#allocation2 + $0x160] sm:$0xff]
      %v1602 = vld [vmem:[#allocation2 + $0x168] sm:$0xff]
      %v1603 = vld [vmem:[#allocation2 + $0x170] sm:$0xff]
      %v1604 = vld [vmem:[#allocation2 + $0x178] sm:$0xff]
      %v1605 = vld [vmem:[#allocation2 + $0x180] sm:$0xff]
      %v1606 = vld [vmem:[#allocation2 + $0x188] sm:$0xff]
      %v1607 = vld [vmem:[#allocation2 + $0x190] sm:$0xff]
      %v1608 = vld [vmem:[#allocation2 + $0x198] sm:$0xff]
      %v1609 = vld [vmem:[#allocation2 + $0x1a0] sm:$0xff]
      %v1610 = vld [vmem:[#allocation2 + $0x1a8] sm:$0xff]
      %v1611 = vld [vmem:[#allocation2 + $0x1b0] sm:$0xff]
      %v1612 = vld [vmem:[#allocation2 + $0x1b8] sm:$0xff]
      %v1613 = vld [vmem:[#allocation2 + $0x1c0] sm:$0xff]
      %v1614 = vld [vmem:[#allocation2 + $0x1c8] sm:$0xff]
      %v1615 = vld [vmem:[#allocation2 + $0x1d0] sm:$0xff]
      %v1616 = vld [vmem:[#allocation2 + $0x1d8] sm:$0xff]
      %v1617 = vld [vmem:[#allocation2 + $0x1e0] sm:$0xff]
      %v1618 = vld [vmem:[#allocation2 + $0x1e8] sm:$0xff]
      %v1619 = vld [vmem:[#allocation2 + $0x1f0] sm:$0xff]
      %v1620 = vld [vmem:[#allocation2 + $0x1f8] sm:$0xff]
      %v1621 = vld [vmem:[#allocation2 + $0x200] sm:$0xff]
      %v1622 = vld [vmem:[#allocation2 + $0x208] sm:$0xff]
      %v1623 = vld [vmem:[#allocation2 + $0x210] sm:$0xff]
      %v1624 = vld [vmem:[#allocation2 + $0x218] sm:$0xff]
      %v1625 = vld [vmem:[#allocation2 + $0x220] sm:$0xff]
      %v1626 = vld [vmem:[#allocation2 + $0x228] sm:$0xff]
      %v1627 = vld [vmem:[#allocation2 + $0x230] sm:$0xff]
      %v1628 = vld [vmem:[#allocation2 + $0x238] sm:$0xff]
      %v1629 = vld [vmem:[#allocation2 + $0x240] sm:$0xff]
      %v1630 = vld [vmem:[#allocation2 + $0x248] sm:$0xff]
      %v1631 = vld [vmem:[#allocation2 + $0x250] sm:$0xff]
      %v1632 = vld [vmem:[#allocation2 + $0x258] sm:$0xff]
      %v1633 = vld [vmem:[#allocation2 + $0x260] sm:$0xff]
      %v1634 = vld [vmem:[#allocation2 + $0x268] sm:$0xff]
      %v1635 = vld [vmem:[#allocation2 + $0x270] sm:$0xff]
      %v1636 = vld [vmem:[#allocation2 + $0x278] sm:$0xff]
      %v1637 = vld [vmem:[#allocation2 + $0x280] sm:$0xff]
      %v1638 = vld [vmem:[#allocation2 + $0x288] sm:$0xff]
      %v1639 = vld [vmem:[#allocation2 + $0x290] sm:$0xff]
      %v1640 = vld [vmem:[#allocation2 + $0x298] sm:$0xff]
      %v1641 = vld [vmem:[#allocation2 + $0x2a0] sm:$0xff]
      %v1642 = vld [vmem:[#allocation2 + $0x2a8] sm:$0xff]
      %v1643 = vld [vmem:[#allocation2 + $0x2b0] sm:$0xff]
      %v1644 = vld [vmem:[#allocation2 + $0x2b8] sm:$0xff]
      %v1645 = vld [vmem:[#allocation2 + $0x2c0] sm:$0xff]
      %v1646 = vld [vmem:[#allocation2 + $0x2c8] sm:$0xff]
      %v1647 = vld [vmem:[#allocation2 + $0x2d0] sm:$0xff]
      %v1648 = vld [vmem:[#allocation2 + $0x2d8] sm:$0xff]
      %v1649 = vld [vmem:[#allocation2 + $0x2e0] sm:$0xff]
      %v1650 = vld [vmem:[#allocation2 + $0x2e8] sm:$0xff]
      %v1651 = vld [vmem:[#allocation2 + $0x2f0] sm:$0xff]
      %v1652 = vld [vmem:[#allocation2 + $0x2f8] sm:$0xff]
      %v1653 = vld [vmem:[#allocation2 + $0x300] sm:$0xff]
      %v1654 = vld [vmem:[#allocation2 + $0x308] sm:$0xff]
      %v1655 = vld [vmem:[#allocation2 + $0x310] sm:$0xff]
      %v1656 = vld [vmem:[%s4] sm:$0xf]
      %v1657 = vld [vmem:[%s4 + $0x4] sm:$0xf]
      %v1658 = vld [vmem:[%s4 + $0x8] sm:$0xf]
      %v1659 = vld [vmem:[%s4 + $0xc] sm:$0xf]
      %v1660 = vld [vmem:[%s4 + $0x10] sm:$0xf]
      %v1661 = vld [vmem:[%s4 + $0x14] sm:$0xf]
      %v1662 = vld [vmem:[%s4 + $0x18] sm:$0xf]
      %v1663 = vld [vmem:[%s4 + $0x1c] sm:$0xf]
      %v1664 = vld [vmem:[%s4 + $0x20] sm:$0xf]
      %v1665 = vld [vmem:[%s4 + $0x24] sm:$0xf]
      %v1666 = vld [vmem:[%s4 + $0x28] sm:$0xf]
      %v1667 = vld [vmem:[%s4 + $0x2c] sm:$0xf]
      %v1668 = vld [vmem:[%s4 + $0x30] sm:$0xf]
      %v1669 = vld [vmem:[%s4 + $0x34] sm:$0xf]
      %v1670 = vld [vmem:[%s4 + $0x38] sm:$0xf]
      %v1671 = vld [vmem:[%s4 + $0x3c] sm:$0xf]
      %v1672 = vld [vmem:[%s4 + $0x40] sm:$0xf]
      %v1673 = vld [vmem:[%s4 + $0x44] sm:$0xf]
      %v1674 = vld [vmem:[%s4 + $0x48] sm:$0xf]
      %v1675 = vld [vmem:[%s4 + $0x4c] sm:$0xf]
      %v1676 = vld [vmem:[%s4 + $0x50] sm:$0xf]
      %v1677 = vld [vmem:[%s4 + $0x54] sm:$0xf]
      %v1678 = vld [vmem:[%s4 + $0x58] sm:$0xf]
      %v1679 = vld [vmem:[%s4 + $0x5c] sm:$0xf]
      %v1680 = vld [vmem:[%s4 + $0x60] sm:$0xf]
      %v1681 = vld [vmem:[%s4 + $0x64] sm:$0xf]
      %v1682 = vld [vmem:[%s4 + $0x68] sm:$0xf]
      %v1683 = vld [vmem:[%s4 + $0x6c] sm:$0xf]
      %v1684 = vld [vmem:[%s4 + $0x70] sm:$0xf]
      %v1685 = vld [vmem:[%s4 + $0x74] sm:$0xf]
      %v1686 = vld [vmem:[%s4 + $0x78] sm:$0xf]
      %v1687 = vld [vmem:[%s4 + $0x7c] sm:$0xf]
      %v1688 = vld [vmem:[%s4 + $0x80] sm:$0xf]
      %v1689 = vld [vmem:[%s4 + $0x84] sm:$0xf]
      %v1690 = vld [vmem:[%s4 + $0x88] sm:$0xf]
      %v1691 = vld [vmem:[%s4 + $0x8c] sm:$0xf]
      %v1692 = vld [vmem:[%s4 + $0x90] sm:$0xf]
      %v1693 = vld [vmem:[%s4 + $0x94] sm:$0xf]
      %v1694 = vld [vmem:[%s4 + $0x98] sm:$0xf]
      %v1695 = vld [vmem:[%s4 + $0x9c] sm:$0xf]
      %v1696 = vld [vmem:[%s4 + $0xa0] sm:$0xf]
      %v1697 = vld [vmem:[%s4 + $0xa4] sm:$0xf]
      %v1698 = vld [vmem:[%s4 + $0xa8] sm:$0xf]
      %v1699 = vld [vmem:[%s4 + $0xac] sm:$0xf]
      %v1700 = vld [vmem:[%s4 + $0xb0] sm:$0xf]
      %v1701 = vld [vmem:[%s4 + $0xb4] sm:$0xf]
      %v1702 = vld [vmem:[%s4 + $0xb8] sm:$0xf]
      %v1703 = vld [vmem:[%s4 + $0xbc] sm:$0xf]
      %vm1704 = vsmask.f32 256
      %v1706 = vshrl.u32 %v1557, 16
      %v1708 = vrot.slane %v1706, 7
      %v1710 = vshrl.u32 %v1560, 16
      %v1712 = vrot.slane %v1710, 7
      %v1713 = vshll.u32 %v1560, 16
      %v1715 = vor.u32 %v1712, %v1713
      %v1716 = vsel %vm1704, %v1708, %v1715
      %v1718 = vshrl.u32 %v1558, 16
      %v1720 = vrot.slane %v1718, 7
      %v1722 = vshrl.u32 %v1561, 16
      %v1724 = vrot.slane %v1722, 7
      %v1725 = vshll.u32 %v1561, 16
      %v1727 = vor.u32 %v1724, %v1725
      %v1728 = vsel %vm1704, %v1720, %v1727
      %v1730 = vshrl.u32 %v1559, 16
      %v1732 = vrot.slane %v1730, 7
      %v1734 = vshrl.u32 %v1562, 16
      %v1736 = vrot.slane %v1734, 7
      %v1737 = vshll.u32 %v1562, 16
      %v1739 = vor.u32 %v1736, %v1737
      %v1740 = vsel %vm1704, %v1732, %v1739
      %v1742 = vshrl.u32 %v1563, 16
      %v1744 = vrot.slane %v1742, 7
      %v1745 = vshll.u32 %v1563, 16
      %v1747 = vor.u32 %v1744, %v1745
      %v1748 = vsel %vm1704, %v1712, %v1747
      %v1750 = vshrl.u32 %v1564, 16
      %v1752 = vrot.slane %v1750, 7
      %v1753 = vshll.u32 %v1564, 16
      %v1755 = vor.u32 %v1752, %v1753
      %v1756 = vsel %vm1704, %v1724, %v1755
      %v1758 = vshrl.u32 %v1565, 16
      %v1760 = vrot.slane %v1758, 7
      %v1761 = vshll.u32 %v1565, 16
      %v1763 = vor.u32 %v1760, %v1761
      %v1764 = vsel %vm1704, %v1736, %v1763
      %v1766 = vshrl.u32 %v1566, 16
      %v1768 = vrot.slane %v1766, 7
      %v1769 = vshll.u32 %v1566, 16
      %v1771 = vor.u32 %v1768, %v1769
      %v1772 = vsel %vm1704, %v1744, %v1771
      %v1774 = vshrl.u32 %v1567, 16
      %v1776 = vrot.slane %v1774, 7
      %v1777 = vshll.u32 %v1567, 16
      %v1779 = vor.u32 %v1776, %v1777
      %v1780 = vsel %vm1704, %v1752, %v1779
      %v1782 = vshrl.u32 %v1568, 16
      %v1784 = vrot.slane %v1782, 7
      %v1785 = vshll.u32 %v1568, 16
      %v1787 = vor.u32 %v1784, %v1785
      %v1788 = vsel %vm1704, %v1760, %v1787
      %v1790 = vshrl.u32 %v1569, 16
      %v1792 = vrot.slane %v1790, 7
      %v1793 = vshll.u32 %v1569, 16
      %v1795 = vor.u32 %v1792, %v1793
      %v1796 = vsel %vm1704, %v1768, %v1795
      %v1798 = vshrl.u32 %v1570, 16
      %v1800 = vrot.slane %v1798, 7
      %v1801 = vshll.u32 %v1570, 16
      %v1803 = vor.u32 %v1800, %v1801
      %v1804 = vsel %vm1704, %v1776, %v1803
      %v1806 = vshrl.u32 %v1571, 16
      %v1808 = vrot.slane %v1806, 7
      %v1809 = vshll.u32 %v1571, 16
      %v1811 = vor.u32 %v1808, %v1809
      %v1812 = vsel %vm1704, %v1784, %v1811
      %v1814 = vshrl.u32 %v1572, 16
      %v1816 = vrot.slane %v1814, 7
      %v1817 = vshll.u32 %v1572, 16
      %v1819 = vor.u32 %v1816, %v1817
      %v1820 = vsel %vm1704, %v1792, %v1819
      %v1822 = vshrl.u32 %v1573, 16
      %v1824 = vrot.slane %v1822, 7
      %v1825 = vshll.u32 %v1573, 16
      %v1827 = vor.u32 %v1824, %v1825
      %v1828 = vsel %vm1704, %v1800, %v1827
      %v1830 = vshrl.u32 %v1574, 16
      %v1832 = vrot.slane %v1830, 7
      %v1833 = vshll.u32 %v1574, 16
      %v1835 = vor.u32 %v1832, %v1833
      %v1836 = vsel %vm1704, %v1808, %v1835
      %v1838 = vshrl.u32 %v1575, 16
      %v1840 = vrot.slane %v1838, 7
      %v1841 = vshll.u32 %v1575, 16
      %v1843 = vor.u32 %v1840, %v1841
      %v1844 = vsel %vm1704, %v1816, %v1843
      %v1846 = vshrl.u32 %v1576, 16
      %v1848 = vrot.slane %v1846, 7
      %v1849 = vshll.u32 %v1576, 16
      %v1851 = vor.u32 %v1848, %v1849
      %v1852 = vsel %vm1704, %v1824, %v1851
      %v1854 = vshrl.u32 %v1577, 16
      %v1856 = vrot.slane %v1854, 7
      %v1857 = vshll.u32 %v1577, 16
      %v1859 = vor.u32 %v1856, %v1857
      %v1860 = vsel %vm1704, %v1832, %v1859
      %v1862 = vshrl.u32 %v1578, 16
      %v1864 = vrot.slane %v1862, 7
      %v1865 = vshll.u32 %v1578, 16
      %v1867 = vor.u32 %v1864, %v1865
      %v1868 = vsel %vm1704, %v1840, %v1867
      %v1870 = vshrl.u32 %v1579, 16
      %v1872 = vrot.slane %v1870, 7
      %v1873 = vshll.u32 %v1579, 16
      %v1875 = vor.u32 %v1872, %v1873
      %v1876 = vsel %vm1704, %v1848, %v1875
      %v1878 = vshrl.u32 %v1580, 16
      %v1880 = vrot.slane %v1878, 7
      %v1881 = vshll.u32 %v1580, 16
      %v1883 = vor.u32 %v1880, %v1881
      %v1884 = vsel %vm1704, %v1856, %v1883
      %v1886 = vshrl.u32 %v1581, 16
      %v1888 = vrot.slane %v1886, 7
      %v1889 = vshll.u32 %v1581, 16
      %v1891 = vor.u32 %v1888, %v1889
      %v1892 = vsel %vm1704, %v1864, %v1891
      %v1894 = vshrl.u32 %v1582, 16
      %v1896 = vrot.slane %v1894, 7
      %v1897 = vshll.u32 %v1582, 16
      %v1899 = vor.u32 %v1896, %v1897
      %v1900 = vsel %vm1704, %v1872, %v1899
      %v1902 = vshrl.u32 %v1583, 16
      %v1904 = vrot.slane %v1902, 7
      %v1905 = vshll.u32 %v1583, 16
      %v1907 = vor.u32 %v1904, %v1905
      %v1908 = vsel %vm1704, %v1880, %v1907
      %v1910 = vshrl.u32 %v1584, 16
      %v1912 = vrot.slane %v1910, 7
      %v1913 = vshll.u32 %v1584, 16
      %v1915 = vor.u32 %v1912, %v1913
      %v1916 = vsel %vm1704, %v1888, %v1915
      %v1918 = vshrl.u32 %v1585, 16
      %v1920 = vrot.slane %v1918, 7
      %v1921 = vshll.u32 %v1585, 16
      %v1923 = vor.u32 %v1920, %v1921
      %v1924 = vsel %vm1704, %v1896, %v1923
      %v1926 = vshrl.u32 %v1586, 16
      %v1928 = vrot.slane %v1926, 7
      %v1929 = vshll.u32 %v1586, 16
      %v1931 = vor.u32 %v1928, %v1929
      %v1932 = vsel %vm1704, %v1904, %v1931
      %v1934 = vshrl.u32 %v1587, 16
      %v1936 = vrot.slane %v1934, 7
      %v1937 = vshll.u32 %v1587, 16
      %v1939 = vor.u32 %v1936, %v1937
      %v1940 = vsel %vm1704, %v1912, %v1939
      %v1942 = vshrl.u32 %v1588, 16
      %v1944 = vrot.slane %v1942, 7
      %v1945 = vshll.u32 %v1588, 16
      %v1947 = vor.u32 %v1944, %v1945
      %v1948 = vsel %vm1704, %v1920, %v1947
      %v1950 = vshrl.u32 %v1589, 16
      %v1952 = vrot.slane %v1950, 7
      %v1953 = vshll.u32 %v1589, 16
      %v1955 = vor.u32 %v1952, %v1953
      %v1956 = vsel %vm1704, %v1928, %v1955
      %v1958 = vshrl.u32 %v1590, 16
      %v1960 = vrot.slane %v1958, 7
      %v1961 = vshll.u32 %v1590, 16
      %v1963 = vor.u32 %v1960, %v1961
      %v1964 = vsel %vm1704, %v1936, %v1963
      %v1966 = vshrl.u32 %v1591, 16
      %v1968 = vrot.slane %v1966, 7
      %v1969 = vshll.u32 %v1591, 16
      %v1971 = vor.u32 %v1968, %v1969
      %v1972 = vsel %vm1704, %v1944, %v1971
      %v1974 = vshrl.u32 %v1592, 16
      %v1976 = vrot.slane %v1974, 7
      %v1977 = vshll.u32 %v1592, 16
      %v1979 = vor.u32 %v1976, %v1977
      %v1980 = vsel %vm1704, %v1952, %v1979
      %v1982 = vshrl.u32 %v1593, 16
      %v1984 = vrot.slane %v1982, 7
      %v1985 = vshll.u32 %v1593, 16
      %v1987 = vor.u32 %v1984, %v1985
      %v1988 = vsel %vm1704, %v1960, %v1987
      %v1990 = vshrl.u32 %v1594, 16
      %v1992 = vrot.slane %v1990, 7
      %v1993 = vshll.u32 %v1594, 16
      %v1995 = vor.u32 %v1992, %v1993
      %v1996 = vsel %vm1704, %v1968, %v1995
      %v1998 = vshrl.u32 %v1595, 16
      %v2000 = vrot.slane %v1998, 7
      %v2001 = vshll.u32 %v1595, 16
      %v2003 = vor.u32 %v2000, %v2001
      %v2004 = vsel %vm1704, %v1976, %v2003
      %v2006 = vshrl.u32 %v1596, 16
      %v2008 = vrot.slane %v2006, 7
      %v2009 = vshll.u32 %v1596, 16
      %v2011 = vor.u32 %v2008, %v2009
      %v2012 = vsel %vm1704, %v1984, %v2011
      %v2014 = vshrl.u32 %v1597, 16
      %v2016 = vrot.slane %v2014, 7
      %v2017 = vshll.u32 %v1597, 16
      %v2019 = vor.u32 %v2016, %v2017
      %v2020 = vsel %vm1704, %v1992, %v2019
      %v2022 = vshrl.u32 %v1598, 16
      %v2024 = vrot.slane %v2022, 7
      %v2025 = vshll.u32 %v1598, 16
      %v2027 = vor.u32 %v2024, %v2025
      %v2028 = vsel %vm1704, %v2000, %v2027
      %v2030 = vshrl.u32 %v1599, 16
      %v2032 = vrot.slane %v2030, 7
      %v2033 = vshll.u32 %v1599, 16
      %v2035 = vor.u32 %v2032, %v2033
      %v2036 = vsel %vm1704, %v2008, %v2035
      %v2038 = vshrl.u32 %v1600, 16
      %v2040 = vrot.slane %v2038, 7
      %v2041 = vshll.u32 %v1600, 16
      %v2043 = vor.u32 %v2040, %v2041
      %v2044 = vsel %vm1704, %v2016, %v2043
      %v2046 = vshrl.u32 %v1601, 16
      %v2048 = vrot.slane %v2046, 7
      %v2049 = vshll.u32 %v1601, 16
      %v2051 = vor.u32 %v2048, %v2049
      %v2052 = vsel %vm1704, %v2024, %v2051
      %v2054 = vshrl.u32 %v1602, 16
      %v2056 = vrot.slane %v2054, 7
      %v2057 = vshll.u32 %v1602, 16
      %v2059 = vor.u32 %v2056, %v2057
      %v2060 = vsel %vm1704, %v2032, %v2059
      %v2062 = vshrl.u32 %v1603, 16
      %v2064 = vrot.slane %v2062, 7
      %v2065 = vshll.u32 %v1603, 16
      %v2067 = vor.u32 %v2064, %v2065
      %v2068 = vsel %vm1704, %v2040, %v2067
      %v2070 = vshrl.u32 %v1604, 16
      %v2072 = vrot.slane %v2070, 7
      %v2073 = vshll.u32 %v1604, 16
      %v2075 = vor.u32 %v2072, %v2073
      %v2076 = vsel %vm1704, %v2048, %v2075
      %v2078 = vshrl.u32 %v1605, 16
      %v2080 = vrot.slane %v2078, 7
      %v2081 = vshll.u32 %v1605, 16
      %v2083 = vor.u32 %v2080, %v2081
      %v2084 = vsel %vm1704, %v2056, %v2083
      %v2086 = vshrl.u32 %v1606, 16
      %v2088 = vrot.slane %v2086, 7
      %v2089 = vshll.u32 %v1606, 16
      %v2091 = vor.u32 %v2088, %v2089
      %v2092 = vsel %vm1704, %v2064, %v2091
      %v2094 = vshrl.u32 %v1607, 16
      %v2096 = vrot.slane %v2094, 7
      %v2097 = vshll.u32 %v1607, 16
      %v2099 = vor.u32 %v2096, %v2097
      %v2100 = vsel %vm1704, %v2072, %v2099
      %v2102 = vshrl.u32 %v1608, 16
      %v2104 = vrot.slane %v2102, 7
      %v2105 = vshll.u32 %v1608, 16
      %v2107 = vor.u32 %v2104, %v2105
      %v2108 = vsel %vm1704, %v2080, %v2107
      %v2110 = vshrl.u32 %v1609, 16
      %v2112 = vrot.slane %v2110, 7
      %v2113 = vshll.u32 %v1609, 16
      %v2115 = vor.u32 %v2112, %v2113
      %v2116 = vsel %vm1704, %v2088, %v2115
      %v2118 = vshrl.u32 %v1610, 16
      %v2120 = vrot.slane %v2118, 7
      %v2121 = vshll.u32 %v1610, 16
      %v2123 = vor.u32 %v2120, %v2121
      %v2124 = vsel %vm1704, %v2096, %v2123
      %v2126 = vshrl.u32 %v1611, 16
      %v2128 = vrot.slane %v2126, 7
      %v2129 = vshll.u32 %v1611, 16
      %v2131 = vor.u32 %v2128, %v2129
      %v2132 = vsel %vm1704, %v2104, %v2131
      %v2134 = vshrl.u32 %v1612, 16
      %v2136 = vrot.slane %v2134, 7
      %v2137 = vshll.u32 %v1612, 16
      %v2139 = vor.u32 %v2136, %v2137
      %v2140 = vsel %vm1704, %v2112, %v2139
      %v2142 = vshrl.u32 %v1613, 16
      %v2144 = vrot.slane %v2142, 7
      %v2145 = vshll.u32 %v1613, 16
      %v2147 = vor.u32 %v2144, %v2145
      %v2148 = vsel %vm1704, %v2120, %v2147
      %v2150 = vshrl.u32 %v1614, 16
      %v2152 = vrot.slane %v2150, 7
      %v2153 = vshll.u32 %v1614, 16
      %v2155 = vor.u32 %v2152, %v2153
      %v2156 = vsel %vm1704, %v2128, %v2155
      %v2158 = vshrl.u32 %v1615, 16
      %v2160 = vrot.slane %v2158, 7
      %v2161 = vshll.u32 %v1615, 16
      %v2163 = vor.u32 %v2160, %v2161
      %v2164 = vsel %vm1704, %v2136, %v2163
      %v2166 = vshrl.u32 %v1616, 16
      %v2168 = vrot.slane %v2166, 7
      %v2169 = vshll.u32 %v1616, 16
      %v2171 = vor.u32 %v2168, %v2169
      %v2172 = vsel %vm1704, %v2144, %v2171
      %v2174 = vshrl.u32 %v1617, 16
      %v2176 = vrot.slane %v2174, 7
      %v2177 = vshll.u32 %v1617, 16
      %v2179 = vor.u32 %v2176, %v2177
      %v2180 = vsel %vm1704, %v2152, %v2179
      %v2182 = vshrl.u32 %v1618, 16
      %v2184 = vrot.slane %v2182, 7
      %v2185 = vshll.u32 %v1618, 16
      %v2187 = vor.u32 %v2184, %v2185
      %v2188 = vsel %vm1704, %v2160, %v2187
      %v2190 = vshrl.u32 %v1619, 16
      %v2192 = vrot.slane %v2190, 7
      %v2193 = vshll.u32 %v1619, 16
      %v2195 = vor.u32 %v2192, %v2193
      %v2196 = vsel %vm1704, %v2168, %v2195
      %v2198 = vshrl.u32 %v1620, 16
      %v2200 = vrot.slane %v2198, 7
      %v2201 = vshll.u32 %v1620, 16
      %v2203 = vor.u32 %v2200, %v2201
      %v2204 = vsel %vm1704, %v2176, %v2203
      %v2206 = vshrl.u32 %v1621, 16
      %v2208 = vrot.slane %v2206, 7
      %v2209 = vshll.u32 %v1621, 16
      %v2211 = vor.u32 %v2208, %v2209
      %v2212 = vsel %vm1704, %v2184, %v2211
      %v2214 = vshrl.u32 %v1622, 16
      %v2216 = vrot.slane %v2214, 7
      %v2217 = vshll.u32 %v1622, 16
      %v2219 = vor.u32 %v2216, %v2217
      %v2220 = vsel %vm1704, %v2192, %v2219
      %v2222 = vshrl.u32 %v1623, 16
      %v2224 = vrot.slane %v2222, 7
      %v2225 = vshll.u32 %v1623, 16
      %v2227 = vor.u32 %v2224, %v2225
      %v2228 = vsel %vm1704, %v2200, %v2227
      %v2230 = vshrl.u32 %v1624, 16
      %v2232 = vrot.slane %v2230, 7
      %v2233 = vshll.u32 %v1624, 16
      %v2235 = vor.u32 %v2232, %v2233
      %v2236 = vsel %vm1704, %v2208, %v2235
      %v2238 = vshrl.u32 %v1625, 16
      %v2240 = vrot.slane %v2238, 7
      %v2241 = vshll.u32 %v1625, 16
      %v2243 = vor.u32 %v2240, %v2241
      %v2244 = vsel %vm1704, %v2216, %v2243
      %v2246 = vshrl.u32 %v1626, 16
      %v2248 = vrot.slane %v2246, 7
      %v2249 = vshll.u32 %v1626, 16
      %v2251 = vor.u32 %v2248, %v2249
      %v2252 = vsel %vm1704, %v2224, %v2251
      %v2254 = vshrl.u32 %v1627, 16
      %v2256 = vrot.slane %v2254, 7
      %v2257 = vshll.u32 %v1627, 16
      %v2259 = vor.u32 %v2256, %v2257
      %v2260 = vsel %vm1704, %v2232, %v2259
      %v2262 = vshrl.u32 %v1628, 16
      %v2264 = vrot.slane %v2262, 7
      %v2265 = vshll.u32 %v1628, 16
      %v2267 = vor.u32 %v2264, %v2265
      %v2268 = vsel %vm1704, %v2240, %v2267
      %v2270 = vshrl.u32 %v1629, 16
      %v2272 = vrot.slane %v2270, 7
      %v2273 = vshll.u32 %v1629, 16
      %v2275 = vor.u32 %v2272, %v2273
      %v2276 = vsel %vm1704, %v2248, %v2275
      %v2278 = vshrl.u32 %v1630, 16
      %v2280 = vrot.slane %v2278, 7
      %v2281 = vshll.u32 %v1630, 16
      %v2283 = vor.u32 %v2280, %v2281
      %v2284 = vsel %vm1704, %v2256, %v2283
      %v2286 = vshrl.u32 %v1631, 16
      %v2288 = vrot.slane %v2286, 7
      %v2289 = vshll.u32 %v1631, 16
      %v2291 = vor.u32 %v2288, %v2289
      %v2292 = vsel %vm1704, %v2264, %v2291
      %v2294 = vshrl.u32 %v1632, 16
      %v2296 = vrot.slane %v2294, 7
      %v2297 = vshll.u32 %v1632, 16
      %v2299 = vor.u32 %v2296, %v2297
      %v2300 = vsel %vm1704, %v2272, %v2299
      %v2302 = vshrl.u32 %v1633, 16
      %v2304 = vrot.slane %v2302, 7
      %v2305 = vshll.u32 %v1633, 16
      %v2307 = vor.u32 %v2304, %v2305
      %v2308 = vsel %vm1704, %v2280, %v2307
      %v2310 = vshrl.u32 %v1634, 16
      %v2312 = vrot.slane %v2310, 7
      %v2313 = vshll.u32 %v1634, 16
      %v2315 = vor.u32 %v2312, %v2313
      %v2316 = vsel %vm1704, %v2288, %v2315
      %v2318 = vshrl.u32 %v1635, 16
      %v2320 = vrot.slane %v2318, 7
      %v2321 = vshll.u32 %v1635, 16
      %v2323 = vor.u32 %v2320, %v2321
      %v2324 = vsel %vm1704, %v2296, %v2323
      %v2326 = vshrl.u32 %v1636, 16
      %v2328 = vrot.slane %v2326, 7
      %v2329 = vshll.u32 %v1636, 16
      %v2331 = vor.u32 %v2328, %v2329
      %v2332 = vsel %vm1704, %v2304, %v2331
      %v2334 = vshrl.u32 %v1637, 16
      %v2336 = vrot.slane %v2334, 7
      %v2337 = vshll.u32 %v1637, 16
      %v2339 = vor.u32 %v2336, %v2337
      %v2340 = vsel %vm1704, %v2312, %v2339
      %v2342 = vshrl.u32 %v1638, 16
      %v2344 = vrot.slane %v2342, 7
      %v2345 = vshll.u32 %v1638, 16
      %v2347 = vor.u32 %v2344, %v2345
      %v2348 = vsel %vm1704, %v2320, %v2347
      %v2350 = vshrl.u32 %v1639, 16
      %v2352 = vrot.slane %v2350, 7
      %v2353 = vshll.u32 %v1639, 16
      %v2355 = vor.u32 %v2352, %v2353
      %v2356 = vsel %vm1704, %v2328, %v2355
      %v2358 = vshrl.u32 %v1640, 16
      %v2360 = vrot.slane %v2358, 7
      %v2361 = vshll.u32 %v1640, 16
      %v2363 = vor.u32 %v2360, %v2361
      %v2364 = vsel %vm1704, %v2336, %v2363
      %v2366 = vshrl.u32 %v1641, 16
      %v2368 = vrot.slane %v2366, 7
      %v2369 = vshll.u32 %v1641, 16
      %v2371 = vor.u32 %v2368, %v2369
      %v2372 = vsel %vm1704, %v2344, %v2371
      %v2374 = vshrl.u32 %v1642, 16
      %v2376 = vrot.slane %v2374, 7
      %v2377 = vshll.u32 %v1642, 16
      %v2379 = vor.u32 %v2376, %v2377
      %v2380 = vsel %vm1704, %v2352, %v2379
      %v2382 = vshrl.u32 %v1643, 16
      %v2384 = vrot.slane %v2382, 7
      %v2385 = vshll.u32 %v1643, 16
      %v2387 = vor.u32 %v2384, %v2385
      %v2388 = vsel %vm1704, %v2360, %v2387
      %v2390 = vshrl.u32 %v1644, 16
      %v2392 = vrot.slane %v2390, 7
      %v2393 = vshll.u32 %v1644, 16
      %v2395 = vor.u32 %v2392, %v2393
      %v2396 = vsel %vm1704, %v2368, %v2395
      %v2398 = vshrl.u32 %v1645, 16
      %v2400 = vrot.slane %v2398, 7
      %v2401 = vshll.u32 %v1645, 16
      %v2403 = vor.u32 %v2400, %v2401
      %v2404 = vsel %vm1704, %v2376, %v2403
      %v2406 = vshrl.u32 %v1646, 16
      %v2408 = vrot.slane %v2406, 7
      %v2409 = vshll.u32 %v1646, 16
      %v2411 = vor.u32 %v2408, %v2409
      %v2412 = vsel %vm1704, %v2384, %v2411
      %v2414 = vshrl.u32 %v1647, 16
      %v2416 = vrot.slane %v2414, 7
      %v2417 = vshll.u32 %v1647, 16
      %v2419 = vor.u32 %v2416, %v2417
      %v2420 = vsel %vm1704, %v2392, %v2419
      %v2422 = vshrl.u32 %v1648, 16
      %v2424 = vrot.slane %v2422, 7
      %v2425 = vshll.u32 %v1648, 16
      %v2427 = vor.u32 %v2424, %v2425
      %v2428 = vsel %vm1704, %v2400, %v2427
      %v2430 = vshrl.u32 %v1649, 16
      %v2432 = vrot.slane %v2430, 7
      %v2433 = vshll.u32 %v1649, 16
      %v2435 = vor.u32 %v2432, %v2433
      %v2436 = vsel %vm1704, %v2408, %v2435
      %v2438 = vshrl.u32 %v1650, 16
      %v2440 = vrot.slane %v2438, 7
      %v2441 = vshll.u32 %v1650, 16
      %v2443 = vor.u32 %v2440, %v2441
      %v2444 = vsel %vm1704, %v2416, %v2443
      %v2446 = vshrl.u32 %v1651, 16
      %v2448 = vrot.slane %v2446, 7
      %v2449 = vshll.u32 %v1651, 16
      %v2451 = vor.u32 %v2448, %v2449
      %v2452 = vsel %vm1704, %v2424, %v2451
      %v2454 = vshrl.u32 %v1652, 16
      %v2456 = vrot.slane %v2454, 7
      %v2457 = vshll.u32 %v1652, 16
      %v2459 = vor.u32 %v2456, %v2457
      %v2460 = vsel %vm1704, %v2432, %v2459
      %v2462 = vshrl.u32 %v1653, 16
      %v2464 = vrot.slane %v2462, 7
      %v2465 = vshll.u32 %v1653, 16
      %v2467 = vor.u32 %v2464, %v2465
      %v2468 = vsel %vm1704, %v2440, %v2467
      %v2470 = vshrl.u32 %v1654, 16
      %v2472 = vrot.slane %v2470, 7
      %v2473 = vshll.u32 %v1654, 16
      %v2475 = vor.u32 %v2472, %v2473
      %v2476 = vsel %vm1704, %v2448, %v2475
      %v2478 = vshrl.u32 %v1655, 16
      %v2480 = vrot.slane %v2478, 7
      %v2481 = vshll.u32 %v1655, 16
      %v2483 = vor.u32 %v2480, %v2481
      %v2484 = vsel %vm1704, %v2456, %v2483
      %v2629 = vunpack.c.l.b16 %v1656
      %v2630 = vunpack.c.l.b16 %v1657
      %v2631 = vunpack.c.l.b16 %v1658
      %v2632 = vunpack.c.l.b16 %v1659
      %v2633 = vunpack.c.l.b16 %v1660
      %v2634 = vunpack.c.l.b16 %v1661
      %v2635 = vunpack.c.l.b16 %v1662
      %v2636 = vunpack.c.l.b16 %v1663
      %v2637 = vunpack.c.l.b16 %v1664
      %v2638 = vunpack.c.l.b16 %v1665
      %v2639 = vunpack.c.l.b16 %v1666
      %v2640 = vunpack.c.l.b16 %v1667
      %v2641 = vunpack.c.l.b16 %v1668
      %v2642 = vunpack.c.l.b16 %v1669
      %v2643 = vunpack.c.l.b16 %v1670
      %v2644 = vunpack.c.l.b16 %v1671
      %v2645 = vunpack.c.l.b16 %v1672
      %v2646 = vunpack.c.l.b16 %v1673
      %v2647 = vunpack.c.l.b16 %v1674
      %v2648 = vunpack.c.l.b16 %v1675
      %v2649 = vunpack.c.l.b16 %v1676
      %v2650 = vunpack.c.l.b16 %v1677
      %v2651 = vunpack.c.l.b16 %v1678
      %v2652 = vunpack.c.l.b16 %v1679
      %v2653 = vunpack.c.l.b16 %v1680
      %v2654 = vunpack.c.l.b16 %v1681
      %v2655 = vunpack.c.l.b16 %v1682
      %v2656 = vunpack.c.l.b16 %v1683
      %v2657 = vunpack.c.l.b16 %v1684
      %v2658 = vunpack.c.l.b16 %v1685
      %v2659 = vunpack.c.l.b16 %v1686
      %v2660 = vunpack.c.l.b16 %v1687
      %v2661 = vunpack.c.l.b16 %v1688
      %v2662 = vunpack.c.l.b16 %v1689
      %v2663 = vunpack.c.l.b16 %v1690
      %v2664 = vunpack.c.l.b16 %v1691
      %v2665 = vunpack.c.l.b16 %v1692
      %v2666 = vunpack.c.l.b16 %v1693
      %v2667 = vunpack.c.l.b16 %v1694
      %v2668 = vunpack.c.l.b16 %v1695
      %v2669 = vunpack.c.l.b16 %v1696
      %v2670 = vunpack.c.l.b16 %v1697
      %v2671 = vunpack.c.l.b16 %v1698
      %v2672 = vunpack.c.l.b16 %v1699
      %v2673 = vunpack.c.l.b16 %v1700
      %v2674 = vunpack.c.l.b16 %v1701
      %v2675 = vunpack.c.l.b16 %v1702
      %v2676 = vunpack.c.l.b16 %v1703
      %v2677 = vpack.c.b16 %v2630, %v2629
      %v2678 = vpack.c.b16 %v2632, %v2631
      %v2679 = vpack.c.b16 %v2634, %v2633
      %v2680 = vpack.c.b16 %v2636, %v2635
      %v2681 = vpack.c.b16 %v2638, %v2637
      %v2682 = vpack.c.b16 %v2640, %v2639
      %v2683 = vpack.c.b16 %v2642, %v2641
      %v2684 = vpack.c.b16 %v2644, %v2643
      %v2685 = vpack.c.b16 %v2646, %v2645
      %v2686 = vpack.c.b16 %v2648, %v2647
      %v2687 = vpack.c.b16 %v2650, %v2649
      %v2688 = vpack.c.b16 %v2652, %v2651
      %v2689 = vpack.c.b16 %v2654, %v2653
      %v2690 = vpack.c.b16 %v2656, %v2655
      %v2691 = vpack.c.b16 %v2658, %v2657
      %v2692 = vpack.c.b16 %v2660, %v2659
      %v2693 = vpack.c.b16 %v2662, %v2661
      %v2694 = vpack.c.b16 %v2664, %v2663
      %v2695 = vpack.c.b16 %v2666, %v2665
      %v2696 = vpack.c.b16 %v2668, %v2667
      %v2697 = vpack.c.b16 %v2670, %v2669
      %v2698 = vpack.c.b16 %v2672, %v2671
      %v2699 = vpack.c.b16 %v2674, %v2673
      %v2700 = vpack.c.b16 %v2676, %v2675
      %2725 = vmatprep.subr.bf16.mxu0 0
      %2726 = vmatpush1.bf16.msra.mxu0 %v2677
      %2727 = vmatprep.subr.bf16.mxu0 0
      %2728 = vmatpush1.bf16.msra.mxu0 %v2678
      %2729 = vmatprep.subr.bf16.mxu0 0
      %2730 = vmatpush1.bf16.msra.mxu0 %v2679
      %2731 = vmatprep.subr.bf16.mxu0 0
      %2732 = vmatpush1.bf16.msra.mxu0 %v2680
      %2733 = vmatprep.subr.bf16.mxu0 0
      %2734 = vmatpush1.bf16.msra.mxu0 %v2681
      %2735 = vmatprep.subr.bf16.mxu0 0
      %2736 = vmatpush1.bf16.msra.mxu0 %v2682
      %2737 = vmatprep.subr.bf16.mxu0 0
      %2738 = vmatpush1.bf16.msra.mxu0 %v2683
      %2739 = vmatprep.subr.bf16.mxu0 0
      %2740 = vmatpush1.bf16.msra.mxu0 %v2684
      %2741 = vmatprep.subr.bf16.mxu0 0
      %2742 = vmatpush1.bf16.msra.mxu0 %v2685
      %2743 = vmatprep.subr.bf16.mxu0 0
      %2744 = vmatpush1.bf16.msra.mxu0 %v2686
      %2745 = vmatprep.subr.bf16.mxu0 0
      %2746 = vmatpush1.bf16.msra.mxu0 %v2687
      %2747 = vmatprep.subr.bf16.mxu0 0
      %2748 = vmatpush1.bf16.msra.mxu0 %v2688
      %2749 = vmatprep.subr.bf16.mxu0 0
      %2750 = vmatpush1.bf16.msra.mxu0 %v2689
      %2751 = vmatprep.subr.bf16.mxu0 0
      %2752 = vmatpush1.bf16.msra.mxu0 %v2690
      %2753 = vmatprep.subr.bf16.mxu0 0
      %2754 = vmatpush1.bf16.msra.mxu0 %v2691
      %2755 = vmatprep.subr.bf16.mxu0 0
      %2756 = vmatpush1.bf16.msra.mxu0 %v2692
      %2757 = vmatprep.mubr.bf16.mxu0 %v1728
      %2758 = vmatmul.mubr.bf16.gmra.mrb[0].mxu0 %v1716
      %v2759 = vpop.f32.mrb[0].mxu0
      %v2760 = vadd.f32 0.0, %v2759
      %v2761 = vpop.f32.mrb[0].mxu0
      %v2762 = vpop.f32.mrb[0].mxu0
      %v2763 = vadd.f32 0.0, %v2762
      %v2764 = vpop.f32.mrb[0].mxu0
      %2765 = vmatprep.mubr.bf16.mxu0 %v1756
      %2766 = vmatmul.mubr.bf16.gmra.mrb[0].mxu0 %v1748
      %v2767 = vpop.f32.mrb[0].mxu0
      %v2768 = vadd.f32 0.0, %v2767
      %v2769 = vpop.f32.mrb[0].mxu0
      %v2770 = vpop.f32.mrb[0].mxu0
      %v2771 = vadd.f32 0.0, %v2770
      %v2772 = vpop.f32.mrb[0].mxu0
      %2773 = vmatprep.mubr.bf16.mxu0 %v1780
      %2774 = vmatmul.mubr.bf16.gmra.mrb[0].mxu0 %v1772
      %v2775 = vpop.f32.mrb[0].mxu0
      %v2776 = vadd.f32 0.0, %v2775
      %v2777 = vpop.f32.mrb[0].mxu0
      %v2778 = vpop.f32.mrb[0].mxu0
      %v2779 = vadd.f32 0.0, %v2778
      %v2780 = vpop.f32.mrb[0].mxu0
      %2781 = vmatprep.mubr.bf16.mxu0 %v1804
      %2782 = vmatmul.mubr.bf16.gmra.mrb[0].mxu0 %v1796
      %v2783 = vpop.f32.mrb[0].mxu0
      %v2784 = vadd.f32 0.0, %v2783
      %v2785 = vpop.f32.mrb[0].mxu0
      %v2786 = vpop.f32.mrb[0].mxu0
      %v2787 = vadd.f32 0.0, %v2786
      %v2788 = vpop.f32.mrb[0].mxu0
      %2789 = vmatprep.mubr.bf16.mxu0 %v1828
      %2790 = vmatmul.mubr.bf16.gmra.mrb[0].mxu0 %v1820
      %v2791 = vpop.f32.mrb[0].mxu0
      %v2792 = vadd.f32 0.0, %v2791
      %v2793 = vpop.f32.mrb[0].mxu0
      %v2794 = vpop.f32.mrb[0].mxu0
      %v2795 = vadd.f32 0.0, %v2794
      %v2796 = vpop.f32.mrb[0].mxu0
      %2797 = vmatprep.mubr.bf16.mxu0 %v1852
      %2798 = vmatmul.mubr.bf16.gmra.mrb[0].mxu0 %v1844
      %v2799 = vpop.f32.mrb[0].mxu0
      %v2800 = vadd.f32 0.0, %v2799
      %v2801 = vpop.f32.mrb[0].mxu0
      %v2802 = vpop.f32.mrb[0].mxu0
      %v2803 = vadd.f32 0.0, %v2802
      %v2804 = vpop.f32.mrb[0].mxu0
      %2805 = vmatprep.mubr.bf16.mxu0 %v1876
      %2806 = vmatmul.mubr.bf16.gmra.mrb[0].mxu0 %v1868
      %v2807 = vpop.f32.mrb[0].mxu0
      %v2808 = vadd.f32 0.0, %v2807
      %v2809 = vpop.f32.mrb[0].mxu0
      %v2810 = vpop.f32.mrb[0].mxu0
      %v2811 = vadd.f32 0.0, %v2810
      %v2812 = vpop.f32.mrb[0].mxu0
      %2813 = vmatprep.mubr.bf16.mxu0 %v1900
      %2814 = vmatmul.mubr.bf16.gmra.mrb[0].mxu0 %v1892
      %v2815 = vpop.f32.mrb[0].mxu0
      %v2816 = vadd.f32 0.0, %v2815
      %v2817 = vpop.f32.mrb[0].mxu0
      %v2818 = vpop.f32.mrb[0].mxu0
      %v2819 = vadd.f32 0.0, %v2818
      %v2820 = vpop.f32.mrb[0].mxu0
      %2821 = vmatprep.mubr.bf16.mxu0 %v1924
      %2822 = vmatmul.mubr.bf16.gmra.mrb[0].mxu0 %v1916
      %v2823 = vpop.f32.mrb[0].mxu0
      %v2824 = vadd.f32 0.0, %v2823
      %v2825 = vpop.f32.mrb[0].mxu0
      %v2826 = vpop.f32.mrb[0].mxu0
      %v2827 = vadd.f32 0.0, %v2826
      %v2828 = vpop.f32.mrb[0].mxu0
      %2829 = vmatprep.mubr.bf16.mxu0 %v1948
      %2830 = vmatmul.mubr.bf16.gmra.mrb[0].mxu0 %v1940
      %v2831 = vpop.f32.mrb[0].mxu0
      %v2832 = vadd.f32 0.0, %v2831
      %v2833 = vpop.f32.mrb[0].mxu0
      %v2834 = vpop.f32.mrb[0].mxu0
      %v2835 = vadd.f32 0.0, %v2834
      %v2836 = vpop.f32.mrb[0].mxu0
      %2837 = vmatprep.mubr.bf16.mxu0 %v1972
      %2838 = vmatmul.mubr.bf16.gmra.mrb[0].mxu0 %v1964
      %v2839 = vpop.f32.mrb[0].mxu0
      %v2840 = vadd.f32 0.0, %v2839
      %v2841 = vpop.f32.mrb[0].mxu0
      %v2842 = vpop.f32.mrb[0].mxu0
      %v2843 = vadd.f32 0.0, %v2842
      %v2844 = vpop.f32.mrb[0].mxu0
      %2845 = vmatprep.mubr.bf16.mxu0 %v1996
      %2846 = vmatmul.mubr.bf16.gmra.mrb[0].mxu0 %v1988
      %v2847 = vpop.f32.mrb[0].mxu0
      %v2848 = vadd.f32 0.0, %v2847
      %v2849 = vpop.f32.mrb[0].mxu0
      %v2850 = vpop.f32.mrb[0].mxu0
      %v2851 = vadd.f32 0.0, %v2850
      %v2852 = vpop.f32.mrb[0].mxu0
      %2853 = vmatprep.mubr.bf16.mxu0 %v2020
      %2854 = vmatmul.mubr.bf16.gmra.mrb[0].mxu0 %v2012
      %v2855 = vpop.f32.mrb[0].mxu0
      %v2856 = vadd.f32 0.0, %v2855
      %v2857 = vpop.f32.mrb[0].mxu0
      %v2858 = vpop.f32.mrb[0].mxu0
      %v2859 = vadd.f32 0.0, %v2858
      %v2860 = vpop.f32.mrb[0].mxu0
      %2861 = vmatprep.mubr.bf16.mxu0 %v2044
      %2862 = vmatmul.mubr.bf16.gmra.mrb[0].mxu0 %v2036
      %v2863 = vpop.f32.mrb[0].mxu0
      %v2864 = vadd.f32 0.0, %v2863
      %v2865 = vpop.f32.mrb[0].mxu0
      %v2866 = vpop.f32.mrb[0].mxu0
      %v2867 = vadd.f32 0.0, %v2866
      %v2868 = vpop.f32.mrb[0].mxu0
      %2869 = vmatprep.mubr.bf16.mxu0 %v2068
      %2870 = vmatmul.mubr.bf16.gmra.mrb[0].mxu0 %v2060
      %v2871 = vpop.f32.mrb[0].mxu0
      %v2872 = vadd.f32 0.0, %v2871
      %v2873 = vpop.f32.mrb[0].mxu0
      %v2874 = vpop.f32.mrb[0].mxu0
      %v2875 = vadd.f32 0.0, %v2874
      %v2876 = vpop.f32.mrb[0].mxu0
      %2877 = vmatprep.mubr.bf16.mxu0 %v2092
      %2878 = vmatmul.mubr.bf16.gmra.mrb[0].mxu0 %v2084
      %v2879 = vpop.f32.mrb[0].mxu0
      %v2880 = vadd.f32 0.0, %v2879
      %v2881 = vpop.f32.mrb[0].mxu0
      %v2882 = vpop.f32.mrb[0].mxu0
      %v2883 = vadd.f32 0.0, %v2882
      %v2884 = vpop.f32.mrb[0].mxu0
      %2885 = vmatprep.mubr.bf16.mxu0 %v2116
      %2886 = vmatmul.mubr.bf16.gmra.mrb[0].mxu0 %v2108
      %v2887 = vpop.f32.mrb[0].mxu0
      %v2888 = vadd.f32 0.0, %v2887
      %v2889 = vpop.f32.mrb[0].mxu0
      %v2890 = vpop.f32.mrb[0].mxu0
      %v2891 = vadd.f32 0.0, %v2890
      %v2892 = vpop.f32.mrb[0].mxu0
      %2893 = vmatprep.mubr.bf16.mxu0 %v2140
      %2894 = vmatmul.mubr.bf16.gmra.mrb[0].mxu0 %v2132
      %v2895 = vpop.f32.mrb[0].mxu0
      %v2896 = vadd.f32 0.0, %v2895
      %v2897 = vpop.f32.mrb[0].mxu0
      %v2898 = vpop.f32.mrb[0].mxu0
      %v2899 = vadd.f32 0.0, %v2898
      %v2900 = vpop.f32.mrb[0].mxu0
      %2901 = vmatprep.mubr.bf16.mxu0 %v2164
      %2902 = vmatmul.mubr.bf16.gmra.mrb[0].mxu0 %v2156
      %v2903 = vpop.f32.mrb[0].mxu0
      %v2904 = vadd.f32 0.0, %v2903
      %v2905 = vpop.f32.mrb[0].mxu0
      %v2906 = vpop.f32.mrb[0].mxu0
      %v2907 = vadd.f32 0.0, %v2906
      %v2908 = vpop.f32.mrb[0].mxu0
      %2909 = vmatprep.mubr.bf16.mxu0 %v2188
      %2910 = vmatmul.mubr.bf16.gmra.mrb[0].mxu0 %v2180
      %v2911 = vpop.f32.mrb[0].mxu0
      %v2912 = vadd.f32 0.0, %v2911
      %v2913 = vpop.f32.mrb[0].mxu0
      %v2914 = vpop.f32.mrb[0].mxu0
      %v2915 = vadd.f32 0.0, %v2914
      %v2916 = vpop.f32.mrb[0].mxu0
      %2917 = vmatprep.mubr.bf16.mxu0 %v2212
      %2918 = vmatmul.mubr.bf16.gmra.mrb[0].mxu0 %v2204
      %v2919 = vpop.f32.mrb[0].mxu0
      %v2920 = vadd.f32 0.0, %v2919
      %v2921 = vpop.f32.mrb[0].mxu0
      %v2922 = vpop.f32.mrb[0].mxu0
      %v2923 = vadd.f32 0.0, %v2922
      %v2924 = vpop.f32.mrb[0].mxu0
      %2925 = vmatprep.mubr.bf16.mxu0 %v2236
      %2926 = vmatmul.mubr.bf16.gmra.mrb[0].mxu0 %v2228
      %v2927 = vpop.f32.mrb[0].mxu0
      %v2928 = vadd.f32 0.0, %v2927
      %v2929 = vpop.f32.mrb[0].mxu0
      %v2930 = vpop.f32.mrb[0].mxu0
      %v2931 = vadd.f32 0.0, %v2930
      %v2932 = vpop.f32.mrb[0].mxu0
      %2933 = vmatprep.mubr.bf16.mxu0 %v2260
      %2934 = vmatmul.mubr.bf16.gmra.mrb[0].mxu0 %v2252
      %v2935 = vpop.f32.mrb[0].mxu0
      %v2936 = vadd.f32 0.0, %v2935
      %v2937 = vpop.f32.mrb[0].mxu0
      %v2938 = vpop.f32.mrb[0].mxu0
      %v2939 = vadd.f32 0.0, %v2938
      %v2940 = vpop.f32.mrb[0].mxu0
      %2941 = vmatprep.mubr.bf16.mxu0 %v2284
      %2942 = vmatmul.mubr.bf16.gmra.mrb[0].mxu0 %v2276
      %v2943 = vpop.f32.mrb[0].mxu0
      %v2944 = vadd.f32 0.0, %v2943
      %v2945 = vpop.f32.mrb[0].mxu0
      %v2946 = vpop.f32.mrb[0].mxu0
      %v2947 = vadd.f32 0.0, %v2946
      %v2948 = vpop.f32.mrb[0].mxu0
      %2949 = vmatprep.mubr.bf16.mxu0 %v2308
      %2950 = vmatmul.mubr.bf16.gmra.mrb[0].mxu0 %v2300
      %v2951 = vpop.f32.mrb[0].mxu0
      %v2952 = vadd.f32 0.0, %v2951
      %v2953 = vpop.f32.mrb[0].mxu0
      %v2954 = vpop.f32.mrb[0].mxu0
      %v2955 = vadd.f32 0.0, %v2954
      %v2956 = vpop.f32.mrb[0].mxu0
      %2957 = vmatprep.mubr.bf16.mxu0 %v2332
      %2958 = vmatmul.mubr.bf16.gmra.mrb[0].mxu0 %v2324
      %v2959 = vpop.f32.mrb[0].mxu0
      %v2960 = vadd.f32 0.0, %v2959
      %v2961 = vpop.f32.mrb[0].mxu0
      %v2962 = vpop.f32.mrb[0].mxu0
      %v2963 = vadd.f32 0.0, %v2962
      %v2964 = vpop.f32.mrb[0].mxu0
      %2965 = vmatprep.mubr.bf16.mxu0 %v2356
      %2966 = vmatmul.mubr.bf16.gmra.mrb[0].mxu0 %v2348
      %v2967 = vpop.f32.mrb[0].mxu0
      %v2968 = vadd.f32 0.0, %v2967
      %v2969 = vpop.f32.mrb[0].mxu0
      %v2970 = vpop.f32.mrb[0].mxu0
      %v2971 = vadd.f32 0.0, %v2970
      %v2972 = vpop.f32.mrb[0].mxu0
      %2973 = vmatprep.mubr.bf16.mxu0 %v2380
      %2974 = vmatmul.mubr.bf16.gmra.mrb[0].mxu0 %v2372
      %v2975 = vpop.f32.mrb[0].mxu0
      %v2976 = vadd.f32 0.0, %v2975
      %v2977 = vpop.f32.mrb[0].mxu0
      %v2978 = vpop.f32.mrb[0].mxu0
      %v2979 = vadd.f32 0.0, %v2978
      %v2980 = vpop.f32.mrb[0].mxu0
      %2981 = vmatprep.mubr.bf16.mxu0 %v2404
      %2982 = vmatmul.mubr.bf16.gmra.mrb[0].mxu0 %v2396
      %v2983 = vpop.f32.mrb[0].mxu0
      %v2984 = vadd.f32 0.0, %v2983
      %v2985 = vpop.f32.mrb[0].mxu0
      %v2986 = vpop.f32.mrb[0].mxu0
      %v2987 = vadd.f32 0.0, %v2986
      %v2988 = vpop.f32.mrb[0].mxu0
      %2989 = vmatprep.mubr.bf16.mxu0 %v2428
      %2990 = vmatmul.mubr.bf16.gmra.mrb[0].mxu0 %v2420
      %v2991 = vpop.f32.mrb[0].mxu0
      %v2992 = vadd.f32 0.0, %v2991
      %v2993 = vpop.f32.mrb[0].mxu0
      %v2994 = vpop.f32.mrb[0].mxu0
      %v2995 = vadd.f32 0.0, %v2994
      %v2996 = vpop.f32.mrb[0].mxu0
      %2997 = vmatprep.mubr.bf16.mxu0 %v2452
      %2998 = vmatmul.mubr.bf16.gmra.mrb[0].mxu0 %v2444
      %v2999 = vpop.f32.mrb[0].mxu0
      %v3000 = vadd.f32 0.0, %v2999
      %v3001 = vpop.f32.mrb[0].mxu0
      %v3002 = vpop.f32.mrb[0].mxu0
      %v3003 = vadd.f32 0.0, %v3002
      %v3004 = vpop.f32.mrb[0].mxu0
      %3005 = vmatprep.mubr.bf16.mxu0 %v2476
      %3006 = vmatmul.mubr.bf16.gmra.mrb[0].mxu0 %v2468
      %v3007 = vpop.f32.mrb[0].mxu0
      %v3008 = vadd.f32 0.0, %v3007
      %v3009 = vpop.f32.mrb[0].mxu0
      %v3010 = vpop.f32.mrb[0].mxu0
      %v3011 = vadd.f32 0.0, %v3010
      %v3012 = vpop.f32.mrb[0].mxu0
      %3013 = vdwg.mxu0
      %3014 = vmatprep.subr.bf16.mxu0 0
      %3015 = vmatpush1.bf16.msra.mxu0 %v2693
      %3016 = vmatprep.subr.bf16.mxu0 0
      %3017 = vmatpush1.bf16.msra.mxu0 %v2694
      %3018 = vmatprep.subr.bf16.mxu0 0
      %3019 = vmatpush1.bf16.msra.mxu0 %v2695
      %3020 = vmatprep.subr.bf16.mxu0 0
      %3021 = vmatpush1.bf16.msra.mxu0 %v2696
      %3022 = vmatprep.subr.bf16.mxu0 0
      %3023 = vmatpush1.bf16.msra.mxu0 %v2697
      %3024 = vmatprep.subr.bf16.mxu0 0
      %3025 = vmatpush1.bf16.msra.mxu0 %v2698
      %3026 = vmatprep.subr.bf16.mxu0 0
      %3027 = vmatpush1.bf16.msra.mxu0 %v2699
      %3028 = vmatprep.subr.bf16.mxu0 0
      %3029 = vmatpush1.bf16.msra.mxu0 %v2700
      %3030 = vmatprep.subr.bf16.mxu0 0
      %3031 = vmatpush1.bf16.msra.mxu0 0
      %3032 = vmatprep.subr.bf16.mxu0 0
      %3033 = vmatpush1.bf16.msra.mxu0 0
      %3034 = vmatprep.subr.bf16.mxu0 0
      %3035 = vmatpush1.bf16.msra.mxu0 0
      %3036 = vmatprep.subr.bf16.mxu0 0
      %3037 = vmatpush1.bf16.msra.mxu0 0
      %3038 = vmatprep.subr.bf16.mxu0 0
      %3039 = vmatpush1.bf16.msra.mxu0 0
      %3040 = vmatprep.subr.bf16.mxu0 0
      %3041 = vmatpush1.bf16.msra.mxu0 0
      %3042 = vmatprep.subr.bf16.mxu0 0
      %3043 = vmatpush1.bf16.msra.mxu0 0
      %3044 = vmatprep.subr.bf16.mxu0 0
      %3045 = vmatpush1.bf16.msra.mxu0 0
      %3046 = vmatprep.mubr.bf16.mxu0 0
      %3047 = vmatmul.mubr.bf16.gmra.mrb[0].mxu0 %v1740
      %v3048 = vpop.f32.mrb[0].mxu0
      %v3049 = vadd.f32 %v2760, %v3048
      %v3050 = vpop.f32.mrb[0].mxu0
      %v3051 = vpop.f32.mrb[0].mxu0
      %v3052 = vadd.f32 %v2763, %v3051
      %v3053 = vpop.f32.mrb[0].mxu0
      %3054 = vmatprep.mubr.bf16.mxu0 0
      %3055 = vmatmul.mubr.bf16.gmra.mrb[0].mxu0 %v1764
      %v3056 = vpop.f32.mrb[0].mxu0
      %v3057 = vadd.f32 %v2768, %v3056
      %v3058 = vpop.f32.mrb[0].mxu0
      %v3059 = vpop.f32.mrb[0].mxu0
      %v3060 = vadd.f32 %v2771, %v3059
      %v3061 = vpop.f32.mrb[0].mxu0
      %3062 = vmatprep.mubr.bf16.mxu0 0
      %3063 = vmatmul.mubr.bf16.gmra.mrb[0].mxu0 %v1788
      %v3064 = vpop.f32.mrb[0].mxu0
      %v3065 = vadd.f32 %v2776, %v3064
      %v3066 = vpop.f32.mrb[0].mxu0
      %v3067 = vpop.f32.mrb[0].mxu0
      %v3068 = vadd.f32 %v2779, %v3067
      %v3069 = vpop.f32.mrb[0].mxu0
      %3070 = vmatprep.mubr.bf16.mxu0 0
      %3071 = vmatmul.mubr.bf16.gmra.mrb[0].mxu0 %v1812
      %v3072 = vpop.f32.mrb[0].mxu0
      %v3073 = vadd.f32 %v2784, %v3072
      %v3074 = vpop.f32.mrb[0].mxu0
      %v3075 = vpop.f32.mrb[0].mxu0
      %v3076 = vadd.f32 %v2787, %v3075
      %v3077 = vpop.f32.mrb[0].mxu0
      %3078 = vmatprep.mubr.bf16.mxu0 0
      %3079 = vmatmul.mubr.bf16.gmra.mrb[0].mxu0 %v1836
      %v3080 = vpop.f32.mrb[0].mxu0
      %v3081 = vadd.f32 %v2792, %v3080
      %v3082 = vpop.f32.mrb[0].mxu0
      %v3083 = vpop.f32.mrb[0].mxu0
      %v3084 = vadd.f32 %v2795, %v3083
      %v3085 = vpop.f32.mrb[0].mxu0
      %3086 = vmatprep.mubr.bf16.mxu0 0
      %3087 = vmatmul.mubr.bf16.gmra.mrb[0].mxu0 %v1860
      %v3088 = vpop.f32.mrb[0].mxu0
      %v3089 = vadd.f32 %v2800, %v3088
      %v3090 = vpop.f32.mrb[0].mxu0
      %v3091 = vpop.f32.mrb[0].mxu0
      %v3092 = vadd.f32 %v2803, %v3091
      %v3093 = vpop.f32.mrb[0].mxu0
      %3094 = vmatprep.mubr.bf16.mxu0 0
      %3095 = vmatmul.mubr.bf16.gmra.mrb[0].mxu0 %v1884
      %v3096 = vpop.f32.mrb[0].mxu0
      %v3097 = vadd.f32 %v2808, %v3096
      %v3098 = vpop.f32.mrb[0].mxu0
      %v3099 = vpop.f32.mrb[0].mxu0
      %v3100 = vadd.f32 %v2811, %v3099
      %v3101 = vpop.f32.mrb[0].mxu0
      %3102 = vmatprep.mubr.bf16.mxu0 0
      %3103 = vmatmul.mubr.bf16.gmra.mrb[0].mxu0 %v1908
      %v3104 = vpop.f32.mrb[0].mxu0
      %v3105 = vadd.f32 %v2816, %v3104
      %v3106 = vpop.f32.mrb[0].mxu0
      %v3107 = vpop.f32.mrb[0].mxu0
      %v3108 = vadd.f32 %v2819, %v3107
      %v3109 = vpop.f32.mrb[0].mxu0
      %3110 = vmatprep.mubr.bf16.mxu0 0
      %3111 = vmatmul.mubr.bf16.gmra.mrb[0].mxu0 %v1932
      %v3112 = vpop.f32.mrb[0].mxu0
      %v3113 = vadd.f32 %v2824, %v3112
      %v3114 = vpop.f32.mrb[0].mxu0
      %v3115 = vpop.f32.mrb[0].mxu0
      %v3116 = vadd.f32 %v2827, %v3115
      %v3117 = vpop.f32.mrb[0].mxu0
      %3118 = vmatprep.mubr.bf16.mxu0 0
      %3119 = vmatmul.mubr.bf16.gmra.mrb[0].mxu0 %v1956
      %v3120 = vpop.f32.mrb[0].mxu0
      %v3121 = vadd.f32 %v2832, %v3120
      %v3122 = vpop.f32.mrb[0].mxu0
      %v3123 = vpop.f32.mrb[0].mxu0
      %v3124 = vadd.f32 %v2835, %v3123
      %v3125 = vpop.f32.mrb[0].mxu0
      %3126 = vmatprep.mubr.bf16.mxu0 0
      %3127 = vmatmul.mubr.bf16.gmra.mrb[0].mxu0 %v1980
      %v3128 = vpop.f32.mrb[0].mxu0
      %v3129 = vadd.f32 %v2840, %v3128
      %v3130 = vpop.f32.mrb[0].mxu0
      %v3131 = vpop.f32.mrb[0].mxu0
      %v3132 = vadd.f32 %v2843, %v3131
      %v3133 = vpop.f32.mrb[0].mxu0
      %3134 = vmatprep.mubr.bf16.mxu0 0
      %3135 = vmatmul.mubr.bf16.gmra.mrb[0].mxu0 %v2004
      %v3136 = vpop.f32.mrb[0].mxu0
      %v3137 = vadd.f32 %v2848, %v3136
      %v3138 = vpop.f32.mrb[0].mxu0
      %v3139 = vpop.f32.mrb[0].mxu0
      %v3140 = vadd.f32 %v2851, %v3139
      %v3141 = vpop.f32.mrb[0].mxu0
      %3142 = vmatprep.mubr.bf16.mxu0 0
      %3143 = vmatmul.mubr.bf16.gmra.mrb[0].mxu0 %v2028
      %v3144 = vpop.f32.mrb[0].mxu0
      %v3145 = vadd.f32 %v2856, %v3144
      %v3146 = vpop.f32.mrb[0].mxu0
      %v3147 = vpop.f32.mrb[0].mxu0
      %v3148 = vadd.f32 %v2859, %v3147
      %v3149 = vpop.f32.mrb[0].mxu0
      %3150 = vmatprep.mubr.bf16.mxu0 0
      %3151 = vmatmul.mubr.bf16.gmra.mrb[0].mxu0 %v2052
      %v3152 = vpop.f32.mrb[0].mxu0
      %v3153 = vadd.f32 %v2864, %v3152
      %v3154 = vpop.f32.mrb[0].mxu0
      %v3155 = vpop.f32.mrb[0].mxu0
      %v3156 = vadd.f32 %v2867, %v3155
      %v3157 = vpop.f32.mrb[0].mxu0
      %3158 = vmatprep.mubr.bf16.mxu0 0
      %3159 = vmatmul.mubr.bf16.gmra.mrb[0].mxu0 %v2076
      %v3160 = vpop.f32.mrb[0].mxu0
      %v3161 = vadd.f32 %v2872, %v3160
      %v3162 = vpop.f32.mrb[0].mxu0
      %v3163 = vpop.f32.mrb[0].mxu0
      %v3164 = vadd.f32 %v2875, %v3163
      %v3165 = vpop.f32.mrb[0].mxu0
      %3166 = vmatprep.mubr.bf16.mxu0 0
      %3167 = vmatmul.mubr.bf16.gmra.mrb[0].mxu0 %v2100
      %v3168 = vpop.f32.mrb[0].mxu0
      %v3169 = vadd.f32 %v2880, %v3168
      %v3170 = vpop.f32.mrb[0].mxu0
      %v3171 = vpop.f32.mrb[0].mxu0
      %v3172 = vadd.f32 %v2883, %v3171
      %v3173 = vpop.f32.mrb[0].mxu0
      %3174 = vmatprep.mubr.bf16.mxu0 0
      %3175 = vmatmul.mubr.bf16.gmra.mrb[0].mxu0 %v2124
      %v3176 = vpop.f32.mrb[0].mxu0
      %v3177 = vadd.f32 %v2888, %v3176
      %v3178 = vpop.f32.mrb[0].mxu0
      %v3179 = vpop.f32.mrb[0].mxu0
      %v3180 = vadd.f32 %v2891, %v3179
      %v3181 = vpop.f32.mrb[0].mxu0
      %3182 = vmatprep.mubr.bf16.mxu0 0
      %3183 = vmatmul.mubr.bf16.gmra.mrb[0].mxu0 %v2148
      %v3184 = vpop.f32.mrb[0].mxu0
      %v3185 = vadd.f32 %v2896, %v3184
      %v3186 = vpop.f32.mrb[0].mxu0
      %v3187 = vpop.f32.mrb[0].mxu0
      %v3188 = vadd.f32 %v2899, %v3187
      %v3189 = vpop.f32.mrb[0].mxu0
      %3190 = vmatprep.mubr.bf16.mxu0 0
      %3191 = vmatmul.mubr.bf16.gmra.mrb[0].mxu0 %v2172
      %v3192 = vpop.f32.mrb[0].mxu0
      %v3193 = vadd.f32 %v2904, %v3192
      %v3194 = vpop.f32.mrb[0].mxu0
      %v3195 = vpop.f32.mrb[0].mxu0
      %v3196 = vadd.f32 %v2907, %v3195
      %v3197 = vpop.f32.mrb[0].mxu0
      %3198 = vmatprep.mubr.bf16.mxu0 0
      %3199 = vmatmul.mubr.bf16.gmra.mrb[0].mxu0 %v2196
      %v3200 = vpop.f32.mrb[0].mxu0
      %v3201 = vadd.f32 %v2912, %v3200
      %v3202 = vpop.f32.mrb[0].mxu0
      %v3203 = vpop.f32.mrb[0].mxu0
      %v3204 = vadd.f32 %v2915, %v3203
      %v3205 = vpop.f32.mrb[0].mxu0
      %3206 = vmatprep.mubr.bf16.mxu0 0
      %3207 = vmatmul.mubr.bf16.gmra.mrb[0].mxu0 %v2220
      %v3208 = vpop.f32.mrb[0].mxu0
      %v3209 = vadd.f32 %v2920, %v3208
      %v3210 = vpop.f32.mrb[0].mxu0
      %v3211 = vpop.f32.mrb[0].mxu0
      %v3212 = vadd.f32 %v2923, %v3211
      %v3213 = vpop.f32.mrb[0].mxu0
      %3214 = vmatprep.mubr.bf16.mxu0 0
      %3215 = vmatmul.mubr.bf16.gmra.mrb[0].mxu0 %v2244
      %v3216 = vpop.f32.mrb[0].mxu0
      %v3217 = vadd.f32 %v2928, %v3216
      %v3218 = vpop.f32.mrb[0].mxu0
      %v3219 = vpop.f32.mrb[0].mxu0
      %v3220 = vadd.f32 %v2931, %v3219
      %v3221 = vpop.f32.mrb[0].mxu0
      %3222 = vmatprep.mubr.bf16.mxu0 0
      %3223 = vmatmul.mubr.bf16.gmra.mrb[0].mxu0 %v2268
      %v3224 = vpop.f32.mrb[0].mxu0
      %v3225 = vadd.f32 %v2936, %v3224
      %v3226 = vpop.f32.mrb[0].mxu0
      %v3227 = vpop.f32.mrb[0].mxu0
      %v3228 = vadd.f32 %v2939, %v3227
      %v3229 = vpop.f32.mrb[0].mxu0
      %3230 = vmatprep.mubr.bf16.mxu0 0
      %3231 = vmatmul.mubr.bf16.gmra.mrb[0].mxu0 %v2292
      %v3232 = vpop.f32.mrb[0].mxu0
      %v3233 = vadd.f32 %v2944, %v3232
      %v3234 = vpop.f32.mrb[0].mxu0
      %v3235 = vpop.f32.mrb[0].mxu0
      %v3236 = vadd.f32 %v2947, %v3235
      %v3237 = vpop.f32.mrb[0].mxu0
      %3238 = vmatprep.mubr.bf16.mxu0 0
      %3239 = vmatmul.mubr.bf16.gmra.mrb[0].mxu0 %v2316
      %v3240 = vpop.f32.mrb[0].mxu0
      %v3241 = vadd.f32 %v2952, %v3240
      %v3242 = vpop.f32.mrb[0].mxu0
      %v3243 = vpop.f32.mrb[0].mxu0
      %v3244 = vadd.f32 %v2955, %v3243
      %v3245 = vpop.f32.mrb[0].mxu0
      %3246 = vmatprep.mubr.bf16.mxu0 0
      %3247 = vmatmul.mubr.bf16.gmra.mrb[0].mxu0 %v2340
      %v3248 = vpop.f32.mrb[0].mxu0
      %v3249 = vadd.f32 %v2960, %v3248
      %v3250 = vpop.f32.mrb[0].mxu0
      %v3251 = vpop.f32.mrb[0].mxu0
      %v3252 = vadd.f32 %v2963, %v3251
      %v3253 = vpop.f32.mrb[0].mxu0
      %3254 = vmatprep.mubr.bf16.mxu0 0
      %3255 = vmatmul.mubr.bf16.gmra.mrb[0].mxu0 %v2364
      %v3256 = vpop.f32.mrb[0].mxu0
      %v3257 = vadd.f32 %v2968, %v3256
      %v3258 = vpop.f32.mrb[0].mxu0
      %v3259 = vpop.f32.mrb[0].mxu0
      %v3260 = vadd.f32 %v2971, %v3259
      %v3261 = vpop.f32.mrb[0].mxu0
      %3262 = vmatprep.mubr.bf16.mxu0 0
      %3263 = vmatmul.mubr.bf16.gmra.mrb[0].mxu0 %v2388
      %v3264 = vpop.f32.mrb[0].mxu0
      %v3265 = vadd.f32 %v2976, %v3264
      %v3266 = vpop.f32.mrb[0].mxu0
      %v3267 = vpop.f32.mrb[0].mxu0
      %v3268 = vadd.f32 %v2979, %v3267
      %v3269 = vpop.f32.mrb[0].mxu0
      %3270 = vmatprep.mubr.bf16.mxu0 0
      %3271 = vmatmul.mubr.bf16.gmra.mrb[0].mxu0 %v2412
      %v3272 = vpop.f32.mrb[0].mxu0
      %v3273 = vadd.f32 %v2984, %v3272
      %v3274 = vpop.f32.mrb[0].mxu0
      %v3275 = vpop.f32.mrb[0].mxu0
      %v3276 = vadd.f32 %v2987, %v3275
      %v3277 = vpop.f32.mrb[0].mxu0
      %3278 = vmatprep.mubr.bf16.mxu0 0
      %3279 = vmatmul.mubr.bf16.gmra.mrb[0].mxu0 %v2436
      %v3280 = vpop.f32.mrb[0].mxu0
      %v3281 = vadd.f32 %v2992, %v3280
      %v3282 = vpop.f32.mrb[0].mxu0
      %v3283 = vpop.f32.mrb[0].mxu0
      %v3284 = vadd.f32 %v2995, %v3283
      %v3285 = vpop.f32.mrb[0].mxu0
      %3286 = vmatprep.mubr.bf16.mxu0 0
      %3287 = vmatmul.mubr.bf16.gmra.mrb[0].mxu0 %v2460
      %v3288 = vpop.f32.mrb[0].mxu0
      %v3289 = vadd.f32 %v3000, %v3288
      %v3290 = vpop.f32.mrb[0].mxu0
      %v3291 = vpop.f32.mrb[0].mxu0
      %v3292 = vadd.f32 %v3003, %v3291
      %v3293 = vpop.f32.mrb[0].mxu0
      %3294 = vmatprep.mubr.bf16.mxu0 0
      %3295 = vmatmul.mubr.bf16.gmra.mrb[0].mxu0 %v2484
      %v3296 = vpop.f32.mrb[0].mxu0
      %v3297 = vadd.f32 %v3008, %v3296
      %v3298 = vpop.f32.mrb[0].mxu0
      %v3299 = vpop.f32.mrb[0].mxu0
      %v3300 = vadd.f32 %v3011, %v3299
      %v3301 = vpop.f32.mrb[0].mxu0
      %3302 = vdwg.mxu0
      %3303 = vst [vmem:[#allocation3] sm:$0xff] %v3049
      %3304 = vst [vmem:[#allocation3 + $0x8] sm:$0xff] %v3052
      %3305 = vst [vmem:[#allocation3 + $0x10] sm:$0xff] %v3057
      %3306 = vst [vmem:[#allocation3 + $0x18] sm:$0xff] %v3060
      %3307 = vst [vmem:[#allocation3 + $0x20] sm:$0xff] %v3065
      %3308 = vst [vmem:[#allocation3 + $0x28] sm:$0xff] %v3068
      %3309 = vst [vmem:[#allocation3 + $0x30] sm:$0xff] %v3073
      %3310 = vst [vmem:[#allocation3 + $0x38] sm:$0xff] %v3076
      %3311 = vst [vmem:[#allocation3 + $0x40] sm:$0xff] %v3081
      %3312 = vst [vmem:[#allocation3 + $0x48] sm:$0xff] %v3084
      %3313 = vst [vmem:[#allocation3 + $0x50] sm:$0xff] %v3089
      %3314 = vst [vmem:[#allocation3 + $0x58] sm:$0xff] %v3092
      %3315 = vst [vmem:[#allocation3 + $0x60] sm:$0xff] %v3097
      %3316 = vst [vmem:[#allocation3 + $0x68] sm:$0xff] %v3100
      %3317 = vst [vmem:[#allocation3 + $0x70] sm:$0xff] %v3105
      %3318 = vst [vmem:[#allocation3 + $0x78] sm:$0xff] %v3108
      %3319 = vst [vmem:[#allocation3 + $0x80] sm:$0xff] %v3113
      %3320 = vst [vmem:[#allocation3 + $0x88] sm:$0xff] %v3116
      %3321 = vst [vmem:[#allocation3 + $0x90] sm:$0xff] %v3121
      %3322 = vst [vmem:[#allocation3 + $0x98] sm:$0xff] %v3124
      %3323 = vst [vmem:[#allocation3 + $0xa0] sm:$0xff] %v3129
      %3324 = vst [vmem:[#allocation3 + $0xa8] sm:$0xff] %v3132
      %3325 = vst [vmem:[#allocation3 + $0xb0] sm:$0xff] %v3137
      %3326 = vst [vmem:[#allocation3 + $0xb8] sm:$0xff] %v3140
      %3327 = vst [vmem:[#allocation3 + $0xc0] sm:$0xff] %v3145
      %3328 = vst [vmem:[#allocation3 + $0xc8] sm:$0xff] %v3148
      %3329 = vst [vmem:[#allocation3 + $0xd0] sm:$0xff] %v3153
      %3330 = vst [vmem:[#allocation3 + $0xd8] sm:$0xff] %v3156
      %3331 = vst [vmem:[#allocation3 + $0xe0] sm:$0xff] %v3161
      %3332 = vst [vmem:[#allocation3 + $0xe8] sm:$0xff] %v3164
      %3333 = vst [vmem:[#allocation3 + $0xf0] sm:$0xff] %v3169
      %3334 = vst [vmem:[#allocation3 + $0xf8] sm:$0xff] %v3172
      %3335 = vst [vmem:[#allocation3 + $0x100] sm:$0xff] %v3177
      %3336 = vst [vmem:[#allocation3 + $0x108] sm:$0xff] %v3180
      %3337 = vst [vmem:[#allocation3 + $0x110] sm:$0xff] %v3185
      %3338 = vst [vmem:[#allocation3 + $0x118] sm:$0xff] %v3188
      %3339 = vst [vmem:[#allocation3 + $0x120] sm:$0xff] %v3193
      %3340 = vst [vmem:[#allocation3 + $0x128] sm:$0xff] %v3196
      %3341 = vst [vmem:[#allocation3 + $0x130] sm:$0xff] %v3201
      %3342 = vst [vmem:[#allocation3 + $0x138] sm:$0xff] %v3204
      %3343 = vst [vmem:[#allocation3 + $0x140] sm:$0xff] %v3209
      %3344 = vst [vmem:[#allocation3 + $0x148] sm:$0xff] %v3212
      %3345 = vst [vmem:[#allocation3 + $0x150] sm:$0xff] %v3217
      %3346 = vst [vmem:[#allocation3 + $0x158] sm:$0xff] %v3220
      %3347 = vst [vmem:[#allocation3 + $0x160] sm:$0xff] %v3225
      %3348 = vst [vmem:[#allocation3 + $0x168] sm:$0xff] %v3228
      %3349 = vst [vmem:[#allocation3 + $0x170] sm:$0xff] %v3233
      %3350 = vst [vmem:[#allocation3 + $0x178] sm:$0xff] %v3236
      %3351 = vst [vmem:[#allocation3 + $0x180] sm:$0xff] %v3241
      %3352 = vst [vmem:[#allocation3 + $0x188] sm:$0xff] %v3244
      %3353 = vst [vmem:[#allocation3 + $0x190] sm:$0xff] %v3249
      %3354 = vst [vmem:[#allocation3 + $0x198] sm:$0xff] %v3252
      %3355 = vst [vmem:[#allocation3 + $0x1a0] sm:$0xff] %v3257
      %3356 = vst [vmem:[#allocation3 + $0x1a8] sm:$0xff] %v3260
      %3357 = vst [vmem:[#allocation3 + $0x1b0] sm:$0xff] %v3265
      %3358 = vst [vmem:[#allocation3 + $0x1b8] sm:$0xff] %v3268
      %3359 = vst [vmem:[#allocation3 + $0x1c0] sm:$0xff] %v3273
      %3360 = vst [vmem:[#allocation3 + $0x1c8] sm:$0xff] %v3276
      %3361 = vst [vmem:[#allocation3 + $0x1d0] sm:$0xff] %v3281
      %3362 = vst [vmem:[#allocation3 + $0x1d8] sm:$0xff] %v3284
      %3363 = vst [vmem:[#allocation3 + $0x1e0] sm:$0xff] %v3289
      %3364 = vst [vmem:[#allocation3 + $0x1e8] sm:$0xff] %v3292
      %3365 = vst [vmem:[#allocation3 + $0x1f0] sm:$0xff] %v3297
      %3366 = vst [vmem:[#allocation3 + $0x1f8] sm:$0xff] %v3300
      %v3367 = vld [vmem:[#allocation2 + $0x18] sm:$0xff]
      %v3368 = vld [vmem:[#allocation2 + $0x20] sm:$0xff]
      %v3369 = vld [vmem:[#allocation2 + $0x28] sm:$0xff]
      %v3370 = vld [vmem:[#allocation2 + $0x30] sm:$0xff]
      %v3371 = vld [vmem:[#allocation2 + $0x38] sm:$0xff]
      %v3372 = vld [vmem:[#allocation2 + $0x40] sm:$0xff]
      %v3373 = vld [vmem:[#allocation2 + $0x48] sm:$0xff]
      %v3374 = vld [vmem:[#allocation2 + $0x50] sm:$0xff]
      %v3375 = vld [vmem:[#allocation2 + $0x58] sm:$0xff]
      %v3376 = vld [vmem:[#allocation2 + $0x60] sm:$0xff]
      %v3377 = vld [vmem:[#allocation2 + $0x68] sm:$0xff]
      %v3378 = vld [vmem:[#allocation2 + $0x70] sm:$0xff]
      %v3379 = vld [vmem:[#allocation2 + $0x78] sm:$0xff]
      %v3380 = vld [vmem:[#allocation2 + $0x80] sm:$0xff]
      %v3381 = vld [vmem:[#allocation2 + $0x88] sm:$0xff]
      %v3382 = vld [vmem:[#allocation2 + $0x90] sm:$0xff]
      %v3383 = vld [vmem:[#allocation2 + $0x98] sm:$0xff]
      %v3384 = vld [vmem:[#allocation2 + $0xa0] sm:$0xff]
      %v3385 = vld [vmem:[#allocation2 + $0xa8] sm:$0xff]
      %v3386 = vld [vmem:[#allocation2 + $0xb0] sm:$0xff]
      %v3387 = vld [vmem:[#allocation2 + $0xb8] sm:$0xff]
      %v3388 = vld [vmem:[#allocation2 + $0xc0] sm:$0xff]
      %v3389 = vld [vmem:[#allocation2 + $0xc8] sm:$0xff]
      %v3390 = vld [vmem:[#allocation2 + $0xd0] sm:$0xff]
      %v3391 = vld [vmem:[#allocation2 + $0xd8] sm:$0xff]
      %v3392 = vld [vmem:[#allocation2 + $0xe0] sm:$0xff]
      %v3393 = vld [vmem:[#allocation2 + $0xe8] sm:$0xff]
      %v3394 = vld [vmem:[#allocation2 + $0xf0] sm:$0xff]
      %v3395 = vld [vmem:[#allocation2 + $0xf8] sm:$0xff]
      %v3396 = vld [vmem:[#allocation2 + $0x100] sm:$0xff]
      %v3397 = vld [vmem:[#allocation2 + $0x108] sm:$0xff]
      %v3398 = vld [vmem:[#allocation2 + $0x110] sm:$0xff]
      %v3399 = vld [vmem:[#allocation2 + $0x118] sm:$0xff]
      %v3400 = vld [vmem:[#allocation2 + $0x120] sm:$0xff]
      %v3401 = vld [vmem:[#allocation2 + $0x128] sm:$0xff]
      %v3402 = vld [vmem:[#allocation2 + $0x130] sm:$0xff]
      %v3403 = vld [vmem:[#allocation2 + $0x138] sm:$0xff]
      %v3404 = vld [vmem:[#allocation2 + $0x140] sm:$0xff]
      %v3405 = vld [vmem:[#allocation2 + $0x148] sm:$0xff]
      %v3406 = vld [vmem:[#allocation2 + $0x150] sm:$0xff]
      %v3407 = vld [vmem:[#allocation2 + $0x158] sm:$0xff]
      %v3408 = vld [vmem:[#allocation2 + $0x160] sm:$0xff]
      %v3409 = vld [vmem:[#allocation2 + $0x168] sm:$0xff]
      %v3410 = vld [vmem:[#allocation2 + $0x170] sm:$0xff]
      %v3411 = vld [vmem:[#allocation2 + $0x178] sm:$0xff]
      %v3412 = vld [vmem:[#allocation2 + $0x180] sm:$0xff]
      %v3413 = vld [vmem:[#allocation2 + $0x188] sm:$0xff]
      %v3414 = vld [vmem:[#allocation2 + $0x190] sm:$0xff]
      %v3415 = vld [vmem:[#allocation2 + $0x198] sm:$0xff]
      %v3416 = vld [vmem:[#allocation2 + $0x1a0] sm:$0xff]
      %v3417 = vld [vmem:[#allocation2 + $0x1a8] sm:$0xff]
      %v3418 = vld [vmem:[#allocation2 + $0x1b0] sm:$0xff]
      %v3419 = vld [vmem:[#allocation2 + $0x1b8] sm:$0xff]
      %v3420 = vld [vmem:[#allocation2 + $0x1c0] sm:$0xff]
      %v3421 = vld [vmem:[#allocation2 + $0x1c8] sm:$0xff]
      %v3422 = vld [vmem:[#allocation2 + $0x1d0] sm:$0xff]
      %v3423 = vld [vmem:[#allocation2 + $0x1d8] sm:$0xff]
      %v3424 = vld [vmem:[#allocation2 + $0x1e0] sm:$0xff]
      %v3425 = vld [vmem:[#allocation2 + $0x1e8] sm:$0xff]
      %v3426 = vld [vmem:[#allocation2 + $0x1f0] sm:$0xff]
      %v3427 = vld [vmem:[#allocation2 + $0x1f8] sm:$0xff]
      %v3428 = vld [vmem:[#allocation2 + $0x200] sm:$0xff]
      %v3429 = vld [vmem:[#allocation2 + $0x208] sm:$0xff]
      %v3430 = vld [vmem:[#allocation2 + $0x210] sm:$0xff]
      %v3431 = vld [vmem:[#allocation2 + $0x218] sm:$0xff]
      %v3432 = vld [vmem:[#allocation2 + $0x220] sm:$0xff]
      %v3433 = vld [vmem:[#allocation2 + $0x228] sm:$0xff]
      %v3434 = vld [vmem:[#allocation2 + $0x230] sm:$0xff]
      %v3435 = vld [vmem:[#allocation2 + $0x238] sm:$0xff]
      %v3436 = vld [vmem:[#allocation2 + $0x240] sm:$0xff]
      %v3437 = vld [vmem:[#allocation2 + $0x248] sm:$0xff]
      %v3438 = vld [vmem:[#allocation2 + $0x250] sm:$0xff]
      %v3439 = vld [vmem:[#allocation2 + $0x258] sm:$0xff]
      %v3440 = vld [vmem:[#allocation2 + $0x260] sm:$0xff]
      %v3441 = vld [vmem:[#allocation2 + $0x268] sm:$0xff]
      %v3442 = vld [vmem:[#allocation2 + $0x270] sm:$0xff]
      %v3443 = vld [vmem:[#allocation2 + $0x278] sm:$0xff]
      %v3444 = vld [vmem:[#allocation2 + $0x280] sm:$0xff]
      %v3445 = vld [vmem:[#allocation2 + $0x288] sm:$0xff]
      %v3446 = vld [vmem:[#allocation2 + $0x290] sm:$0xff]
      %v3447 = vld [vmem:[#allocation2 + $0x298] sm:$0xff]
      %v3448 = vld [vmem:[#allocation2 + $0x2a0] sm:$0xff]
      %v3449 = vld [vmem:[#allocation2 + $0x2a8] sm:$0xff]
      %v3450 = vld [vmem:[#allocation2 + $0x2b0] sm:$0xff]
      %v3451 = vld [vmem:[#allocation2 + $0x2b8] sm:$0xff]
      %v3452 = vld [vmem:[#allocation2 + $0x2c0] sm:$0xff]
      %v3453 = vld [vmem:[#allocation2 + $0x2c8] sm:$0xff]
      %v3454 = vld [vmem:[#allocation2 + $0x2d0] sm:$0xff]
      %v3455 = vld [vmem:[#allocation2 + $0x2d8] sm:$0xff]
      %v3456 = vld [vmem:[#allocation2 + $0x2e0] sm:$0xff]
      %v3457 = vld [vmem:[#allocation2 + $0x2e8] sm:$0xff]
      %v3458 = vld [vmem:[#allocation2 + $0x2f0] sm:$0xff]
      %v3459 = vld [vmem:[#allocation2 + $0x2f8] sm:$0xff]
      %v3460 = vld [vmem:[#allocation2 + $0x300] sm:$0xff]
      %v3461 = vld [vmem:[#allocation2 + $0x308] sm:$0xff]
      %v3462 = vld [vmem:[#allocation2 + $0x310] sm:$0xff]
      %s3463 = scalar_lea.vmem %s4, 192
      %v3464 = vld [vmem:[%s3463] sm:$0xf]
      %v3465 = vld [vmem:[%s3463 + $0x4] sm:$0xf]
      %v3466 = vld [vmem:[%s3463 + $0x8] sm:$0xf]
      %v3467 = vld [vmem:[%s3463 + $0xc] sm:$0xf]
      %v3468 = vld [vmem:[%s3463 + $0x10] sm:$0xf]
      %v3469 = vld [vmem:[%s3463 + $0x14] sm:$0xf]
      %v3470 = vld [vmem:[%s3463 + $0x18] sm:$0xf]
      %v3471 = vld [vmem:[%s3463 + $0x1c] sm:$0xf]
      %v3472 = vld [vmem:[%s3463 + $0x20] sm:$0xf]
      %v3473 = vld [vmem:[%s3463 + $0x24] sm:$0xf]
      %v3474 = vld [vmem:[%s3463 + $0x28] sm:$0xf]
      %v3475 = vld [vmem:[%s3463 + $0x2c] sm:$0xf]
      %v3476 = vld [vmem:[%s3463 + $0x30] sm:$0xf]
      %v3477 = vld [vmem:[%s3463 + $0x34] sm:$0xf]
      %v3478 = vld [vmem:[%s3463 + $0x38] sm:$0xf]
      %v3479 = vld [vmem:[%s3463 + $0x3c] sm:$0xf]
      %v3480 = vld [vmem:[%s3463 + $0x40] sm:$0xf]
      %v3481 = vld [vmem:[%s3463 + $0x44] sm:$0xf]
      %v3482 = vld [vmem:[%s3463 + $0x48] sm:$0xf]
      %v3483 = vld [vmem:[%s3463 + $0x4c] sm:$0xf]
      %v3484 = vld [vmem:[%s3463 + $0x50] sm:$0xf]
      %v3485 = vld [vmem:[%s3463 + $0x54] sm:$0xf]
      %v3486 = vld [vmem:[%s3463 + $0x58] sm:$0xf]
      %v3487 = vld [vmem:[%s3463 + $0x5c] sm:$0xf]
      %v3488 = vld [vmem:[%s3463 + $0x60] sm:$0xf]
      %v3489 = vld [vmem:[%s3463 + $0x64] sm:$0xf]
      %v3490 = vld [vmem:[%s3463 + $0x68] sm:$0xf]
      %v3491 = vld [vmem:[%s3463 + $0x6c] sm:$0xf]
      %v3492 = vld [vmem:[%s3463 + $0x70] sm:$0xf]
      %v3493 = vld [vmem:[%s3463 + $0x74] sm:$0xf]
      %v3494 = vld [vmem:[%s3463 + $0x78] sm:$0xf]
      %v3495 = vld [vmem:[%s3463 + $0x7c] sm:$0xf]
      %v3496 = vld [vmem:[%s3463 + $0x80] sm:$0xf]
      %v3497 = vld [vmem:[%s3463 + $0x84] sm:$0xf]
      %v3498 = vld [vmem:[%s3463 + $0x88] sm:$0xf]
      %v3499 = vld [vmem:[%s3463 + $0x8c] sm:$0xf]
      %v3500 = vld [vmem:[%s3463 + $0x90] sm:$0xf]
      %v3501 = vld [vmem:[%s3463 + $0x94] sm:$0xf]
      %v3502 = vld [vmem:[%s3463 + $0x98] sm:$0xf]
      %v3503 = vld [vmem:[%s3463 + $0x9c] sm:$0xf]
      %v3504 = vld [vmem:[%s3463 + $0xa0] sm:$0xf]
      %v3505 = vld [vmem:[%s3463 + $0xa4] sm:$0xf]
      %v3506 = vld [vmem:[%s3463 + $0xa8] sm:$0xf]
      %v3507 = vld [vmem:[%s3463 + $0xac] sm:$0xf]
      %v3508 = vld [vmem:[%s3463 + $0xb0] sm:$0xf]
      %v3509 = vld [vmem:[%s3463 + $0xb4] sm:$0xf]
      %v3510 = vld [vmem:[%s3463 + $0xb8] sm:$0xf]
      %v3511 = vld [vmem:[%s3463 + $0xbc] sm:$0xf]
      %v3560 = vunpack.c.l.b16 %v3464
      %v3561 = vunpack.c.l.b16 %v3465
      %v3562 = vunpack.c.l.b16 %v3466
      %v3563 = vunpack.c.l.b16 %v3467
      %v3564 = vunpack.c.l.b16 %v3468
      %v3565 = vunpack.c.l.b16 %v3469
      %v3566 = vunpack.c.l.b16 %v3470
      %v3567 = vunpack.c.l.b16 %v3471
      %v3568 = vunpack.c.l.b16 %v3472
      %v3569 = vunpack.c.l.b16 %v3473
      %v3570 = vunpack.c.l.b16 %v3474
      %v3571 = vunpack.c.l.b16 %v3475
      %v3572 = vunpack.c.l.b16 %v3476
      %v3573 = vunpack.c.l.b16 %v3477
      %v3574 = vunpack.c.l.b16 %v3478
      %v3575 = vunpack.c.l.b16 %v3479
      %v3576 = vunpack.c.l.b16 %v3480
      %v3577 = vunpack.c.l.b16 %v3481
      %v3578 = vunpack.c.l.b16 %v3482
      %v3579 = vunpack.c.l.b16 %v3483
      %v3580 = vunpack.c.l.b16 %v3484
      %v3581 = vunpack.c.l.b16 %v3485
      %v3582 = vunpack.c.l.b16 %v3486
      %v3583 = vunpack.c.l.b16 %v3487
      %v3584 = vunpack.c.l.b16 %v3488
      %v3585 = vunpack.c.l.b16 %v3489
      %v3586 = vunpack.c.l.b16 %v3490
      %v3587 = vunpack.c.l.b16 %v3491
      %v3588 = vunpack.c.l.b16 %v3492
      %v3589 = vunpack.c.l.b16 %v3493
      %v3590 = vunpack.c.l.b16 %v3494
      %v3591 = vunpack.c.l.b16 %v3495
      %v3592 = vunpack.c.l.b16 %v3496
      %v3593 = vunpack.c.l.b16 %v3497
      %v3594 = vunpack.c.l.b16 %v3498
      %v3595 = vunpack.c.l.b16 %v3499
      %v3596 = vunpack.c.l.b16 %v3500
      %v3597 = vunpack.c.l.b16 %v3501
      %v3598 = vunpack.c.l.b16 %v3502
      %v3599 = vunpack.c.l.b16 %v3503
      %v3600 = vunpack.c.l.b16 %v3504
      %v3601 = vunpack.c.l.b16 %v3505
      %v3602 = vunpack.c.l.b16 %v3506
      %v3603 = vunpack.c.l.b16 %v3507
      %v3604 = vunpack.c.l.b16 %v3508
      %v3605 = vunpack.c.l.b16 %v3509
      %v3606 = vunpack.c.l.b16 %v3510
      %v3607 = vunpack.c.l.b16 %v3511
      %v3608 = vpack.c.b16 %v3561, %v3560
      %v3609 = vpack.c.b16 %v3563, %v3562
      %v3610 = vpack.c.b16 %v3565, %v3564
      %v3611 = vpack.c.b16 %v3567, %v3566
      %v3612 = vpack.c.b16 %v3569, %v3568
      %v3613 = vpack.c.b16 %v3571, %v3570
      %v3614 = vpack.c.b16 %v3573, %v3572
      %v3615 = vpack.c.b16 %v3575, %v3574
      %v3616 = vpack.c.b16 %v3577, %v3576
      %v3617 = vpack.c.b16 %v3579, %v3578
      %v3618 = vpack.c.b16 %v3581, %v3580
      %v3619 = vpack.c.b16 %v3583, %v3582
      %v3620 = vpack.c.b16 %v3585, %v3584
      %v3621 = vpack.c.b16 %v3587, %v3586
      %v3622 = vpack.c.b16 %v3589, %v3588
      %v3623 = vpack.c.b16 %v3591, %v3590
      %v3624 = vpack.c.b16 %v3593, %v3592
      %v3625 = vpack.c.b16 %v3595, %v3594
      %v3626 = vpack.c.b16 %v3597, %v3596
      %v3627 = vpack.c.b16 %v3599, %v3598
      %v3628 = vpack.c.b16 %v3601, %v3600
      %v3629 = vpack.c.b16 %v3603, %v3602
      %v3630 = vpack.c.b16 %v3605, %v3604
      %v3631 = vpack.c.b16 %v3607, %v3606
      %3656 = vmatprep.subr.bf16.mxu0 0
      %3657 = vmatpush1.bf16.msra.mxu0 %v3608
      %3658 = vmatprep.subr.bf16.mxu0 0
      %3659 = vmatpush1.bf16.msra.mxu0 %v3609
      %3660 = vmatprep.subr.bf16.mxu0 0
      %3661 = vmatpush1.bf16.msra.mxu0 %v3610
      %3662 = vmatprep.subr.bf16.mxu0 0
      %3663 = vmatpush1.bf16.msra.mxu0 %v3611
      %3664 = vmatprep.subr.bf16.mxu0 0
      %3665 = vmatpush1.bf16.msra.mxu0 %v3612
      %3666 = vmatprep.subr.bf16.mxu0 0
      %3667 = vmatpush1.bf16.msra.mxu0 %v3613
      %3668 = vmatprep.subr.bf16.mxu0 0
      %3669 = vmatpush1.bf16.msra.mxu0 %v3614
      %3670 = vmatprep.subr.bf16.mxu0 0
      %3671 = vmatpush1.bf16.msra.mxu0 %v3615
      %3672 = vmatprep.subr.bf16.mxu0 0
      %3673 = vmatpush1.bf16.msra.mxu0 %v3616
      %3674 = vmatprep.subr.bf16.mxu0 0
      %3675 = vmatpush1.bf16.msra.mxu0 %v3617
      %3676 = vmatprep.subr.bf16.mxu0 0
      %3677 = vmatpush1.bf16.msra.mxu0 %v3618
      %3678 = vmatprep.subr.bf16.mxu0 0
      %3679 = vmatpush1.bf16.msra.mxu0 %v3619
      %3680 = vmatprep.subr.bf16.mxu0 0
      %3681 = vmatpush1.bf16.msra.mxu0 %v3620
      %3682 = vmatprep.subr.bf16.mxu0 0
      %3683 = vmatpush1.bf16.msra.mxu0 %v3621
      %3684 = vmatprep.subr.bf16.mxu0 0
      %3685 = vmatpush1.bf16.msra.mxu0 %v3622
      %3686 = vmatprep.subr.bf16.mxu0 0
      %3687 = vmatpush1.bf16.msra.mxu0 %v3623
      %3688 = vmatprep.mubr.bf16.mxu0 %v3368
      %3689 = vmatmul.mubr.bf16.gmra.mrb[0].mxu0 %v3367
      %v3690 = vpop.f32.mrb[0].mxu0
      %v3691 = vadd.f32 0.0, %v3690
      %v3692 = vpop.f32.mrb[0].mxu0
      %v3693 = vpop.f32.mrb[0].mxu0
      %v3694 = vadd.f32 0.0, %v3693
      %v3695 = vpop.f32.mrb[0].mxu0
      %3696 = vmatprep.mubr.bf16.mxu0 %v3371
      %3697 = vmatmul.mubr.bf16.gmra.mrb[0].mxu0 %v3370
      %v3698 = vpop.f32.mrb[0].mxu0
      %v3699 = vadd.f32 0.0, %v3698
      %v3700 = vpop.f32.mrb[0].mxu0
      %v3701 = vpop.f32.mrb[0].mxu0
      %v3702 = vadd.f32 0.0, %v3701
      %v3703 = vpop.f32.mrb[0].mxu0
      %3704 = vmatprep.mubr.bf16.mxu0 %v3374
      %3705 = vmatmul.mubr.bf16.gmra.mrb[0].mxu0 %v3373
      %v3706 = vpop.f32.mrb[0].mxu0
      %v3707 = vadd.f32 0.0, %v3706
      %v3708 = vpop.f32.mrb[0].mxu0
      %v3709 = vpop.f32.mrb[0].mxu0
      %v3710 = vadd.f32 0.0, %v3709
      %v3711 = vpop.f32.mrb[0].mxu0
      %3712 = vmatprep.mubr.bf16.mxu0 %v3377
      %3713 = vmatmul.mubr.bf16.gmra.mrb[0].mxu0 %v3376
      %v3714 = vpop.f32.mrb[0].mxu0
      %v3715 = vadd.f32 0.0, %v3714
      %v3716 = vpop.f32.mrb[0].mxu0
      %v3717 = vpop.f32.mrb[0].mxu0
      %v3718 = vadd.f32 0.0, %v3717
      %v3719 = vpop.f32.mrb[0].mxu0
      %3720 = vmatprep.mubr.bf16.mxu0 %v3380
      %3721 = vmatmul.mubr.bf16.gmra.mrb[0].mxu0 %v3379
      %v3722 = vpop.f32.mrb[0].mxu0
      %v3723 = vadd.f32 0.0, %v3722
      %v3724 = vpop.f32.mrb[0].mxu0
      %v3725 = vpop.f32.mrb[0].mxu0
      %v3726 = vadd.f32 0.0, %v3725
      %v3727 = vpop.f32.mrb[0].mxu0
      %3728 = vmatprep.mubr.bf16.mxu0 %v3383
      %3729 = vmatmul.mubr.bf16.gmra.mrb[0].mxu0 %v3382
      %v3730 = vpop.f32.mrb[0].mxu0
      %v3731 = vadd.f32 0.0, %v3730
      %v3732 = vpop.f32.mrb[0].mxu0
      %v3733 = vpop.f32.mrb[0].mxu0
      %v3734 = vadd.f32 0.0, %v3733
      %v3735 = vpop.f32.mrb[0].mxu0
      %3736 = vmatprep.mubr.bf16.mxu0 %v3386
      %3737 = vmatmul.mubr.bf16.gmra.mrb[0].mxu0 %v3385
      %v3738 = vpop.f32.mrb[0].mxu0
      %v3739 = vadd.f32 0.0, %v3738
      %v3740 = vpop.f32.mrb[0].mxu0
      %v3741 = vpop.f32.mrb[0].mxu0
      %v3742 = vadd.f32 0.0, %v3741
      %v3743 = vpop.f32.mrb[0].mxu0
      %3744 = vmatprep.mubr.bf16.mxu0 %v3389
      %3745 = vmatmul.mubr.bf16.gmra.mrb[0].mxu0 %v3388
      %v3746 = vpop.f32.mrb[0].mxu0
      %v3747 = vadd.f32 0.0, %v3746
      %v3748 = vpop.f32.mrb[0].mxu0
      %v3749 = vpop.f32.mrb[0].mxu0
      %v3750 = vadd.f32 0.0, %v3749
      %v3751 = vpop.f32.mrb[0].mxu0
      %3752 = vmatprep.mubr.bf16.mxu0 %v3392
      %3753 = vmatmul.mubr.bf16.gmra.mrb[0].mxu0 %v3391
      %v3754 = vpop.f32.mrb[0].mxu0
      %v3755 = vadd.f32 0.0, %v3754
      %v3756 = vpop.f32.mrb[0].mxu0
      %v3757 = vpop.f32.mrb[0].mxu0
      %v3758 = vadd.f32 0.0, %v3757
      %v3759 = vpop.f32.mrb[0].mxu0
      %3760 = vmatprep.mubr.bf16.mxu0 %v3395
      %3761 = vmatmul.mubr.bf16.gmra.mrb[0].mxu0 %v3394
      %v3762 = vpop.f32.mrb[0].mxu0
      %v3763 = vadd.f32 0.0, %v3762
      %v3764 = vpop.f32.mrb[0].mxu0
      %v3765 = vpop.f32.mrb[0].mxu0
      %v3766 = vadd.f32 0.0, %v3765
      %v3767 = vpop.f32.mrb[0].mxu0
      %3768 = vmatprep.mubr.bf16.mxu0 %v3398
      %3769 = vmatmul.mubr.bf16.gmra.mrb[0].mxu0 %v3397
      %v3770 = vpop.f32.mrb[0].mxu0
      %v3771 = vadd.f32 0.0, %v3770
      %v3772 = vpop.f32.mrb[0].mxu0
      %v3773 = vpop.f32.mrb[0].mxu0
      %v3774 = vadd.f32 0.0, %v3773
      %v3775 = vpop.f32.mrb[0].mxu0
      %3776 = vmatprep.mubr.bf16.mxu0 %v3401
      %3777 = vmatmul.mubr.bf16.gmra.mrb[0].mxu0 %v3400
      %v3778 = vpop.f32.mrb[0].mxu0
      %v3779 = vadd.f32 0.0, %v3778
      %v3780 = vpop.f32.mrb[0].mxu0
      %v3781 = vpop.f32.mrb[0].mxu0
      %v3782 = vadd.f32 0.0, %v3781
      %v3783 = vpop.f32.mrb[0].mxu0
      %3784 = vmatprep.mubr.bf16.mxu0 %v3404
      %3785 = vmatmul.mubr.bf16.gmra.mrb[0].mxu0 %v3403
      %v3786 = vpop.f32.mrb[0].mxu0
      %v3787 = vadd.f32 0.0, %v3786
      %v3788 = vpop.f32.mrb[0].mxu0
      %v3789 = vpop.f32.mrb[0].mxu0
      %v3790 = vadd.f32 0.0, %v3789
      %v3791 = vpop.f32.mrb[0].mxu0
      %3792 = vmatprep.mubr.bf16.mxu0 %v3407
      %3793 = vmatmul.mubr.bf16.gmra.mrb[0].mxu0 %v3406
      %v3794 = vpop.f32.mrb[0].mxu0
      %v3795 = vadd.f32 0.0, %v3794
      %v3796 = vpop.f32.mrb[0].mxu0
      %v3797 = vpop.f32.mrb[0].mxu0
      %v3798 = vadd.f32 0.0, %v3797
      %v3799 = vpop.f32.mrb[0].mxu0
      %3800 = vmatprep.mubr.bf16.mxu0 %v3410
      %3801 = vmatmul.mubr.bf16.gmra.mrb[0].mxu0 %v3409
      %v3802 = vpop.f32.mrb[0].mxu0
      %v3803 = vadd.f32 0.0, %v3802
      %v3804 = vpop.f32.mrb[0].mxu0
      %v3805 = vpop.f32.mrb[0].mxu0
      %v3806 = vadd.f32 0.0, %v3805
      %v3807 = vpop.f32.mrb[0].mxu0
      %3808 = vmatprep.mubr.bf16.mxu0 %v3413
      %3809 = vmatmul.mubr.bf16.gmra.mrb[0].mxu0 %v3412
      %v3810 = vpop.f32.mrb[0].mxu0
      %v3811 = vadd.f32 0.0, %v3810
      %v3812 = vpop.f32.mrb[0].mxu0
      %v3813 = vpop.f32.mrb[0].mxu0
      %v3814 = vadd.f32 0.0, %v3813
      %v3815 = vpop.f32.mrb[0].mxu0
      %3816 = vmatprep.mubr.bf16.mxu0 %v3416
      %3817 = vmatmul.mubr.bf16.gmra.mrb[0].mxu0 %v3415
      %v3818 = vpop.f32.mrb[0].mxu0
      %v3819 = vadd.f32 0.0, %v3818
      %v3820 = vpop.f32.mrb[0].mxu0
      %v3821 = vpop.f32.mrb[0].mxu0
      %v3822 = vadd.f32 0.0, %v3821
      %v3823 = vpop.f32.mrb[0].mxu0
      %3824 = vmatprep.mubr.bf16.mxu0 %v3419
      %3825 = vmatmul.mubr.bf16.gmra.mrb[0].mxu0 %v3418
      %v3826 = vpop.f32.mrb[0].mxu0
      %v3827 = vadd.f32 0.0, %v3826
      %v3828 = vpop.f32.mrb[0].mxu0
      %v3829 = vpop.f32.mrb[0].mxu0
      %v3830 = vadd.f32 0.0, %v3829
      %v3831 = vpop.f32.mrb[0].mxu0
      %3832 = vmatprep.mubr.bf16.mxu0 %v3422
      %3833 = vmatmul.mubr.bf16.gmra.mrb[0].mxu0 %v3421
      %v3834 = vpop.f32.mrb[0].mxu0
      %v3835 = vadd.f32 0.0, %v3834
      %v3836 = vpop.f32.mrb[0].mxu0
      %v3837 = vpop.f32.mrb[0].mxu0
      %v3838 = vadd.f32 0.0, %v3837
      %v3839 = vpop.f32.mrb[0].mxu0
      %3840 = vmatprep.mubr.bf16.mxu0 %v3425
      %3841 = vmatmul.mubr.bf16.gmra.mrb[0].mxu0 %v3424
      %v3842 = vpop.f32.mrb[0].mxu0
      %v3843 = vadd.f32 0.0, %v3842
      %v3844 = vpop.f32.mrb[0].mxu0
      %v3845 = vpop.f32.mrb[0].mxu0
      %v3846 = vadd.f32 0.0, %v3845
      %v3847 = vpop.f32.mrb[0].mxu0
      %3848 = vmatprep.mubr.bf16.mxu0 %v3428
      %3849 = vmatmul.mubr.bf16.gmra.mrb[0].mxu0 %v3427
      %v3850 = vpop.f32.mrb[0].mxu0
      %v3851 = vadd.f32 0.0, %v3850
      %v3852 = vpop.f32.mrb[0].mxu0
      %v3853 = vpop.f32.mrb[0].mxu0
      %v3854 = vadd.f32 0.0, %v3853
      %v3855 = vpop.f32.mrb[0].mxu0
      %3856 = vmatprep.mubr.bf16.mxu0 %v3431
      %3857 = vmatmul.mubr.bf16.gmra.mrb[0].mxu0 %v3430
      %v3858 = vpop.f32.mrb[0].mxu0
      %v3859 = vadd.f32 0.0, %v3858
      %v3860 = vpop.f32.mrb[0].mxu0
      %v3861 = vpop.f32.mrb[0].mxu0
      %v3862 = vadd.f32 0.0, %v3861
      %v3863 = vpop.f32.mrb[0].mxu0
      %3864 = vmatprep.mubr.bf16.mxu0 %v3434
      %3865 = vmatmul.mubr.bf16.gmra.mrb[0].mxu0 %v3433
      %v3866 = vpop.f32.mrb[0].mxu0
      %v3867 = vadd.f32 0.0, %v3866
      %v3868 = vpop.f32.mrb[0].mxu0
      %v3869 = vpop.f32.mrb[0].mxu0
      %v3870 = vadd.f32 0.0, %v3869
      %v3871 = vpop.f32.mrb[0].mxu0
      %3872 = vmatprep.mubr.bf16.mxu0 %v3437
      %3873 = vmatmul.mubr.bf16.gmra.mrb[0].mxu0 %v3436
      %v3874 = vpop.f32.mrb[0].mxu0
      %v3875 = vadd.f32 0.0, %v3874
      %v3876 = vpop.f32.mrb[0].mxu0
      %v3877 = vpop.f32.mrb[0].mxu0
      %v3878 = vadd.f32 0.0, %v3877
      %v3879 = vpop.f32.mrb[0].mxu0
      %3880 = vmatprep.mubr.bf16.mxu0 %v3440
      %3881 = vmatmul.mubr.bf16.gmra.mrb[0].mxu0 %v3439
      %v3882 = vpop.f32.mrb[0].mxu0
      %v3883 = vadd.f32 0.0, %v3882
      %v3884 = vpop.f32.mrb[0].mxu0
      %v3885 = vpop.f32.mrb[0].mxu0
      %v3886 = vadd.f32 0.0, %v3885
      %v3887 = vpop.f32.mrb[0].mxu0
      %3888 = vmatprep.mubr.bf16.mxu0 %v3443
      %3889 = vmatmul.mubr.bf16.gmra.mrb[0].mxu0 %v3442
      %v3890 = vpop.f32.mrb[0].mxu0
      %v3891 = vadd.f32 0.0, %v3890
      %v3892 = vpop.f32.mrb[0].mxu0
      %v3893 = vpop.f32.mrb[0].mxu0
      %v3894 = vadd.f32 0.0, %v3893
      %v3895 = vpop.f32.mrb[0].mxu0
      %3896 = vmatprep.mubr.bf16.mxu0 %v3446
      %3897 = vmatmul.mubr.bf16.gmra.mrb[0].mxu0 %v3445
      %v3898 = vpop.f32.mrb[0].mxu0
      %v3899 = vadd.f32 0.0, %v3898
      %v3900 = vpop.f32.mrb[0].mxu0
      %v3901 = vpop.f32.mrb[0].mxu0
      %v3902 = vadd.f32 0.0, %v3901
      %v3903 = vpop.f32.mrb[0].mxu0
      %3904 = vmatprep.mubr.bf16.mxu0 %v3449
      %3905 = vmatmul.mubr.bf16.gmra.mrb[0].mxu0 %v3448
      %v3906 = vpop.f32.mrb[0].mxu0
      %v3907 = vadd.f32 0.0, %v3906
      %v3908 = vpop.f32.mrb[0].mxu0
      %v3909 = vpop.f32.mrb[0].mxu0
      %v3910 = vadd.f32 0.0, %v3909
      %v3911 = vpop.f32.mrb[0].mxu0
      %3912 = vmatprep.mubr.bf16.mxu0 %v3452
      %3913 = vmatmul.mubr.bf16.gmra.mrb[0].mxu0 %v3451
      %v3914 = vpop.f32.mrb[0].mxu0
      %v3915 = vadd.f32 0.0, %v3914
      %v3916 = vpop.f32.mrb[0].mxu0
      %v3917 = vpop.f32.mrb[0].mxu0
      %v3918 = vadd.f32 0.0, %v3917
      %v3919 = vpop.f32.mrb[0].mxu0
      %3920 = vmatprep.mubr.bf16.mxu0 %v3455
      %3921 = vmatmul.mubr.bf16.gmra.mrb[0].mxu0 %v3454
      %v3922 = vpop.f32.mrb[0].mxu0
      %v3923 = vadd.f32 0.0, %v3922
      %v3924 = vpop.f32.mrb[0].mxu0
      %v3925 = vpop.f32.mrb[0].mxu0
      %v3926 = vadd.f32 0.0, %v3925
      %v3927 = vpop.f32.mrb[0].mxu0
      %3928 = vmatprep.mubr.bf16.mxu0 %v3458
      %3929 = vmatmul.mubr.bf16.gmra.mrb[0].mxu0 %v3457
      %v3930 = vpop.f32.mrb[0].mxu0
      %v3931 = vadd.f32 0.0, %v3930
      %v3932 = vpop.f32.mrb[0].mxu0
      %v3933 = vpop.f32.mrb[0].mxu0
      %v3934 = vadd.f32 0.0, %v3933
      %v3935 = vpop.f32.mrb[0].mxu0
      %3936 = vmatprep.mubr.bf16.mxu0 %v3461
      %3937 = vmatmul.mubr.bf16.gmra.mrb[0].mxu0 %v3460
      %v3938 = vpop.f32.mrb[0].mxu0
      %v3939 = vadd.f32 0.0, %v3938
      %v3940 = vpop.f32.mrb[0].mxu0
      %v3941 = vpop.f32.mrb[0].mxu0
      %v3942 = vadd.f32 0.0, %v3941
      %v3943 = vpop.f32.mrb[0].mxu0
      %3944 = vdwg.mxu0
      %3945 = vmatprep.subr.bf16.mxu0 0
      %3946 = vmatpush1.bf16.msra.mxu0 %v3624
      %3947 = vmatprep.subr.bf16.mxu0 0
      %3948 = vmatpush1.bf16.msra.mxu0 %v3625
      %3949 = vmatprep.subr.bf16.mxu0 0
      %3950 = vmatpush1.bf16.msra.mxu0 %v3626
      %3951 = vmatprep.subr.bf16.mxu0 0
      %3952 = vmatpush1.bf16.msra.mxu0 %v3627
      %3953 = vmatprep.subr.bf16.mxu0 0
      %3954 = vmatpush1.bf16.msra.mxu0 %v3628
      %3955 = vmatprep.subr.bf16.mxu0 0
      %3956 = vmatpush1.bf16.msra.mxu0 %v3629
      %3957 = vmatprep.subr.bf16.mxu0 0
      %3958 = vmatpush1.bf16.msra.mxu0 %v3630
      %3959 = vmatprep.subr.bf16.mxu0 0
      %3960 = vmatpush1.bf16.msra.mxu0 %v3631
      %3961 = vmatprep.subr.bf16.mxu0 0
      %3962 = vmatpush1.bf16.msra.mxu0 0
      %3963 = vmatprep.subr.bf16.mxu0 0
      %3964 = vmatpush1.bf16.msra.mxu0 0
      %3965 = vmatprep.subr.bf16.mxu0 0
      %3966 = vmatpush1.bf16.msra.mxu0 0
      %3967 = vmatprep.subr.bf16.mxu0 0
      %3968 = vmatpush1.bf16.msra.mxu0 0
      %3969 = vmatprep.subr.bf16.mxu0 0
      %3970 = vmatpush1.bf16.msra.mxu0 0
      %3971 = vmatprep.subr.bf16.mxu0 0
      %3972 = vmatpush1.bf16.msra.mxu0 0
      %3973 = vmatprep.subr.bf16.mxu0 0
      %3974 = vmatpush1.bf16.msra.mxu0 0
      %3975 = vmatprep.subr.bf16.mxu0 0
      %3976 = vmatpush1.bf16.msra.mxu0 0
      %3977 = vmatprep.mubr.bf16.mxu0 0
      %3978 = vmatmul.mubr.bf16.gmra.mrb[0].mxu0 %v3369
      %v3979 = vpop.f32.mrb[0].mxu0
      %v3980 = vadd.f32 %v3691, %v3979
      %v3981 = vpop.f32.mrb[0].mxu0
      %v3982 = vpop.f32.mrb[0].mxu0
      %v3983 = vadd.f32 %v3694, %v3982
      %v3984 = vpop.f32.mrb[0].mxu0
      %3985 = vmatprep.mubr.bf16.mxu0 0
      %3986 = vmatmul.mubr.bf16.gmra.mrb[0].mxu0 %v3372
      %v3987 = vpop.f32.mrb[0].mxu0
      %v3988 = vadd.f32 %v3699, %v3987
      %v3989 = vpop.f32.mrb[0].mxu0
      %v3990 = vpop.f32.mrb[0].mxu0
      %v3991 = vadd.f32 %v3702, %v3990
      %v3992 = vpop.f32.mrb[0].mxu0
      %3993 = vmatprep.mubr.bf16.mxu0 0
      %3994 = vmatmul.mubr.bf16.gmra.mrb[0].mxu0 %v3375
      %v3995 = vpop.f32.mrb[0].mxu0
      %v3996 = vadd.f32 %v3707, %v3995
      %v3997 = vpop.f32.mrb[0].mxu0
      %v3998 = vpop.f32.mrb[0].mxu0
      %v3999 = vadd.f32 %v3710, %v3998
      %v4000 = vpop.f32.mrb[0].mxu0
      %4001 = vmatprep.mubr.bf16.mxu0 0
      %4002 = vmatmul.mubr.bf16.gmra.mrb[0].mxu0 %v3378
      %v4003 = vpop.f32.mrb[0].mxu0
      %v4004 = vadd.f32 %v3715, %v4003
      %v4005 = vpop.f32.mrb[0].mxu0
      %v4006 = vpop.f32.mrb[0].mxu0
      %v4007 = vadd.f32 %v3718, %v4006
      %v4008 = vpop.f32.mrb[0].mxu0
      %4009 = vmatprep.mubr.bf16.mxu0 0
      %4010 = vmatmul.mubr.bf16.gmra.mrb[0].mxu0 %v3381
      %v4011 = vpop.f32.mrb[0].mxu0
      %v4012 = vadd.f32 %v3723, %v4011
      %v4013 = vpop.f32.mrb[0].mxu0
      %v4014 = vpop.f32.mrb[0].mxu0
      %v4015 = vadd.f32 %v3726, %v4014
      %v4016 = vpop.f32.mrb[0].mxu0
      %4017 = vmatprep.mubr.bf16.mxu0 0
      %4018 = vmatmul.mubr.bf16.gmra.mrb[0].mxu0 %v3384
      %v4019 = vpop.f32.mrb[0].mxu0
      %v4020 = vadd.f32 %v3731, %v4019
      %v4021 = vpop.f32.mrb[0].mxu0
      %v4022 = vpop.f32.mrb[0].mxu0
      %v4023 = vadd.f32 %v3734, %v4022
      %v4024 = vpop.f32.mrb[0].mxu0
      %4025 = vmatprep.mubr.bf16.mxu0 0
      %4026 = vmatmul.mubr.bf16.gmra.mrb[0].mxu0 %v3387
      %v4027 = vpop.f32.mrb[0].mxu0
      %v4028 = vadd.f32 %v3739, %v4027
      %v4029 = vpop.f32.mrb[0].mxu0
      %v4030 = vpop.f32.mrb[0].mxu0
      %v4031 = vadd.f32 %v3742, %v4030
      %v4032 = vpop.f32.mrb[0].mxu0
      %4033 = vmatprep.mubr.bf16.mxu0 0
      %4034 = vmatmul.mubr.bf16.gmra.mrb[0].mxu0 %v3390
      %v4035 = vpop.f32.mrb[0].mxu0
      %v4036 = vadd.f32 %v3747, %v4035
      %v4037 = vpop.f32.mrb[0].mxu0
      %v4038 = vpop.f32.mrb[0].mxu0
      %v4039 = vadd.f32 %v3750, %v4038
      %v4040 = vpop.f32.mrb[0].mxu0
      %4041 = vmatprep.mubr.bf16.mxu0 0
      %4042 = vmatmul.mubr.bf16.gmra.mrb[0].mxu0 %v3393
      %v4043 = vpop.f32.mrb[0].mxu0
      %v4044 = vadd.f32 %v3755, %v4043
      %v4045 = vpop.f32.mrb[0].mxu0
      %v4046 = vpop.f32.mrb[0].mxu0
      %v4047 = vadd.f32 %v3758, %v4046
      %v4048 = vpop.f32.mrb[0].mxu0
      %4049 = vmatprep.mubr.bf16.mxu0 0
      %4050 = vmatmul.mubr.bf16.gmra.mrb[0].mxu0 %v3396
      %v4051 = vpop.f32.mrb[0].mxu0
      %v4052 = vadd.f32 %v3763, %v4051
      %v4053 = vpop.f32.mrb[0].mxu0
      %v4054 = vpop.f32.mrb[0].mxu0
      %v4055 = vadd.f32 %v3766, %v4054
      %v4056 = vpop.f32.mrb[0].mxu0
      %4057 = vmatprep.mubr.bf16.mxu0 0
      %4058 = vmatmul.mubr.bf16.gmra.mrb[0].mxu0 %v3399
      %v4059 = vpop.f32.mrb[0].mxu0
      %v4060 = vadd.f32 %v3771, %v4059
      %v4061 = vpop.f32.mrb[0].mxu0
      %v4062 = vpop.f32.mrb[0].mxu0
      %v4063 = vadd.f32 %v3774, %v4062
      %v4064 = vpop.f32.mrb[0].mxu0
      %4065 = vmatprep.mubr.bf16.mxu0 0
      %4066 = vmatmul.mubr.bf16.gmra.mrb[0].mxu0 %v3402
      %v4067 = vpop.f32.mrb[0].mxu0
      %v4068 = vadd.f32 %v3779, %v4067
      %v4069 = vpop.f32.mrb[0].mxu0
      %v4070 = vpop.f32.mrb[0].mxu0
      %v4071 = vadd.f32 %v3782, %v4070
      %v4072 = vpop.f32.mrb[0].mxu0
      %4073 = vmatprep.mubr.bf16.mxu0 0
      %4074 = vmatmul.mubr.bf16.gmra.mrb[0].mxu0 %v3405
      %v4075 = vpop.f32.mrb[0].mxu0
      %v4076 = vadd.f32 %v3787, %v4075
      %v4077 = vpop.f32.mrb[0].mxu0
      %v4078 = vpop.f32.mrb[0].mxu0
      %v4079 = vadd.f32 %v3790, %v4078
      %v4080 = vpop.f32.mrb[0].mxu0
      %4081 = vmatprep.mubr.bf16.mxu0 0
      %4082 = vmatmul.mubr.bf16.gmra.mrb[0].mxu0 %v3408
      %v4083 = vpop.f32.mrb[0].mxu0
      %v4084 = vadd.f32 %v3795, %v4083
      %v4085 = vpop.f32.mrb[0].mxu0
      %v4086 = vpop.f32.mrb[0].mxu0
      %v4087 = vadd.f32 %v3798, %v4086
      %v4088 = vpop.f32.mrb[0].mxu0
      %4089 = vmatprep.mubr.bf16.mxu0 0
      %4090 = vmatmul.mubr.bf16.gmra.mrb[0].mxu0 %v3411
      %v4091 = vpop.f32.mrb[0].mxu0
      %v4092 = vadd.f32 %v3803, %v4091
      %v4093 = vpop.f32.mrb[0].mxu0
      %v4094 = vpop.f32.mrb[0].mxu0
      %v4095 = vadd.f32 %v3806, %v4094
      %v4096 = vpop.f32.mrb[0].mxu0
      %4097 = vmatprep.mubr.bf16.mxu0 0
      %4098 = vmatmul.mubr.bf16.gmra.mrb[0].mxu0 %v3414
      %v4099 = vpop.f32.mrb[0].mxu0
      %v4100 = vadd.f32 %v3811, %v4099
      %v4101 = vpop.f32.mrb[0].mxu0
      %v4102 = vpop.f32.mrb[0].mxu0
      %v4103 = vadd.f32 %v3814, %v4102
      %v4104 = vpop.f32.mrb[0].mxu0
      %4105 = vmatprep.mubr.bf16.mxu0 0
      %4106 = vmatmul.mubr.bf16.gmra.mrb[0].mxu0 %v3417
      %v4107 = vpop.f32.mrb[0].mxu0
      %v4108 = vadd.f32 %v3819, %v4107
      %v4109 = vpop.f32.mrb[0].mxu0
      %v4110 = vpop.f32.mrb[0].mxu0
      %v4111 = vadd.f32 %v3822, %v4110
      %v4112 = vpop.f32.mrb[0].mxu0
      %4113 = vmatprep.mubr.bf16.mxu0 0
      %4114 = vmatmul.mubr.bf16.gmra.mrb[0].mxu0 %v3420
      %v4115 = vpop.f32.mrb[0].mxu0
      %v4116 = vadd.f32 %v3827, %v4115
      %v4117 = vpop.f32.mrb[0].mxu0
      %v4118 = vpop.f32.mrb[0].mxu0
      %v4119 = vadd.f32 %v3830, %v4118
      %v4120 = vpop.f32.mrb[0].mxu0
      %4121 = vmatprep.mubr.bf16.mxu0 0
      %4122 = vmatmul.mubr.bf16.gmra.mrb[0].mxu0 %v3423
      %v4123 = vpop.f32.mrb[0].mxu0
      %v4124 = vadd.f32 %v3835, %v4123
      %v4125 = vpop.f32.mrb[0].mxu0
      %v4126 = vpop.f32.mrb[0].mxu0
      %v4127 = vadd.f32 %v3838, %v4126
      %v4128 = vpop.f32.mrb[0].mxu0
      %4129 = vmatprep.mubr.bf16.mxu0 0
      %4130 = vmatmul.mubr.bf16.gmra.mrb[0].mxu0 %v3426
      %v4131 = vpop.f32.mrb[0].mxu0
      %v4132 = vadd.f32 %v3843, %v4131
      %v4133 = vpop.f32.mrb[0].mxu0
      %v4134 = vpop.f32.mrb[0].mxu0
      %v4135 = vadd.f32 %v3846, %v4134
      %v4136 = vpop.f32.mrb[0].mxu0
      %4137 = vmatprep.mubr.bf16.mxu0 0
      %4138 = vmatmul.mubr.bf16.gmra.mrb[0].mxu0 %v3429
      %v4139 = vpop.f32.mrb[0].mxu0
      %v4140 = vadd.f32 %v3851, %v4139
      %v4141 = vpop.f32.mrb[0].mxu0
      %v4142 = vpop.f32.mrb[0].mxu0
      %v4143 = vadd.f32 %v3854, %v4142
      %v4144 = vpop.f32.mrb[0].mxu0
      %4145 = vmatprep.mubr.bf16.mxu0 0
      %4146 = vmatmul.mubr.bf16.gmra.mrb[0].mxu0 %v3432
      %v4147 = vpop.f32.mrb[0].mxu0
      %v4148 = vadd.f32 %v3859, %v4147
      %v4149 = vpop.f32.mrb[0].mxu0
      %v4150 = vpop.f32.mrb[0].mxu0
      %v4151 = vadd.f32 %v3862, %v4150
      %v4152 = vpop.f32.mrb[0].mxu0
      %4153 = vmatprep.mubr.bf16.mxu0 0
      %4154 = vmatmul.mubr.bf16.gmra.mrb[0].mxu0 %v3435
      %v4155 = vpop.f32.mrb[0].mxu0
      %v4156 = vadd.f32 %v3867, %v4155
      %v4157 = vpop.f32.mrb[0].mxu0
      %v4158 = vpop.f32.mrb[0].mxu0
      %v4159 = vadd.f32 %v3870, %v4158
      %v4160 = vpop.f32.mrb[0].mxu0
      %4161 = vmatprep.mubr.bf16.mxu0 0
      %4162 = vmatmul.mubr.bf16.gmra.mrb[0].mxu0 %v3438
      %v4163 = vpop.f32.mrb[0].mxu0
      %v4164 = vadd.f32 %v3875, %v4163
      %v4165 = vpop.f32.mrb[0].mxu0
      %v4166 = vpop.f32.mrb[0].mxu0
      %v4167 = vadd.f32 %v3878, %v4166
      %v4168 = vpop.f32.mrb[0].mxu0
      %4169 = vmatprep.mubr.bf16.mxu0 0
      %4170 = vmatmul.mubr.bf16.gmra.mrb[0].mxu0 %v3441
      %v4171 = vpop.f32.mrb[0].mxu0
      %v4172 = vadd.f32 %v3883, %v4171
      %v4173 = vpop.f32.mrb[0].mxu0
      %v4174 = vpop.f32.mrb[0].mxu0
      %v4175 = vadd.f32 %v3886, %v4174
      %v4176 = vpop.f32.mrb[0].mxu0
      %4177 = vmatprep.mubr.bf16.mxu0 0
      %4178 = vmatmul.mubr.bf16.gmra.mrb[0].mxu0 %v3444
      %v4179 = vpop.f32.mrb[0].mxu0
      %v4180 = vadd.f32 %v3891, %v4179
      %v4181 = vpop.f32.mrb[0].mxu0
      %v4182 = vpop.f32.mrb[0].mxu0
      %v4183 = vadd.f32 %v3894, %v4182
      %v4184 = vpop.f32.mrb[0].mxu0
      %4185 = vmatprep.mubr.bf16.mxu0 0
      %4186 = vmatmul.mubr.bf16.gmra.mrb[0].mxu0 %v3447
      %v4187 = vpop.f32.mrb[0].mxu0
      %v4188 = vadd.f32 %v3899, %v4187
      %v4189 = vpop.f32.mrb[0].mxu0
      %v4190 = vpop.f32.mrb[0].mxu0
      %v4191 = vadd.f32 %v3902, %v4190
      %v4192 = vpop.f32.mrb[0].mxu0
      %4193 = vmatprep.mubr.bf16.mxu0 0
      %4194 = vmatmul.mubr.bf16.gmra.mrb[0].mxu0 %v3450
      %v4195 = vpop.f32.mrb[0].mxu0
      %v4196 = vadd.f32 %v3907, %v4195
      %v4197 = vpop.f32.mrb[0].mxu0
      %v4198 = vpop.f32.mrb[0].mxu0
      %v4199 = vadd.f32 %v3910, %v4198
      %v4200 = vpop.f32.mrb[0].mxu0
      %4201 = vmatprep.mubr.bf16.mxu0 0
      %4202 = vmatmul.mubr.bf16.gmra.mrb[0].mxu0 %v3453
      %v4203 = vpop.f32.mrb[0].mxu0
      %v4204 = vadd.f32 %v3915, %v4203
      %v4205 = vpop.f32.mrb[0].mxu0
      %v4206 = vpop.f32.mrb[0].mxu0
      %v4207 = vadd.f32 %v3918, %v4206
      %v4208 = vpop.f32.mrb[0].mxu0
      %4209 = vmatprep.mubr.bf16.mxu0 0
      %4210 = vmatmul.mubr.bf16.gmra.mrb[0].mxu0 %v3456
      %v4211 = vpop.f32.mrb[0].mxu0
      %v4212 = vadd.f32 %v3923, %v4211
      %v4213 = vpop.f32.mrb[0].mxu0
      %v4214 = vpop.f32.mrb[0].mxu0
      %v4215 = vadd.f32 %v3926, %v4214
      %v4216 = vpop.f32.mrb[0].mxu0
      %4217 = vmatprep.mubr.bf16.mxu0 0
      %4218 = vmatmul.mubr.bf16.gmra.mrb[0].mxu0 %v3459
      %v4219 = vpop.f32.mrb[0].mxu0
      %v4220 = vadd.f32 %v3931, %v4219
      %v4221 = vpop.f32.mrb[0].mxu0
      %v4222 = vpop.f32.mrb[0].mxu0
      %v4223 = vadd.f32 %v3934, %v4222
      %v4224 = vpop.f32.mrb[0].mxu0
      %4225 = vmatprep.mubr.bf16.mxu0 0
      %4226 = vmatmul.mubr.bf16.gmra.mrb[0].mxu0 %v3462
      %v4227 = vpop.f32.mrb[0].mxu0
      %v4228 = vadd.f32 %v3939, %v4227
      %v4229 = vpop.f32.mrb[0].mxu0
      %v4230 = vpop.f32.mrb[0].mxu0
      %v4231 = vadd.f32 %v3942, %v4230
      %v4232 = vpop.f32.mrb[0].mxu0
      %4233 = vdwg.mxu0
      %v4234 = vld [vmem:[#allocation3] sm:$0xff]
      %v4235 = vld [vmem:[#allocation3 + $0x8] sm:$0xff]
      %v4236 = vld [vmem:[#allocation3 + $0x10] sm:$0xff]
      %v4237 = vld [vmem:[#allocation3 + $0x18] sm:$0xff]
      %v4238 = vld [vmem:[#allocation3 + $0x20] sm:$0xff]
      %v4239 = vld [vmem:[#allocation3 + $0x28] sm:$0xff]
      %v4240 = vld [vmem:[#allocation3 + $0x30] sm:$0xff]
      %v4241 = vld [vmem:[#allocation3 + $0x38] sm:$0xff]
      %v4242 = vld [vmem:[#allocation3 + $0x40] sm:$0xff]
      %v4243 = vld [vmem:[#allocation3 + $0x48] sm:$0xff]
      %v4244 = vld [vmem:[#allocation3 + $0x50] sm:$0xff]
      %v4245 = vld [vmem:[#allocation3 + $0x58] sm:$0xff]
      %v4246 = vld [vmem:[#allocation3 + $0x60] sm:$0xff]
      %v4247 = vld [vmem:[#allocation3 + $0x68] sm:$0xff]
      %v4248 = vld [vmem:[#allocation3 + $0x70] sm:$0xff]
      %v4249 = vld [vmem:[#allocation3 + $0x78] sm:$0xff]
      %v4250 = vld [vmem:[#allocation3 + $0x80] sm:$0xff]
      %v4251 = vld [vmem:[#allocation3 + $0x88] sm:$0xff]
      %v4252 = vld [vmem:[#allocation3 + $0x90] sm:$0xff]
      %v4253 = vld [vmem:[#allocation3 + $0x98] sm:$0xff]
      %v4254 = vld [vmem:[#allocation3 + $0xa0] sm:$0xff]
      %v4255 = vld [vmem:[#allocation3 + $0xa8] sm:$0xff]
      %v4256 = vld [vmem:[#allocation3 + $0xb0] sm:$0xff]
      %v4257 = vld [vmem:[#allocation3 + $0xb8] sm:$0xff]
      %v4258 = vld [vmem:[#allocation3 + $0xc0] sm:$0xff]
      %v4259 = vld [vmem:[#allocation3 + $0xc8] sm:$0xff]
      %v4260 = vld [vmem:[#allocation3 + $0xd0] sm:$0xff]
      %v4261 = vld [vmem:[#allocation3 + $0xd8] sm:$0xff]
      %v4262 = vld [vmem:[#allocation3 + $0xe0] sm:$0xff]
      %v4263 = vld [vmem:[#allocation3 + $0xe8] sm:$0xff]
      %v4264 = vld [vmem:[#allocation3 + $0xf0] sm:$0xff]
      %v4265 = vld [vmem:[#allocation3 + $0xf8] sm:$0xff]
      %v4266 = vld [vmem:[#allocation3 + $0x100] sm:$0xff]
      %v4267 = vld [vmem:[#allocation3 + $0x108] sm:$0xff]
      %v4268 = vld [vmem:[#allocation3 + $0x110] sm:$0xff]
      %v4269 = vld [vmem:[#allocation3 + $0x118] sm:$0xff]
      %v4270 = vld [vmem:[#allocation3 + $0x120] sm:$0xff]
      %v4271 = vld [vmem:[#allocation3 + $0x128] sm:$0xff]
      %v4272 = vld [vmem:[#allocation3 + $0x130] sm:$0xff]
      %v4273 = vld [vmem:[#allocation3 + $0x138] sm:$0xff]
      %v4274 = vld [vmem:[#allocation3 + $0x140] sm:$0xff]
      %v4275 = vld [vmem:[#allocation3 + $0x148] sm:$0xff]
      %v4276 = vld [vmem:[#allocation3 + $0x150] sm:$0xff]
      %v4277 = vld [vmem:[#allocation3 + $0x158] sm:$0xff]
      %v4278 = vld [vmem:[#allocation3 + $0x160] sm:$0xff]
      %v4279 = vld [vmem:[#allocation3 + $0x168] sm:$0xff]
      %v4280 = vld [vmem:[#allocation3 + $0x170] sm:$0xff]
      %v4281 = vld [vmem:[#allocation3 + $0x178] sm:$0xff]
      %v4282 = vld [vmem:[#allocation3 + $0x180] sm:$0xff]
      %v4283 = vld [vmem:[#allocation3 + $0x188] sm:$0xff]
      %v4284 = vld [vmem:[#allocation3 + $0x190] sm:$0xff]
      %v4285 = vld [vmem:[#allocation3 + $0x198] sm:$0xff]
      %v4286 = vld [vmem:[#allocation3 + $0x1a0] sm:$0xff]
      %v4287 = vld [vmem:[#allocation3 + $0x1a8] sm:$0xff]
      %v4288 = vld [vmem:[#allocation3 + $0x1b0] sm:$0xff]
      %v4289 = vld [vmem:[#allocation3 + $0x1b8] sm:$0xff]
      %v4290 = vld [vmem:[#allocation3 + $0x1c0] sm:$0xff]
      %v4291 = vld [vmem:[#allocation3 + $0x1c8] sm:$0xff]
      %v4292 = vld [vmem:[#allocation3 + $0x1d0] sm:$0xff]
      %v4293 = vld [vmem:[#allocation3 + $0x1d8] sm:$0xff]
      %v4294 = vld [vmem:[#allocation3 + $0x1e0] sm:$0xff]
      %v4295 = vld [vmem:[#allocation3 + $0x1e8] sm:$0xff]
      %v4296 = vld [vmem:[#allocation3 + $0x1f0] sm:$0xff]
      %v4297 = vld [vmem:[#allocation3 + $0x1f8] sm:$0xff]
      %v4298 = vadd.f32 %v4234, %v3980
      %v4299 = vadd.f32 %v4235, %v3983
      %v4300 = vadd.f32 %v4236, %v3988
      %v4301 = vadd.f32 %v4237, %v3991
      %v4302 = vadd.f32 %v4238, %v3996
      %v4303 = vadd.f32 %v4239, %v3999
      %v4304 = vadd.f32 %v4240, %v4004
      %v4305 = vadd.f32 %v4241, %v4007
      %v4306 = vadd.f32 %v4242, %v4012
      %v4307 = vadd.f32 %v4243, %v4015
      %v4308 = vadd.f32 %v4244, %v4020
      %v4309 = vadd.f32 %v4245, %v4023
      %v4310 = vadd.f32 %v4246, %v4028
      %v4311 = vadd.f32 %v4247, %v4031
      %v4312 = vadd.f32 %v4248, %v4036
      %v4313 = vadd.f32 %v4249, %v4039
      %v4314 = vadd.f32 %v4250, %v4044
      %v4315 = vadd.f32 %v4251, %v4047
      %v4316 = vadd.f32 %v4252, %v4052
      %v4317 = vadd.f32 %v4253, %v4055
      %v4318 = vadd.f32 %v4254, %v4060
      %v4319 = vadd.f32 %v4255, %v4063
      %v4320 = vadd.f32 %v4256, %v4068
      %v4321 = vadd.f32 %v4257, %v4071
      %v4322 = vadd.f32 %v4258, %v4076
      %v4323 = vadd.f32 %v4259, %v4079
      %v4324 = vadd.f32 %v4260, %v4084
      %v4325 = vadd.f32 %v4261, %v4087
      %v4326 = vadd.f32 %v4262, %v4092
      %v4327 = vadd.f32 %v4263, %v4095
      %v4328 = vadd.f32 %v4264, %v4100
      %v4329 = vadd.f32 %v4265, %v4103
      %v4330 = vadd.f32 %v4266, %v4108
      %v4331 = vadd.f32 %v4267, %v4111
      %v4332 = vadd.f32 %v4268, %v4116
      %v4333 = vadd.f32 %v4269, %v4119
      %v4334 = vadd.f32 %v4270, %v4124
      %v4335 = vadd.f32 %v4271, %v4127
      %v4336 = vadd.f32 %v4272, %v4132
      %v4337 = vadd.f32 %v4273, %v4135
      %v4338 = vadd.f32 %v4274, %v4140
      %v4339 = vadd.f32 %v4275, %v4143
      %v4340 = vadd.f32 %v4276, %v4148
      %v4341 = vadd.f32 %v4277, %v4151
      %v4342 = vadd.f32 %v4278, %v4156
      %v4343 = vadd.f32 %v4279, %v4159
      %v4344 = vadd.f32 %v4280, %v4164
      %v4345 = vadd.f32 %v4281, %v4167
      %v4346 = vadd.f32 %v4282, %v4172
      %v4347 = vadd.f32 %v4283, %v4175
      %v4348 = vadd.f32 %v4284, %v4180
      %v4349 = vadd.f32 %v4285, %v4183
      %v4350 = vadd.f32 %v4286, %v4188
      %v4351 = vadd.f32 %v4287, %v4191
      %v4352 = vadd.f32 %v4288, %v4196
      %v4353 = vadd.f32 %v4289, %v4199
      %v4354 = vadd.f32 %v4290, %v4204
      %v4355 = vadd.f32 %v4291, %v4207
      %v4356 = vadd.f32 %v4292, %v4212
      %v4357 = vadd.f32 %v4293, %v4215
      %v4358 = vadd.f32 %v4294, %v4220
      %v4359 = vadd.f32 %v4295, %v4223
      %v4360 = vadd.f32 %v4296, %v4228
      %v4361 = vadd.f32 %v4297, %v4231
      %4362 = vst [vmem:[#allocation3] sm:$0xff] %v4298
      %4363 = vst [vmem:[#allocation3 + $0x8] sm:$0xff] %v4299
      %4364 = vst [vmem:[#allocation3 + $0x10] sm:$0xff] %v4300
      %4365 = vst [vmem:[#allocation3 + $0x18] sm:$0xff] %v4301
      %4366 = vst [vmem:[#allocation3 + $0x20] sm:$0xff] %v4302
      %4367 = vst [vmem:[#allocation3 + $0x28] sm:$0xff] %v4303
      %4368 = vst [vmem:[#allocation3 + $0x30] sm:$0xff] %v4304
      %4369 = vst [vmem:[#allocation3 + $0x38] sm:$0xff] %v4305
      %4370 = vst [vmem:[#allocation3 + $0x40] sm:$0xff] %v4306
      %4371 = vst [vmem:[#allocation3 + $0x48] sm:$0xff] %v4307
      %4372 = vst [vmem:[#allocation3 + $0x50] sm:$0xff] %v4308
      %4373 = vst [vmem:[#allocation3 + $0x58] sm:$0xff] %v4309
      %4374 = vst [vmem:[#allocation3 + $0x60] sm:$0xff] %v4310
      %4375 = vst [vmem:[#allocation3 + $0x68] sm:$0xff] %v4311
      %4376 = vst [vmem:[#allocation3 + $0x70] sm:$0xff] %v4312
      %4377 = vst [vmem:[#allocation3 + $0x78] sm:$0xff] %v4313
      %4378 = vst [vmem:[#allocation3 + $0x80] sm:$0xff] %v4314
      %4379 = vst [vmem:[#allocation3 + $0x88] sm:$0xff] %v4315
      %4380 = vst [vmem:[#allocation3 + $0x90] sm:$0xff] %v4316
      %4381 = vst [vmem:[#allocation3 + $0x98] sm:$0xff] %v4317
      %4382 = vst [vmem:[#allocation3 + $0xa0] sm:$0xff] %v4318
      %4383 = vst [vmem:[#allocation3 + $0xa8] sm:$0xff] %v4319
      %4384 = vst [vmem:[#allocation3 + $0xb0] sm:$0xff] %v4320
      %4385 = vst [vmem:[#allocation3 + $0xb8] sm:$0xff] %v4321
      %4386 = vst [vmem:[#allocation3 + $0xc0] sm:$0xff] %v4322
      %4387 = vst [vmem:[#allocation3 + $0xc8] sm:$0xff] %v4323
      %4388 = vst [vmem:[#allocation3 + $0xd0] sm:$0xff] %v4324
      %4389 = vst [vmem:[#allocation3 + $0xd8] sm:$0xff] %v4325
      %4390 = vst [vmem:[#allocation3 + $0xe0] sm:$0xff] %v4326
      %4391 = vst [vmem:[#allocation3 + $0xe8] sm:$0xff] %v4327
      %4392 = vst [vmem:[#allocation3 + $0xf0] sm:$0xff] %v4328
      %4393 = vst [vmem:[#allocation3 + $0xf8] sm:$0xff] %v4329
      %4394 = vst [vmem:[#allocation3 + $0x100] sm:$0xff] %v4330
      %4395 = vst [vmem:[#allocation3 + $0x108] sm:$0xff] %v4331
      %4396 = vst [vmem:[#allocation3 + $0x110] sm:$0xff] %v4332
      %4397 = vst [vmem:[#allocation3 + $0x118] sm:$0xff] %v4333
      %4398 = vst [vmem:[#allocation3 + $0x120] sm:$0xff] %v4334
      %4399 = vst [vmem:[#allocation3 + $0x128] sm:$0xff] %v4335
      %4400 = vst [vmem:[#allocation3 + $0x130] sm:$0xff] %v4336
      %4401 = vst [vmem:[#allocation3 + $0x138] sm:$0xff] %v4337
      %4402 = vst [vmem:[#allocation3 + $0x140] sm:$0xff] %v4338
      %4403 = vst [vmem:[#allocation3 + $0x148] sm:$0xff] %v4339
      %4404 = vst [vmem:[#allocation3 + $0x150] sm:$0xff] %v4340
      %4405 = vst [vmem:[#allocation3 + $0x158] sm:$0xff] %v4341
      %4406 = vst [vmem:[#allocation3 + $0x160] sm:$0xff] %v4342
      %4407 = vst [vmem:[#allocation3 + $0x168] sm:$0xff] %v4343
      %4408 = vst [vmem:[#allocation3 + $0x170] sm:$0xff] %v4344
      %4409 = vst [vmem:[#allocation3 + $0x178] sm:$0xff] %v4345
      %4410 = vst [vmem:[#allocation3 + $0x180] sm:$0xff] %v4346
      %4411 = vst [vmem:[#allocation3 + $0x188] sm:$0xff] %v4347
      %4412 = vst [vmem:[#allocation3 + $0x190] sm:$0xff] %v4348
      %4413 = vst [vmem:[#allocation3 + $0x198] sm:$0xff] %v4349
      %4414 = vst [vmem:[#allocation3 + $0x1a0] sm:$0xff] %v4350
      %4415 = vst [vmem:[#allocation3 + $0x1a8] sm:$0xff] %v4351
      %4416 = vst [vmem:[#allocation3 + $0x1b0] sm:$0xff] %v4352
      %4417 = vst [vmem:[#allocation3 + $0x1b8] sm:$0xff] %v4353
      %4418 = vst [vmem:[#allocation3 + $0x1c0] sm:$0xff] %v4354
      %4419 = vst [vmem:[#allocation3 + $0x1c8] sm:$0xff] %v4355
      %4420 = vst [vmem:[#allocation3 + $0x1d0] sm:$0xff] %v4356
      %4421 = vst [vmem:[#allocation3 + $0x1d8] sm:$0xff] %v4357
      %4422 = vst [vmem:[#allocation3 + $0x1e0] sm:$0xff] %v4358
      %4423 = vst [vmem:[#allocation3 + $0x1e8] sm:$0xff] %v4359
      %4424 = vst [vmem:[#allocation3 + $0x1f0] sm:$0xff] %v4360
      %4425 = vst [vmem:[#allocation3 + $0x1f8] sm:$0xff] %v4361
      %v4426 = vld [vmem:[#allocation2 + $0x18] sm:$0xff]
      %v4427 = vld [vmem:[#allocation2 + $0x20] sm:$0xff]
      %v4428 = vld [vmem:[#allocation2 + $0x28] sm:$0xff]
      %v4429 = vld [vmem:[#allocation2 + $0x30] sm:$0xff]
      %v4430 = vld [vmem:[#allocation2 + $0x38] sm:$0xff]
      %v4431 = vld [vmem:[#allocation2 + $0x40] sm:$0xff]
      %v4432 = vld [vmem:[#allocation2 + $0x48] sm:$0xff]
      %v4433 = vld [vmem:[#allocation2 + $0x50] sm:$0xff]
      %v4434 = vld [vmem:[#allocation2 + $0x58] sm:$0xff]
      %v4435 = vld [vmem:[#allocation2 + $0x60] sm:$0xff]
      %v4436 = vld [vmem:[#allocation2 + $0x68] sm:$0xff]
      %v4437 = vld [vmem:[#allocation2 + $0x70] sm:$0xff]
      %v4438 = vld [vmem:[#allocation2 + $0x78] sm:$0xff]
      %v4439 = vld [vmem:[#allocation2 + $0x80] sm:$0xff]
      %v4440 = vld [vmem:[#allocation2 + $0x88] sm:$0xff]
      %v4441 = vld [vmem:[#allocation2 + $0x90] sm:$0xff]
      %v4442 = vld [vmem:[#allocation2 + $0x98] sm:$0xff]
      %v4443 = vld [vmem:[#allocation2 + $0xa0] sm:$0xff]
      %v4444 = vld [vmem:[#allocation2 + $0xa8] sm:$0xff]
      %v4445 = vld [vmem:[#allocation2 + $0xb0] sm:$0xff]
      %v4446 = vld [vmem:[#allocation2 + $0xb8] sm:$0xff]
      %v4447 = vld [vmem:[#allocation2 + $0xc0] sm:$0xff]
      %v4448 = vld [vmem:[#allocation2 + $0xc8] sm:$0xff]
      %v4449 = vld [vmem:[#allocation2 + $0xd0] sm:$0xff]
      %v4450 = vld [vmem:[#allocation2 + $0xd8] sm:$0xff]
      %v4451 = vld [vmem:[#allocation2 + $0xe0] sm:$0xff]
      %v4452 = vld [vmem:[#allocation2 + $0xe8] sm:$0xff]
      %v4453 = vld [vmem:[#allocation2 + $0xf0] sm:$0xff]
      %v4454 = vld [vmem:[#allocation2 + $0xf8] sm:$0xff]
      %v4455 = vld [vmem:[#allocation2 + $0x100] sm:$0xff]
      %v4456 = vld [vmem:[#allocation2 + $0x108] sm:$0xff]
      %v4457 = vld [vmem:[#allocation2 + $0x110] sm:$0xff]
      %v4458 = vld [vmem:[#allocation2 + $0x118] sm:$0xff]
      %v4459 = vld [vmem:[#allocation2 + $0x120] sm:$0xff]
      %v4460 = vld [vmem:[#allocation2 + $0x128] sm:$0xff]
      %v4461 = vld [vmem:[#allocation2 + $0x130] sm:$0xff]
      %v4462 = vld [vmem:[#allocation2 + $0x138] sm:$0xff]
      %v4463 = vld [vmem:[#allocation2 + $0x140] sm:$0xff]
      %v4464 = vld [vmem:[#allocation2 + $0x148] sm:$0xff]
      %v4465 = vld [vmem:[#allocation2 + $0x150] sm:$0xff]
      %v4466 = vld [vmem:[#allocation2 + $0x158] sm:$0xff]
      %v4467 = vld [vmem:[#allocation2 + $0x160] sm:$0xff]
      %v4468 = vld [vmem:[#allocation2 + $0x168] sm:$0xff]
      %v4469 = vld [vmem:[#allocation2 + $0x170] sm:$0xff]
      %v4470 = vld [vmem:[#allocation2 + $0x178] sm:$0xff]
      %v4471 = vld [vmem:[#allocation2 + $0x180] sm:$0xff]
      %v4472 = vld [vmem:[#allocation2 + $0x188] sm:$0xff]
      %v4473 = vld [vmem:[#allocation2 + $0x190] sm:$0xff]
      %v4474 = vld [vmem:[#allocation2 + $0x198] sm:$0xff]
      %v4475 = vld [vmem:[#allocation2 + $0x1a0] sm:$0xff]
      %v4476 = vld [vmem:[#allocation2 + $0x1a8] sm:$0xff]
      %v4477 = vld [vmem:[#allocation2 + $0x1b0] sm:$0xff]
      %v4478 = vld [vmem:[#allocation2 + $0x1b8] sm:$0xff]
      %v4479 = vld [vmem:[#allocation2 + $0x1c0] sm:$0xff]
      %v4480 = vld [vmem:[#allocation2 + $0x1c8] sm:$0xff]
      %v4481 = vld [vmem:[#allocation2 + $0x1d0] sm:$0xff]
      %v4482 = vld [vmem:[#allocation2 + $0x1d8] sm:$0xff]
      %v4483 = vld [vmem:[#allocation2 + $0x1e0] sm:$0xff]
      %v4484 = vld [vmem:[#allocation2 + $0x1e8] sm:$0xff]
      %v4485 = vld [vmem:[#allocation2 + $0x1f0] sm:$0xff]
      %v4486 = vld [vmem:[#allocation2 + $0x1f8] sm:$0xff]
      %v4487 = vld [vmem:[#allocation2 + $0x200] sm:$0xff]
      %v4488 = vld [vmem:[#allocation2 + $0x208] sm:$0xff]
      %v4489 = vld [vmem:[#allocation2 + $0x210] sm:$0xff]
      %v4490 = vld [vmem:[#allocation2 + $0x218] sm:$0xff]
      %v4491 = vld [vmem:[#allocation2 + $0x220] sm:$0xff]
      %v4492 = vld [vmem:[#allocation2 + $0x228] sm:$0xff]
      %v4493 = vld [vmem:[#allocation2 + $0x230] sm:$0xff]
      %v4494 = vld [vmem:[#allocation2 + $0x238] sm:$0xff]
      %v4495 = vld [vmem:[#allocation2 + $0x240] sm:$0xff]
      %v4496 = vld [vmem:[#allocation2 + $0x248] sm:$0xff]
      %v4497 = vld [vmem:[#allocation2 + $0x250] sm:$0xff]
      %v4498 = vld [vmem:[#allocation2 + $0x258] sm:$0xff]
      %v4499 = vld [vmem:[#allocation2 + $0x260] sm:$0xff]
      %v4500 = vld [vmem:[#allocation2 + $0x268] sm:$0xff]
      %v4501 = vld [vmem:[#allocation2 + $0x270] sm:$0xff]
      %v4502 = vld [vmem:[#allocation2 + $0x278] sm:$0xff]
      %v4503 = vld [vmem:[#allocation2 + $0x280] sm:$0xff]
      %v4504 = vld [vmem:[#allocation2 + $0x288] sm:$0xff]
      %v4505 = vld [vmem:[#allocation2 + $0x290] sm:$0xff]
      %v4506 = vld [vmem:[#allocation2 + $0x298] sm:$0xff]
      %v4507 = vld [vmem:[#allocation2 + $0x2a0] sm:$0xff]
      %v4508 = vld [vmem:[#allocation2 + $0x2a8] sm:$0xff]
      %v4509 = vld [vmem:[#allocation2 + $0x2b0] sm:$0xff]
      %v4510 = vld [vmem:[#allocation2 + $0x2b8] sm:$0xff]
      %v4511 = vld [vmem:[#allocation2 + $0x2c0] sm:$0xff]
      %v4512 = vld [vmem:[#allocation2 + $0x2c8] sm:$0xff]
      %v4513 = vld [vmem:[#allocation2 + $0x2d0] sm:$0xff]
      %v4514 = vld [vmem:[#allocation2 + $0x2d8] sm:$0xff]
      %v4515 = vld [vmem:[#allocation2 + $0x2e0] sm:$0xff]
      %v4516 = vld [vmem:[#allocation2 + $0x2e8] sm:$0xff]
      %v4517 = vld [vmem:[#allocation2 + $0x2f0] sm:$0xff]
      %v4518 = vld [vmem:[#allocation2 + $0x2f8] sm:$0xff]
      %v4519 = vld [vmem:[#allocation2 + $0x300] sm:$0xff]
      %v4520 = vld [vmem:[#allocation2 + $0x308] sm:$0xff]
      %v4521 = vld [vmem:[#allocation2 + $0x310] sm:$0xff]
      %v4522 = vld [vmem:[#allocation2 + $0x318] sm:$0x1]
      %v4523 = vld [vmem:[#allocation2 + $0x320] sm:$0x1]
      %v4524 = vld [vmem:[#allocation2 + $0x328] sm:$0x1]
      %s4525 = scalar_lea.vmem %s4, 384
      %v4526 = vld [vmem:[%s4525] sm:$0xf]
      %v4527 = vld [vmem:[%s4525 + $0x4] sm:$0xf]
      %v4528 = vld [vmem:[%s4525 + $0x8] sm:$0xf]
      %v4529 = vld [vmem:[%s4525 + $0xc] sm:$0xf]
      %v4530 = vld [vmem:[%s4525 + $0x10] sm:$0xf]
      %v4531 = vld [vmem:[%s4525 + $0x14] sm:$0xf]
      %v4532 = vld [vmem:[%s4525 + $0x18] sm:$0xf]
      %v4533 = vld [vmem:[%s4525 + $0x1c] sm:$0xf]
      %v4534 = vld [vmem:[%s4525 + $0x20] sm:$0xf]
      %v4535 = vld [vmem:[%s4525 + $0x24] sm:$0xf]
      %v4536 = vld [vmem:[%s4525 + $0x28] sm:$0xf]
      %v4537 = vld [vmem:[%s4525 + $0x2c] sm:$0xf]
      %v4538 = vld [vmem:[%s4525 + $0x30] sm:$0xf]
      %v4539 = vld [vmem:[%s4525 + $0x34] sm:$0xf]
      %v4540 = vld [vmem:[%s4525 + $0x38] sm:$0xf]
      %v4541 = vld [vmem:[%s4525 + $0x3c] sm:$0xf]
      %v4542 = vld [vmem:[%s4525 + $0x40] sm:$0xf]
      %v4543 = vld [vmem:[%s4525 + $0x44] sm:$0xf]
      %v4544 = vld [vmem:[%s4525 + $0x48] sm:$0xf]
      %v4545 = vld [vmem:[%s4525 + $0x4c] sm:$0xf]
      %v4546 = vld [vmem:[%s4525 + $0x50] sm:$0xf]
      %v4547 = vld [vmem:[%s4525 + $0x54] sm:$0xf]
      %v4548 = vld [vmem:[%s4525 + $0x58] sm:$0xf]
      %v4549 = vld [vmem:[%s4525 + $0x5c] sm:$0xf]
      %v4550 = vld [vmem:[%s4525 + $0x60] sm:$0xf]
      %v4551 = vld [vmem:[%s4525 + $0x64] sm:$0xf]
      %v4552 = vld [vmem:[%s4525 + $0x68] sm:$0xf]
      %v4553 = vld [vmem:[%s4525 + $0x6c] sm:$0xf]
      %v4554 = vld [vmem:[%s4525 + $0x70] sm:$0xf]
      %v4555 = vld [vmem:[%s4525 + $0x74] sm:$0xf]
      %v4556 = vld [vmem:[%s4525 + $0x78] sm:$0xf]
      %v4557 = vld [vmem:[%s4525 + $0x7c] sm:$0xf]
      %v4558 = vld [vmem:[%s4525 + $0x80] sm:$0xf]
      %v4559 = vld [vmem:[%s4525 + $0x84] sm:$0xf]
      %v4560 = vld [vmem:[%s4525 + $0x88] sm:$0xf]
      %v4561 = vld [vmem:[%s4525 + $0x8c] sm:$0xf]
      %v4562 = vld [vmem:[%s4525 + $0x90] sm:$0xf]
      %v4563 = vld [vmem:[%s4525 + $0x94] sm:$0xf]
      %v4564 = vld [vmem:[%s4525 + $0x98] sm:$0xf]
      %v4565 = vld [vmem:[%s4525 + $0x9c] sm:$0xf]
      %v4566 = vld [vmem:[%s4525 + $0xa0] sm:$0xf]
      %v4567 = vld [vmem:[%s4525 + $0xa4] sm:$0xf]
      %v4568 = vld [vmem:[%s4525 + $0xa8] sm:$0xf]
      %v4569 = vld [vmem:[%s4525 + $0xac] sm:$0xf]
      %v4570 = vld [vmem:[%s4525 + $0xb0] sm:$0xf]
      %v4571 = vld [vmem:[%s4525 + $0xb4] sm:$0xf]
      %v4572 = vld [vmem:[%s4525 + $0xb8] sm:$0xf]
      %v4573 = vld [vmem:[%s4525 + $0xbc] sm:$0xf]
      %vm4574 = vsmask.f32 7424
      %v4576 = vshrl.u32 %v4426, 16
      %v4578 = vshll.u32 %v4426, 16
      %v4580 = vrot.slane %v4578, 1
      %v4581 = vor.u32 %v4576, %v4580
      %v4583 = vshll.u32 %v4429, 16
      %v4585 = vrot.slane %v4583, 1
      %v4586 = vsel %vm4574, %v4581, %v4585
      %v4588 = vshrl.u32 %v4427, 16
      %v4590 = vshll.u32 %v4427, 16
      %v4592 = vrot.slane %v4590, 1
      %v4593 = vor.u32 %v4588, %v4592
      %v4595 = vshll.u32 %v4430, 16
      %v4597 = vrot.slane %v4595, 1
      %v4598 = vsel %vm4574, %v4593, %v4597
      %v4600 = vshrl.u32 %v4428, 16
      %v4602 = vshll.u32 %v4428, 16
      %v4604 = vrot.slane %v4602, 1
      %v4605 = vor.u32 %v4600, %v4604
      %v4607 = vshll.u32 %v4431, 16
      %v4609 = vrot.slane %v4607, 1
      %v4610 = vsel %vm4574, %v4605, %v4609
      %v4611 = vshrl.u32 %v4429, 16
      %v4613 = vor.u32 %v4611, %v4585
      %v4615 = vshll.u32 %v4432, 16
      %v4617 = vrot.slane %v4615, 1
      %v4618 = vsel %vm4574, %v4613, %v4617
      %v4619 = vshrl.u32 %v4430, 16
      %v4621 = vor.u32 %v4619, %v4597
      %v4623 = vshll.u32 %v4433, 16
      %v4625 = vrot.slane %v4623, 1
      %v4626 = vsel %vm4574, %v4621, %v4625
      %v4627 = vshrl.u32 %v4431, 16
      %v4629 = vor.u32 %v4627, %v4609
      %v4631 = vshll.u32 %v4434, 16
      %v4633 = vrot.slane %v4631, 1
      %v4634 = vsel %vm4574, %v4629, %v4633
      %v4635 = vshrl.u32 %v4432, 16
      %v4637 = vor.u32 %v4635, %v4617
      %v4639 = vshll.u32 %v4435, 16
      %v4641 = vrot.slane %v4639, 1
      %v4642 = vsel %vm4574, %v4637, %v4641
      %v4643 = vshrl.u32 %v4433, 16
      %v4645 = vor.u32 %v4643, %v4625
      %v4647 = vshll.u32 %v4436, 16
      %v4649 = vrot.slane %v4647, 1
      %v4650 = vsel %vm4574, %v4645, %v4649
      %v4651 = vshrl.u32 %v4434, 16
      %v4653 = vor.u32 %v4651, %v4633
      %v4655 = vshll.u32 %v4437, 16
      %v4657 = vrot.slane %v4655, 1
      %v4658 = vsel %vm4574, %v4653, %v4657
      %v4659 = vshrl.u32 %v4435, 16
      %v4661 = vor.u32 %v4659, %v4641
      %v4663 = vshll.u32 %v4438, 16
      %v4665 = vrot.slane %v4663, 1
      %v4666 = vsel %vm4574, %v4661, %v4665
      %v4667 = vshrl.u32 %v4436, 16
      %v4669 = vor.u32 %v4667, %v4649
      %v4671 = vshll.u32 %v4439, 16
      %v4673 = vrot.slane %v4671, 1
      %v4674 = vsel %vm4574, %v4669, %v4673
      %v4675 = vshrl.u32 %v4437, 16
      %v4677 = vor.u32 %v4675, %v4657
      %v4679 = vshll.u32 %v4440, 16
      %v4681 = vrot.slane %v4679, 1
      %v4682 = vsel %vm4574, %v4677, %v4681
      %v4683 = vshrl.u32 %v4438, 16
      %v4685 = vor.u32 %v4683, %v4665
      %v4687 = vshll.u32 %v4441, 16
      %v4689 = vrot.slane %v4687, 1
      %v4690 = vsel %vm4574, %v4685, %v4689
      %v4691 = vshrl.u32 %v4439, 16
      %v4693 = vor.u32 %v4691, %v4673
      %v4695 = vshll.u32 %v4442, 16
      %v4697 = vrot.slane %v4695, 1
      %v4698 = vsel %vm4574, %v4693, %v4697
      %v4699 = vshrl.u32 %v4440, 16
      %v4701 = vor.u32 %v4699, %v4681
      %v4703 = vshll.u32 %v4443, 16
      %v4705 = vrot.slane %v4703, 1
      %v4706 = vsel %vm4574, %v4701, %v4705
      %v4707 = vshrl.u32 %v4441, 16
      %v4709 = vor.u32 %v4707, %v4689
      %v4711 = vshll.u32 %v4444, 16
      %v4713 = vrot.slane %v4711, 1
      %v4714 = vsel %vm4574, %v4709, %v4713
      %v4715 = vshrl.u32 %v4442, 16
      %v4717 = vor.u32 %v4715, %v4697
      %v4719 = vshll.u32 %v4445, 16
      %v4721 = vrot.slane %v4719, 1
      %v4722 = vsel %vm4574, %v4717, %v4721
      %v4723 = vshrl.u32 %v4443, 16
      %v4725 = vor.u32 %v4723, %v4705
      %v4727 = vshll.u32 %v4446, 16
      %v4729 = vrot.slane %v4727, 1
      %v4730 = vsel %vm4574, %v4725, %v4729
      %v4731 = vshrl.u32 %v4444, 16
      %v4733 = vor.u32 %v4731, %v4713
      %v4735 = vshll.u32 %v4447, 16
      %v4737 = vrot.slane %v4735, 1
      %v4738 = vsel %vm4574, %v4733, %v4737
      %v4739 = vshrl.u32 %v4445, 16
      %v4741 = vor.u32 %v4739, %v4721
      %v4743 = vshll.u32 %v4448, 16
      %v4745 = vrot.slane %v4743, 1
      %v4746 = vsel %vm4574, %v4741, %v4745
      %v4747 = vshrl.u32 %v4446, 16
      %v4749 = vor.u32 %v4747, %v4729
      %v4751 = vshll.u32 %v4449, 16
      %v4753 = vrot.slane %v4751, 1
      %v4754 = vsel %vm4574, %v4749, %v4753
      %v4755 = vshrl.u32 %v4447, 16
      %v4757 = vor.u32 %v4755, %v4737
      %v4759 = vshll.u32 %v4450, 16
      %v4761 = vrot.slane %v4759, 1
      %v4762 = vsel %vm4574, %v4757, %v4761
      %v4763 = vshrl.u32 %v4448, 16
      %v4765 = vor.u32 %v4763, %v4745
      %v4767 = vshll.u32 %v4451, 16
      %v4769 = vrot.slane %v4767, 1
      %v4770 = vsel %vm4574, %v4765, %v4769
      %v4771 = vshrl.u32 %v4449, 16
      %v4773 = vor.u32 %v4771, %v4753
      %v4775 = vshll.u32 %v4452, 16
      %v4777 = vrot.slane %v4775, 1
      %v4778 = vsel %vm4574, %v4773, %v4777
      %v4779 = vshrl.u32 %v4450, 16
      %v4781 = vor.u32 %v4779, %v4761
      %v4783 = vshll.u32 %v4453, 16
      %v4785 = vrot.slane %v4783, 1
      %v4786 = vsel %vm4574, %v4781, %v4785
      %v4787 = vshrl.u32 %v4451, 16
      %v4789 = vor.u32 %v4787, %v4769
      %v4791 = vshll.u32 %v4454, 16
      %v4793 = vrot.slane %v4791, 1
      %v4794 = vsel %vm4574, %v4789, %v4793
      %v4795 = vshrl.u32 %v4452, 16
      %v4797 = vor.u32 %v4795, %v4777
      %v4799 = vshll.u32 %v4455, 16
      %v4801 = vrot.slane %v4799, 1
      %v4802 = vsel %vm4574, %v4797, %v4801
      %v4803 = vshrl.u32 %v4453, 16
      %v4805 = vor.u32 %v4803, %v4785
      %v4807 = vshll.u32 %v4456, 16
      %v4809 = vrot.slane %v4807, 1
      %v4810 = vsel %vm4574, %v4805, %v4809
      %v4811 = vshrl.u32 %v4454, 16
      %v4813 = vor.u32 %v4811, %v4793
      %v4815 = vshll.u32 %v4457, 16
      %v4817 = vrot.slane %v4815, 1
      %v4818 = vsel %vm4574, %v4813, %v4817
      %v4819 = vshrl.u32 %v4455, 16
      %v4821 = vor.u32 %v4819, %v4801
      %v4823 = vshll.u32 %v4458, 16
      %v4825 = vrot.slane %v4823, 1
      %v4826 = vsel %vm4574, %v4821, %v4825
      %v4827 = vshrl.u32 %v4456, 16
      %v4829 = vor.u32 %v4827, %v4809
      %v4831 = vshll.u32 %v4459, 16
      %v4833 = vrot.slane %v4831, 1
      %v4834 = vsel %vm4574, %v4829, %v4833
      %v4835 = vshrl.u32 %v4457, 16
      %v4837 = vor.u32 %v4835, %v4817
      %v4839 = vshll.u32 %v4460, 16
      %v4841 = vrot.slane %v4839, 1
      %v4842 = vsel %vm4574, %v4837, %v4841
      %v4843 = vshrl.u32 %v4458, 16
      %v4845 = vor.u32 %v4843, %v4825
      %v4847 = vshll.u32 %v4461, 16
      %v4849 = vrot.slane %v4847, 1
      %v4850 = vsel %vm4574, %v4845, %v4849
      %v4851 = vshrl.u32 %v4459, 16
      %v4853 = vor.u32 %v4851, %v4833
      %v4855 = vshll.u32 %v4462, 16
      %v4857 = vrot.slane %v4855, 1
      %v4858 = vsel %vm4574, %v4853, %v4857
      %v4859 = vshrl.u32 %v4460, 16
      %v4861 = vor.u32 %v4859, %v4841
      %v4863 = vshll.u32 %v4463, 16
      %v4865 = vrot.slane %v4863, 1
      %v4866 = vsel %vm4574, %v4861, %v4865
      %v4867 = vshrl.u32 %v4461, 16
      %v4869 = vor.u32 %v4867, %v4849
      %v4871 = vshll.u32 %v4464, 16
      %v4873 = vrot.slane %v4871, 1
      %v4874 = vsel %vm4574, %v4869, %v4873
      %v4875 = vshrl.u32 %v4462, 16
      %v4877 = vor.u32 %v4875, %v4857
      %v4879 = vshll.u32 %v4465, 16
      %v4881 = vrot.slane %v4879, 1
      %v4882 = vsel %vm4574, %v4877, %v4881
      %v4883 = vshrl.u32 %v4463, 16
      %v4885 = vor.u32 %v4883, %v4865
      %v4887 = vshll.u32 %v4466, 16
      %v4889 = vrot.slane %v4887, 1
      %v4890 = vsel %vm4574, %v4885, %v4889
      %v4891 = vshrl.u32 %v4464, 16
      %v4893 = vor.u32 %v4891, %v4873
      %v4895 = vshll.u32 %v4467, 16
      %v4897 = vrot.slane %v4895, 1
      %v4898 = vsel %vm4574, %v4893, %v4897
      %v4899 = vshrl.u32 %v4465, 16
      %v4901 = vor.u32 %v4899, %v4881
      %v4903 = vshll.u32 %v4468, 16
      %v4905 = vrot.slane %v4903, 1
      %v4906 = vsel %vm4574, %v4901, %v4905
      %v4907 = vshrl.u32 %v4466, 16
      %v4909 = vor.u32 %v4907, %v4889
      %v4911 = vshll.u32 %v4469, 16
      %v4913 = vrot.slane %v4911, 1
      %v4914 = vsel %vm4574, %v4909, %v4913
      %v4915 = vshrl.u32 %v4467, 16
      %v4917 = vor.u32 %v4915, %v4897
      %v4919 = vshll.u32 %v4470, 16
      %v4921 = vrot.slane %v4919, 1
      %v4922 = vsel %vm4574, %v4917, %v4921
      %v4923 = vshrl.u32 %v4468, 16
      %v4925 = vor.u32 %v4923, %v4905
      %v4927 = vshll.u32 %v4471, 16
      %v4929 = vrot.slane %v4927, 1
      %v4930 = vsel %vm4574, %v4925, %v4929
      %v4931 = vshrl.u32 %v4469, 16
      %v4933 = vor.u32 %v4931, %v4913
      %v4935 = vshll.u32 %v4472, 16
      %v4937 = vrot.slane %v4935, 1
      %v4938 = vsel %vm4574, %v4933, %v4937
      %v4939 = vshrl.u32 %v4470, 16
      %v4941 = vor.u32 %v4939, %v4921
      %v4943 = vshll.u32 %v4473, 16
      %v4945 = vrot.slane %v4943, 1
      %v4946 = vsel %vm4574, %v4941, %v4945
      %v4947 = vshrl.u32 %v4471, 16
      %v4949 = vor.u32 %v4947, %v4929
      %v4951 = vshll.u32 %v4474, 16
      %v4953 = vrot.slane %v4951, 1
      %v4954 = vsel %vm4574, %v4949, %v4953
      %v4955 = vshrl.u32 %v4472, 16
      %v4957 = vor.u32 %v4955, %v4937
      %v4959 = vshll.u32 %v4475, 16
      %v4961 = vrot.slane %v4959, 1
      %v4962 = vsel %vm4574, %v4957, %v4961
      %v4963 = vshrl.u32 %v4473, 16
      %v4965 = vor.u32 %v4963, %v4945
      %v4967 = vshll.u32 %v4476, 16
      %v4969 = vrot.slane %v4967, 1
      %v4970 = vsel %vm4574, %v4965, %v4969
      %v4971 = vshrl.u32 %v4474, 16
      %v4973 = vor.u32 %v4971, %v4953
      %v4975 = vshll.u32 %v4477, 16
      %v4977 = vrot.slane %v4975, 1
      %v4978 = vsel %vm4574, %v4973, %v4977
      %v4979 = vshrl.u32 %v4475, 16
      %v4981 = vor.u32 %v4979, %v4961
      %v4983 = vshll.u32 %v4478, 16
      %v4985 = vrot.slane %v4983, 1
      %v4986 = vsel %vm4574, %v4981, %v4985
      %v4987 = vshrl.u32 %v4476, 16
      %v4989 = vor.u32 %v4987, %v4969
      %v4991 = vshll.u32 %v4479, 16
      %v4993 = vrot.slane %v4991, 1
      %v4994 = vsel %vm4574, %v4989, %v4993
      %v4995 = vshrl.u32 %v4477, 16
      %v4997 = vor.u32 %v4995, %v4977
      %v4999 = vshll.u32 %v4480, 16
      %v5001 = vrot.slane %v4999, 1
      %v5002 = vsel %vm4574, %v4997, %v5001
      %v5003 = vshrl.u32 %v4478, 16
      %v5005 = vor.u32 %v5003, %v4985
      %v5007 = vshll.u32 %v4481, 16
      %v5009 = vrot.slane %v5007, 1
      %v5010 = vsel %vm4574, %v5005, %v5009
      %v5011 = vshrl.u32 %v4479, 16
      %v5013 = vor.u32 %v5011, %v4993
      %v5015 = vshll.u32 %v4482, 16
      %v5017 = vrot.slane %v5015, 1
      %v5018 = vsel %vm4574, %v5013, %v5017
      %v5019 = vshrl.u32 %v4480, 16
      %v5021 = vor.u32 %v5019, %v5001
      %v5023 = vshll.u32 %v4483, 16
      %v5025 = vrot.slane %v5023, 1
      %v5026 = vsel %vm4574, %v5021, %v5025
      %v5027 = vshrl.u32 %v4481, 16
      %v5029 = vor.u32 %v5027, %v5009
      %v5031 = vshll.u32 %v4484, 16
      %v5033 = vrot.slane %v5031, 1
      %v5034 = vsel %vm4574, %v5029, %v5033
      %v5035 = vshrl.u32 %v4482, 16
      %v5037 = vor.u32 %v5035, %v5017
      %v5039 = vshll.u32 %v4485, 16
      %v5041 = vrot.slane %v5039, 1
      %v5042 = vsel %vm4574, %v5037, %v5041
      %v5043 = vshrl.u32 %v4483, 16
      %v5045 = vor.u32 %v5043, %v5025
      %v5047 = vshll.u32 %v4486, 16
      %v5049 = vrot.slane %v5047, 1
      %v5050 = vsel %vm4574, %v5045, %v5049
      %v5051 = vshrl.u32 %v4484, 16
      %v5053 = vor.u32 %v5051, %v5033
      %v5055 = vshll.u32 %v4487, 16
      %v5057 = vrot.slane %v5055, 1
      %v5058 = vsel %vm4574, %v5053, %v5057
      %v5059 = vshrl.u32 %v4485, 16
      %v5061 = vor.u32 %v5059, %v5041
      %v5063 = vshll.u32 %v4488, 16
      %v5065 = vrot.slane %v5063, 1
      %v5066 = vsel %vm4574, %v5061, %v5065
      %v5067 = vshrl.u32 %v4486, 16
      %v5069 = vor.u32 %v5067, %v5049
      %v5071 = vshll.u32 %v4489, 16
      %v5073 = vrot.slane %v5071, 1
      %v5074 = vsel %vm4574, %v5069, %v5073
      %v5075 = vshrl.u32 %v4487, 16
      %v5077 = vor.u32 %v5075, %v5057
      %v5079 = vshll.u32 %v4490, 16
      %v5081 = vrot.slane %v5079, 1
      %v5082 = vsel %vm4574, %v5077, %v5081
      %v5083 = vshrl.u32 %v4488, 16
      %v5085 = vor.u32 %v5083, %v5065
      %v5087 = vshll.u32 %v4491, 16
      %v5089 = vrot.slane %v5087, 1
      %v5090 = vsel %vm4574, %v5085, %v5089
      %v5091 = vshrl.u32 %v4489, 16
      %v5093 = vor.u32 %v5091, %v5073
      %v5095 = vshll.u32 %v4492, 16
      %v5097 = vrot.slane %v5095, 1
      %v5098 = vsel %vm4574, %v5093, %v5097
      %v5099 = vshrl.u32 %v4490, 16
      %v5101 = vor.u32 %v5099, %v5081
      %v5103 = vshll.u32 %v4493, 16
      %v5105 = vrot.slane %v5103, 1
      %v5106 = vsel %vm4574, %v5101, %v5105
      %v5107 = vshrl.u32 %v4491, 16
      %v5109 = vor.u32 %v5107, %v5089
      %v5111 = vshll.u32 %v4494, 16
      %v5113 = vrot.slane %v5111, 1
      %v5114 = vsel %vm4574, %v5109, %v5113
      %v5115 = vshrl.u32 %v4492, 16
      %v5117 = vor.u32 %v5115, %v5097
      %v5119 = vshll.u32 %v4495, 16
      %v5121 = vrot.slane %v5119, 1
      %v5122 = vsel %vm4574, %v5117, %v5121
      %v5123 = vshrl.u32 %v4493, 16
      %v5125 = vor.u32 %v5123, %v5105
      %v5127 = vshll.u32 %v4496, 16
      %v5129 = vrot.slane %v5127, 1
      %v5130 = vsel %vm4574, %v5125, %v5129
      %v5131 = vshrl.u32 %v4494, 16
      %v5133 = vor.u32 %v5131, %v5113
      %v5135 = vshll.u32 %v4497, 16
      %v5137 = vrot.slane %v5135, 1
      %v5138 = vsel %vm4574, %v5133, %v5137
      %v5139 = vshrl.u32 %v4495, 16
      %v5141 = vor.u32 %v5139, %v5121
      %v5143 = vshll.u32 %v4498, 16
      %v5145 = vrot.slane %v5143, 1
      %v5146 = vsel %vm4574, %v5141, %v5145
      %v5147 = vshrl.u32 %v4496, 16
      %v5149 = vor.u32 %v5147, %v5129
      %v5151 = vshll.u32 %v4499, 16
      %v5153 = vrot.slane %v5151, 1
      %v5154 = vsel %vm4574, %v5149, %v5153
      %v5155 = vshrl.u32 %v4497, 16
      %v5157 = vor.u32 %v5155, %v5137
      %v5159 = vshll.u32 %v4500, 16
      %v5161 = vrot.slane %v5159, 1
      %v5162 = vsel %vm4574, %v5157, %v5161
      %v5163 = vshrl.u32 %v4498, 16
      %v5165 = vor.u32 %v5163, %v5145
      %v5167 = vshll.u32 %v4501, 16
      %v5169 = vrot.slane %v5167, 1
      %v5170 = vsel %vm4574, %v5165, %v5169
      %v5171 = vshrl.u32 %v4499, 16
      %v5173 = vor.u32 %v5171, %v5153
      %v5175 = vshll.u32 %v4502, 16
      %v5177 = vrot.slane %v5175, 1
      %v5178 = vsel %vm4574, %v5173, %v5177
      %v5179 = vshrl.u32 %v4500, 16
      %v5181 = vor.u32 %v5179, %v5161
      %v5183 = vshll.u32 %v4503, 16
      %v5185 = vrot.slane %v5183, 1
      %v5186 = vsel %vm4574, %v5181, %v5185
      %v5187 = vshrl.u32 %v4501, 16
      %v5189 = vor.u32 %v5187, %v5169
      %v5191 = vshll.u32 %v4504, 16
      %v5193 = vrot.slane %v5191, 1
      %v5194 = vsel %vm4574, %v5189, %v5193
      %v5195 = vshrl.u32 %v4502, 16
      %v5197 = vor.u32 %v5195, %v5177
      %v5199 = vshll.u32 %v4505, 16
      %v5201 = vrot.slane %v5199, 1
      %v5202 = vsel %vm4574, %v5197, %v5201
      %v5203 = vshrl.u32 %v4503, 16
      %v5205 = vor.u32 %v5203, %v5185
      %v5207 = vshll.u32 %v4506, 16
      %v5209 = vrot.slane %v5207, 1
      %v5210 = vsel %vm4574, %v5205, %v5209
      %v5211 = vshrl.u32 %v4504, 16
      %v5213 = vor.u32 %v5211, %v5193
      %v5215 = vshll.u32 %v4507, 16
      %v5217 = vrot.slane %v5215, 1
      %v5218 = vsel %vm4574, %v5213, %v5217
      %v5219 = vshrl.u32 %v4505, 16
      %v5221 = vor.u32 %v5219, %v5201
      %v5223 = vshll.u32 %v4508, 16
      %v5225 = vrot.slane %v5223, 1
      %v5226 = vsel %vm4574, %v5221, %v5225
      %v5227 = vshrl.u32 %v4506, 16
      %v5229 = vor.u32 %v5227, %v5209
      %v5231 = vshll.u32 %v4509, 16
      %v5233 = vrot.slane %v5231, 1
      %v5234 = vsel %vm4574, %v5229, %v5233
      %v5235 = vshrl.u32 %v4507, 16
      %v5237 = vor.u32 %v5235, %v5217
      %v5239 = vshll.u32 %v4510, 16
      %v5241 = vrot.slane %v5239, 1
      %v5242 = vsel %vm4574, %v5237, %v5241
      %v5243 = vshrl.u32 %v4508, 16
      %v5245 = vor.u32 %v5243, %v5225
      %v5247 = vshll.u32 %v4511, 16
      %v5249 = vrot.slane %v5247, 1
      %v5250 = vsel %vm4574, %v5245, %v5249
      %v5251 = vshrl.u32 %v4509, 16
      %v5253 = vor.u32 %v5251, %v5233
      %v5255 = vshll.u32 %v4512, 16
      %v5257 = vrot.slane %v5255, 1
      %v5258 = vsel %vm4574, %v5253, %v5257
      %v5259 = vshrl.u32 %v4510, 16
      %v5261 = vor.u32 %v5259, %v5241
      %v5263 = vshll.u32 %v4513, 16
      %v5265 = vrot.slane %v5263, 1
      %v5266 = vsel %vm4574, %v5261, %v5265
      %v5267 = vshrl.u32 %v4511, 16
      %v5269 = vor.u32 %v5267, %v5249
      %v5271 = vshll.u32 %v4514, 16
      %v5273 = vrot.slane %v5271, 1
      %v5274 = vsel %vm4574, %v5269, %v5273
      %v5275 = vshrl.u32 %v4512, 16
      %v5277 = vor.u32 %v5275, %v5257
      %v5279 = vshll.u32 %v4515, 16
      %v5281 = vrot.slane %v5279, 1
      %v5282 = vsel %vm4574, %v5277, %v5281
      %v5283 = vshrl.u32 %v4513, 16
      %v5285 = vor.u32 %v5283, %v5265
      %v5287 = vshll.u32 %v4516, 16
      %v5289 = vrot.slane %v5287, 1
      %v5290 = vsel %vm4574, %v5285, %v5289
      %v5291 = vshrl.u32 %v4514, 16
      %v5293 = vor.u32 %v5291, %v5273
      %v5295 = vshll.u32 %v4517, 16
      %v5297 = vrot.slane %v5295, 1
      %v5298 = vsel %vm4574, %v5293, %v5297
      %v5299 = vshrl.u32 %v4515, 16
      %v5301 = vor.u32 %v5299, %v5281
      %v5303 = vshll.u32 %v4518, 16
      %v5305 = vrot.slane %v5303, 1
      %v5306 = vsel %vm4574, %v5301, %v5305
      %v5307 = vshrl.u32 %v4516, 16
      %v5309 = vor.u32 %v5307, %v5289
      %v5311 = vshll.u32 %v4519, 16
      %v5313 = vrot.slane %v5311, 1
      %v5314 = vsel %vm4574, %v5309, %v5313
      %v5315 = vshrl.u32 %v4517, 16
      %v5317 = vor.u32 %v5315, %v5297
      %v5319 = vshll.u32 %v4520, 16
      %v5321 = vrot.slane %v5319, 1
      %v5322 = vsel %vm4574, %v5317, %v5321
      %v5323 = vshrl.u32 %v4518, 16
      %v5325 = vor.u32 %v5323, %v5305
      %v5327 = vshll.u32 %v4521, 16
      %v5329 = vrot.slane %v5327, 1
      %v5330 = vsel %vm4574, %v5325, %v5329
      %v5331 = vshrl.u32 %v4519, 16
      %v5333 = vor.u32 %v5331, %v5313
      %v5335 = vshll.u32 %v4522, 16
      %v5337 = vrot.slane %v5335, 1
      %v5338 = vsel %vm4574, %v5333, %v5337
      %v5339 = vshrl.u32 %v4520, 16
      %v5341 = vor.u32 %v5339, %v5321
      %v5343 = vshll.u32 %v4523, 16
      %v5345 = vrot.slane %v5343, 1
      %v5346 = vsel %vm4574, %v5341, %v5345
      %v5347 = vshrl.u32 %v4521, 16
      %v5349 = vor.u32 %v5347, %v5329
      %v5351 = vshll.u32 %v4524, 16
      %v5353 = vrot.slane %v5351, 1
      %v5354 = vsel %vm4574, %v5349, %v5353
      %v5499 = vunpack.c.l.b16 %v4526
      %v5500 = vunpack.c.l.b16 %v4527
      %v5501 = vunpack.c.l.b16 %v4528
      %v5502 = vunpack.c.l.b16 %v4529
      %v5503 = vunpack.c.l.b16 %v4530
      %v5504 = vunpack.c.l.b16 %v4531
      %v5505 = vunpack.c.l.b16 %v4532
      %v5506 = vunpack.c.l.b16 %v4533
      %v5507 = vunpack.c.l.b16 %v4534
      %v5508 = vunpack.c.l.b16 %v4535
      %v5509 = vunpack.c.l.b16 %v4536
      %v5510 = vunpack.c.l.b16 %v4537
      %v5511 = vunpack.c.l.b16 %v4538
      %v5512 = vunpack.c.l.b16 %v4539
      %v5513 = vunpack.c.l.b16 %v4540
      %v5514 = vunpack.c.l.b16 %v4541
      %v5515 = vunpack.c.l.b16 %v4542
      %v5516 = vunpack.c.l.b16 %v4543
      %v5517 = vunpack.c.l.b16 %v4544
      %v5518 = vunpack.c.l.b16 %v4545
      %v5519 = vunpack.c.l.b16 %v4546
      %v5520 = vunpack.c.l.b16 %v4547
      %v5521 = vunpack.c.l.b16 %v4548
      %v5522 = vunpack.c.l.b16 %v4549
      %v5523 = vunpack.c.l.b16 %v4550
      %v5524 = vunpack.c.l.b16 %v4551
      %v5525 = vunpack.c.l.b16 %v4552
      %v5526 = vunpack.c.l.b16 %v4553
      %v5527 = vunpack.c.l.b16 %v4554
      %v5528 = vunpack.c.l.b16 %v4555
      %v5529 = vunpack.c.l.b16 %v4556
      %v5530 = vunpack.c.l.b16 %v4557
      %v5531 = vunpack.c.l.b16 %v4558
      %v5532 = vunpack.c.l.b16 %v4559
      %v5533 = vunpack.c.l.b16 %v4560
      %v5534 = vunpack.c.l.b16 %v4561
      %v5535 = vunpack.c.l.b16 %v4562
      %v5536 = vunpack.c.l.b16 %v4563
      %v5537 = vunpack.c.l.b16 %v4564
      %v5538 = vunpack.c.l.b16 %v4565
      %v5539 = vunpack.c.l.b16 %v4566
      %v5540 = vunpack.c.l.b16 %v4567
      %v5541 = vunpack.c.l.b16 %v4568
      %v5542 = vunpack.c.l.b16 %v4569
      %v5543 = vunpack.c.l.b16 %v4570
      %v5544 = vunpack.c.l.b16 %v4571
      %v5545 = vunpack.c.l.b16 %v4572
      %v5546 = vunpack.c.l.b16 %v4573
      %v5547 = vpack.c.b16 %v5500, %v5499
      %v5548 = vpack.c.b16 %v5502, %v5501
      %v5549 = vpack.c.b16 %v5504, %v5503
      %v5550 = vpack.c.b16 %v5506, %v5505
      %v5551 = vpack.c.b16 %v5508, %v5507
      %v5552 = vpack.c.b16 %v5510, %v5509
      %v5553 = vpack.c.b16 %v5512, %v5511
      %v5554 = vpack.c.b16 %v5514, %v5513
      %v5555 = vpack.c.b16 %v5516, %v5515
      %v5556 = vpack.c.b16 %v5518, %v5517
      %v5557 = vpack.c.b16 %v5520, %v5519
      %v5558 = vpack.c.b16 %v5522, %v5521
      %v5559 = vpack.c.b16 %v5524, %v5523
      %v5560 = vpack.c.b16 %v5526, %v5525
      %v5561 = vpack.c.b16 %v5528, %v5527
      %v5562 = vpack.c.b16 %v5530, %v5529
      %v5563 = vpack.c.b16 %v5532, %v5531
      %v5564 = vpack.c.b16 %v5534, %v5533
      %v5565 = vpack.c.b16 %v5536, %v5535
      %v5566 = vpack.c.b16 %v5538, %v5537
      %v5567 = vpack.c.b16 %v5540, %v5539
      %v5568 = vpack.c.b16 %v5542, %v5541
      %v5569 = vpack.c.b16 %v5544, %v5543
      %v5570 = vpack.c.b16 %v5546, %v5545
      %5595 = vmatprep.subr.bf16.mxu0 0
      %5596 = vmatpush1.bf16.msra.mxu0 %v5547
      %5597 = vmatprep.subr.bf16.mxu0 0
      %5598 = vmatpush1.bf16.msra.mxu0 %v5548
      %5599 = vmatprep.subr.bf16.mxu0 0
      %5600 = vmatpush1.bf16.msra.mxu0 %v5549
      %5601 = vmatprep.subr.bf16.mxu0 0
      %5602 = vmatpush1.bf16.msra.mxu0 %v5550
      %5603 = vmatprep.subr.bf16.mxu0 0
      %5604 = vmatpush1.bf16.msra.mxu0 %v5551
      %5605 = vmatprep.subr.bf16.mxu0 0
      %5606 = vmatpush1.bf16.msra.mxu0 %v5552
      %5607 = vmatprep.subr.bf16.mxu0 0
      %5608 = vmatpush1.bf16.msra.mxu0 %v5553
      %5609 = vmatprep.subr.bf16.mxu0 0
      %5610 = vmatpush1.bf16.msra.mxu0 %v5554
      %5611 = vmatprep.subr.bf16.mxu0 0
      %5612 = vmatpush1.bf16.msra.mxu0 %v5555
      %5613 = vmatprep.subr.bf16.mxu0 0
      %5614 = vmatpush1.bf16.msra.mxu0 %v5556
      %5615 = vmatprep.subr.bf16.mxu0 0
      %5616 = vmatpush1.bf16.msra.mxu0 %v5557
      %5617 = vmatprep.subr.bf16.mxu0 0
      %5618 = vmatpush1.bf16.msra.mxu0 %v5558
      %5619 = vmatprep.subr.bf16.mxu0 0
      %5620 = vmatpush1.bf16.msra.mxu0 %v5559
      %5621 = vmatprep.subr.bf16.mxu0 0
      %5622 = vmatpush1.bf16.msra.mxu0 %v5560
      %5623 = vmatprep.subr.bf16.mxu0 0
      %5624 = vmatpush1.bf16.msra.mxu0 %v5561
      %5625 = vmatprep.subr.bf16.mxu0 0
      %5626 = vmatpush1.bf16.msra.mxu0 %v5562
      %5627 = vmatprep.mubr.bf16.mxu0 %v4598
      %5628 = vmatmul.mubr.bf16.gmra.mrb[0].mxu0 %v4586
      %v5629 = vpop.f32.mrb[0].mxu0
      %v5630 = vadd.f32 0.0, %v5629
      %v5631 = vpop.f32.mrb[0].mxu0
      %v5632 = vpop.f32.mrb[0].mxu0
      %v5633 = vadd.f32 0.0, %v5632
      %v5634 = vpop.f32.mrb[0].mxu0
      %5635 = vmatprep.mubr.bf16.mxu0 %v4626
      %5636 = vmatmul.mubr.bf16.gmra.mrb[0].mxu0 %v4618
      %v5637 = vpop.f32.mrb[0].mxu0
      %v5638 = vadd.f32 0.0, %v5637
      %v5639 = vpop.f32.mrb[0].mxu0
      %v5640 = vpop.f32.mrb[0].mxu0
      %v5641 = vadd.f32 0.0, %v5640
      %v5642 = vpop.f32.mrb[0].mxu0
      %5643 = vmatprep.mubr.bf16.mxu0 %v4650
      %5644 = vmatmul.mubr.bf16.gmra.mrb[0].mxu0 %v4642
      %v5645 = vpop.f32.mrb[0].mxu0
      %v5646 = vadd.f32 0.0, %v5645
      %v5647 = vpop.f32.mrb[0].mxu0
      %v5648 = vpop.f32.mrb[0].mxu0
      %v5649 = vadd.f32 0.0, %v5648
      %v5650 = vpop.f32.mrb[0].mxu0
      %5651 = vmatprep.mubr.bf16.mxu0 %v4674
      %5652 = vmatmul.mubr.bf16.gmra.mrb[0].mxu0 %v4666
      %v5653 = vpop.f32.mrb[0].mxu0
      %v5654 = vadd.f32 0.0, %v5653
      %v5655 = vpop.f32.mrb[0].mxu0
      %v5656 = vpop.f32.mrb[0].mxu0
      %v5657 = vadd.f32 0.0, %v5656
      %v5658 = vpop.f32.mrb[0].mxu0
      %5659 = vmatprep.mubr.bf16.mxu0 %v4698
      %5660 = vmatmul.mubr.bf16.gmra.mrb[0].mxu0 %v4690
      %v5661 = vpop.f32.mrb[0].mxu0
      %v5662 = vadd.f32 0.0, %v5661
      %v5663 = vpop.f32.mrb[0].mxu0
      %v5664 = vpop.f32.mrb[0].mxu0
      %v5665 = vadd.f32 0.0, %v5664
      %v5666 = vpop.f32.mrb[0].mxu0
      %5667 = vmatprep.mubr.bf16.mxu0 %v4722
      %5668 = vmatmul.mubr.bf16.gmra.mrb[0].mxu0 %v4714
      %v5669 = vpop.f32.mrb[0].mxu0
      %v5670 = vadd.f32 0.0, %v5669
      %v5671 = vpop.f32.mrb[0].mxu0
      %v5672 = vpop.f32.mrb[0].mxu0
      %v5673 = vadd.f32 0.0, %v5672
      %v5674 = vpop.f32.mrb[0].mxu0
      %5675 = vmatprep.mubr.bf16.mxu0 %v4746
      %5676 = vmatmul.mubr.bf16.gmra.mrb[0].mxu0 %v4738
      %v5677 = vpop.f32.mrb[0].mxu0
      %v5678 = vadd.f32 0.0, %v5677
      %v5679 = vpop.f32.mrb[0].mxu0
      %v5680 = vpop.f32.mrb[0].mxu0
      %v5681 = vadd.f32 0.0, %v5680
      %v5682 = vpop.f32.mrb[0].mxu0
      %5683 = vmatprep.mubr.bf16.mxu0 %v4770
      %5684 = vmatmul.mubr.bf16.gmra.mrb[0].mxu0 %v4762
      %v5685 = vpop.f32.mrb[0].mxu0
      %v5686 = vadd.f32 0.0, %v5685
      %v5687 = vpop.f32.mrb[0].mxu0
      %v5688 = vpop.f32.mrb[0].mxu0
      %v5689 = vadd.f32 0.0, %v5688
      %v5690 = vpop.f32.mrb[0].mxu0
      %5691 = vmatprep.mubr.bf16.mxu0 %v4794
      %5692 = vmatmul.mubr.bf16.gmra.mrb[0].mxu0 %v4786
      %v5693 = vpop.f32.mrb[0].mxu0
      %v5694 = vadd.f32 0.0, %v5693
      %v5695 = vpop.f32.mrb[0].mxu0
      %v5696 = vpop.f32.mrb[0].mxu0
      %v5697 = vadd.f32 0.0, %v5696
      %v5698 = vpop.f32.mrb[0].mxu0
      %5699 = vmatprep.mubr.bf16.mxu0 %v4818
      %5700 = vmatmul.mubr.bf16.gmra.mrb[0].mxu0 %v4810
      %v5701 = vpop.f32.mrb[0].mxu0
      %v5702 = vadd.f32 0.0, %v5701
      %v5703 = vpop.f32.mrb[0].mxu0
      %v5704 = vpop.f32.mrb[0].mxu0
      %v5705 = vadd.f32 0.0, %v5704
      %v5706 = vpop.f32.mrb[0].mxu0
      %5707 = vmatprep.mubr.bf16.mxu0 %v4842
      %5708 = vmatmul.mubr.bf16.gmra.mrb[0].mxu0 %v4834
      %v5709 = vpop.f32.mrb[0].mxu0
      %v5710 = vadd.f32 0.0, %v5709
      %v5711 = vpop.f32.mrb[0].mxu0
      %v5712 = vpop.f32.mrb[0].mxu0
      %v5713 = vadd.f32 0.0, %v5712
      %v5714 = vpop.f32.mrb[0].mxu0
      %5715 = vmatprep.mubr.bf16.mxu0 %v4866
      %5716 = vmatmul.mubr.bf16.gmra.mrb[0].mxu0 %v4858
      %v5717 = vpop.f32.mrb[0].mxu0
      %v5718 = vadd.f32 0.0, %v5717
      %v5719 = vpop.f32.mrb[0].mxu0
      %v5720 = vpop.f32.mrb[0].mxu0
      %v5721 = vadd.f32 0.0, %v5720
      %v5722 = vpop.f32.mrb[0].mxu0
      %5723 = vmatprep.mubr.bf16.mxu0 %v4890
      %5724 = vmatmul.mubr.bf16.gmra.mrb[0].mxu0 %v4882
      %v5725 = vpop.f32.mrb[0].mxu0
      %v5726 = vadd.f32 0.0, %v5725
      %v5727 = vpop.f32.mrb[0].mxu0
      %v5728 = vpop.f32.mrb[0].mxu0
      %v5729 = vadd.f32 0.0, %v5728
      %v5730 = vpop.f32.mrb[0].mxu0
      %5731 = vmatprep.mubr.bf16.mxu0 %v4914
      %5732 = vmatmul.mubr.bf16.gmra.mrb[0].mxu0 %v4906
      %v5733 = vpop.f32.mrb[0].mxu0
      %v5734 = vadd.f32 0.0, %v5733
      %v5735 = vpop.f32.mrb[0].mxu0
      %v5736 = vpop.f32.mrb[0].mxu0
      %v5737 = vadd.f32 0.0, %v5736
      %v5738 = vpop.f32.mrb[0].mxu0
      %5739 = vmatprep.mubr.bf16.mxu0 %v4938
      %5740 = vmatmul.mubr.bf16.gmra.mrb[0].mxu0 %v4930
      %v5741 = vpop.f32.mrb[0].mxu0
      %v5742 = vadd.f32 0.0, %v5741
      %v5743 = vpop.f32.mrb[0].mxu0
      %v5744 = vpop.f32.mrb[0].mxu0
      %v5745 = vadd.f32 0.0, %v5744
      %v5746 = vpop.f32.mrb[0].mxu0
      %5747 = vmatprep.mubr.bf16.mxu0 %v4962
      %5748 = vmatmul.mubr.bf16.gmra.mrb[0].mxu0 %v4954
      %v5749 = vpop.f32.mrb[0].mxu0
      %v5750 = vadd.f32 0.0, %v5749
      %v5751 = vpop.f32.mrb[0].mxu0
      %v5752 = vpop.f32.mrb[0].mxu0
      %v5753 = vadd.f32 0.0, %v5752
      %v5754 = vpop.f32.mrb[0].mxu0
      %5755 = vmatprep.mubr.bf16.mxu0 %v4986
      %5756 = vmatmul.mubr.bf16.gmra.mrb[0].mxu0 %v4978
      %v5757 = vpop.f32.mrb[0].mxu0
      %v5758 = vadd.f32 0.0, %v5757
      %v5759 = vpop.f32.mrb[0].mxu0
      %v5760 = vpop.f32.mrb[0].mxu0
      %v5761 = vadd.f32 0.0, %v5760
      %v5762 = vpop.f32.mrb[0].mxu0
      %5763 = vmatprep.mubr.bf16.mxu0 %v5010
      %5764 = vmatmul.mubr.bf16.gmra.mrb[0].mxu0 %v5002
      %v5765 = vpop.f32.mrb[0].mxu0
      %v5766 = vadd.f32 0.0, %v5765
      %v5767 = vpop.f32.mrb[0].mxu0
      %v5768 = vpop.f32.mrb[0].mxu0
      %v5769 = vadd.f32 0.0, %v5768
      %v5770 = vpop.f32.mrb[0].mxu0
      %5771 = vmatprep.mubr.bf16.mxu0 %v5034
      %5772 = vmatmul.mubr.bf16.gmra.mrb[0].mxu0 %v5026
      %v5773 = vpop.f32.mrb[0].mxu0
      %v5774 = vadd.f32 0.0, %v5773
      %v5775 = vpop.f32.mrb[0].mxu0
      %v5776 = vpop.f32.mrb[0].mxu0
      %v5777 = vadd.f32 0.0, %v5776
      %v5778 = vpop.f32.mrb[0].mxu0
      %5779 = vmatprep.mubr.bf16.mxu0 %v5058
      %5780 = vmatmul.mubr.bf16.gmra.mrb[0].mxu0 %v5050
      %v5781 = vpop.f32.mrb[0].mxu0
      %v5782 = vadd.f32 0.0, %v5781
      %v5783 = vpop.f32.mrb[0].mxu0
      %v5784 = vpop.f32.mrb[0].mxu0
      %v5785 = vadd.f32 0.0, %v5784
      %v5786 = vpop.f32.mrb[0].mxu0
      %5787 = vmatprep.mubr.bf16.mxu0 %v5082
      %5788 = vmatmul.mubr.bf16.gmra.mrb[0].mxu0 %v5074
      %v5789 = vpop.f32.mrb[0].mxu0
      %v5790 = vadd.f32 0.0, %v5789
      %v5791 = vpop.f32.mrb[0].mxu0
      %v5792 = vpop.f32.mrb[0].mxu0
      %v5793 = vadd.f32 0.0, %v5792
      %v5794 = vpop.f32.mrb[0].mxu0
      %5795 = vmatprep.mubr.bf16.mxu0 %v5106
      %5796 = vmatmul.mubr.bf16.gmra.mrb[0].mxu0 %v5098
      %v5797 = vpop.f32.mrb[0].mxu0
      %v5798 = vadd.f32 0.0, %v5797
      %v5799 = vpop.f32.mrb[0].mxu0
      %v5800 = vpop.f32.mrb[0].mxu0
      %v5801 = vadd.f32 0.0, %v5800
      %v5802 = vpop.f32.mrb[0].mxu0
      %5803 = vmatprep.mubr.bf16.mxu0 %v5130
      %5804 = vmatmul.mubr.bf16.gmra.mrb[0].mxu0 %v5122
      %v5805 = vpop.f32.mrb[0].mxu0
      %v5806 = vadd.f32 0.0, %v5805
      %v5807 = vpop.f32.mrb[0].mxu0
      %v5808 = vpop.f32.mrb[0].mxu0
      %v5809 = vadd.f32 0.0, %v5808
      %v5810 = vpop.f32.mrb[0].mxu0
      %5811 = vmatprep.mubr.bf16.mxu0 %v5154
      %5812 = vmatmul.mubr.bf16.gmra.mrb[0].mxu0 %v5146
      %v5813 = vpop.f32.mrb[0].mxu0
      %v5814 = vadd.f32 0.0, %v5813
      %v5815 = vpop.f32.mrb[0].mxu0
      %v5816 = vpop.f32.mrb[0].mxu0
      %v5817 = vadd.f32 0.0, %v5816
      %v5818 = vpop.f32.mrb[0].mxu0
      %5819 = vmatprep.mubr.bf16.mxu0 %v5178
      %5820 = vmatmul.mubr.bf16.gmra.mrb[0].mxu0 %v5170
      %v5821 = vpop.f32.mrb[0].mxu0
      %v5822 = vadd.f32 0.0, %v5821
      %v5823 = vpop.f32.mrb[0].mxu0
      %v5824 = vpop.f32.mrb[0].mxu0
      %v5825 = vadd.f32 0.0, %v5824
      %v5826 = vpop.f32.mrb[0].mxu0
      %5827 = vmatprep.mubr.bf16.mxu0 %v5202
      %5828 = vmatmul.mubr.bf16.gmra.mrb[0].mxu0 %v5194
      %v5829 = vpop.f32.mrb[0].mxu0
      %v5830 = vadd.f32 0.0, %v5829
      %v5831 = vpop.f32.mrb[0].mxu0
      %v5832 = vpop.f32.mrb[0].mxu0
      %v5833 = vadd.f32 0.0, %v5832
      %v5834 = vpop.f32.mrb[0].mxu0
      %5835 = vmatprep.mubr.bf16.mxu0 %v5226
      %5836 = vmatmul.mubr.bf16.gmra.mrb[0].mxu0 %v5218
      %v5837 = vpop.f32.mrb[0].mxu0
      %v5838 = vadd.f32 0.0, %v5837
      %v5839 = vpop.f32.mrb[0].mxu0
      %v5840 = vpop.f32.mrb[0].mxu0
      %v5841 = vadd.f32 0.0, %v5840
      %v5842 = vpop.f32.mrb[0].mxu0
      %5843 = vmatprep.mubr.bf16.mxu0 %v5250
      %5844 = vmatmul.mubr.bf16.gmra.mrb[0].mxu0 %v5242
      %v5845 = vpop.f32.mrb[0].mxu0
      %v5846 = vadd.f32 0.0, %v5845
      %v5847 = vpop.f32.mrb[0].mxu0
      %v5848 = vpop.f32.mrb[0].mxu0
      %v5849 = vadd.f32 0.0, %v5848
      %v5850 = vpop.f32.mrb[0].mxu0
      %5851 = vmatprep.mubr.bf16.mxu0 %v5274
      %5852 = vmatmul.mubr.bf16.gmra.mrb[0].mxu0 %v5266
      %v5853 = vpop.f32.mrb[0].mxu0
      %v5854 = vadd.f32 0.0, %v5853
      %v5855 = vpop.f32.mrb[0].mxu0
      %v5856 = vpop.f32.mrb[0].mxu0
      %v5857 = vadd.f32 0.0, %v5856
      %v5858 = vpop.f32.mrb[0].mxu0
      %5859 = vmatprep.mubr.bf16.mxu0 %v5298
      %5860 = vmatmul.mubr.bf16.gmra.mrb[0].mxu0 %v5290
      %v5861 = vpop.f32.mrb[0].mxu0
      %v5862 = vadd.f32 0.0, %v5861
      %v5863 = vpop.f32.mrb[0].mxu0
      %v5864 = vpop.f32.mrb[0].mxu0
      %v5865 = vadd.f32 0.0, %v5864
      %v5866 = vpop.f32.mrb[0].mxu0
      %5867 = vmatprep.mubr.bf16.mxu0 %v5322
      %5868 = vmatmul.mubr.bf16.gmra.mrb[0].mxu0 %v5314
      %v5869 = vpop.f32.mrb[0].mxu0
      %v5870 = vadd.f32 0.0, %v5869
      %v5871 = vpop.f32.mrb[0].mxu0
      %v5872 = vpop.f32.mrb[0].mxu0
      %v5873 = vadd.f32 0.0, %v5872
      %v5874 = vpop.f32.mrb[0].mxu0
      %5875 = vmatprep.mubr.bf16.mxu0 %v5346
      %5876 = vmatmul.mubr.bf16.gmra.mrb[0].mxu0 %v5338
      %v5877 = vpop.f32.mrb[0].mxu0
      %v5878 = vadd.f32 0.0, %v5877
      %v5879 = vpop.f32.mrb[0].mxu0
      %v5880 = vpop.f32.mrb[0].mxu0
      %v5881 = vadd.f32 0.0, %v5880
      %v5882 = vpop.f32.mrb[0].mxu0
      %5883 = vdwg.mxu0
      %5884 = vmatprep.subr.bf16.mxu0 0
      %5885 = vmatpush1.bf16.msra.mxu0 %v5563
      %5886 = vmatprep.subr.bf16.mxu0 0
      %5887 = vmatpush1.bf16.msra.mxu0 %v5564
      %5888 = vmatprep.subr.bf16.mxu0 0
      %5889 = vmatpush1.bf16.msra.mxu0 %v5565
      %5890 = vmatprep.subr.bf16.mxu0 0
      %5891 = vmatpush1.bf16.msra.mxu0 %v5566
      %5892 = vmatprep.subr.bf16.mxu0 0
      %5893 = vmatpush1.bf16.msra.mxu0 %v5567
      %5894 = vmatprep.subr.bf16.mxu0 0
      %5895 = vmatpush1.bf16.msra.mxu0 %v5568
      %5896 = vmatprep.subr.bf16.mxu0 0
      %5897 = vmatpush1.bf16.msra.mxu0 %v5569
      %5898 = vmatprep.subr.bf16.mxu0 0
      %5899 = vmatpush1.bf16.msra.mxu0 %v5570
      %5900 = vmatprep.subr.bf16.mxu0 0
      %5901 = vmatpush1.bf16.msra.mxu0 0
      %5902 = vmatprep.subr.bf16.mxu0 0
      %5903 = vmatpush1.bf16.msra.mxu0 0
      %5904 = vmatprep.subr.bf16.mxu0 0
      %5905 = vmatpush1.bf16.msra.mxu0 0
      %5906 = vmatprep.subr.bf16.mxu0 0
      %5907 = vmatpush1.bf16.msra.mxu0 0
      %5908 = vmatprep.subr.bf16.mxu0 0
      %5909 = vmatpush1.bf16.msra.mxu0 0
      %5910 = vmatprep.subr.bf16.mxu0 0
      %5911 = vmatpush1.bf16.msra.mxu0 0
      %5912 = vmatprep.subr.bf16.mxu0 0
      %5913 = vmatpush1.bf16.msra.mxu0 0
      %5914 = vmatprep.subr.bf16.mxu0 0
      %5915 = vmatpush1.bf16.msra.mxu0 0
      %5916 = vmatprep.mubr.bf16.mxu0 0
      %5917 = vmatmul.mubr.bf16.gmra.mrb[0].mxu0 %v4610
      %v5918 = vpop.f32.mrb[0].mxu0
      %v5919 = vadd.f32 %v5630, %v5918
      %v5920 = vpop.f32.mrb[0].mxu0
      %v5921 = vpop.f32.mrb[0].mxu0
      %v5922 = vadd.f32 %v5633, %v5921
      %v5923 = vpop.f32.mrb[0].mxu0
      %5924 = vmatprep.mubr.bf16.mxu0 0
      %5925 = vmatmul.mubr.bf16.gmra.mrb[0].mxu0 %v4634
      %v5926 = vpop.f32.mrb[0].mxu0
      %v5927 = vadd.f32 %v5638, %v5926
      %v5928 = vpop.f32.mrb[0].mxu0
      %v5929 = vpop.f32.mrb[0].mxu0
      %v5930 = vadd.f32 %v5641, %v5929
      %v5931 = vpop.f32.mrb[0].mxu0
      %5932 = vmatprep.mubr.bf16.mxu0 0
      %5933 = vmatmul.mubr.bf16.gmra.mrb[0].mxu0 %v4658
      %v5934 = vpop.f32.mrb[0].mxu0
      %v5935 = vadd.f32 %v5646, %v5934
      %v5936 = vpop.f32.mrb[0].mxu0
      %v5937 = vpop.f32.mrb[0].mxu0
      %v5938 = vadd.f32 %v5649, %v5937
      %v5939 = vpop.f32.mrb[0].mxu0
      %5940 = vmatprep.mubr.bf16.mxu0 0
      %5941 = vmatmul.mubr.bf16.gmra.mrb[0].mxu0 %v4682
      %v5942 = vpop.f32.mrb[0].mxu0
      %v5943 = vadd.f32 %v5654, %v5942
      %v5944 = vpop.f32.mrb[0].mxu0
      %v5945 = vpop.f32.mrb[0].mxu0
      %v5946 = vadd.f32 %v5657, %v5945
      %v5947 = vpop.f32.mrb[0].mxu0
      %5948 = vmatprep.mubr.bf16.mxu0 0
      %5949 = vmatmul.mubr.bf16.gmra.mrb[0].mxu0 %v4706
      %v5950 = vpop.f32.mrb[0].mxu0
      %v5951 = vadd.f32 %v5662, %v5950
      %v5952 = vpop.f32.mrb[0].mxu0
      %v5953 = vpop.f32.mrb[0].mxu0
      %v5954 = vadd.f32 %v5665, %v5953
      %v5955 = vpop.f32.mrb[0].mxu0
      %5956 = vmatprep.mubr.bf16.mxu0 0
      %5957 = vmatmul.mubr.bf16.gmra.mrb[0].mxu0 %v4730
      %v5958 = vpop.f32.mrb[0].mxu0
      %v5959 = vadd.f32 %v5670, %v5958
      %v5960 = vpop.f32.mrb[0].mxu0
      %v5961 = vpop.f32.mrb[0].mxu0
      %v5962 = vadd.f32 %v5673, %v5961
      %v5963 = vpop.f32.mrb[0].mxu0
      %5964 = vmatprep.mubr.bf16.mxu0 0
      %5965 = vmatmul.mubr.bf16.gmra.mrb[0].mxu0 %v4754
      %v5966 = vpop.f32.mrb[0].mxu0
      %v5967 = vadd.f32 %v5678, %v5966
      %v5968 = vpop.f32.mrb[0].mxu0
      %v5969 = vpop.f32.mrb[0].mxu0
      %v5970 = vadd.f32 %v5681, %v5969
      %v5971 = vpop.f32.mrb[0].mxu0
      %5972 = vmatprep.mubr.bf16.mxu0 0
      %5973 = vmatmul.mubr.bf16.gmra.mrb[0].mxu0 %v4778
      %v5974 = vpop.f32.mrb[0].mxu0
      %v5975 = vadd.f32 %v5686, %v5974
      %v5976 = vpop.f32.mrb[0].mxu0
      %v5977 = vpop.f32.mrb[0].mxu0
      %v5978 = vadd.f32 %v5689, %v5977
      %v5979 = vpop.f32.mrb[0].mxu0
      %5980 = vmatprep.mubr.bf16.mxu0 0
      %5981 = vmatmul.mubr.bf16.gmra.mrb[0].mxu0 %v4802
      %v5982 = vpop.f32.mrb[0].mxu0
      %v5983 = vadd.f32 %v5694, %v5982
      %v5984 = vpop.f32.mrb[0].mxu0
      %v5985 = vpop.f32.mrb[0].mxu0
      %v5986 = vadd.f32 %v5697, %v5985
      %v5987 = vpop.f32.mrb[0].mxu0
      %5988 = vmatprep.mubr.bf16.mxu0 0
      %5989 = vmatmul.mubr.bf16.gmra.mrb[0].mxu0 %v4826
      %v5990 = vpop.f32.mrb[0].mxu0
      %v5991 = vadd.f32 %v5702, %v5990
      %v5992 = vpop.f32.mrb[0].mxu0
      %v5993 = vpop.f32.mrb[0].mxu0
      %v5994 = vadd.f32 %v5705, %v5993
      %v5995 = vpop.f32.mrb[0].mxu0
      %5996 = vmatprep.mubr.bf16.mxu0 0
      %5997 = vmatmul.mubr.bf16.gmra.mrb[0].mxu0 %v4850
      %v5998 = vpop.f32.mrb[0].mxu0
      %v5999 = vadd.f32 %v5710, %v5998
      %v6000 = vpop.f32.mrb[0].mxu0
      %v6001 = vpop.f32.mrb[0].mxu0
      %v6002 = vadd.f32 %v5713, %v6001
      %v6003 = vpop.f32.mrb[0].mxu0
      %6004 = vmatprep.mubr.bf16.mxu0 0
      %6005 = vmatmul.mubr.bf16.gmra.mrb[0].mxu0 %v4874
      %v6006 = vpop.f32.mrb[0].mxu0
      %v6007 = vadd.f32 %v5718, %v6006
      %v6008 = vpop.f32.mrb[0].mxu0
      %v6009 = vpop.f32.mrb[0].mxu0
      %v6010 = vadd.f32 %v5721, %v6009
      %v6011 = vpop.f32.mrb[0].mxu0
      %6012 = vmatprep.mubr.bf16.mxu0 0
      %6013 = vmatmul.mubr.bf16.gmra.mrb[0].mxu0 %v4898
      %v6014 = vpop.f32.mrb[0].mxu0
      %v6015 = vadd.f32 %v5726, %v6014
      %v6016 = vpop.f32.mrb[0].mxu0
      %v6017 = vpop.f32.mrb[0].mxu0
      %v6018 = vadd.f32 %v5729, %v6017
      %v6019 = vpop.f32.mrb[0].mxu0
      %6020 = vmatprep.mubr.bf16.mxu0 0
      %6021 = vmatmul.mubr.bf16.gmra.mrb[0].mxu0 %v4922
      %v6022 = vpop.f32.mrb[0].mxu0
      %v6023 = vadd.f32 %v5734, %v6022
      %v6024 = vpop.f32.mrb[0].mxu0
      %v6025 = vpop.f32.mrb[0].mxu0
      %v6026 = vadd.f32 %v5737, %v6025
      %v6027 = vpop.f32.mrb[0].mxu0
      %6028 = vmatprep.mubr.bf16.mxu0 0
      %6029 = vmatmul.mubr.bf16.gmra.mrb[0].mxu0 %v4946
      %v6030 = vpop.f32.mrb[0].mxu0
      %v6031 = vadd.f32 %v5742, %v6030
      %v6032 = vpop.f32.mrb[0].mxu0
      %v6033 = vpop.f32.mrb[0].mxu0
      %v6034 = vadd.f32 %v5745, %v6033
      %v6035 = vpop.f32.mrb[0].mxu0
      %6036 = vmatprep.mubr.bf16.mxu0 0
      %6037 = vmatmul.mubr.bf16.gmra.mrb[0].mxu0 %v4970
      %v6038 = vpop.f32.mrb[0].mxu0
      %v6039 = vadd.f32 %v5750, %v6038
      %v6040 = vpop.f32.mrb[0].mxu0
      %v6041 = vpop.f32.mrb[0].mxu0
      %v6042 = vadd.f32 %v5753, %v6041
      %v6043 = vpop.f32.mrb[0].mxu0
      %6044 = vmatprep.mubr.bf16.mxu0 0
      %6045 = vmatmul.mubr.bf16.gmra.mrb[0].mxu0 %v4994
      %v6046 = vpop.f32.mrb[0].mxu0
      %v6047 = vadd.f32 %v5758, %v6046
      %v6048 = vpop.f32.mrb[0].mxu0
      %v6049 = vpop.f32.mrb[0].mxu0
      %v6050 = vadd.f32 %v5761, %v6049
      %v6051 = vpop.f32.mrb[0].mxu0
      %6052 = vmatprep.mubr.bf16.mxu0 0
      %6053 = vmatmul.mubr.bf16.gmra.mrb[0].mxu0 %v5018
      %v6054 = vpop.f32.mrb[0].mxu0
      %v6055 = vadd.f32 %v5766, %v6054
      %v6056 = vpop.f32.mrb[0].mxu0
      %v6057 = vpop.f32.mrb[0].mxu0
      %v6058 = vadd.f32 %v5769, %v6057
      %v6059 = vpop.f32.mrb[0].mxu0
      %6060 = vmatprep.mubr.bf16.mxu0 0
      %6061 = vmatmul.mubr.bf16.gmra.mrb[0].mxu0 %v5042
      %v6062 = vpop.f32.mrb[0].mxu0
      %v6063 = vadd.f32 %v5774, %v6062
      %v6064 = vpop.f32.mrb[0].mxu0
      %v6065 = vpop.f32.mrb[0].mxu0
      %v6066 = vadd.f32 %v5777, %v6065
      %v6067 = vpop.f32.mrb[0].mxu0
      %6068 = vmatprep.mubr.bf16.mxu0 0
      %6069 = vmatmul.mubr.bf16.gmra.mrb[0].mxu0 %v5066
      %v6070 = vpop.f32.mrb[0].mxu0
      %v6071 = vadd.f32 %v5782, %v6070
      %v6072 = vpop.f32.mrb[0].mxu0
      %v6073 = vpop.f32.mrb[0].mxu0
      %v6074 = vadd.f32 %v5785, %v6073
      %v6075 = vpop.f32.mrb[0].mxu0
      %6076 = vmatprep.mubr.bf16.mxu0 0
      %6077 = vmatmul.mubr.bf16.gmra.mrb[0].mxu0 %v5090
      %v6078 = vpop.f32.mrb[0].mxu0
      %v6079 = vadd.f32 %v5790, %v6078
      %v6080 = vpop.f32.mrb[0].mxu0
      %v6081 = vpop.f32.mrb[0].mxu0
      %v6082 = vadd.f32 %v5793, %v6081
      %v6083 = vpop.f32.mrb[0].mxu0
      %6084 = vmatprep.mubr.bf16.mxu0 0
      %6085 = vmatmul.mubr.bf16.gmra.mrb[0].mxu0 %v5114
      %v6086 = vpop.f32.mrb[0].mxu0
      %v6087 = vadd.f32 %v5798, %v6086
      %v6088 = vpop.f32.mrb[0].mxu0
      %v6089 = vpop.f32.mrb[0].mxu0
      %v6090 = vadd.f32 %v5801, %v6089
      %v6091 = vpop.f32.mrb[0].mxu0
      %6092 = vmatprep.mubr.bf16.mxu0 0
      %6093 = vmatmul.mubr.bf16.gmra.mrb[0].mxu0 %v5138
      %v6094 = vpop.f32.mrb[0].mxu0
      %v6095 = vadd.f32 %v5806, %v6094
      %v6096 = vpop.f32.mrb[0].mxu0
      %v6097 = vpop.f32.mrb[0].mxu0
      %v6098 = vadd.f32 %v5809, %v6097
      %v6099 = vpop.f32.mrb[0].mxu0
      %6100 = vmatprep.mubr.bf16.mxu0 0
      %6101 = vmatmul.mubr.bf16.gmra.mrb[0].mxu0 %v5162
      %v6102 = vpop.f32.mrb[0].mxu0
      %v6103 = vadd.f32 %v5814, %v6102
      %v6104 = vpop.f32.mrb[0].mxu0
      %v6105 = vpop.f32.mrb[0].mxu0
      %v6106 = vadd.f32 %v5817, %v6105
      %v6107 = vpop.f32.mrb[0].mxu0
      %6108 = vmatprep.mubr.bf16.mxu0 0
      %6109 = vmatmul.mubr.bf16.gmra.mrb[0].mxu0 %v5186
      %v6110 = vpop.f32.mrb[0].mxu0
      %v6111 = vadd.f32 %v5822, %v6110
      %v6112 = vpop.f32.mrb[0].mxu0
      %v6113 = vpop.f32.mrb[0].mxu0
      %v6114 = vadd.f32 %v5825, %v6113
      %v6115 = vpop.f32.mrb[0].mxu0
      %6116 = vmatprep.mubr.bf16.mxu0 0
      %6117 = vmatmul.mubr.bf16.gmra.mrb[0].mxu0 %v5210
      %v6118 = vpop.f32.mrb[0].mxu0
      %v6119 = vadd.f32 %v5830, %v6118
      %v6120 = vpop.f32.mrb[0].mxu0
      %v6121 = vpop.f32.mrb[0].mxu0
      %v6122 = vadd.f32 %v5833, %v6121
      %v6123 = vpop.f32.mrb[0].mxu0
      %6124 = vmatprep.mubr.bf16.mxu0 0
      %6125 = vmatmul.mubr.bf16.gmra.mrb[0].mxu0 %v5234
      %v6126 = vpop.f32.mrb[0].mxu0
      %v6127 = vadd.f32 %v5838, %v6126
      %v6128 = vpop.f32.mrb[0].mxu0
      %v6129 = vpop.f32.mrb[0].mxu0
      %v6130 = vadd.f32 %v5841, %v6129
      %v6131 = vpop.f32.mrb[0].mxu0
      %6132 = vmatprep.mubr.bf16.mxu0 0
      %6133 = vmatmul.mubr.bf16.gmra.mrb[0].mxu0 %v5258
      %v6134 = vpop.f32.mrb[0].mxu0
      %v6135 = vadd.f32 %v5846, %v6134
      %v6136 = vpop.f32.mrb[0].mxu0
      %v6137 = vpop.f32.mrb[0].mxu0
      %v6138 = vadd.f32 %v5849, %v6137
      %v6139 = vpop.f32.mrb[0].mxu0
      %6140 = vmatprep.mubr.bf16.mxu0 0
      %6141 = vmatmul.mubr.bf16.gmra.mrb[0].mxu0 %v5282
      %v6142 = vpop.f32.mrb[0].mxu0
      %v6143 = vadd.f32 %v5854, %v6142
      %v6144 = vpop.f32.mrb[0].mxu0
      %v6145 = vpop.f32.mrb[0].mxu0
      %v6146 = vadd.f32 %v5857, %v6145
      %v6147 = vpop.f32.mrb[0].mxu0
      %6148 = vmatprep.mubr.bf16.mxu0 0
      %6149 = vmatmul.mubr.bf16.gmra.mrb[0].mxu0 %v5306
      %v6150 = vpop.f32.mrb[0].mxu0
      %v6151 = vadd.f32 %v5862, %v6150
      %v6152 = vpop.f32.mrb[0].mxu0
      %v6153 = vpop.f32.mrb[0].mxu0
      %v6154 = vadd.f32 %v5865, %v6153
      %v6155 = vpop.f32.mrb[0].mxu0
      %6156 = vmatprep.mubr.bf16.mxu0 0
      %6157 = vmatmul.mubr.bf16.gmra.mrb[0].mxu0 %v5330
      %v6158 = vpop.f32.mrb[0].mxu0
      %v6159 = vadd.f32 %v5870, %v6158
      %v6160 = vpop.f32.mrb[0].mxu0
      %v6161 = vpop.f32.mrb[0].mxu0
      %v6162 = vadd.f32 %v5873, %v6161
      %v6163 = vpop.f32.mrb[0].mxu0
      %6164 = vmatprep.mubr.bf16.mxu0 0
      %6165 = vmatmul.mubr.bf16.gmra.mrb[0].mxu0 %v5354
      %v6166 = vpop.f32.mrb[0].mxu0
      %v6167 = vadd.f32 %v5878, %v6166
      %v6168 = vpop.f32.mrb[0].mxu0
      %v6169 = vpop.f32.mrb[0].mxu0
      %v6170 = vadd.f32 %v5881, %v6169
      %v6171 = vpop.f32.mrb[0].mxu0
      %6172 = vdwg.mxu0
      %v6173 = vld [vmem:[#allocation3] sm:$0xff]
      %v6174 = vld [vmem:[#allocation3 + $0x8] sm:$0xff]
      %v6175 = vld [vmem:[#allocation3 + $0x10] sm:$0xff]
      %v6176 = vld [vmem:[#allocation3 + $0x18] sm:$0xff]
      %v6177 = vld [vmem:[#allocation3 + $0x20] sm:$0xff]
      %v6178 = vld [vmem:[#allocation3 + $0x28] sm:$0xff]
      %v6179 = vld [vmem:[#allocation3 + $0x30] sm:$0xff]
      %v6180 = vld [vmem:[#allocation3 + $0x38] sm:$0xff]
      %v6181 = vld [vmem:[#allocation3 + $0x40] sm:$0xff]
      %v6182 = vld [vmem:[#allocation3 + $0x48] sm:$0xff]
      %v6183 = vld [vmem:[#allocation3 + $0x50] sm:$0xff]
      %v6184 = vld [vmem:[#allocation3 + $0x58] sm:$0xff]
      %v6185 = vld [vmem:[#allocation3 + $0x60] sm:$0xff]
      %v6186 = vld [vmem:[#allocation3 + $0x68] sm:$0xff]
      %v6187 = vld [vmem:[#allocation3 + $0x70] sm:$0xff]
      %v6188 = vld [vmem:[#allocation3 + $0x78] sm:$0xff]
      %v6189 = vld [vmem:[#allocation3 + $0x80] sm:$0xff]
      %v6190 = vld [vmem:[#allocation3 + $0x88] sm:$0xff]
      %v6191 = vld [vmem:[#allocation3 + $0x90] sm:$0xff]
      %v6192 = vld [vmem:[#allocation3 + $0x98] sm:$0xff]
      %v6193 = vld [vmem:[#allocation3 + $0xa0] sm:$0xff]
      %v6194 = vld [vmem:[#allocation3 + $0xa8] sm:$0xff]
      %v6195 = vld [vmem:[#allocation3 + $0xb0] sm:$0xff]
      %v6196 = vld [vmem:[#allocation3 + $0xb8] sm:$0xff]
      %v6197 = vld [vmem:[#allocation3 + $0xc0] sm:$0xff]
      %v6198 = vld [vmem:[#allocation3 + $0xc8] sm:$0xff]
      %v6199 = vld [vmem:[#allocation3 + $0xd0] sm:$0xff]
      %v6200 = vld [vmem:[#allocation3 + $0xd8] sm:$0xff]
      %v6201 = vld [vmem:[#allocation3 + $0xe0] sm:$0xff]
      %v6202 = vld [vmem:[#allocation3 + $0xe8] sm:$0xff]
      %v6203 = vld [vmem:[#allocation3 + $0xf0] sm:$0xff]
      %v6204 = vld [vmem:[#allocation3 + $0xf8] sm:$0xff]
      %v6205 = vld [vmem:[#allocation3 + $0x100] sm:$0xff]
      %v6206 = vld [vmem:[#allocation3 + $0x108] sm:$0xff]
      %v6207 = vld [vmem:[#allocation3 + $0x110] sm:$0xff]
      %v6208 = vld [vmem:[#allocation3 + $0x118] sm:$0xff]
      %v6209 = vld [vmem:[#allocation3 + $0x120] sm:$0xff]
      %v6210 = vld [vmem:[#allocation3 + $0x128] sm:$0xff]
      %v6211 = vld [vmem:[#allocation3 + $0x130] sm:$0xff]
      %v6212 = vld [vmem:[#allocation3 + $0x138] sm:$0xff]
      %v6213 = vld [vmem:[#allocation3 + $0x140] sm:$0xff]
      %v6214 = vld [vmem:[#allocation3 + $0x148] sm:$0xff]
      %v6215 = vld [vmem:[#allocation3 + $0x150] sm:$0xff]
      %v6216 = vld [vmem:[#allocation3 + $0x158] sm:$0xff]
      %v6217 = vld [vmem:[#allocation3 + $0x160] sm:$0xff]
      %v6218 = vld [vmem:[#allocation3 + $0x168] sm:$0xff]
      %v6219 = vld [vmem:[#allocation3 + $0x170] sm:$0xff]
      %v6220 = vld [vmem:[#allocation3 + $0x178] sm:$0xff]
      %v6221 = vld [vmem:[#allocation3 + $0x180] sm:$0xff]
      %v6222 = vld [vmem:[#allocation3 + $0x188] sm:$0xff]
      %v6223 = vld [vmem:[#allocation3 + $0x190] sm:$0xff]
      %v6224 = vld [vmem:[#allocation3 + $0x198] sm:$0xff]
      %v6225 = vld [vmem:[#allocation3 + $0x1a0] sm:$0xff]
      %v6226 = vld [vmem:[#allocation3 + $0x1a8] sm:$0xff]
      %v6227 = vld [vmem:[#allocation3 + $0x1b0] sm:$0xff]
      %v6228 = vld [vmem:[#allocation3 + $0x1b8] sm:$0xff]
      %v6229 = vld [vmem:[#allocation3 + $0x1c0] sm:$0xff]
      %v6230 = vld [vmem:[#allocation3 + $0x1c8] sm:$0xff]
      %v6231 = vld [vmem:[#allocation3 + $0x1d0] sm:$0xff]
      %v6232 = vld [vmem:[#allocation3 + $0x1d8] sm:$0xff]
      %v6233 = vld [vmem:[#allocation3 + $0x1e0] sm:$0xff]
      %v6234 = vld [vmem:[#allocation3 + $0x1e8] sm:$0xff]
      %v6235 = vld [vmem:[#allocation3 + $0x1f0] sm:$0xff]
      %v6236 = vld [vmem:[#allocation3 + $0x1f8] sm:$0xff]
      %v6237 = vadd.f32 %v6173, %v5919
      %v6238 = vadd.f32 %v6174, %v5922
      %v6239 = vadd.f32 %v6175, %v5927
      %v6240 = vadd.f32 %v6176, %v5930
      %v6241 = vadd.f32 %v6177, %v5935
      %v6242 = vadd.f32 %v6178, %v5938
      %v6243 = vadd.f32 %v6179, %v5943
      %v6244 = vadd.f32 %v6180, %v5946
      %v6245 = vadd.f32 %v6181, %v5951
      %v6246 = vadd.f32 %v6182, %v5954
      %v6247 = vadd.f32 %v6183, %v5959
      %v6248 = vadd.f32 %v6184, %v5962
      %v6249 = vadd.f32 %v6185, %v5967
      %v6250 = vadd.f32 %v6186, %v5970
      %v6251 = vadd.f32 %v6187, %v5975
      %v6252 = vadd.f32 %v6188, %v5978
      %v6253 = vadd.f32 %v6189, %v5983
      %v6254 = vadd.f32 %v6190, %v5986
      %v6255 = vadd.f32 %v6191, %v5991
      %v6256 = vadd.f32 %v6192, %v5994
      %v6257 = vadd.f32 %v6193, %v5999
      %v6258 = vadd.f32 %v6194, %v6002
      %v6259 = vadd.f32 %v6195, %v6007
      %v6260 = vadd.f32 %v6196, %v6010
      %v6261 = vadd.f32 %v6197, %v6015
      %v6262 = vadd.f32 %v6198, %v6018
      %v6263 = vadd.f32 %v6199, %v6023
      %v6264 = vadd.f32 %v6200, %v6026
      %v6265 = vadd.f32 %v6201, %v6031
      %v6266 = vadd.f32 %v6202, %v6034
      %v6267 = vadd.f32 %v6203, %v6039
      %v6268 = vadd.f32 %v6204, %v6042
      %v6269 = vadd.f32 %v6205, %v6047
      %v6270 = vadd.f32 %v6206, %v6050
      %v6271 = vadd.f32 %v6207, %v6055
      %v6272 = vadd.f32 %v6208, %v6058
      %v6273 = vadd.f32 %v6209, %v6063
      %v6274 = vadd.f32 %v6210, %v6066
      %v6275 = vadd.f32 %v6211, %v6071
      %v6276 = vadd.f32 %v6212, %v6074
      %v6277 = vadd.f32 %v6213, %v6079
      %v6278 = vadd.f32 %v6214, %v6082
      %v6279 = vadd.f32 %v6215, %v6087
      %v6280 = vadd.f32 %v6216, %v6090
      %v6281 = vadd.f32 %v6217, %v6095
      %v6282 = vadd.f32 %v6218, %v6098
      %v6283 = vadd.f32 %v6219, %v6103
      %v6284 = vadd.f32 %v6220, %v6106
      %v6285 = vadd.f32 %v6221, %v6111
      %v6286 = vadd.f32 %v6222, %v6114
      %v6287 = vadd.f32 %v6223, %v6119
      %v6288 = vadd.f32 %v6224, %v6122
      %v6289 = vadd.f32 %v6225, %v6127
      %v6290 = vadd.f32 %v6226, %v6130
      %v6291 = vadd.f32 %v6227, %v6135
      %v6292 = vadd.f32 %v6228, %v6138
      %v6293 = vadd.f32 %v6229, %v6143
      %v6294 = vadd.f32 %v6230, %v6146
      %v6295 = vadd.f32 %v6231, %v6151
      %v6296 = vadd.f32 %v6232, %v6154
      %v6297 = vadd.f32 %v6233, %v6159
      %v6298 = vadd.f32 %v6234, %v6162
      %v6299 = vadd.f32 %v6235, %v6167
      %v6300 = vadd.f32 %v6236, %v6170
      %6301 = vst [vmem:[#allocation3] sm:$0xff] %v6237
      %6302 = vst [vmem:[#allocation3 + $0x8] sm:$0xff] %v6238
      %6303 = vst [vmem:[#allocation3 + $0x10] sm:$0xff] %v6239
      %6304 = vst [vmem:[#allocation3 + $0x18] sm:$0xff] %v6240
      %6305 = vst [vmem:[#allocation3 + $0x20] sm:$0xff] %v6241
      %6306 = vst [vmem:[#allocation3 + $0x28] sm:$0xff] %v6242
      %6307 = vst [vmem:[#allocation3 + $0x30] sm:$0xff] %v6243
      %6308 = vst [vmem:[#allocation3 + $0x38] sm:$0xff] %v6244
      %6309 = vst [vmem:[#allocation3 + $0x40] sm:$0xff] %v6245
      %6310 = vst [vmem:[#allocation3 + $0x48] sm:$0xff] %v6246
      %6311 = vst [vmem:[#allocation3 + $0x50] sm:$0xff] %v6247
      %6312 = vst [vmem:[#allocation3 + $0x58] sm:$0xff] %v6248
      %6313 = vst [vmem:[#allocation3 + $0x60] sm:$0xff] %v6249
      %6314 = vst [vmem:[#allocation3 + $0x68] sm:$0xff] %v6250
      %6315 = vst [vmem:[#allocation3 + $0x70] sm:$0xff] %v6251
      %6316 = vst [vmem:[#allocation3 + $0x78] sm:$0xff] %v6252
      %6317 = vst [vmem:[#allocation3 + $0x80] sm:$0xff] %v6253
      %6318 = vst [vmem:[#allocation3 + $0x88] sm:$0xff] %v6254
      %6319 = vst [vmem:[#allocation3 + $0x90] sm:$0xff] %v6255
      %6320 = vst [vmem:[#allocation3 + $0x98] sm:$0xff] %v6256
      %6321 = vst [vmem:[#allocation3 + $0xa0] sm:$0xff] %v6257
      %6322 = vst [vmem:[#allocation3 + $0xa8] sm:$0xff] %v6258
      %6323 = vst [vmem:[#allocation3 + $0xb0] sm:$0xff] %v6259
      %6324 = vst [vmem:[#allocation3 + $0xb8] sm:$0xff] %v6260
      %6325 = vst [vmem:[#allocation3 + $0xc0] sm:$0xff] %v6261
      %6326 = vst [vmem:[#allocation3 + $0xc8] sm:$0xff] %v6262
      %6327 = vst [vmem:[#allocation3 + $0xd0] sm:$0xff] %v6263
      %6328 = vst [vmem:[#allocation3 + $0xd8] sm:$0xff] %v6264
      %6329 = vst [vmem:[#allocation3 + $0xe0] sm:$0xff] %v6265
      %6330 = vst [vmem:[#allocation3 + $0xe8] sm:$0xff] %v6266
      %6331 = vst [vmem:[#allocation3 + $0xf0] sm:$0xff] %v6267
      %6332 = vst [vmem:[#allocation3 + $0xf8] sm:$0xff] %v6268
      %6333 = vst [vmem:[#allocation3 + $0x100] sm:$0xff] %v6269
      %6334 = vst [vmem:[#allocation3 + $0x108] sm:$0xff] %v6270
      %6335 = vst [vmem:[#allocation3 + $0x110] sm:$0xff] %v6271
      %6336 = vst [vmem:[#allocation3 + $0x118] sm:$0xff] %v6272
      %6337 = vst [vmem:[#allocation3 + $0x120] sm:$0xff] %v6273
      %6338 = vst [vmem:[#allocation3 + $0x128] sm:$0xff] %v6274
      %6339 = vst [vmem:[#allocation3 + $0x130] sm:$0xff] %v6275
      %6340 = vst [vmem:[#allocation3 + $0x138] sm:$0xff] %v6276
      %6341 = vst [vmem:[#allocation3 + $0x140] sm:$0xff] %v6277
      %6342 = vst [vmem:[#allocation3 + $0x148] sm:$0xff] %v6278
      %6343 = vst [vmem:[#allocation3 + $0x150] sm:$0xff] %v6279
      %6344 = vst [vmem:[#allocation3 + $0x158] sm:$0xff] %v6280
      %6345 = vst [vmem:[#allocation3 + $0x160] sm:$0xff] %v6281
      %6346 = vst [vmem:[#allocation3 + $0x168] sm:$0xff] %v6282
      %6347 = vst [vmem:[#allocation3 + $0x170] sm:$0xff] %v6283
      %6348 = vst [vmem:[#allocation3 + $0x178] sm:$0xff] %v6284
      %6349 = vst [vmem:[#allocation3 + $0x180] sm:$0xff] %v6285
      %6350 = vst [vmem:[#allocation3 + $0x188] sm:$0xff] %v6286
      %6351 = vst [vmem:[#allocation3 + $0x190] sm:$0xff] %v6287
      %6352 = vst [vmem:[#allocation3 + $0x198] sm:$0xff] %v6288
      %6353 = vst [vmem:[#allocation3 + $0x1a0] sm:$0xff] %v6289
      %6354 = vst [vmem:[#allocation3 + $0x1a8] sm:$0xff] %v6290
      %6355 = vst [vmem:[#allocation3 + $0x1b0] sm:$0xff] %v6291
      %6356 = vst [vmem:[#allocation3 + $0x1b8] sm:$0xff] %v6292
      %6357 = vst [vmem:[#allocation3 + $0x1c0] sm:$0xff] %v6293
      %6358 = vst [vmem:[#allocation3 + $0x1c8] sm:$0xff] %v6294
      %6359 = vst [vmem:[#allocation3 + $0x1d0] sm:$0xff] %v6295
      %6360 = vst [vmem:[#allocation3 + $0x1d8] sm:$0xff] %v6296
      %6361 = vst [vmem:[#allocation3 + $0x1e0] sm:$0xff] %v6297
      %6362 = vst [vmem:[#allocation3 + $0x1e8] sm:$0xff] %v6298
      %6363 = vst [vmem:[#allocation3 + $0x1f0] sm:$0xff] %v6299
      %6364 = vst [vmem:[#allocation3 + $0x1f8] sm:$0xff] %v6300
      %v6365 = vld [vmem:[#allocation3] sm:$0xff]
      %v6366 = vld [vmem:[#allocation3 + $0x8] sm:$0xff]
      %v6367 = vld [vmem:[%s5] sm:$0x1]
      %v6369 = vlaneseq
      %v6370 = vshrl.u32 %v6369, 7
      %v6371 = vsub.s32 0, %v6370
      %v6372 = vrot.slane %v6367, %v6371
      %v6374 = vmul.f32 %v6365, %v6372
      %v6375 = vmul.f32 %v6366, %v6372
      %v6376 = vld [vmem:[%s6] sm:$0x1]
      %v6378 = vlaneseq
      %v6379 = vshrl.u32 %v6378, 7
      %v6380 = vsub.s32 0, %v6379
      %v6381 = vrot.slane %v6376, %v6380
      %v6383 = vadd.f32 %v6374, %v6381
      %v6384 = vadd.f32 %v6375, %v6381
      %v6385 = vmax.f32 %v6383, 0.0
      %v6386 = vmax.f32 %v6384, 0.0
      %v6387 = vpack.c.bf16 %v6386, %v6385
      %6388 = vst [vmem:[#allocation4] sm:$0xff] %v6387
      %v6389 = vld [vmem:[#allocation3 + $0x20] sm:$0xff]
      %v6390 = vld [vmem:[#allocation3 + $0x28] sm:$0xff]
      %v6391 = vld [vmem:[%s5] sm:$0x1]
      %v6393 = vlaneseq
      %v6394 = vshrl.u32 %v6393, 7
      %v6395 = vsub.s32 0, %v6394
      %v6396 = vrot.slane %v6391, %v6395
      %v6398 = vmul.f32 %v6389, %v6396
      %v6399 = vmul.f32 %v6390, %v6396
      %v6400 = vld [vmem:[%s6] sm:$0x1]
      %v6402 = vlaneseq
      %v6403 = vshrl.u32 %v6402, 7
      %v6404 = vsub.s32 0, %v6403
      %v6405 = vrot.slane %v6400, %v6404
      %v6407 = vadd.f32 %v6398, %v6405
      %v6408 = vadd.f32 %v6399, %v6405
      %v6409 = vmax.f32 %v6407, 0.0
      %v6410 = vmax.f32 %v6408, 0.0
      %v6411 = vpack.c.bf16 %v6410, %v6409
      %6412 = vst [vmem:[#allocation4 + $0x8] sm:$0xff] %v6411
      %v6413 = vld [vmem:[#allocation3 + $0x40] sm:$0xff]
      %v6414 = vld [vmem:[#allocation3 + $0x48] sm:$0xff]
      %v6415 = vld [vmem:[%s5] sm:$0x1]
      %v6417 = vlaneseq
      %v6418 = vshrl.u32 %v6417, 7
      %v6419 = vsub.s32 0, %v6418
      %v6420 = vrot.slane %v6415, %v6419
      %v6422 = vmul.f32 %v6413, %v6420
      %v6423 = vmul.f32 %v6414, %v6420
      %v6424 = vld [vmem:[%s6] sm:$0x1]
      %v6426 = vlaneseq
      %v6427 = vshrl.u32 %v6426, 7
      %v6428 = vsub.s32 0, %v6427
      %v6429 = vrot.slane %v6424, %v6428
      %v6431 = vadd.f32 %v6422, %v6429
      %v6432 = vadd.f32 %v6423, %v6429
      %v6433 = vmax.f32 %v6431, 0.0
      %v6434 = vmax.f32 %v6432, 0.0
      %v6435 = vpack.c.bf16 %v6434, %v6433
      %6436 = vst [vmem:[#allocation4 + $0x10] sm:$0xff] %v6435
      %v6437 = vld [vmem:[#allocation3 + $0x60] sm:$0xff]
      %v6438 = vld [vmem:[#allocation3 + $0x68] sm:$0xff]
      %v6439 = vld [vmem:[%s5] sm:$0x1]
      %v6441 = vlaneseq
      %v6442 = vshrl.u32 %v6441, 7
      %v6443 = vsub.s32 0, %v6442
      %v6444 = vrot.slane %v6439, %v6443
      %v6446 = vmul.f32 %v6437, %v6444
      %v6447 = vmul.f32 %v6438, %v6444
      %v6448 = vld [vmem:[%s6] sm:$0x1]
      %v6450 = vlaneseq
      %v6451 = vshrl.u32 %v6450, 7
      %v6452 = vsub.s32 0, %v6451
      %v6453 = vrot.slane %v6448, %v6452
      %v6455 = vadd.f32 %v6446, %v6453
      %v6456 = vadd.f32 %v6447, %v6453
      %v6457 = vmax.f32 %v6455, 0.0
      %v6458 = vmax.f32 %v6456, 0.0
      %v6459 = vpack.c.bf16 %v6458, %v6457
      %6460 = vst [vmem:[#allocation4 + $0x18] sm:$0xff] %v6459
      %v6461 = vld [vmem:[#allocation3 + $0x80] sm:$0xff]
      %v6462 = vld [vmem:[#allocation3 + $0x88] sm:$0xff]
      %v6463 = vld [vmem:[%s5] sm:$0x1]
      %v6465 = vlaneseq
      %v6466 = vshrl.u32 %v6465, 7
      %v6467 = vsub.s32 0, %v6466
      %v6468 = vrot.slane %v6463, %v6467
      %v6470 = vmul.f32 %v6461, %v6468
      %v6471 = vmul.f32 %v6462, %v6468
      %v6472 = vld [vmem:[%s6] sm:$0x1]
      %v6474 = vlaneseq
      %v6475 = vshrl.u32 %v6474, 7
      %v6476 = vsub.s32 0, %v6475
      %v6477 = vrot.slane %v6472, %v6476
      %v6479 = vadd.f32 %v6470, %v6477
      %v6480 = vadd.f32 %v6471, %v6477
      %v6481 = vmax.f32 %v6479, 0.0
      %v6482 = vmax.f32 %v6480, 0.0
      %v6483 = vpack.c.bf16 %v6482, %v6481
      %6484 = vst [vmem:[#allocation4 + $0x20] sm:$0xff] %v6483
      %v6485 = vld [vmem:[#allocation3 + $0xa0] sm:$0xff]
      %v6486 = vld [vmem:[#allocation3 + $0xa8] sm:$0xff]
      %v6487 = vld [vmem:[%s5] sm:$0x1]
      %v6489 = vlaneseq
      %v6490 = vshrl.u32 %v6489, 7
      %v6491 = vsub.s32 0, %v6490
      %v6492 = vrot.slane %v6487, %v6491
      %v6494 = vmul.f32 %v6485, %v6492
      %v6495 = vmul.f32 %v6486, %v6492
      %v6496 = vld [vmem:[%s6] sm:$0x1]
      %v6498 = vlaneseq
      %v6499 = vshrl.u32 %v6498, 7
      %v6500 = vsub.s32 0, %v6499
      %v6501 = vrot.slane %v6496, %v6500
      %v6503 = vadd.f32 %v6494, %v6501
      %v6504 = vadd.f32 %v6495, %v6501
      %v6505 = vmax.f32 %v6503, 0.0
      %v6506 = vmax.f32 %v6504, 0.0
      %v6507 = vpack.c.bf16 %v6506, %v6505
      %6508 = vst [vmem:[#allocation4 + $0x28] sm:$0xff] %v6507
      %v6509 = vld [vmem:[#allocation3 + $0xc0] sm:$0xff]
      %v6510 = vld [vmem:[#allocation3 + $0xc8] sm:$0xff]
      %v6511 = vld [vmem:[%s5] sm:$0x1]
      %v6513 = vlaneseq
      %v6514 = vshrl.u32 %v6513, 7
      %v6515 = vsub.s32 0, %v6514
      %v6516 = vrot.slane %v6511, %v6515
      %v6518 = vmul.f32 %v6509, %v6516
      %v6519 = vmul.f32 %v6510, %v6516
      %v6520 = vld [vmem:[%s6] sm:$0x1]
      %v6522 = vlaneseq
      %v6523 = vshrl.u32 %v6522, 7
      %v6524 = vsub.s32 0, %v6523
      %v6525 = vrot.slane %v6520, %v6524
      %v6527 = vadd.f32 %v6518, %v6525
      %v6528 = vadd.f32 %v6519, %v6525
      %v6529 = vmax.f32 %v6527, 0.0
      %v6530 = vmax.f32 %v6528, 0.0
      %v6531 = vpack.c.bf16 %v6530, %v6529
      %6532 = vst [vmem:[#allocation4 + $0x30] sm:$0xff] %v6531
      %v6533 = vld [vmem:[#allocation3 + $0xe0] sm:$0xff]
      %v6534 = vld [vmem:[#allocation3 + $0xe8] sm:$0xff]
      %v6535 = vld [vmem:[%s5] sm:$0x1]
      %v6537 = vlaneseq
      %v6538 = vshrl.u32 %v6537, 7
      %v6539 = vsub.s32 0, %v6538
      %v6540 = vrot.slane %v6535, %v6539
      %v6542 = vmul.f32 %v6533, %v6540
      %v6543 = vmul.f32 %v6534, %v6540
      %v6544 = vld [vmem:[%s6] sm:$0x1]
      %v6546 = vlaneseq
      %v6547 = vshrl.u32 %v6546, 7
      %v6548 = vsub.s32 0, %v6547
      %v6549 = vrot.slane %v6544, %v6548
      %v6551 = vadd.f32 %v6542, %v6549
      %v6552 = vadd.f32 %v6543, %v6549
      %v6553 = vmax.f32 %v6551, 0.0
      %v6554 = vmax.f32 %v6552, 0.0
      %v6555 = vpack.c.bf16 %v6554, %v6553
      %6556 = vst [vmem:[#allocation4 + $0x38] sm:$0xff] %v6555
      %v6557 = vld [vmem:[#allocation3 + $0x100] sm:$0xff]
      %v6558 = vld [vmem:[#allocation3 + $0x108] sm:$0xff]
      %v6559 = vld [vmem:[%s5] sm:$0x1]
      %v6561 = vlaneseq
      %v6562 = vshrl.u32 %v6561, 7
      %v6563 = vsub.s32 0, %v6562
      %v6564 = vrot.slane %v6559, %v6563
      %v6566 = vmul.f32 %v6557, %v6564
      %v6567 = vmul.f32 %v6558, %v6564
      %v6568 = vld [vmem:[%s6] sm:$0x1]
      %v6570 = vlaneseq
      %v6571 = vshrl.u32 %v6570, 7
      %v6572 = vsub.s32 0, %v6571
      %v6573 = vrot.slane %v6568, %v6572
      %v6575 = vadd.f32 %v6566, %v6573
      %v6576 = vadd.f32 %v6567, %v6573
      %v6577 = vmax.f32 %v6575, 0.0
      %v6578 = vmax.f32 %v6576, 0.0
      %v6579 = vpack.c.bf16 %v6578, %v6577
      %6580 = vst [vmem:[#allocation4 + $0x40] sm:$0xff] %v6579
      %v6581 = vld [vmem:[#allocation3 + $0x120] sm:$0xff]
      %v6582 = vld [vmem:[#allocation3 + $0x128] sm:$0xff]
      %v6583 = vld [vmem:[%s5] sm:$0x1]
      %v6585 = vlaneseq
      %v6586 = vshrl.u32 %v6585, 7
      %v6587 = vsub.s32 0, %v6586
      %v6588 = vrot.slane %v6583, %v6587
      %v6590 = vmul.f32 %v6581, %v6588
      %v6591 = vmul.f32 %v6582, %v6588
      %v6592 = vld [vmem:[%s6] sm:$0x1]
      %v6594 = vlaneseq
      %v6595 = vshrl.u32 %v6594, 7
      %v6596 = vsub.s32 0, %v6595
      %v6597 = vrot.slane %v6592, %v6596
      %v6599 = vadd.f32 %v6590, %v6597
      %v6600 = vadd.f32 %v6591, %v6597
      %v6601 = vmax.f32 %v6599, 0.0
      %v6602 = vmax.f32 %v6600, 0.0
      %v6603 = vpack.c.bf16 %v6602, %v6601
      %6604 = vst [vmem:[#allocation4 + $0x48] sm:$0xff] %v6603
      %v6605 = vld [vmem:[#allocation3 + $0x140] sm:$0xff]
      %v6606 = vld [vmem:[#allocation3 + $0x148] sm:$0xff]
      %v6607 = vld [vmem:[%s5] sm:$0x1]
      %v6609 = vlaneseq
      %v6610 = vshrl.u32 %v6609, 7
      %v6611 = vsub.s32 0, %v6610
      %v6612 = vrot.slane %v6607, %v6611
      %v6614 = vmul.f32 %v6605, %v6612
      %v6615 = vmul.f32 %v6606, %v6612
      %v6616 = vld [vmem:[%s6] sm:$0x1]
      %v6618 = vlaneseq
      %v6619 = vshrl.u32 %v6618, 7
      %v6620 = vsub.s32 0, %v6619
      %v6621 = vrot.slane %v6616, %v6620
      %v6623 = vadd.f32 %v6614, %v6621
      %v6624 = vadd.f32 %v6615, %v6621
      %v6625 = vmax.f32 %v6623, 0.0
      %v6626 = vmax.f32 %v6624, 0.0
      %v6627 = vpack.c.bf16 %v6626, %v6625
      %6628 = vst [vmem:[#allocation4 + $0x50] sm:$0xff] %v6627
      %v6629 = vld [vmem:[#allocation3 + $0x160] sm:$0xff]
      %v6630 = vld [vmem:[#allocation3 + $0x168] sm:$0xff]
      %v6631 = vld [vmem:[%s5] sm:$0x1]
      %v6633 = vlaneseq
      %v6634 = vshrl.u32 %v6633, 7
      %v6635 = vsub.s32 0, %v6634
      %v6636 = vrot.slane %v6631, %v6635
      %v6638 = vmul.f32 %v6629, %v6636
      %v6639 = vmul.f32 %v6630, %v6636
      %v6640 = vld [vmem:[%s6] sm:$0x1]
      %v6642 = vlaneseq
      %v6643 = vshrl.u32 %v6642, 7
      %v6644 = vsub.s32 0, %v6643
      %v6645 = vrot.slane %v6640, %v6644
      %v6647 = vadd.f32 %v6638, %v6645
      %v6648 = vadd.f32 %v6639, %v6645
      %v6649 = vmax.f32 %v6647, 0.0
      %v6650 = vmax.f32 %v6648, 0.0
      %v6651 = vpack.c.bf16 %v6650, %v6649
      %6652 = vst [vmem:[#allocation4 + $0x58] sm:$0xff] %v6651
      %v6653 = vld [vmem:[#allocation3 + $0x180] sm:$0xff]
      %v6654 = vld [vmem:[#allocation3 + $0x188] sm:$0xff]
      %v6655 = vld [vmem:[%s5] sm:$0x1]
      %v6657 = vlaneseq
      %v6658 = vshrl.u32 %v6657, 7
      %v6659 = vsub.s32 0, %v6658
      %v6660 = vrot.slane %v6655, %v6659
      %v6662 = vmul.f32 %v6653, %v6660
      %v6663 = vmul.f32 %v6654, %v6660
      %v6664 = vld [vmem:[%s6] sm:$0x1]
      %v6666 = vlaneseq
      %v6667 = vshrl.u32 %v6666, 7
      %v6668 = vsub.s32 0, %v6667
      %v6669 = vrot.slane %v6664, %v6668
      %v6671 = vadd.f32 %v6662, %v6669
      %v6672 = vadd.f32 %v6663, %v6669
      %v6673 = vmax.f32 %v6671, 0.0
      %v6674 = vmax.f32 %v6672, 0.0
      %v6675 = vpack.c.bf16 %v6674, %v6673
      %6676 = vst [vmem:[#allocation4 + $0x60] sm:$0xff] %v6675
      %v6677 = vld [vmem:[#allocation3 + $0x1a0] sm:$0xff]
      %v6678 = vld [vmem:[#allocation3 + $0x1a8] sm:$0xff]
      %v6679 = vld [vmem:[%s5] sm:$0x1]
      %v6681 = vlaneseq
      %v6682 = vshrl.u32 %v6681, 7
      %v6683 = vsub.s32 0, %v6682
      %v6684 = vrot.slane %v6679, %v6683
      %v6686 = vmul.f32 %v6677, %v6684
      %v6687 = vmul.f32 %v6678, %v6684
      %v6688 = vld [vmem:[%s6] sm:$0x1]
      %v6690 = vlaneseq
      %v6691 = vshrl.u32 %v6690, 7
      %v6692 = vsub.s32 0, %v6691
      %v6693 = vrot.slane %v6688, %v6692
      %v6695 = vadd.f32 %v6686, %v6693
      %v6696 = vadd.f32 %v6687, %v6693
      %v6697 = vmax.f32 %v6695, 0.0
      %v6698 = vmax.f32 %v6696, 0.0
      %v6699 = vpack.c.bf16 %v6698, %v6697
      %6700 = vst [vmem:[#allocation4 + $0x68] sm:$0xff] %v6699
      %v6701 = vld [vmem:[#allocation3 + $0x1c0] sm:$0xff]
      %v6702 = vld [vmem:[#allocation3 + $0x1c8] sm:$0xff]
      %v6703 = vld [vmem:[%s5] sm:$0x1]
      %v6705 = vlaneseq
      %v6706 = vshrl.u32 %v6705, 7
      %v6707 = vsub.s32 0, %v6706
      %v6708 = vrot.slane %v6703, %v6707
      %v6710 = vmul.f32 %v6701, %v6708
      %v6711 = vmul.f32 %v6702, %v6708
      %v6712 = vld [vmem:[%s6] sm:$0x1]
      %v6714 = vlaneseq
      %v6715 = vshrl.u32 %v6714, 7
      %v6716 = vsub.s32 0, %v6715
      %v6717 = vrot.slane %v6712, %v6716
      %v6719 = vadd.f32 %v6710, %v6717
      %v6720 = vadd.f32 %v6711, %v6717
      %v6721 = vmax.f32 %v6719, 0.0
      %v6722 = vmax.f32 %v6720, 0.0
      %v6723 = vpack.c.bf16 %v6722, %v6721
      %6724 = vst [vmem:[#allocation4 + $0x70] sm:$0xff] %v6723
      %v6725 = vld [vmem:[#allocation3 + $0x1e0] sm:$0xff]
      %v6726 = vld [vmem:[#allocation3 + $0x1e8] sm:$0xff]
      %v6727 = vld [vmem:[%s5] sm:$0x1]
      %v6729 = vlaneseq
      %v6730 = vshrl.u32 %v6729, 7
      %v6731 = vsub.s32 0, %v6730
      %v6732 = vrot.slane %v6727, %v6731
      %v6734 = vmul.f32 %v6725, %v6732
      %v6735 = vmul.f32 %v6726, %v6732
      %v6736 = vld [vmem:[%s6] sm:$0x1]
      %v6738 = vlaneseq
      %v6739 = vshrl.u32 %v6738, 7
      %v6740 = vsub.s32 0, %v6739
      %v6741 = vrot.slane %v6736, %v6740
      %v6743 = vadd.f32 %v6734, %v6741
      %v6744 = vadd.f32 %v6735, %v6741
      %v6745 = vmax.f32 %v6743, 0.0
      %v6746 = vmax.f32 %v6744, 0.0
      %v6747 = vpack.c.bf16 %v6746, %v6745
      %6748 = vst [vmem:[#allocation4 + $0x78] sm:$0xff] %v6747
      %v6749 = vld [vmem:[#allocation4] sm:$0xff]
      %v6750 = vld [vmem:[#allocation4 + $0x8] sm:$0xff]
      %v6751 = vld [vmem:[#allocation4 + $0x10] sm:$0xff]
      %v6752 = vld [vmem:[#allocation4 + $0x18] sm:$0xff]
      %v6753 = vld [vmem:[#allocation4 + $0x20] sm:$0xff]
      %v6754 = vld [vmem:[#allocation4 + $0x28] sm:$0xff]
      %v6755 = vld [vmem:[#allocation4 + $0x30] sm:$0xff]
      %v6756 = vld [vmem:[#allocation4 + $0x38] sm:$0xff]
      %v6757 = vld [vmem:[#allocation4 + $0x40] sm:$0xff]
      %v6758 = vld [vmem:[#allocation4 + $0x48] sm:$0xff]
      %v6759 = vld [vmem:[#allocation4 + $0x50] sm:$0xff]
      %v6760 = vld [vmem:[#allocation4 + $0x58] sm:$0xff]
      %v6761 = vld [vmem:[#allocation4 + $0x60] sm:$0xff]
      %v6762 = vld [vmem:[#allocation4 + $0x68] sm:$0xff]
      %v6763 = vld [vmem:[#allocation4 + $0x70] sm:$0xff]
      %v6764 = vld [vmem:[#allocation4 + $0x78] sm:$0xff]
      %v6765 = vunpack.c.l.bf16 %v6749
      %v6766 = vunpack.c.h.bf16 %v6749
      %v6767 = vunpack.c.l.bf16 %v6750
      %v6768 = vunpack.c.h.bf16 %v6750
      %v6769 = vunpack.c.l.bf16 %v6751
      %v6770 = vunpack.c.h.bf16 %v6751
      %v6771 = vunpack.c.l.bf16 %v6752
      %v6772 = vunpack.c.h.bf16 %v6752
      %v6773 = vunpack.c.l.bf16 %v6753
      %v6774 = vunpack.c.h.bf16 %v6753
      %v6775 = vunpack.c.l.bf16 %v6754
      %v6776 = vunpack.c.h.bf16 %v6754
      %v6777 = vunpack.c.l.bf16 %v6755
      %v6778 = vunpack.c.h.bf16 %v6755
      %v6779 = vunpack.c.l.bf16 %v6756
      %v6780 = vunpack.c.h.bf16 %v6756
      %v6781 = vunpack.c.l.bf16 %v6757
      %v6782 = vunpack.c.h.bf16 %v6757
      %v6783 = vunpack.c.l.bf16 %v6758
      %v6784 = vunpack.c.h.bf16 %v6758
      %v6785 = vunpack.c.l.bf16 %v6759
      %v6786 = vunpack.c.h.bf16 %v6759
      %v6787 = vunpack.c.l.bf16 %v6760
      %v6788 = vunpack.c.h.bf16 %v6760
      %v6789 = vunpack.c.l.bf16 %v6761
      %v6790 = vunpack.c.h.bf16 %v6761
      %v6791 = vunpack.c.l.bf16 %v6762
      %v6792 = vunpack.c.h.bf16 %v6762
      %v6793 = vunpack.c.l.bf16 %v6763
      %v6794 = vunpack.c.h.bf16 %v6763
      %v6795 = vunpack.c.l.bf16 %v6764
      %v6796 = vunpack.c.h.bf16 %v6764
      %v6797 = vadd.f32 %v6765, %v6766
      %v6798 = vadd.f32 %v6797, %v6767
      %v6799 = vadd.f32 %v6798, %v6768
      %v6800 = vadd.f32 %v6799, %v6769
      %v6801 = vadd.f32 %v6800, %v6770
      %v6802 = vadd.f32 %v6801, %v6771
      %v6803 = vadd.f32 %v6802, %v6772
      %v6804 = vadd.f32 %v6803, %v6773
      %v6805 = vadd.f32 %v6804, %v6774
      %v6806 = vadd.f32 %v6805, %v6775
      %v6807 = vadd.f32 %v6806, %v6776
      %v6808 = vadd.f32 %v6807, %v6777
      %v6809 = vadd.f32 %v6808, %v6778
      %v6810 = vadd.f32 %v6809, %v6779
      %v6811 = vadd.f32 %v6810, %v6780
      %v6812 = vadd.f32 %v6811, %v6781
      %v6813 = vadd.f32 %v6812, %v6782
      %v6814 = vadd.f32 %v6813, %v6783
      %v6815 = vadd.f32 %v6814, %v6784
      %v6816 = vadd.f32 %v6815, %v6785
      %v6817 = vadd.f32 %v6816, %v6786
      %v6818 = vadd.f32 %v6817, %v6787
      %v6819 = vadd.f32 %v6818, %v6788
      %v6820 = vadd.f32 %v6819, %v6789
      %v6821 = vadd.f32 %v6820, %v6790
      %v6822 = vadd.f32 %v6821, %v6791
      %v6823 = vadd.f32 %v6822, %v6792
      %v6824 = vadd.f32 %v6823, %v6793
      %v6825 = vadd.f32 %v6824, %v6794
      %v6826 = vadd.f32 %v6825, %v6795
      %v6827 = vadd.f32 %v6826, %v6796
      %v6828 = vrot.slane %v6827, 4
      %v6829 = vadd.f32 %v6827, %v6828
      %v6830 = vrot.slane %v6829, 2
      %v6831 = vadd.f32 %v6829, %v6830
      %v6832 = vrot.slane %v6831, 1
      %v6833 = vadd.f32 %v6831, %v6832
      %v6834 = vmul.f32 %v6833, 0.00390625
      %v6835 = vld [vmem:[%s7] sm:$0xff]
      %v6836 = vld [vmem:[%s7 + $0x8] sm:$0xff]
      %v6837 = vld [vmem:[%s7 + $0x10] sm:$0xff]
      %v6838 = vld [vmem:[%s7 + $0x18] sm:$0xff]
      %v6839 = vld [vmem:[%s7 + $0x20] sm:$0xff]
      %v6840 = vld [vmem:[%s7 + $0x28] sm:$0xff]
      %v6841 = vld [vmem:[%s7 + $0x30] sm:$0xff]
      %v6842 = vld [vmem:[%s7 + $0x38] sm:$0xff]
      %v6843 = vld [vmem:[%s7 + $0x40] sm:$0xff]
      %v6844 = vld [vmem:[%s7 + $0x48] sm:$0xff]
      %v6845 = vld [vmem:[%s7 + $0x50] sm:$0xff]
      %v6846 = vld [vmem:[%s7 + $0x58] sm:$0xff]
      %v6847 = vld [vmem:[%s7 + $0x60] sm:$0xff]
      %v6848 = vld [vmem:[%s7 + $0x68] sm:$0xff]
      %v6849 = vld [vmem:[%s7 + $0x70] sm:$0xff]
      %v6850 = vld [vmem:[%s7 + $0x78] sm:$0xff]
      %v6851 = vld [vmem:[%s7 + $0x80] sm:$0xff]
      %v6852 = vld [vmem:[%s7 + $0x88] sm:$0xff]
      %v6853 = vld [vmem:[%s7 + $0x90] sm:$0xff]
      %v6854 = vld [vmem:[%s7 + $0x98] sm:$0xff]
      %v6855 = vld [vmem:[%s7 + $0xa0] sm:$0xff]
      %v6856 = vld [vmem:[%s7 + $0xa8] sm:$0xff]
      %v6857 = vld [vmem:[%s7 + $0xb0] sm:$0xff]
      %v6858 = vld [vmem:[%s7 + $0xb8] sm:$0xff]
      %v6859 = vld [vmem:[%s7 + $0xc0] sm:$0xff]
      %v6860 = vld [vmem:[%s7 + $0xc8] sm:$0xff]
      %v6861 = vld [vmem:[%s7 + $0xd0] sm:$0xff]
      %v6862 = vld [vmem:[%s7 + $0xd8] sm:$0xff]
      %v6863 = vld [vmem:[%s7 + $0xe0] sm:$0xff]
      %v6864 = vld [vmem:[%s7 + $0xe8] sm:$0xff]
      %v6865 = vld [vmem:[%s7 + $0xf0] sm:$0xff]
      %v6866 = vld [vmem:[%s7 + $0xf8] sm:$0xff]
      %v6867 = vunpack.c.l.bf16 %v6835
      %v6868 = vunpack.c.h.bf16 %v6835
      %v6869 = vunpack.c.l.bf16 %v6836
      %v6870 = vunpack.c.h.bf16 %v6836
      %v6871 = vunpack.c.l.bf16 %v6837
      %v6872 = vunpack.c.h.bf16 %v6837
      %v6873 = vunpack.c.l.bf16 %v6838
      %v6874 = vunpack.c.h.bf16 %v6838
      %v6875 = vunpack.c.l.bf16 %v6839
      %v6876 = vunpack.c.h.bf16 %v6839
      %v6877 = vunpack.c.l.bf16 %v6840
      %v6878 = vunpack.c.h.bf16 %v6840
      %v6879 = vunpack.c.l.bf16 %v6841
      %v6880 = vunpack.c.h.bf16 %v6841
      %v6881 = vunpack.c.l.bf16 %v6842
      %v6882 = vunpack.c.h.bf16 %v6842
      %v6883 = vunpack.c.l.bf16 %v6843
      %v6884 = vunpack.c.h.bf16 %v6843
      %v6885 = vunpack.c.l.bf16 %v6844
      %v6886 = vunpack.c.h.bf16 %v6844
      %v6887 = vunpack.c.l.bf16 %v6845
      %v6888 = vunpack.c.h.bf16 %v6845
      %v6889 = vunpack.c.l.bf16 %v6846
      %v6890 = vunpack.c.h.bf16 %v6846
      %v6891 = vunpack.c.l.bf16 %v6847
      %v6892 = vunpack.c.h.bf16 %v6847
      %v6893 = vunpack.c.l.bf16 %v6848
      %v6894 = vunpack.c.h.bf16 %v6848
      %v6895 = vunpack.c.l.bf16 %v6849
      %v6896 = vunpack.c.h.bf16 %v6849
      %v6897 = vunpack.c.l.bf16 %v6850
      %v6898 = vunpack.c.h.bf16 %v6850
      %v6899 = vunpack.c.l.bf16 %v6851
      %v6900 = vunpack.c.h.bf16 %v6851
      %v6901 = vunpack.c.l.bf16 %v6852
      %v6902 = vunpack.c.h.bf16 %v6852
      %v6903 = vunpack.c.l.bf16 %v6853
      %v6904 = vunpack.c.h.bf16 %v6853
      %v6905 = vunpack.c.l.bf16 %v6854
      %v6906 = vunpack.c.h.bf16 %v6854
      %v6907 = vunpack.c.l.bf16 %v6855
      %v6908 = vunpack.c.h.bf16 %v6855
      %v6909 = vunpack.c.l.bf16 %v6856
      %v6910 = vunpack.c.h.bf16 %v6856
      %v6911 = vunpack.c.l.bf16 %v6857
      %v6912 = vunpack.c.h.bf16 %v6857
      %v6913 = vunpack.c.l.bf16 %v6858
      %v6914 = vunpack.c.h.bf16 %v6858
      %v6915 = vunpack.c.l.bf16 %v6859
      %v6916 = vunpack.c.h.bf16 %v6859
      %v6917 = vunpack.c.l.bf16 %v6860
      %v6918 = vunpack.c.h.bf16 %v6860
      %v6919 = vunpack.c.l.bf16 %v6861
      %v6920 = vunpack.c.h.bf16 %v6861
      %v6921 = vunpack.c.l.bf16 %v6862
      %v6922 = vunpack.c.h.bf16 %v6862
      %v6923 = vunpack.c.l.bf16 %v6863
      %v6924 = vunpack.c.h.bf16 %v6863
      %v6925 = vunpack.c.l.bf16 %v6864
      %v6926 = vunpack.c.h.bf16 %v6864
      %v6927 = vunpack.c.l.bf16 %v6865
      %v6928 = vunpack.c.h.bf16 %v6865
      %v6929 = vunpack.c.l.bf16 %v6866
      %v6930 = vunpack.c.h.bf16 %v6866
      %6931 = vmatprep.subr.mxu0 %v6868
      %6932 = vmatpush1.msra.mxu0 %v6867
      %6933 = vmatprep.subr.mxu0 %v6872
      %6934 = vmatpush1.msra.mxu0 %v6871
      %6935 = vmatprep.subr.mxu0 %v6876
      %6936 = vmatpush1.msra.mxu0 %v6875
      %6937 = vmatprep.subr.mxu0 %v6880
      %6938 = vmatpush1.msra.mxu0 %v6879
      %6939 = vmatprep.subr.mxu0 %v6884
      %6940 = vmatpush1.msra.mxu0 %v6883
      %6941 = vmatprep.subr.mxu0 %v6888
      %6942 = vmatpush1.msra.mxu0 %v6887
      %6943 = vmatprep.subr.mxu0 %v6892
      %6944 = vmatpush1.msra.mxu0 %v6891
      %6945 = vmatprep.subr.mxu0 %v6896
      %6946 = vmatpush1.msra.mxu0 %v6895
      %6947 = vmatprep.subr.mxu0 %v6900
      %6948 = vmatpush1.msra.mxu0 %v6899
      %6949 = vmatprep.subr.mxu0 %v6904
      %6950 = vmatpush1.msra.mxu0 %v6903
      %6951 = vmatprep.subr.mxu0 %v6908
      %6952 = vmatpush1.msra.mxu0 %v6907
      %6953 = vmatprep.subr.mxu0 %v6912
      %6954 = vmatpush1.msra.mxu0 %v6911
      %6955 = vmatprep.subr.mxu0 %v6916
      %6956 = vmatpush1.msra.mxu0 %v6915
      %6957 = vmatprep.subr.mxu0 %v6920
      %6958 = vmatpush1.msra.mxu0 %v6919
      %6959 = vmatprep.subr.mxu0 %v6924
      %6960 = vmatpush1.msra.mxu0 %v6923
      %6961 = vmatprep.subr.mxu0 %v6928
      %6962 = vmatpush1.msra.mxu0 %v6927
      %6963 = vmatprep.subr.mxu0 0.0
      %6964 = vmatpush1.msra.mxu0 0.0
      %6965 = vmatprep.subr.mxu0 0.0
      %6966 = vmatpush1.msra.mxu0 0.0
      %6967 = vmatprep.subr.mxu0 0.0
      %6968 = vmatpush1.msra.mxu0 0.0
      %6969 = vmatprep.subr.mxu0 0.0
      %6970 = vmatpush1.msra.mxu0 0.0
      %6971 = vmatprep.subr.mxu0 0.0
      %6972 = vmatpush1.msra.mxu0 0.0
      %6973 = vmatprep.subr.mxu0 0.0
      %6974 = vmatpush1.msra.mxu0 0.0
      %6975 = vmatprep.subr.mxu0 0.0
      %6976 = vmatpush1.msra.mxu0 0.0
      %6977 = vmatprep.subr.mxu0 0.0
      %6978 = vmatpush1.msra.mxu0 0.0
      %6979 = vmatprep.subr.mxu0 0.0
      %6980 = vmatpush1.msra.mxu0 0.0
      %6981 = vmatprep.subr.mxu0 0.0
      %6982 = vmatpush1.msra.mxu0 0.0
      %6983 = vmatprep.subr.mxu0 0.0
      %6984 = vmatpush1.msra.mxu0 0.0
      %6985 = vmatprep.subr.mxu0 0.0
      %6986 = vmatpush1.msra.mxu0 0.0
      %6987 = vmatprep.subr.mxu0 0.0
      %6988 = vmatpush1.msra.mxu0 0.0
      %6989 = vmatprep.subr.mxu0 0.0
      %6990 = vmatpush1.msra.mxu0 0.0
      %6991 = vmatprep.subr.mxu0 0.0
      %6992 = vmatpush1.msra.mxu0 0.0
      %6993 = vmatprep.subr.mxu0 0.0
      %6994 = vmatpush1.msra.mxu0 0.0
      %6995 = vmatprep.mubr.f32.mxu0 0.0
      %6996 = vmatmul.mubr.f32.gmra.mrb[0].mxu0 %v6834
      %v6997 = vpop.f32.mrb[0].mxu0
      %v6998 = vadd.f32 0.0, %v6997
      %v6999 = vpop.f32.mrb[0].mxu0
      %v7000 = vadd.f32 0.0, %v6999
      %7001 = vdwg.mxu0
      %7002 = vmatprep.subr.mxu0 %v6870
      %7003 = vmatpush1.msra.mxu0 %v6869
      %7004 = vmatprep.subr.mxu0 %v6874
      %7005 = vmatpush1.msra.mxu0 %v6873
      %7006 = vmatprep.subr.mxu0 %v6878
      %7007 = vmatpush1.msra.mxu0 %v6877
      %7008 = vmatprep.subr.mxu0 %v6882
      %7009 = vmatpush1.msra.mxu0 %v6881
      %7010 = vmatprep.subr.mxu0 %v6886
      %7011 = vmatpush1.msra.mxu0 %v6885
      %7012 = vmatprep.subr.mxu0 %v6890
      %7013 = vmatpush1.msra.mxu0 %v6889
      %7014 = vmatprep.subr.mxu0 %v6894
      %7015 = vmatpush1.msra.mxu0 %v6893
      %7016 = vmatprep.subr.mxu0 %v6898
      %7017 = vmatpush1.msra.mxu0 %v6897
      %7018 = vmatprep.subr.mxu0 %v6902
      %7019 = vmatpush1.msra.mxu0 %v6901
      %7020 = vmatprep.subr.mxu0 %v6906
      %7021 = vmatpush1.msra.mxu0 %v6905
      %7022 = vmatprep.subr.mxu0 %v6910
      %7023 = vmatpush1.msra.mxu0 %v6909
      %7024 = vmatprep.subr.mxu0 %v6914
      %7025 = vmatpush1.msra.mxu0 %v6913
      %7026 = vmatprep.subr.mxu0 %v6918
      %7027 = vmatpush1.msra.mxu0 %v6917
      %7028 = vmatprep.subr.mxu0 %v6922
      %7029 = vmatpush1.msra.mxu0 %v6921
      %7030 = vmatprep.subr.mxu0 %v6926
      %7031 = vmatpush1.msra.mxu0 %v6925
      %7032 = vmatprep.subr.mxu0 %v6930
      %7033 = vmatpush1.msra.mxu0 %v6929
      %7034 = vmatprep.subr.mxu0 0.0
      %7035 = vmatpush1.msra.mxu0 0.0
      %7036 = vmatprep.subr.mxu0 0.0
      %7037 = vmatpush1.msra.mxu0 0.0
      %7038 = vmatprep.subr.mxu0 0.0
      %7039 = vmatpush1.msra.mxu0 0.0
      %7040 = vmatprep.subr.mxu0 0.0
      %7041 = vmatpush1.msra.mxu0 0.0
      %7042 = vmatprep.subr.mxu0 0.0
      %7043 = vmatpush1.msra.mxu0 0.0
      %7044 = vmatprep.subr.mxu0 0.0
      %7045 = vmatpush1.msra.mxu0 0.0
      %7046 = vmatprep.subr.mxu0 0.0
      %7047 = vmatpush1.msra.mxu0 0.0
      %7048 = vmatprep.subr.mxu0 0.0
      %7049 = vmatpush1.msra.mxu0 0.0
      %7050 = vmatprep.subr.mxu0 0.0
      %7051 = vmatpush1.msra.mxu0 0.0
      %7052 = vmatprep.subr.mxu0 0.0
      %7053 = vmatpush1.msra.mxu0 0.0
      %7054 = vmatprep.subr.mxu0 0.0
      %7055 = vmatpush1.msra.mxu0 0.0
      %7056 = vmatprep.subr.mxu0 0.0
      %7057 = vmatpush1.msra.mxu0 0.0
      %7058 = vmatprep.subr.mxu0 0.0
      %7059 = vmatpush1.msra.mxu0 0.0
      %7060 = vmatprep.subr.mxu0 0.0
      %7061 = vmatpush1.msra.mxu0 0.0
      %7062 = vmatprep.subr.mxu0 0.0
      %7063 = vmatpush1.msra.mxu0 0.0
      %7064 = vmatprep.subr.mxu0 0.0
      %7065 = vmatpush1.msra.mxu0 0.0
      %7066 = vmatprep.mubr.f32.mxu0 0.0
      %7067 = vmatmul.mubr.f32.gmra.mrb[0].mxu0 %v6834
      %v7068 = vpop.f32.mrb[0].mxu0
      %v7069 = vadd.f32 0.0, %v7068
      %v7070 = vpop.f32.mrb[0].mxu0
      %v7071 = vadd.f32 0.0, %v7070
      %7072 = vdwg.mxu0
      %v7073 = vld [vmem:[%s8] sm:$0xf]
      %v7075 = vlaneseq
      %v7076 = vshrl.u32 %v7075, 7
      %v7077 = vsub.s32 0, %v7076
      %v7078 = vrot.slane %v7073, %v7077
      %v7079 = vlaneseq
      %v7080 = vshrl.u32 %v7079, 7
      %v7081 = vsub.s32 1, %v7080
      %v7082 = vrot.slane %v7073, %v7081
      %v7083 = vlaneseq
      %v7084 = vshrl.u32 %v7083, 7
      %v7085 = vsub.s32 2, %v7084
      %v7086 = vrot.slane %v7073, %v7085
      %v7087 = vlaneseq
      %v7088 = vshrl.u32 %v7087, 7
      %v7089 = vsub.s32 3, %v7088
      %v7090 = vrot.slane %v7073, %v7089
      %v7095 = vmul.f32 %v6998, %v7078
      %v7096 = vmul.f32 %v7000, %v7082
      %v7097 = vmul.f32 %v7069, %v7086
      %v7098 = vmul.f32 %v7071, %v7090
      %v7099 = vld [vmem:[%s9] sm:$0xf]
      %v7101 = vlaneseq
      %v7102 = vshrl.u32 %v7101, 7
      %v7103 = vsub.s32 0, %v7102
      %v7104 = vrot.slane %v7099, %v7103
      %v7105 = vlaneseq
      %v7106 = vshrl.u32 %v7105, 7
      %v7107 = vsub.s32 1, %v7106
      %v7108 = vrot.slane %v7099, %v7107
      %v7109 = vlaneseq
      %v7110 = vshrl.u32 %v7109, 7
      %v7111 = vsub.s32 2, %v7110
      %v7112 = vrot.slane %v7099, %v7111
      %v7113 = vlaneseq
      %v7114 = vshrl.u32 %v7113, 7
      %v7115 = vsub.s32 3, %v7114
      %v7116 = vrot.slane %v7099, %v7115
      %v7121 = vadd.f32 %v7095, %v7104
      %v7122 = vadd.f32 %v7096, %v7108
      %v7123 = vadd.f32 %v7097, %v7112
      %v7124 = vadd.f32 %v7098, %v7116
      %v7125 = vld [vmem:[%s10] sm:$0xff]
      %v7126 = vld [vmem:[%s10 + $0x8] sm:$0xff]
      %v7127 = vld [vmem:[%s10 + $0x10] sm:$0xff]
      %v7128 = vld [vmem:[%s10 + $0x18] sm:$0xff]
      %v7129 = vld [vmem:[%s10 + $0x20] sm:$0xff]
      %v7130 = vld [vmem:[%s10 + $0x28] sm:$0xff]
      %v7131 = vld [vmem:[%s10 + $0x30] sm:$0xff]
      %v7132 = vld [vmem:[%s10 + $0x38] sm:$0xff]
      %v7133 = vld [vmem:[%s10 + $0x40] sm:$0xff]
      %v7134 = vld [vmem:[%s10 + $0x48] sm:$0xff]
      %v7135 = vld [vmem:[%s10 + $0x50] sm:$0xff]
      %v7136 = vld [vmem:[%s10 + $0x58] sm:$0xff]
      %v7137 = vld [vmem:[%s10 + $0x60] sm:$0xff]
      %v7138 = vld [vmem:[%s10 + $0x68] sm:$0xff]
      %v7139 = vld [vmem:[%s10 + $0x70] sm:$0xff]
      %v7140 = vld [vmem:[%s10 + $0x78] sm:$0xff]
      %v7141 = vld [vmem:[%s10 + $0x80] sm:$0xff]
      %v7142 = vld [vmem:[%s10 + $0x88] sm:$0xff]
      %v7143 = vld [vmem:[%s10 + $0x90] sm:$0xff]
      %v7144 = vld [vmem:[%s10 + $0x98] sm:$0xff]
      %v7145 = vld [vmem:[%s10 + $0xa0] sm:$0xff]
      %v7146 = vld [vmem:[%s10 + $0xa8] sm:$0xff]
      %v7147 = vld [vmem:[%s10 + $0xb0] sm:$0xff]
      %v7148 = vld [vmem:[%s10 + $0xb8] sm:$0xff]
      %v7149 = vld [vmem:[%s10 + $0xc0] sm:$0xff]
      %v7150 = vld [vmem:[%s10 + $0xc8] sm:$0xff]
      %v7151 = vld [vmem:[%s10 + $0xd0] sm:$0xff]
      %v7152 = vld [vmem:[%s10 + $0xd8] sm:$0xff]
      %v7153 = vld [vmem:[%s10 + $0xe0] sm:$0xff]
      %v7154 = vld [vmem:[%s10 + $0xe8] sm:$0xff]
      %v7155 = vld [vmem:[%s10 + $0xf0] sm:$0xff]
      %v7156 = vld [vmem:[%s10 + $0xf8] sm:$0xff]
      %v7157 = vld [vmem:[%s10 + $0x100] sm:$0xff]
      %v7158 = vld [vmem:[%s10 + $0x108] sm:$0xff]
      %v7159 = vld [vmem:[%s10 + $0x110] sm:$0xff]
      %v7160 = vld [vmem:[%s10 + $0x118] sm:$0xff]
      %v7161 = vld [vmem:[%s10 + $0x120] sm:$0xff]
      %v7162 = vld [vmem:[%s10 + $0x128] sm:$0xff]
      %v7163 = vld [vmem:[%s10 + $0x130] sm:$0xff]
      %v7164 = vld [vmem:[%s10 + $0x138] sm:$0xff]
      %v7165 = vld [vmem:[%s10 + $0x140] sm:$0xff]
      %v7166 = vld [vmem:[%s10 + $0x148] sm:$0xff]
      %v7167 = vld [vmem:[%s10 + $0x150] sm:$0xff]
      %v7168 = vld [vmem:[%s10 + $0x158] sm:$0xff]
      %v7169 = vld [vmem:[%s10 + $0x160] sm:$0xff]
      %v7170 = vld [vmem:[%s10 + $0x168] sm:$0xff]
      %v7171 = vld [vmem:[%s10 + $0x170] sm:$0xff]
      %v7172 = vld [vmem:[%s10 + $0x178] sm:$0xff]
      %v7173 = vld [vmem:[%s10 + $0x180] sm:$0xff]
      %v7174 = vld [vmem:[%s10 + $0x188] sm:$0xff]
      %v7175 = vld [vmem:[%s10 + $0x190] sm:$0xff]
      %v7176 = vld [vmem:[%s10 + $0x198] sm:$0xff]
      %v7177 = vld [vmem:[%s10 + $0x1a0] sm:$0xff]
      %v7178 = vld [vmem:[%s10 + $0x1a8] sm:$0xff]
      %v7179 = vld [vmem:[%s10 + $0x1b0] sm:$0xff]
      %v7180 = vld [vmem:[%s10 + $0x1b8] sm:$0xff]
      %v7181 = vld [vmem:[%s10 + $0x1c0] sm:$0xff]
      %v7182 = vld [vmem:[%s10 + $0x1c8] sm:$0xff]
      %v7183 = vld [vmem:[%s10 + $0x1d0] sm:$0xff]
      %v7184 = vld [vmem:[%s10 + $0x1d8] sm:$0xff]
      %v7185 = vld [vmem:[%s10 + $0x1e0] sm:$0xff]
      %v7186 = vld [vmem:[%s10 + $0x1e8] sm:$0xff]
      %v7187 = vld [vmem:[%s10 + $0x1f0] sm:$0xff]
      %v7188 = vld [vmem:[%s10 + $0x1f8] sm:$0xff]
      %v7189 = vld [vmem:[%s11] sm:$0x1]
      %7190 = vmatprep.subr.mxu0 0.0
      %7191 = vmatpush1.msra.mxu0 %v7125
      %7192 = vmatprep.subr.mxu0 0.0
      %7193 = vmatpush1.msra.mxu0 %v7126
      %7194 = vmatprep.subr.mxu0 0.0
      %7195 = vmatpush1.msra.mxu0 %v7127
      %7196 = vmatprep.subr.mxu0 0.0
      %7197 = vmatpush1.msra.mxu0 %v7128
      %7198 = vmatprep.subr.mxu0 0.0
      %7199 = vmatpush1.msra.mxu0 %v7129
      %7200 = vmatprep.subr.mxu0 0.0
      %7201 = vmatpush1.msra.mxu0 %v7130
      %7202 = vmatprep.subr.mxu0 0.0
      %7203 = vmatpush1.msra.mxu0 %v7131
      %7204 = vmatprep.subr.mxu0 0.0
      %7205 = vmatpush1.msra.mxu0 %v7132
      %7206 = vmatprep.subr.mxu0 0.0
      %7207 = vmatpush1.msra.mxu0 %v7133
      %7208 = vmatprep.subr.mxu0 0.0
      %7209 = vmatpush1.msra.mxu0 %v7134
      %7210 = vmatprep.subr.mxu0 0.0
      %7211 = vmatpush1.msra.mxu0 %v7135
      %7212 = vmatprep.subr.mxu0 0.0
      %7213 = vmatpush1.msra.mxu0 %v7136
      %7214 = vmatprep.subr.mxu0 0.0
      %7215 = vmatpush1.msra.mxu0 %v7137
      %7216 = vmatprep.subr.mxu0 0.0
      %7217 = vmatpush1.msra.mxu0 %v7138
      %7218 = vmatprep.subr.mxu0 0.0
      %7219 = vmatpush1.msra.mxu0 %v7139
      %7220 = vmatprep.subr.mxu0 0.0
      %7221 = vmatpush1.msra.mxu0 %v7140
      %7222 = vmatprep.subr.mxu0 0.0
      %7223 = vmatpush1.msra.mxu0 %v7141
      %7224 = vmatprep.subr.mxu0 0.0
      %7225 = vmatpush1.msra.mxu0 %v7142
      %7226 = vmatprep.subr.mxu0 0.0
      %7227 = vmatpush1.msra.mxu0 %v7143
      %7228 = vmatprep.subr.mxu0 0.0
      %7229 = vmatpush1.msra.mxu0 %v7144
      %7230 = vmatprep.subr.mxu0 0.0
      %7231 = vmatpush1.msra.mxu0 %v7145
      %7232 = vmatprep.subr.mxu0 0.0
      %7233 = vmatpush1.msra.mxu0 %v7146
      %7234 = vmatprep.subr.mxu0 0.0
      %7235 = vmatpush1.msra.mxu0 %v7147
      %7236 = vmatprep.subr.mxu0 0.0
      %7237 = vmatpush1.msra.mxu0 %v7148
      %7238 = vmatprep.subr.mxu0 0.0
      %7239 = vmatpush1.msra.mxu0 %v7149
      %7240 = vmatprep.subr.mxu0 0.0
      %7241 = vmatpush1.msra.mxu0 %v7150
      %7242 = vmatprep.subr.mxu0 0.0
      %7243 = vmatpush1.msra.mxu0 %v7151
      %7244 = vmatprep.subr.mxu0 0.0
      %7245 = vmatpush1.msra.mxu0 %v7152
      %7246 = vmatprep.subr.mxu0 0.0
      %7247 = vmatpush1.msra.mxu0 %v7153
      %7248 = vmatprep.subr.mxu0 0.0
      %7249 = vmatpush1.msra.mxu0 %v7154
      %7250 = vmatprep.subr.mxu0 0.0
      %7251 = vmatpush1.msra.mxu0 %v7155
      %7252 = vmatprep.subr.mxu0 0.0
      %7253 = vmatpush1.msra.mxu0 %v7156
      %7254 = vmatprep.mubr.f32.mxu0 %v7122
      %7255 = vmatmul.mubr.f32.gmra.mrb[0].mxu0 %v7121
      %v7256 = vpop.f32.mrb[0].mxu0
      %v7257 = vadd.f32 %v7189, %v7256
      %v7258 = vpop.f32.mrb[0].mxu0
      %7259 = vdwg.mxu0
      %7260 = vmatprep.subr.mxu0 0.0
      %7261 = vmatpush1.msra.mxu0 %v7157
      %7262 = vmatprep.subr.mxu0 0.0
      %7263 = vmatpush1.msra.mxu0 %v7158
      %7264 = vmatprep.subr.mxu0 0.0
      %7265 = vmatpush1.msra.mxu0 %v7159
      %7266 = vmatprep.subr.mxu0 0.0
      %7267 = vmatpush1.msra.mxu0 %v7160
      %7268 = vmatprep.subr.mxu0 0.0
      %7269 = vmatpush1.msra.mxu0 %v7161
      %7270 = vmatprep.subr.mxu0 0.0
      %7271 = vmatpush1.msra.mxu0 %v7162
      %7272 = vmatprep.subr.mxu0 0.0
      %7273 = vmatpush1.msra.mxu0 %v7163
      %7274 = vmatprep.subr.mxu0 0.0
      %7275 = vmatpush1.msra.mxu0 %v7164
      %7276 = vmatprep.subr.mxu0 0.0
      %7277 = vmatpush1.msra.mxu0 %v7165
      %7278 = vmatprep.subr.mxu0 0.0
      %7279 = vmatpush1.msra.mxu0 %v7166
      %7280 = vmatprep.subr.mxu0 0.0
      %7281 = vmatpush1.msra.mxu0 %v7167
      %7282 = vmatprep.subr.mxu0 0.0
      %7283 = vmatpush1.msra.mxu0 %v7168
      %7284 = vmatprep.subr.mxu0 0.0
      %7285 = vmatpush1.msra.mxu0 %v7169
      %7286 = vmatprep.subr.mxu0 0.0
      %7287 = vmatpush1.msra.mxu0 %v7170
      %7288 = vmatprep.subr.mxu0 0.0
      %7289 = vmatpush1.msra.mxu0 %v7171
      %7290 = vmatprep.subr.mxu0 0.0
      %7291 = vmatpush1.msra.mxu0 %v7172
      %7292 = vmatprep.subr.mxu0 0.0
      %7293 = vmatpush1.msra.mxu0 %v7173
      %7294 = vmatprep.subr.mxu0 0.0
      %7295 = vmatpush1.msra.mxu0 %v7174
      %7296 = vmatprep.subr.mxu0 0.0
      %7297 = vmatpush1.msra.mxu0 %v7175
      %7298 = vmatprep.subr.mxu0 0.0
      %7299 = vmatpush1.msra.mxu0 %v7176
      %7300 = vmatprep.subr.mxu0 0.0
      %7301 = vmatpush1.msra.mxu0 %v7177
      %7302 = vmatprep.subr.mxu0 0.0
      %7303 = vmatpush1.msra.mxu0 %v7178
      %7304 = vmatprep.subr.mxu0 0.0
      %7305 = vmatpush1.msra.mxu0 %v7179
      %7306 = vmatprep.subr.mxu0 0.0
      %7307 = vmatpush1.msra.mxu0 %v7180
      %7308 = vmatprep.subr.mxu0 0.0
      %7309 = vmatpush1.msra.mxu0 %v7181
      %7310 = vmatprep.subr.mxu0 0.0
      %7311 = vmatpush1.msra.mxu0 %v7182
      %7312 = vmatprep.subr.mxu0 0.0
      %7313 = vmatpush1.msra.mxu0 %v7183
      %7314 = vmatprep.subr.mxu0 0.0
      %7315 = vmatpush1.msra.mxu0 %v7184
      %7316 = vmatprep.subr.mxu0 0.0
      %7317 = vmatpush1.msra.mxu0 %v7185
      %7318 = vmatprep.subr.mxu0 0.0
      %7319 = vmatpush1.msra.mxu0 %v7186
      %7320 = vmatprep.subr.mxu0 0.0
      %7321 = vmatpush1.msra.mxu0 %v7187
      %7322 = vmatprep.subr.mxu0 0.0
      %7323 = vmatpush1.msra.mxu0 %v7188
      %7324 = vmatprep.mubr.f32.mxu0 %v7124
      %7325 = vmatmul.mubr.f32.gmra.mrb[0].mxu0 %v7123
      %v7326 = vpop.f32.mrb[0].mxu0
      %v7327 = vadd.f32 %v7257, %v7326
      %v7328 = vpop.f32.mrb[0].mxu0
      %7329 = vdwg.mxu0
      %v7330 = vmax.f32 %v7327, 0.0
      %v7331 = vld [vmem:[%s12] sm:$0xff]
      %v7332 = vld [vmem:[%s12 + $0x8] sm:$0xff]
      %v7333 = vld [vmem:[%s12 + $0x10] sm:$0xff]
      %v7334 = vld [vmem:[%s12 + $0x18] sm:$0xff]
      %v7335 = vld [vmem:[%s12 + $0x20] sm:$0xff]
      %v7336 = vld [vmem:[%s12 + $0x28] sm:$0xff]
      %v7337 = vld [vmem:[%s12 + $0x30] sm:$0xff]
      %v7338 = vld [vmem:[%s12 + $0x38] sm:$0xff]
      %v7339 = vld [vmem:[%s12 + $0x40] sm:$0xff]
      %v7340 = vld [vmem:[%s12 + $0x48] sm:$0xff]
      %v7341 = vld [vmem:[%s12 + $0x50] sm:$0xff]
      %v7342 = vld [vmem:[%s12 + $0x58] sm:$0xff]
      %v7343 = vld [vmem:[%s12 + $0x60] sm:$0xff]
      %v7344 = vld [vmem:[%s12 + $0x68] sm:$0xff]
      %v7345 = vld [vmem:[%s12 + $0x70] sm:$0xff]
      %v7346 = vld [vmem:[%s12 + $0x78] sm:$0xff]
      %v7347 = vld [vmem:[%s13] sm:$0xf]
      %v7349 = vlaneseq
      %v7350 = vshrl.u32 %v7349, 7
      %v7351 = vsub.s32 0, %v7350
      %v7352 = vrot.slane %v7347, %v7351
      %v7353 = vlaneseq
      %v7354 = vshrl.u32 %v7353, 7
      %v7355 = vsub.s32 1, %v7354
      %v7356 = vrot.slane %v7347, %v7355
      %v7357 = vlaneseq
      %v7358 = vshrl.u32 %v7357, 7
      %v7359 = vsub.s32 2, %v7358
      %v7360 = vrot.slane %v7347, %v7359
      %v7361 = vlaneseq
      %v7362 = vshrl.u32 %v7361, 7
      %v7363 = vsub.s32 3, %v7362
      %v7364 = vrot.slane %v7347, %v7363
      %vm7369 = vcmask 261120
      %v7371 = vsel %vm7369, %v7330, 0
      %7373 = vmatprep.subr.mxu0 %v7332
      %7374 = vmatpush1.msra.mxu0 %v7331
      %7375 = vmatprep.subr.mxu0 %v7336
      %7376 = vmatpush1.msra.mxu0 %v7335
      %7377 = vmatprep.subr.mxu0 %v7340
      %7378 = vmatpush1.msra.mxu0 %v7339
      %7379 = vmatprep.subr.mxu0 %v7344
      %7380 = vmatpush1.msra.mxu0 %v7343
      %7381 = vmatprep.subr.mxu0 0.0
      %7382 = vmatpush1.msra.mxu0 0.0
      %7383 = vmatprep.subr.mxu0 0.0
      %7384 = vmatpush1.msra.mxu0 0.0
      %7385 = vmatprep.subr.mxu0 0.0
      %7386 = vmatpush1.msra.mxu0 0.0
      %7387 = vmatprep.subr.mxu0 0.0
      %7388 = vmatpush1.msra.mxu0 0.0
      %7389 = vmatprep.subr.mxu0 0.0
      %7390 = vmatpush1.msra.mxu0 0.0
      %7391 = vmatprep.subr.mxu0 0.0
      %7392 = vmatpush1.msra.mxu0 0.0
      %7393 = vmatprep.subr.mxu0 0.0
      %7394 = vmatpush1.msra.mxu0 0.0
      %7395 = vmatprep.subr.mxu0 0.0
      %7396 = vmatpush1.msra.mxu0 0.0
      %7397 = vmatprep.subr.mxu0 0.0
      %7398 = vmatpush1.msra.mxu0 0.0
      %7399 = vmatprep.subr.mxu0 0.0
      %7400 = vmatpush1.msra.mxu0 0.0
      %7401 = vmatprep.subr.mxu0 0.0
      %7402 = vmatpush1.msra.mxu0 0.0
      %7403 = vmatprep.subr.mxu0 0.0
      %7404 = vmatpush1.msra.mxu0 0.0
      %7405 = vmatprep.subr.mxu0 0.0
      %7406 = vmatpush1.msra.mxu0 0.0
      %7407 = vmatprep.subr.mxu0 0.0
      %7408 = vmatpush1.msra.mxu0 0.0
      %7409 = vmatprep.subr.mxu0 0.0
      %7410 = vmatpush1.msra.mxu0 0.0
      %7411 = vmatprep.subr.mxu0 0.0
      %7412 = vmatpush1.msra.mxu0 0.0
      %7413 = vmatprep.subr.mxu0 0.0
      %7414 = vmatpush1.msra.mxu0 0.0
      %7415 = vmatprep.subr.mxu0 0.0
      %7416 = vmatpush1.msra.mxu0 0.0
      %7417 = vmatprep.subr.mxu0 0.0
      %7418 = vmatpush1.msra.mxu0 0.0
      %7419 = vmatprep.subr.mxu0 0.0
      %7420 = vmatpush1.msra.mxu0 0.0
      %7421 = vmatprep.subr.mxu0 0.0
      %7422 = vmatpush1.msra.mxu0 0.0
      %7423 = vmatprep.subr.mxu0 0.0
      %7424 = vmatpush1.msra.mxu0 0.0
      %7425 = vmatprep.subr.mxu0 0.0
      %7426 = vmatpush1.msra.mxu0 0.0
      %7427 = vmatprep.subr.mxu0 0.0
      %7428 = vmatpush1.msra.mxu0 0.0
      %7429 = vmatprep.subr.mxu0 0.0
      %7430 = vmatpush1.msra.mxu0 0.0
      %7431 = vmatprep.subr.mxu0 0.0
      %7432 = vmatpush1.msra.mxu0 0.0
      %7433 = vmatprep.subr.mxu0 0.0
      %7434 = vmatpush1.msra.mxu0 0.0
      %7435 = vmatprep.subr.mxu0 0.0
      %7436 = vmatpush1.msra.mxu0 0.0
      %7437 = vmatprep.mubr.f32.mxu0 0.0
      %7438 = vmatmul.mubr.f32.gmra.mrb[0].mxu0 %v7371
      %v7439 = vpop.f32.mrb[0].mxu0
      %v7440 = vadd.f32 %v7352, %v7439
      %v7441 = vpop.f32.mrb[0].mxu0
      %v7442 = vadd.f32 %v7356, %v7441
      %7443 = vdwg.mxu0
      %7444 = vmatprep.subr.mxu0 %v7334
      %7445 = vmatpush1.msra.mxu0 %v7333
      %7446 = vmatprep.subr.mxu0 %v7338
      %7447 = vmatpush1.msra.mxu0 %v7337
      %7448 = vmatprep.subr.mxu0 %v7342
      %7449 = vmatpush1.msra.mxu0 %v7341
      %7450 = vmatprep.subr.mxu0 %v7346
      %7451 = vmatpush1.msra.mxu0 %v7345
      %7452 = vmatprep.subr.mxu0 0.0
      %7453 = vmatpush1.msra.mxu0 0.0
      %7454 = vmatprep.subr.mxu0 0.0
      %7455 = vmatpush1.msra.mxu0 0.0
      %7456 = vmatprep.subr.mxu0 0.0
      %7457 = vmatpush1.msra.mxu0 0.0
      %7458 = vmatprep.subr.mxu0 0.0
      %7459 = vmatpush1.msra.mxu0 0.0
      %7460 = vmatprep.subr.mxu0 0.0
      %7461 = vmatpush1.msra.mxu0 0.0
      %7462 = vmatprep.subr.mxu0 0.0
      %7463 = vmatpush1.msra.mxu0 0.0
      %7464 = vmatprep.subr.mxu0 0.0
      %7465 = vmatpush1.msra.mxu0 0.0
      %7466 = vmatprep.subr.mxu0 0.0
      %7467 = vmatpush1.msra.mxu0 0.0
      %7468 = vmatprep.subr.mxu0 0.0
      %7469 = vmatpush1.msra.mxu0 0.0
      %7470 = vmatprep.subr.mxu0 0.0
      %7471 = vmatpush1.msra.mxu0 0.0
      %7472 = vmatprep.subr.mxu0 0.0
      %7473 = vmatpush1.msra.mxu0 0.0
      %7474 = vmatprep.subr.mxu0 0.0
      %7475 = vmatpush1.msra.mxu0 0.0
      %7476 = vmatprep.subr.mxu0 0.0
      %7477 = vmatpush1.msra.mxu0 0.0
      %7478 = vmatprep.subr.mxu0 0.0
      %7479 = vmatpush1.msra.mxu0 0.0
      %7480 = vmatprep.subr.mxu0 0.0
      %7481 = vmatpush1.msra.mxu0 0.0
      %7482 = vmatprep.subr.mxu0 0.0
      %7483 = vmatpush1.msra.mxu0 0.0
      %7484 = vmatprep.subr.mxu0 0.0
      %7485 = vmatpush1.msra.mxu0 0.0
      %7486 = vmatprep.subr.mxu0 0.0
      %7487 = vmatpush1.msra.mxu0 0.0
      %7488 = vmatprep.subr.mxu0 0.0
      %7489 = vmatpush1.msra.mxu0 0.0
      %7490 = vmatprep.subr.mxu0 0.0
      %7491 = vmatpush1.msra.mxu0 0.0
      %7492 = vmatprep.subr.mxu0 0.0
      %7493 = vmatpush1.msra.mxu0 0.0
      %7494 = vmatprep.subr.mxu0 0.0
      %7495 = vmatpush1.msra.mxu0 0.0
      %7496 = vmatprep.subr.mxu0 0.0
      %7497 = vmatpush1.msra.mxu0 0.0
      %7498 = vmatprep.subr.mxu0 0.0
      %7499 = vmatpush1.msra.mxu0 0.0
      %7500 = vmatprep.subr.mxu0 0.0
      %7501 = vmatpush1.msra.mxu0 0.0
      %7502 = vmatprep.subr.mxu0 0.0
      %7503 = vmatpush1.msra.mxu0 0.0
      %7504 = vmatprep.subr.mxu0 0.0
      %7505 = vmatpush1.msra.mxu0 0.0
      %7506 = vmatprep.subr.mxu0 0.0
      %7507 = vmatpush1.msra.mxu0 0.0
      %7508 = vmatprep.mubr.f32.mxu0 0.0
      %7509 = vmatmul.mubr.f32.gmra.mrb[0].mxu0 %v7371
      %v7510 = vpop.f32.mrb[0].mxu0
      %v7511 = vadd.f32 %v7360, %v7510
      %v7512 = vpop.f32.mrb[0].mxu0
      %v7513 = vadd.f32 %v7364, %v7512
      %7514 = vdwg.mxu0
      %v7515 = vadd.f32 %v7440, 3.0
      %v7516 = vadd.f32 %v7442, 3.0
      %v7517 = vadd.f32 %v7511, 3.0
      %v7518 = vadd.f32 %v7513, 3.0
      %v7519 = vrcp.pop 6.0
      %v7520 = vmul.f32 %v7515, %v7519
      %v7521 = vmul.f32 %v7516, %v7519
      %v7522 = vmul.f32 %v7517, %v7519
      %v7523 = vmul.f32 %v7518, %v7519
      %v7524 = vmax.f32 %v7520, 0.0
      %v7525 = vmax.f32 %v7521, 0.0
      %v7526 = vmax.f32 %v7522, 0.0
      %v7527 = vmax.f32 %v7523, 0.0
      %v7528 = vmin.f32 %v7524, 1.0
      %v7529 = vmin.f32 %v7525, 1.0
      %v7530 = vmin.f32 %v7526, 1.0
      %v7531 = vmin.f32 %v7527, 1.0
      %v7532 = vld [vmem:[%s7] sm:$0xf]
      %v7533 = vld [vmem:[%s7 + $0x10] sm:$0xf]
      %v7534 = vld [vmem:[%s7 + $0x20] sm:$0xf]
      %v7535 = vld [vmem:[%s7 + $0x30] sm:$0xf]
      %v7536 = vld [vmem:[%s7 + $0x40] sm:$0xf]
      %v7537 = vld [vmem:[%s7 + $0x50] sm:$0xf]
      %v7538 = vld [vmem:[%s7 + $0x60] sm:$0xf]
      %v7539 = vld [vmem:[%s7 + $0x70] sm:$0xf]
      %v7540 = vld [vmem:[%s7 + $0x80] sm:$0xf]
      %v7541 = vld [vmem:[%s7 + $0x90] sm:$0xf]
      %v7542 = vld [vmem:[%s7 + $0xa0] sm:$0xf]
      %v7543 = vld [vmem:[%s7 + $0xb0] sm:$0xf]
      %v7544 = vld [vmem:[%s7 + $0xc0] sm:$0xf]
      %v7545 = vld [vmem:[%s7 + $0xd0] sm:$0xf]
      %v7546 = vld [vmem:[%s7 + $0xe0] sm:$0xf]
      %v7547 = vld [vmem:[%s7 + $0xf0] sm:$0xf]
      %v7564 = vunpack.c.l.b16 %v7532
      %v7565 = vunpack.c.l.b16 %v7533
      %v7566 = vunpack.c.l.b16 %v7534
      %v7567 = vunpack.c.l.b16 %v7535
      %v7568 = vunpack.c.l.b16 %v7536
      %v7569 = vunpack.c.l.b16 %v7537
      %v7570 = vunpack.c.l.b16 %v7538
      %v7571 = vunpack.c.l.b16 %v7539
      %v7572 = vunpack.c.l.b16 %v7540
      %v7573 = vunpack.c.l.b16 %v7541
      %v7574 = vunpack.c.l.b16 %v7542
      %v7575 = vunpack.c.l.b16 %v7543
      %v7576 = vunpack.c.l.b16 %v7544
      %v7577 = vunpack.c.l.b16 %v7545
      %v7578 = vunpack.c.l.b16 %v7546
      %v7579 = vunpack.c.l.b16 %v7547
      %v7580 = vpack.c.b16 %v7565, %v7564
      %v7581 = vpack.c.b16 %v7567, %v7566
      %v7582 = vpack.c.b16 %v7569, %v7568
      %v7583 = vpack.c.b16 %v7571, %v7570
      %v7584 = vpack.c.b16 %v7573, %v7572
      %v7585 = vpack.c.b16 %v7575, %v7574
      %v7586 = vpack.c.b16 %v7577, %v7576
      %v7587 = vpack.c.b16 %v7579, %v7578
      %7596 = vmatprep.subr.bf16.mxu0 0
      %7597 = vmatpush1.bf16.msra.mxu0 %v7580
      %7598 = vmatprep.subr.bf16.mxu0 0
      %7599 = vmatpush1.bf16.msra.mxu0 %v7581
      %7600 = vmatprep.subr.bf16.mxu0 0
      %7601 = vmatpush1.bf16.msra.mxu0 %v7582
      %7602 = vmatprep.subr.bf16.mxu0 0
      %7603 = vmatpush1.bf16.msra.mxu0 %v7583
      %7604 = vmatprep.subr.bf16.mxu0 0
      %7605 = vmatpush1.bf16.msra.mxu0 %v7584
      %7606 = vmatprep.subr.bf16.mxu0 0
      %7607 = vmatpush1.bf16.msra.mxu0 %v7585
      %7608 = vmatprep.subr.bf16.mxu0 0
      %7609 = vmatpush1.bf16.msra.mxu0 %v7586
      %7610 = vmatprep.subr.bf16.mxu0 0
      %7611 = vmatpush1.bf16.msra.mxu0 %v7587
      %7612 = vmatprep.subr.bf16.mxu0 0
      %7613 = vmatpush1.bf16.msra.mxu0 0
      %7614 = vmatprep.subr.bf16.mxu0 0
      %7615 = vmatpush1.bf16.msra.mxu0 0
      %7616 = vmatprep.subr.bf16.mxu0 0
      %7617 = vmatpush1.bf16.msra.mxu0 0
      %7618 = vmatprep.subr.bf16.mxu0 0
      %7619 = vmatpush1.bf16.msra.mxu0 0
      %7620 = vmatprep.subr.bf16.mxu0 0
      %7621 = vmatpush1.bf16.msra.mxu0 0
      %7622 = vmatprep.subr.bf16.mxu0 0
      %7623 = vmatpush1.bf16.msra.mxu0 0
      %7624 = vmatprep.subr.bf16.mxu0 0
      %7625 = vmatpush1.bf16.msra.mxu0 0
      %7626 = vmatprep.subr.bf16.mxu0 0
      %7627 = vmatpush1.bf16.msra.mxu0 0
      %7628 = vmatprep.mubr.bf16.mxu0 0
      %7629 = vmatmul.mubr.bf16.gmra.mrb[0].mxu0 %v6749
      %v7630 = vpop.f32.mrb[0].mxu0
      %v7631 = vadd.f32 0.0, %v7630
      %v7632 = vpop.f32.mrb[0].mxu0
      %v7633 = vpop.f32.mrb[0].mxu0
      %v7634 = vadd.f32 0.0, %v7633
      %v7635 = vpop.f32.mrb[0].mxu0
      %7636 = vmatprep.mubr.bf16.mxu0 0
      %7637 = vmatmul.mubr.bf16.gmra.mrb[0].mxu0 %v6750
      %v7638 = vpop.f32.mrb[0].mxu0
      %v7639 = vadd.f32 0.0, %v7638
      %v7640 = vpop.f32.mrb[0].mxu0
      %v7641 = vpop.f32.mrb[0].mxu0
      %v7642 = vadd.f32 0.0, %v7641
      %v7643 = vpop.f32.mrb[0].mxu0
      %7644 = vmatprep.mubr.bf16.mxu0 0
      %7645 = vmatmul.mubr.bf16.gmra.mrb[0].mxu0 %v6751
      %v7646 = vpop.f32.mrb[0].mxu0
      %v7647 = vadd.f32 0.0, %v7646
      %v7648 = vpop.f32.mrb[0].mxu0
      %v7649 = vpop.f32.mrb[0].mxu0
      %v7650 = vadd.f32 0.0, %v7649
      %v7651 = vpop.f32.mrb[0].mxu0
      %7652 = vmatprep.mubr.bf16.mxu0 0
      %7653 = vmatmul.mubr.bf16.gmra.mrb[0].mxu0 %v6752
      %v7654 = vpop.f32.mrb[0].mxu0
      %v7655 = vadd.f32 0.0, %v7654
      %v7656 = vpop.f32.mrb[0].mxu0
      %v7657 = vpop.f32.mrb[0].mxu0
      %v7658 = vadd.f32 0.0, %v7657
      %v7659 = vpop.f32.mrb[0].mxu0
      %7660 = vmatprep.mubr.bf16.mxu0 0
      %7661 = vmatmul.mubr.bf16.gmra.mrb[0].mxu0 %v6753
      %v7662 = vpop.f32.mrb[0].mxu0
      %v7663 = vadd.f32 0.0, %v7662
      %v7664 = vpop.f32.mrb[0].mxu0
      %v7665 = vpop.f32.mrb[0].mxu0
      %v7666 = vadd.f32 0.0, %v7665
      %v7667 = vpop.f32.mrb[0].mxu0
      %7668 = vmatprep.mubr.bf16.mxu0 0
      %7669 = vmatmul.mubr.bf16.gmra.mrb[0].mxu0 %v6754
      %v7670 = vpop.f32.mrb[0].mxu0
      %v7671 = vadd.f32 0.0, %v7670
      %v7672 = vpop.f32.mrb[0].mxu0
      %v7673 = vpop.f32.mrb[0].mxu0
      %v7674 = vadd.f32 0.0, %v7673
      %v7675 = vpop.f32.mrb[0].mxu0
      %7676 = vmatprep.mubr.bf16.mxu0 0
      %7677 = vmatmul.mubr.bf16.gmra.mrb[0].mxu0 %v6755
      %v7678 = vpop.f32.mrb[0].mxu0
      %v7679 = vadd.f32 0.0, %v7678
      %v7680 = vpop.f32.mrb[0].mxu0
      %v7681 = vpop.f32.mrb[0].mxu0
      %v7682 = vadd.f32 0.0, %v7681
      %v7683 = vpop.f32.mrb[0].mxu0
      %7684 = vmatprep.mubr.bf16.mxu0 0
      %7685 = vmatmul.mubr.bf16.gmra.mrb[0].mxu0 %v6756
      %v7686 = vpop.f32.mrb[0].mxu0
      %v7687 = vadd.f32 0.0, %v7686
      %v7688 = vpop.f32.mrb[0].mxu0
      %v7689 = vpop.f32.mrb[0].mxu0
      %v7690 = vadd.f32 0.0, %v7689
      %v7691 = vpop.f32.mrb[0].mxu0
      %7692 = vmatprep.mubr.bf16.mxu0 0
      %7693 = vmatmul.mubr.bf16.gmra.mrb[0].mxu0 %v6757
      %v7694 = vpop.f32.mrb[0].mxu0
      %v7695 = vadd.f32 0.0, %v7694
      %v7696 = vpop.f32.mrb[0].mxu0
      %v7697 = vpop.f32.mrb[0].mxu0
      %v7698 = vadd.f32 0.0, %v7697
      %v7699 = vpop.f32.mrb[0].mxu0
      %7700 = vmatprep.mubr.bf16.mxu0 0
      %7701 = vmatmul.mubr.bf16.gmra.mrb[0].mxu0 %v6758
      %v7702 = vpop.f32.mrb[0].mxu0
      %v7703 = vadd.f32 0.0, %v7702
      %v7704 = vpop.f32.mrb[0].mxu0
      %v7705 = vpop.f32.mrb[0].mxu0
      %v7706 = vadd.f32 0.0, %v7705
      %v7707 = vpop.f32.mrb[0].mxu0
      %7708 = vmatprep.mubr.bf16.mxu0 0
      %7709 = vmatmul.mubr.bf16.gmra.mrb[0].mxu0 %v6759
      %v7710 = vpop.f32.mrb[0].mxu0
      %v7711 = vadd.f32 0.0, %v7710
      %v7712 = vpop.f32.mrb[0].mxu0
      %v7713 = vpop.f32.mrb[0].mxu0
      %v7714 = vadd.f32 0.0, %v7713
      %v7715 = vpop.f32.mrb[0].mxu0
      %7716 = vmatprep.mubr.bf16.mxu0 0
      %7717 = vmatmul.mubr.bf16.gmra.mrb[0].mxu0 %v6760
      %v7718 = vpop.f32.mrb[0].mxu0
      %v7719 = vadd.f32 0.0, %v7718
      %v7720 = vpop.f32.mrb[0].mxu0
      %v7721 = vpop.f32.mrb[0].mxu0
      %v7722 = vadd.f32 0.0, %v7721
      %v7723 = vpop.f32.mrb[0].mxu0
      %7724 = vmatprep.mubr.bf16.mxu0 0
      %7725 = vmatmul.mubr.bf16.gmra.mrb[0].mxu0 %v6761
      %v7726 = vpop.f32.mrb[0].mxu0
      %v7727 = vadd.f32 0.0, %v7726
      %v7728 = vpop.f32.mrb[0].mxu0
      %v7729 = vpop.f32.mrb[0].mxu0
      %v7730 = vadd.f32 0.0, %v7729
      %v7731 = vpop.f32.mrb[0].mxu0
      %7732 = vmatprep.mubr.bf16.mxu0 0
      %7733 = vmatmul.mubr.bf16.gmra.mrb[0].mxu0 %v6762
      %v7734 = vpop.f32.mrb[0].mxu0
      %v7735 = vadd.f32 0.0, %v7734
      %v7736 = vpop.f32.mrb[0].mxu0
      %v7737 = vpop.f32.mrb[0].mxu0
      %v7738 = vadd.f32 0.0, %v7737
      %v7739 = vpop.f32.mrb[0].mxu0
      %7740 = vmatprep.mubr.bf16.mxu0 0
      %7741 = vmatmul.mubr.bf16.gmra.mrb[0].mxu0 %v6763
      %v7742 = vpop.f32.mrb[0].mxu0
      %v7743 = vadd.f32 0.0, %v7742
      %v7744 = vpop.f32.mrb[0].mxu0
      %v7745 = vpop.f32.mrb[0].mxu0
      %v7746 = vadd.f32 0.0, %v7745
      %v7747 = vpop.f32.mrb[0].mxu0
      %7748 = vmatprep.mubr.bf16.mxu0 0
      %7749 = vmatmul.mubr.bf16.gmra.mrb[0].mxu0 %v6764
      %v7750 = vpop.f32.mrb[0].mxu0
      %v7751 = vadd.f32 0.0, %v7750
      %v7752 = vpop.f32.mrb[0].mxu0
      %v7753 = vpop.f32.mrb[0].mxu0
      %v7754 = vadd.f32 0.0, %v7753
      %v7755 = vpop.f32.mrb[0].mxu0
      %7756 = vdwg.mxu0
      %v7757 = vld [vmem:[%s8] sm:$0x1]
      %v7759 = vlaneseq
      %v7760 = vshrl.u32 %v7759, 7
      %v7761 = vsub.s32 0, %v7760
      %v7762 = vrot.slane %v7757, %v7761
      %v7764 = vmul.f32 %v7631, %v7762
      %v7765 = vmul.f32 %v7634, %v7762
      %v7766 = vmul.f32 %v7639, %v7762
      %v7767 = vmul.f32 %v7642, %v7762
      %v7768 = vmul.f32 %v7647, %v7762
      %v7769 = vmul.f32 %v7650, %v7762
      %v7770 = vmul.f32 %v7655, %v7762
      %v7771 = vmul.f32 %v7658, %v7762
      %v7772 = vmul.f32 %v7663, %v7762
      %v7773 = vmul.f32 %v7666, %v7762
      %v7774 = vmul.f32 %v7671, %v7762
      %v7775 = vmul.f32 %v7674, %v7762
      %v7776 = vmul.f32 %v7679, %v7762
      %v7777 = vmul.f32 %v7682, %v7762
      %v7778 = vmul.f32 %v7687, %v7762
      %v7779 = vmul.f32 %v7690, %v7762
      %v7780 = vmul.f32 %v7695, %v7762
      %v7781 = vmul.f32 %v7698, %v7762
      %v7782 = vmul.f32 %v7703, %v7762
      %v7783 = vmul.f32 %v7706, %v7762
      %v7784 = vmul.f32 %v7711, %v7762
      %v7785 = vmul.f32 %v7714, %v7762
      %v7786 = vmul.f32 %v7719, %v7762
      %v7787 = vmul.f32 %v7722, %v7762
      %v7788 = vmul.f32 %v7727, %v7762
      %v7789 = vmul.f32 %v7730, %v7762
      %v7790 = vmul.f32 %v7735, %v7762
      %v7791 = vmul.f32 %v7738, %v7762
      %v7792 = vmul.f32 %v7743, %v7762
      %v7793 = vmul.f32 %v7746, %v7762
      %v7794 = vmul.f32 %v7751, %v7762
      %v7795 = vmul.f32 %v7754, %v7762
      %v7796 = vld [vmem:[%s9] sm:$0x1]
      %v7798 = vlaneseq
      %v7799 = vshrl.u32 %v7798, 7
      %v7800 = vsub.s32 0, %v7799
      %v7801 = vrot.slane %v7796, %v7800
      %v7803 = vadd.f32 %v7764, %v7801
      %v7804 = vadd.f32 %v7765, %v7801
      %v7805 = vadd.f32 %v7766, %v7801
      %v7806 = vadd.f32 %v7767, %v7801
      %v7807 = vadd.f32 %v7768, %v7801
      %v7808 = vadd.f32 %v7769, %v7801
      %v7809 = vadd.f32 %v7770, %v7801
      %v7810 = vadd.f32 %v7771, %v7801
      %v7811 = vadd.f32 %v7772, %v7801
      %v7812 = vadd.f32 %v7773, %v7801
      %v7813 = vadd.f32 %v7774, %v7801
      %v7814 = vadd.f32 %v7775, %v7801
      %v7815 = vadd.f32 %v7776, %v7801
      %v7816 = vadd.f32 %v7777, %v7801
      %v7817 = vadd.f32 %v7778, %v7801
      %v7818 = vadd.f32 %v7779, %v7801
      %v7819 = vadd.f32 %v7780, %v7801
      %v7820 = vadd.f32 %v7781, %v7801
      %v7821 = vadd.f32 %v7782, %v7801
      %v7822 = vadd.f32 %v7783, %v7801
      %v7823 = vadd.f32 %v7784, %v7801
      %v7824 = vadd.f32 %v7785, %v7801
      %v7825 = vadd.f32 %v7786, %v7801
      %v7826 = vadd.f32 %v7787, %v7801
      %v7827 = vadd.f32 %v7788, %v7801
      %v7828 = vadd.f32 %v7789, %v7801
      %v7829 = vadd.f32 %v7790, %v7801
      %v7830 = vadd.f32 %v7791, %v7801
      %v7831 = vadd.f32 %v7792, %v7801
      %v7832 = vadd.f32 %v7793, %v7801
      %v7833 = vadd.f32 %v7794, %v7801
      %v7834 = vadd.f32 %v7795, %v7801
      %v7835 = vlaneseq
      %v7836 = vshrl.u32 %v7835, 7
      %v7837 = vsub.s32 0, %v7836
      %v7838 = vrot.slane %v7528, %v7837
      %v7839 = vmul.f32 %v7803, %v7838
      %v7840 = vmul.f32 %v7804, %v7838
      %v7841 = vmul.f32 %v7805, %v7838
      %v7842 = vmul.f32 %v7806, %v7838
      %v7843 = vmul.f32 %v7807, %v7838
      %v7844 = vmul.f32 %v7808, %v7838
      %v7845 = vmul.f32 %v7809, %v7838
      %v7846 = vmul.f32 %v7810, %v7838
      %v7847 = vmul.f32 %v7811, %v7838
      %v7848 = vmul.f32 %v7812, %v7838
      %v7849 = vmul.f32 %v7813, %v7838
      %v7850 = vmul.f32 %v7814, %v7838
      %v7851 = vmul.f32 %v7815, %v7838
      %v7852 = vmul.f32 %v7816, %v7838
      %v7853 = vmul.f32 %v7817, %v7838
      %v7854 = vmul.f32 %v7818, %v7838
      %v7855 = vmul.f32 %v7819, %v7838
      %v7856 = vmul.f32 %v7820, %v7838
      %v7857 = vmul.f32 %v7821, %v7838
      %v7858 = vmul.f32 %v7822, %v7838
      %v7859 = vmul.f32 %v7823, %v7838
      %v7860 = vmul.f32 %v7824, %v7838
      %v7861 = vmul.f32 %v7825, %v7838
      %v7862 = vmul.f32 %v7826, %v7838
      %v7863 = vmul.f32 %v7827, %v7838
      %v7864 = vmul.f32 %v7828, %v7838
      %v7865 = vmul.f32 %v7829, %v7838
      %v7866 = vmul.f32 %v7830, %v7838
      %v7867 = vmul.f32 %v7831, %v7838
      %v7868 = vmul.f32 %v7832, %v7838
      %v7869 = vmul.f32 %v7833, %v7838
      %v7870 = vmul.f32 %v7834, %v7838
      %7871 = vxpose.xlu0.b32.start [1/16] %v7839, 128
      %7872 = vxpose.xlu0.b32.cont [2/16] %v7840, 128
      %7873 = vxpose.xlu0.b32.cont [3/16] %v7841, 128
      %7874 = vxpose.xlu0.b32.cont [4/16] %v7842, 128
      %7875 = vxpose.xlu0.b32.cont [5/16] %v7843, 128
      %7876 = vxpose.xlu0.b32.cont [6/16] %v7844, 128
      %7877 = vxpose.xlu0.b32.cont [7/16] %v7845, 128
      %7878 = vxpose.xlu0.b32.cont [8/16] %v7846, 128
      %7879 = vxpose.xlu0.b32.cont [9/16] %v7847, 128
      %7880 = vxpose.xlu0.b32.cont [10/16] %v7848, 128
      %7881 = vxpose.xlu0.b32.cont [11/16] %v7849, 128
      %7882 = vxpose.xlu0.b32.cont [12/16] %v7850, 128
      %7883 = vxpose.xlu0.b32.cont [13/16] %v7851, 128
      %7884 = vxpose.xlu0.b32.cont [14/16] %v7852, 128
      %7885 = vxpose.xlu0.b32.cont [15/16] %v7853, 128
      %7886 = vxpose.xlu0.b32.end [16/16] %v7854, 128
      %v7887 = vpop.trf.xlu0
      %v7888 = vpop.trf.xlu0
      %v7889 = vpop.trf.xlu0
      %v7890 = vpop.trf.xlu0
      %v7891 = vpop.trf.xlu0
      %v7892 = vpop.trf.xlu0
      %v7893 = vpop.trf.xlu0
      %v7894 = vpop.trf.xlu0
      %v7895 = vpop.trf.xlu0
      %v7896 = vpop.trf.xlu0
      %v7897 = vpop.trf.xlu0
      %v7898 = vpop.trf.xlu0
      %v7899 = vpop.trf.xlu0
      %v7900 = vpop.trf.xlu0
      %v7901 = vpop.trf.xlu0
      %v7902 = vpop.trf.xlu0
      %7903 = vxpose.xlu0.b32.start [1/16] %v7855, 128
      %7904 = vxpose.xlu0.b32.cont [2/16] %v7856, 128
      %7905 = vxpose.xlu0.b32.cont [3/16] %v7857, 128
      %7906 = vxpose.xlu0.b32.cont [4/16] %v7858, 128
      %7907 = vxpose.xlu0.b32.cont [5/16] %v7859, 128
      %7908 = vxpose.xlu0.b32.cont [6/16] %v7860, 128
      %7909 = vxpose.xlu0.b32.cont [7/16] %v7861, 128
      %7910 = vxpose.xlu0.b32.cont [8/16] %v7862, 128
      %7911 = vxpose.xlu0.b32.cont [9/16] %v7863, 128
      %7912 = vxpose.xlu0.b32.cont [10/16] %v7864, 128
      %7913 = vxpose.xlu0.b32.cont [11/16] %v7865, 128
      %7914 = vxpose.xlu0.b32.cont [12/16] %v7866, 128
      %7915 = vxpose.xlu0.b32.cont [13/16] %v7867, 128
      %7916 = vxpose.xlu0.b32.cont [14/16] %v7868, 128
      %7917 = vxpose.xlu0.b32.cont [15/16] %v7869, 128
      %7918 = vxpose.xlu0.b32.end [16/16] %v7870, 128
      %v7919 = vpop.trf.xlu0
      %v7920 = vpop.trf.xlu0
      %v7921 = vpop.trf.xlu0
      %v7922 = vpop.trf.xlu0
      %v7923 = vpop.trf.xlu0
      %v7924 = vpop.trf.xlu0
      %v7925 = vpop.trf.xlu0
      %v7926 = vpop.trf.xlu0
      %v7927 = vpop.trf.xlu0
      %v7928 = vpop.trf.xlu0
      %v7929 = vpop.trf.xlu0
      %v7930 = vpop.trf.xlu0
      %v7931 = vpop.trf.xlu0
      %v7932 = vpop.trf.xlu0
      %v7933 = vpop.trf.xlu0
      %v7934 = vpop.trf.xlu0
      %v7935 = vld [vmem:[%s467] sm:$0xff]
      %v7936 = vld [vmem:[%s467 + $0x8] sm:$0xff]
      %v7937 = vld [vmem:[%s467 + $0x10] sm:$0xff]
      %v7938 = vld [vmem:[%s467 + $0x18] sm:$0xff]
      %v7939 = vld [vmem:[%s467 + $0x20] sm:$0xff]
      %v7940 = vld [vmem:[%s467 + $0x28] sm:$0xff]
      %v7941 = vld [vmem:[%s467 + $0x30] sm:$0xff]
      %v7942 = vld [vmem:[%s467 + $0x38] sm:$0xff]
      %v7943 = vld [vmem:[%s467 + $0x40] sm:$0xff]
      %v7944 = vld [vmem:[%s467 + $0x48] sm:$0xff]
      %v7945 = vld [vmem:[%s467 + $0x50] sm:$0xff]
      %v7946 = vld [vmem:[%s467 + $0x58] sm:$0xff]
      %v7947 = vld [vmem:[%s467 + $0x60] sm:$0xff]
      %v7948 = vld [vmem:[%s467 + $0x68] sm:$0xff]
      %v7949 = vld [vmem:[%s467 + $0x70] sm:$0xff]
      %v7950 = vld [vmem:[%s467 + $0x78] sm:$0xff]
      %v7951 = vld [vmem:[%s467 + $0x80] sm:$0xff]
      %v7952 = vld [vmem:[%s467 + $0x88] sm:$0xff]
      %v7953 = vld [vmem:[%s467 + $0x90] sm:$0xff]
      %v7954 = vld [vmem:[%s467 + $0x98] sm:$0xff]
      %v7955 = vld [vmem:[%s467 + $0xa0] sm:$0xff]
      %v7956 = vld [vmem:[%s467 + $0xa8] sm:$0xff]
      %v7957 = vld [vmem:[%s467 + $0xb0] sm:$0xff]
      %v7958 = vld [vmem:[%s467 + $0xb8] sm:$0xff]
      %v7959 = vld [vmem:[%s467 + $0xc0] sm:$0xff]
      %v7960 = vld [vmem:[%s467 + $0xc8] sm:$0xff]
      %v7961 = vld [vmem:[%s467 + $0xd0] sm:$0xff]
      %v7962 = vld [vmem:[%s467 + $0xd8] sm:$0xff]
      %v7963 = vld [vmem:[%s467 + $0xe0] sm:$0xff]
      %v7964 = vld [vmem:[%s467 + $0xe8] sm:$0xff]
      %v7965 = vld [vmem:[%s467 + $0xf0] sm:$0xff]
      %v7966 = vld [vmem:[%s467 + $0xf8] sm:$0xff]
      %v7967 = vadd.f32 %v7887, %v7935
      %v7968 = vadd.f32 %v7919, %v7936
      %v7969 = vadd.f32 %v7888, %v7937
      %v7970 = vadd.f32 %v7920, %v7938
      %v7971 = vadd.f32 %v7889, %v7939
      %v7972 = vadd.f32 %v7921, %v7940
      %v7973 = vadd.f32 %v7890, %v7941
      %v7974 = vadd.f32 %v7922, %v7942
      %v7975 = vadd.f32 %v7891, %v7943
      %v7976 = vadd.f32 %v7923, %v7944
      %v7977 = vadd.f32 %v7892, %v7945
      %v7978 = vadd.f32 %v7924, %v7946
      %v7979 = vadd.f32 %v7893, %v7947
      %v7980 = vadd.f32 %v7925, %v7948
      %v7981 = vadd.f32 %v7894, %v7949
      %v7982 = vadd.f32 %v7926, %v7950
      %v7983 = vadd.f32 %v7895, %v7951
      %v7984 = vadd.f32 %v7927, %v7952
      %v7985 = vadd.f32 %v7896, %v7953
      %v7986 = vadd.f32 %v7928, %v7954
      %v7987 = vadd.f32 %v7897, %v7955
      %v7988 = vadd.f32 %v7929, %v7956
      %v7989 = vadd.f32 %v7898, %v7957
      %v7990 = vadd.f32 %v7930, %v7958
      %v7991 = vadd.f32 %v7899, %v7959
      %v7992 = vadd.f32 %v7931, %v7960
      %v7993 = vadd.f32 %v7900, %v7961
      %v7994 = vadd.f32 %v7932, %v7962
      %v7995 = vadd.f32 %v7901, %v7963
      %v7996 = vadd.f32 %v7933, %v7964
      %v7997 = vadd.f32 %v7902, %v7965
      %v7998 = vadd.f32 %v7934, %v7966
      %v7999 = vmax.f32 %v7967, 0.0
      %v8000 = vmax.f32 %v7968, 0.0
      %v8001 = vmax.f32 %v7969, 0.0
      %v8002 = vmax.f32 %v7970, 0.0
      %v8003 = vmax.f32 %v7971, 0.0
      %v8004 = vmax.f32 %v7972, 0.0
      %v8005 = vmax.f32 %v7973, 0.0
      %v8006 = vmax.f32 %v7974, 0.0
      %v8007 = vmax.f32 %v7975, 0.0
      %v8008 = vmax.f32 %v7976, 0.0
      %v8009 = vmax.f32 %v7977, 0.0
      %v8010 = vmax.f32 %v7978, 0.0
      %v8011 = vmax.f32 %v7979, 0.0
      %v8012 = vmax.f32 %v7980, 0.0
      %v8013 = vmax.f32 %v7981, 0.0
      %v8014 = vmax.f32 %v7982, 0.0
      %v8015 = vmax.f32 %v7983, 0.0
      %v8016 = vmax.f32 %v7984, 0.0
      %v8017 = vmax.f32 %v7985, 0.0
      %v8018 = vmax.f32 %v7986, 0.0
      %v8019 = vmax.f32 %v7987, 0.0
      %v8020 = vmax.f32 %v7988, 0.0
      %v8021 = vmax.f32 %v7989, 0.0
      %v8022 = vmax.f32 %v7990, 0.0
      %v8023 = vmax.f32 %v7991, 0.0
      %v8024 = vmax.f32 %v7992, 0.0
      %v8025 = vmax.f32 %v7993, 0.0
      %v8026 = vmax.f32 %v7994, 0.0
      %v8027 = vmax.f32 %v7995, 0.0
      %v8028 = vmax.f32 %v7996, 0.0
      %v8029 = vmax.f32 %v7997, 0.0
      %v8030 = vmax.f32 %v7998, 0.0
      %8031 = vst [vmem:[%s474] sm:$0xff] %v7999
      %8032 = vst [vmem:[%s474 + $0x8] sm:$0xff] %v8000
      %8033 = vst [vmem:[%s474 + $0x10] sm:$0xff] %v8001
      %8034 = vst [vmem:[%s474 + $0x18] sm:$0xff] %v8002
      %8035 = vst [vmem:[%s474 + $0x20] sm:$0xff] %v8003
      %8036 = vst [vmem:[%s474 + $0x28] sm:$0xff] %v8004
      %8037 = vst [vmem:[%s474 + $0x30] sm:$0xff] %v8005
      %8038 = vst [vmem:[%s474 + $0x38] sm:$0xff] %v8006
      %8039 = vst [vmem:[%s474 + $0x40] sm:$0xff] %v8007
      %8040 = vst [vmem:[%s474 + $0x48] sm:$0xff] %v8008
      %8041 = vst [vmem:[%s474 + $0x50] sm:$0xff] %v8009
      %8042 = vst [vmem:[%s474 + $0x58] sm:$0xff] %v8010
      %8043 = vst [vmem:[%s474 + $0x60] sm:$0xff] %v8011
      %8044 = vst [vmem:[%s474 + $0x68] sm:$0xff] %v8012
      %8045 = vst [vmem:[%s474 + $0x70] sm:$0xff] %v8013
      %8046 = vst [vmem:[%s474 + $0x78] sm:$0xff] %v8014
      %8047 = vst [vmem:[%s474 + $0x80] sm:$0xff] %v8015
      %8048 = vst [vmem:[%s474 + $0x88] sm:$0xff] %v8016
      %8049 = vst [vmem:[%s474 + $0x90] sm:$0xff] %v8017
      %8050 = vst [vmem:[%s474 + $0x98] sm:$0xff] %v8018
      %8051 = vst [vmem:[%s474 + $0xa0] sm:$0xff] %v8019
      %8052 = vst [vmem:[%s474 + $0xa8] sm:$0xff] %v8020
      %8053 = vst [vmem:[%s474 + $0xb0] sm:$0xff] %v8021
      %8054 = vst [vmem:[%s474 + $0xb8] sm:$0xff] %v8022
      %8055 = vst [vmem:[%s474 + $0xc0] sm:$0xff] %v8023
      %8056 = vst [vmem:[%s474 + $0xc8] sm:$0xff] %v8024
      %8057 = vst [vmem:[%s474 + $0xd0] sm:$0xff] %v8025
      %8058 = vst [vmem:[%s474 + $0xd8] sm:$0xff] %v8026
      %8059 = vst [vmem:[%s474 + $0xe0] sm:$0xff] %v8027
      %8060 = vst [vmem:[%s474 + $0xe8] sm:$0xff] %v8028
      %8061 = vst [vmem:[%s474 + $0xf0] sm:$0xff] %v8029
      %8062 = vst [vmem:[%s474 + $0xf8] sm:$0xff] %v8030
      %v8063 = vld [vmem:[#allocation4] sm:$0xff]
      %v8064 = vld [vmem:[#allocation4 + $0x8] sm:$0xff]
      %v8065 = vld [vmem:[#allocation4 + $0x10] sm:$0xff]
      %v8066 = vld [vmem:[#allocation4 + $0x18] sm:$0xff]
      %v8067 = vld [vmem:[#allocation4 + $0x20] sm:$0xff]
      %v8068 = vld [vmem:[#allocation4 + $0x28] sm:$0xff]
      %v8069 = vld [vmem:[#allocation4 + $0x30] sm:$0xff]
      %v8070 = vld [vmem:[#allocation4 + $0x38] sm:$0xff]
      %v8071 = vld [vmem:[#allocation4 + $0x40] sm:$0xff]
      %v8072 = vld [vmem:[#allocation4 + $0x48] sm:$0xff]
      %v8073 = vld [vmem:[#allocation4 + $0x50] sm:$0xff]
      %v8074 = vld [vmem:[#allocation4 + $0x58] sm:$0xff]
      %v8075 = vld [vmem:[#allocation4 + $0x60] sm:$0xff]
      %v8076 = vld [vmem:[#allocation4 + $0x68] sm:$0xff]
      %v8077 = vld [vmem:[#allocation4 + $0x70] sm:$0xff]
      %v8078 = vld [vmem:[#allocation4 + $0x78] sm:$0xff]
      %v8079 = vld [vmem:[%s7 + $0x4] sm:$0xf]
      %v8080 = vld [vmem:[%s7 + $0x14] sm:$0xf]
      %v8081 = vld [vmem:[%s7 + $0x24] sm:$0xf]
      %v8082 = vld [vmem:[%s7 + $0x34] sm:$0xf]
      %v8083 = vld [vmem:[%s7 + $0x44] sm:$0xf]
      %v8084 = vld [vmem:[%s7 + $0x54] sm:$0xf]
      %v8085 = vld [vmem:[%s7 + $0x64] sm:$0xf]
      %v8086 = vld [vmem:[%s7 + $0x74] sm:$0xf]
      %v8087 = vld [vmem:[%s7 + $0x84] sm:$0xf]
      %v8088 = vld [vmem:[%s7 + $0x94] sm:$0xf]
      %v8089 = vld [vmem:[%s7 + $0xa4] sm:$0xf]
      %v8090 = vld [vmem:[%s7 + $0xb4] sm:$0xf]
      %v8091 = vld [vmem:[%s7 + $0xc4] sm:$0xf]
      %v8092 = vld [vmem:[%s7 + $0xd4] sm:$0xf]
      %v8093 = vld [vmem:[%s7 + $0xe4] sm:$0xf]
      %v8094 = vld [vmem:[%s7 + $0xf4] sm:$0xf]
      %v8111 = vunpack.c.l.b16 %v8079
      %v8112 = vunpack.c.l.b16 %v8080
      %v8113 = vunpack.c.l.b16 %v8081
      %v8114 = vunpack.c.l.b16 %v8082
      %v8115 = vunpack.c.l.b16 %v8083
      %v8116 = vunpack.c.l.b16 %v8084
      %v8117 = vunpack.c.l.b16 %v8085
      %v8118 = vunpack.c.l.b16 %v8086
      %v8119 = vunpack.c.l.b16 %v8087
      %v8120 = vunpack.c.l.b16 %v8088
      %v8121 = vunpack.c.l.b16 %v8089
      %v8122 = vunpack.c.l.b16 %v8090
      %v8123 = vunpack.c.l.b16 %v8091
      %v8124 = vunpack.c.l.b16 %v8092
      %v8125 = vunpack.c.l.b16 %v8093
      %v8126 = vunpack.c.l.b16 %v8094
      %v8127 = vpack.c.b16 %v8112, %v8111
      %v8128 = vpack.c.b16 %v8114, %v8113
      %v8129 = vpack.c.b16 %v8116, %v8115
      %v8130 = vpack.c.b16 %v8118, %v8117
      %v8131 = vpack.c.b16 %v8120, %v8119
      %v8132 = vpack.c.b16 %v8122, %v8121
      %v8133 = vpack.c.b16 %v8124, %v8123
      %v8134 = vpack.c.b16 %v8126, %v8125
      %8143 = vmatprep.subr.bf16.mxu0 0
      %8144 = vmatpush1.bf16.msra.mxu0 %v8127
      %8145 = vmatprep.subr.bf16.mxu0 0
      %8146 = vmatpush1.bf16.msra.mxu0 %v8128
      %8147 = vmatprep.subr.bf16.mxu0 0
      %8148 = vmatpush1.bf16.msra.mxu0 %v8129
      %8149 = vmatprep.subr.bf16.mxu0 0
      %8150 = vmatpush1.bf16.msra.mxu0 %v8130
      %8151 = vmatprep.subr.bf16.mxu0 0
      %8152 = vmatpush1.bf16.msra.mxu0 %v8131
      %8153 = vmatprep.subr.bf16.mxu0 0
      %8154 = vmatpush1.bf16.msra.mxu0 %v8132
      %8155 = vmatprep.subr.bf16.mxu0 0
      %8156 = vmatpush1.bf16.msra.mxu0 %v8133
      %8157 = vmatprep.subr.bf16.mxu0 0
      %8158 = vmatpush1.bf16.msra.mxu0 %v8134
      %8159 = vmatprep.subr.bf16.mxu0 0
      %8160 = vmatpush1.bf16.msra.mxu0 0
      %8161 = vmatprep.subr.bf16.mxu0 0
      %8162 = vmatpush1.bf16.msra.mxu0 0
      %8163 = vmatprep.subr.bf16.mxu0 0
      %8164 = vmatpush1.bf16.msra.mxu0 0
      %8165 = vmatprep.subr.bf16.mxu0 0
      %8166 = vmatpush1.bf16.msra.mxu0 0
      %8167 = vmatprep.subr.bf16.mxu0 0
      %8168 = vmatpush1.bf16.msra.mxu0 0
      %8169 = vmatprep.subr.bf16.mxu0 0
      %8170 = vmatpush1.bf16.msra.mxu0 0
      %8171 = vmatprep.subr.bf16.mxu0 0
      %8172 = vmatpush1.bf16.msra.mxu0 0
      %8173 = vmatprep.subr.bf16.mxu0 0
      %8174 = vmatpush1.bf16.msra.mxu0 0
      %8175 = vmatprep.mubr.bf16.mxu0 0
      %8176 = vmatmul.mubr.bf16.gmra.mrb[0].mxu0 %v8063
      %v8177 = vpop.f32.mrb[0].mxu0
      %v8178 = vadd.f32 0.0, %v8177
      %v8179 = vpop.f32.mrb[0].mxu0
      %v8180 = vpop.f32.mrb[0].mxu0
      %v8181 = vadd.f32 0.0, %v8180
      %v8182 = vpop.f32.mrb[0].mxu0
      %8183 = vmatprep.mubr.bf16.mxu0 0
      %8184 = vmatmul.mubr.bf16.gmra.mrb[0].mxu0 %v8064
      %v8185 = vpop.f32.mrb[0].mxu0
      %v8186 = vadd.f32 0.0, %v8185
      %v8187 = vpop.f32.mrb[0].mxu0
      %v8188 = vpop.f32.mrb[0].mxu0
      %v8189 = vadd.f32 0.0, %v8188
      %v8190 = vpop.f32.mrb[0].mxu0
      %8191 = vmatprep.mubr.bf16.mxu0 0
      %8192 = vmatmul.mubr.bf16.gmra.mrb[0].mxu0 %v8065
      %v8193 = vpop.f32.mrb[0].mxu0
      %v8194 = vadd.f32 0.0, %v8193
      %v8195 = vpop.f32.mrb[0].mxu0
      %v8196 = vpop.f32.mrb[0].mxu0
      %v8197 = vadd.f32 0.0, %v8196
      %v8198 = vpop.f32.mrb[0].mxu0
      %8199 = vmatprep.mubr.bf16.mxu0 0
      %8200 = vmatmul.mubr.bf16.gmra.mrb[0].mxu0 %v8066
      %v8201 = vpop.f32.mrb[0].mxu0
      %v8202 = vadd.f32 0.0, %v8201
      %v8203 = vpop.f32.mrb[0].mxu0
      %v8204 = vpop.f32.mrb[0].mxu0
      %v8205 = vadd.f32 0.0, %v8204
      %v8206 = vpop.f32.mrb[0].mxu0
      %8207 = vmatprep.mubr.bf16.mxu0 0
      %8208 = vmatmul.mubr.bf16.gmra.mrb[0].mxu0 %v8067
      %v8209 = vpop.f32.mrb[0].mxu0
      %v8210 = vadd.f32 0.0, %v8209
      %v8211 = vpop.f32.mrb[0].mxu0
      %v8212 = vpop.f32.mrb[0].mxu0
      %v8213 = vadd.f32 0.0, %v8212
      %v8214 = vpop.f32.mrb[0].mxu0
      %8215 = vmatprep.mubr.bf16.mxu0 0
      %8216 = vmatmul.mubr.bf16.gmra.mrb[0].mxu0 %v8068
      %v8217 = vpop.f32.mrb[0].mxu0
      %v8218 = vadd.f32 0.0, %v8217
      %v8219 = vpop.f32.mrb[0].mxu0
      %v8220 = vpop.f32.mrb[0].mxu0
      %v8221 = vadd.f32 0.0, %v8220
      %v8222 = vpop.f32.mrb[0].mxu0
      %8223 = vmatprep.mubr.bf16.mxu0 0
      %8224 = vmatmul.mubr.bf16.gmra.mrb[0].mxu0 %v8069
      %v8225 = vpop.f32.mrb[0].mxu0
      %v8226 = vadd.f32 0.0, %v8225
      %v8227 = vpop.f32.mrb[0].mxu0
      %v8228 = vpop.f32.mrb[0].mxu0
      %v8229 = vadd.f32 0.0, %v8228
      %v8230 = vpop.f32.mrb[0].mxu0
      %8231 = vmatprep.mubr.bf16.mxu0 0
      %8232 = vmatmul.mubr.bf16.gmra.mrb[0].mxu0 %v8070
      %v8233 = vpop.f32.mrb[0].mxu0
      %v8234 = vadd.f32 0.0, %v8233
      %v8235 = vpop.f32.mrb[0].mxu0
      %v8236 = vpop.f32.mrb[0].mxu0
      %v8237 = vadd.f32 0.0, %v8236
      %v8238 = vpop.f32.mrb[0].mxu0
      %8239 = vmatprep.mubr.bf16.mxu0 0
      %8240 = vmatmul.mubr.bf16.gmra.mrb[0].mxu0 %v8071
      %v8241 = vpop.f32.mrb[0].mxu0
      %v8242 = vadd.f32 0.0, %v8241
      %v8243 = vpop.f32.mrb[0].mxu0
      %v8244 = vpop.f32.mrb[0].mxu0
      %v8245 = vadd.f32 0.0, %v8244
      %v8246 = vpop.f32.mrb[0].mxu0
      %8247 = vmatprep.mubr.bf16.mxu0 0
      %8248 = vmatmul.mubr.bf16.gmra.mrb[0].mxu0 %v8072
      %v8249 = vpop.f32.mrb[0].mxu0
      %v8250 = vadd.f32 0.0, %v8249
      %v8251 = vpop.f32.mrb[0].mxu0
      %v8252 = vpop.f32.mrb[0].mxu0
      %v8253 = vadd.f32 0.0, %v8252
      %v8254 = vpop.f32.mrb[0].mxu0
      %8255 = vmatprep.mubr.bf16.mxu0 0
      %8256 = vmatmul.mubr.bf16.gmra.mrb[0].mxu0 %v8073
      %v8257 = vpop.f32.mrb[0].mxu0
      %v8258 = vadd.f32 0.0, %v8257
      %v8259 = vpop.f32.mrb[0].mxu0
      %v8260 = vpop.f32.mrb[0].mxu0
      %v8261 = vadd.f32 0.0, %v8260
      %v8262 = vpop.f32.mrb[0].mxu0
      %8263 = vmatprep.mubr.bf16.mxu0 0
      %8264 = vmatmul.mubr.bf16.gmra.mrb[0].mxu0 %v8074
      %v8265 = vpop.f32.mrb[0].mxu0
      %v8266 = vadd.f32 0.0, %v8265
      %v8267 = vpop.f32.mrb[0].mxu0
      %v8268 = vpop.f32.mrb[0].mxu0
      %v8269 = vadd.f32 0.0, %v8268
      %v8270 = vpop.f32.mrb[0].mxu0
      %8271 = vmatprep.mubr.bf16.mxu0 0
      %8272 = vmatmul.mubr.bf16.gmra.mrb[0].mxu0 %v8075
      %v8273 = vpop.f32.mrb[0].mxu0
      %v8274 = vadd.f32 0.0, %v8273
      %v8275 = vpop.f32.mrb[0].mxu0
      %v8276 = vpop.f32.mrb[0].mxu0
      %v8277 = vadd.f32 0.0, %v8276
      %v8278 = vpop.f32.mrb[0].mxu0
      %8279 = vmatprep.mubr.bf16.mxu0 0
      %8280 = vmatmul.mubr.bf16.gmra.mrb[0].mxu0 %v8076
      %v8281 = vpop.f32.mrb[0].mxu0
      %v8282 = vadd.f32 0.0, %v8281
      %v8283 = vpop.f32.mrb[0].mxu0
      %v8284 = vpop.f32.mrb[0].mxu0
      %v8285 = vadd.f32 0.0, %v8284
      %v8286 = vpop.f32.mrb[0].mxu0
      %8287 = vmatprep.mubr.bf16.mxu0 0
      %8288 = vmatmul.mubr.bf16.gmra.mrb[0].mxu0 %v8077
      %v8289 = vpop.f32.mrb[0].mxu0
      %v8290 = vadd.f32 0.0, %v8289
      %v8291 = vpop.f32.mrb[0].mxu0
      %v8292 = vpop.f32.mrb[0].mxu0
      %v8293 = vadd.f32 0.0, %v8292
      %v8294 = vpop.f32.mrb[0].mxu0
      %8295 = vmatprep.mubr.bf16.mxu0 0
      %8296 = vmatmul.mubr.bf16.gmra.mrb[0].mxu0 %v8078
      %v8297 = vpop.f32.mrb[0].mxu0
      %v8298 = vadd.f32 0.0, %v8297
      %v8299 = vpop.f32.mrb[0].mxu0
      %v8300 = vpop.f32.mrb[0].mxu0
      %v8301 = vadd.f32 0.0, %v8300
      %v8302 = vpop.f32.mrb[0].mxu0
      %8303 = vdwg.mxu0
      %v8304 = vld [vmem:[%s8 + $0x1] sm:$0x1]
      %v8306 = vlaneseq
      %v8307 = vshrl.u32 %v8306, 7
      %v8308 = vsub.s32 0, %v8307
      %v8309 = vrot.slane %v8304, %v8308
      %v8311 = vmul.f32 %v8178, %v8309
      %v8312 = vmul.f32 %v8181, %v8309
      %v8313 = vmul.f32 %v8186, %v8309
      %v8314 = vmul.f32 %v8189, %v8309
      %v8315 = vmul.f32 %v8194, %v8309
      %v8316 = vmul.f32 %v8197, %v8309
      %v8317 = vmul.f32 %v8202, %v8309
      %v8318 = vmul.f32 %v8205, %v8309
      %v8319 = vmul.f32 %v8210, %v8309
      %v8320 = vmul.f32 %v8213, %v8309
      %v8321 = vmul.f32 %v8218, %v8309
      %v8322 = vmul.f32 %v8221, %v8309
      %v8323 = vmul.f32 %v8226, %v8309
      %v8324 = vmul.f32 %v8229, %v8309
      %v8325 = vmul.f32 %v8234, %v8309
      %v8326 = vmul.f32 %v8237, %v8309
      %v8327 = vmul.f32 %v8242, %v8309
      %v8328 = vmul.f32 %v8245, %v8309
      %v8329 = vmul.f32 %v8250, %v8309
      %v8330 = vmul.f32 %v8253, %v8309
      %v8331 = vmul.f32 %v8258, %v8309
      %v8332 = vmul.f32 %v8261, %v8309
      %v8333 = vmul.f32 %v8266, %v8309
      %v8334 = vmul.f32 %v8269, %v8309
      %v8335 = vmul.f32 %v8274, %v8309
      %v8336 = vmul.f32 %v8277, %v8309
      %v8337 = vmul.f32 %v8282, %v8309
      %v8338 = vmul.f32 %v8285, %v8309
      %v8339 = vmul.f32 %v8290, %v8309
      %v8340 = vmul.f32 %v8293, %v8309
      %v8341 = vmul.f32 %v8298, %v8309
      %v8342 = vmul.f32 %v8301, %v8309
      %v8343 = vld [vmem:[%s9 + $0x1] sm:$0x1]
      %v8345 = vlaneseq
      %v8346 = vshrl.u32 %v8345, 7
      %v8347 = vsub.s32 0, %v8346
      %v8348 = vrot.slane %v8343, %v8347
      %v8350 = vadd.f32 %v8311, %v8348
      %v8351 = vadd.f32 %v8312, %v8348
      %v8352 = vadd.f32 %v8313, %v8348
      %v8353 = vadd.f32 %v8314, %v8348
      %v8354 = vadd.f32 %v8315, %v8348
      %v8355 = vadd.f32 %v8316, %v8348
      %v8356 = vadd.f32 %v8317, %v8348
      %v8357 = vadd.f32 %v8318, %v8348
      %v8358 = vadd.f32 %v8319, %v8348
      %v8359 = vadd.f32 %v8320, %v8348
      %v8360 = vadd.f32 %v8321, %v8348
      %v8361 = vadd.f32 %v8322, %v8348
      %v8362 = vadd.f32 %v8323, %v8348
      %v8363 = vadd.f32 %v8324, %v8348
      %v8364 = vadd.f32 %v8325, %v8348
      %v8365 = vadd.f32 %v8326, %v8348
      %v8366 = vadd.f32 %v8327, %v8348
      %v8367 = vadd.f32 %v8328, %v8348
      %v8368 = vadd.f32 %v8329, %v8348
      %v8369 = vadd.f32 %v8330, %v8348
      %v8370 = vadd.f32 %v8331, %v8348
      %v8371 = vadd.f32 %v8332, %v8348
      %v8372 = vadd.f32 %v8333, %v8348
      %v8373 = vadd.f32 %v8334, %v8348
      %v8374 = vadd.f32 %v8335, %v8348
      %v8375 = vadd.f32 %v8336, %v8348
      %v8376 = vadd.f32 %v8337, %v8348
      %v8377 = vadd.f32 %v8338, %v8348
      %v8378 = vadd.f32 %v8339, %v8348
      %v8379 = vadd.f32 %v8340, %v8348
      %v8380 = vadd.f32 %v8341, %v8348
      %v8381 = vadd.f32 %v8342, %v8348
      %v8382 = vlaneseq
      %v8383 = vshrl.u32 %v8382, 7
      %v8384 = vsub.s32 0, %v8383
      %v8385 = vrot.slane %v7529, %v8384
      %v8386 = vmul.f32 %v8350, %v8385
      %v8387 = vmul.f32 %v8351, %v8385
      %v8388 = vmul.f32 %v8352, %v8385
      %v8389 = vmul.f32 %v8353, %v8385
      %v8390 = vmul.f32 %v8354, %v8385
      %v8391 = vmul.f32 %v8355, %v8385
      %v8392 = vmul.f32 %v8356, %v8385
      %v8393 = vmul.f32 %v8357, %v8385
      %v8394 = vmul.f32 %v8358, %v8385
      %v8395 = vmul.f32 %v8359, %v8385
      %v8396 = vmul.f32 %v8360, %v8385
      %v8397 = vmul.f32 %v8361, %v8385
      %v8398 = vmul.f32 %v8362, %v8385
      %v8399 = vmul.f32 %v8363, %v8385
      %v8400 = vmul.f32 %v8364, %v8385
      %v8401 = vmul.f32 %v8365, %v8385
      %v8402 = vmul.f32 %v8366, %v8385
      %v8403 = vmul.f32 %v8367, %v8385
      %v8404 = vmul.f32 %v8368, %v8385
      %v8405 = vmul.f32 %v8369, %v8385
      %v8406 = vmul.f32 %v8370, %v8385
      %v8407 = vmul.f32 %v8371, %v8385
      %v8408 = vmul.f32 %v8372, %v8385
      %v8409 = vmul.f32 %v8373, %v8385
      %v8410 = vmul.f32 %v8374, %v8385
      %v8411 = vmul.f32 %v8375, %v8385
      %v8412 = vmul.f32 %v8376, %v8385
      %v8413 = vmul.f32 %v8377, %v8385
      %v8414 = vmul.f32 %v8378, %v8385
      %v8415 = vmul.f32 %v8379, %v8385
      %v8416 = vmul.f32 %v8380, %v8385
      %v8417 = vmul.f32 %v8381, %v8385
      %8418 = vxpose.xlu0.b32.start [1/16] %v8386, 128
      %8419 = vxpose.xlu0.b32.cont [2/16] %v8387, 128
      %8420 = vxpose.xlu0.b32.cont [3/16] %v8388, 128
      %8421 = vxpose.xlu0.b32.cont [4/16] %v8389, 128
      %8422 = vxpose.xlu0.b32.cont [5/16] %v8390, 128
      %8423 = vxpose.xlu0.b32.cont [6/16] %v8391, 128
      %8424 = vxpose.xlu0.b32.cont [7/16] %v8392, 128
      %8425 = vxpose.xlu0.b32.cont [8/16] %v8393, 128
      %8426 = vxpose.xlu0.b32.cont [9/16] %v8394, 128
      %8427 = vxpose.xlu0.b32.cont [10/16] %v8395, 128
      %8428 = vxpose.xlu0.b32.cont [11/16] %v8396, 128
      %8429 = vxpose.xlu0.b32.cont [12/16] %v8397, 128
      %8430 = vxpose.xlu0.b32.cont [13/16] %v8398, 128
      %8431 = vxpose.xlu0.b32.cont [14/16] %v8399, 128
      %8432 = vxpose.xlu0.b32.cont [15/16] %v8400, 128
      %8433 = vxpose.xlu0.b32.end [16/16] %v8401, 128
      %v8434 = vpop.trf.xlu0
      %v8435 = vpop.trf.xlu0
      %v8436 = vpop.trf.xlu0
      %v8437 = vpop.trf.xlu0
      %v8438 = vpop.trf.xlu0
      %v8439 = vpop.trf.xlu0
      %v8440 = vpop.trf.xlu0
      %v8441 = vpop.trf.xlu0
      %v8442 = vpop.trf.xlu0
      %v8443 = vpop.trf.xlu0
      %v8444 = vpop.trf.xlu0
      %v8445 = vpop.trf.xlu0
      %v8446 = vpop.trf.xlu0
      %v8447 = vpop.trf.xlu0
      %v8448 = vpop.trf.xlu0
      %v8449 = vpop.trf.xlu0
      %8450 = vxpose.xlu0.b32.start [1/16] %v8402, 128
      %8451 = vxpose.xlu0.b32.cont [2/16] %v8403, 128
      %8452 = vxpose.xlu0.b32.cont [3/16] %v8404, 128
      %8453 = vxpose.xlu0.b32.cont [4/16] %v8405, 128
      %8454 = vxpose.xlu0.b32.cont [5/16] %v8406, 128
      %8455 = vxpose.xlu0.b32.cont [6/16] %v8407, 128
      %8456 = vxpose.xlu0.b32.cont [7/16] %v8408, 128
      %8457 = vxpose.xlu0.b32.cont [8/16] %v8409, 128
      %8458 = vxpose.xlu0.b32.cont [9/16] %v8410, 128
      %8459 = vxpose.xlu0.b32.cont [10/16] %v8411, 128
      %8460 = vxpose.xlu0.b32.cont [11/16] %v8412, 128
      %8461 = vxpose.xlu0.b32.cont [12/16] %v8413, 128
      %8462 = vxpose.xlu0.b32.cont [13/16] %v8414, 128
      %8463 = vxpose.xlu0.b32.cont [14/16] %v8415, 128
      %8464 = vxpose.xlu0.b32.cont [15/16] %v8416, 128
      %8465 = vxpose.xlu0.b32.end [16/16] %v8417, 128
      %v8466 = vpop.trf.xlu0
      %v8467 = vpop.trf.xlu0
      %v8468 = vpop.trf.xlu0
      %v8469 = vpop.trf.xlu0
      %v8470 = vpop.trf.xlu0
      %v8471 = vpop.trf.xlu0
      %v8472 = vpop.trf.xlu0
      %v8473 = vpop.trf.xlu0
      %v8474 = vpop.trf.xlu0
      %v8475 = vpop.trf.xlu0
      %v8476 = vpop.trf.xlu0
      %v8477 = vpop.trf.xlu0
      %v8478 = vpop.trf.xlu0
      %v8479 = vpop.trf.xlu0
      %v8480 = vpop.trf.xlu0
      %v8481 = vpop.trf.xlu0
      %v8482 = vld [vmem:[%s467 + $0x100] sm:$0xff]
      %v8483 = vld [vmem:[%s467 + $0x108] sm:$0xff]
      %v8484 = vld [vmem:[%s467 + $0x110] sm:$0xff]
      %v8485 = vld [vmem:[%s467 + $0x118] sm:$0xff]
      %v8486 = vld [vmem:[%s467 + $0x120] sm:$0xff]
      %v8487 = vld [vmem:[%s467 + $0x128] sm:$0xff]
      %v8488 = vld [vmem:[%s467 + $0x130] sm:$0xff]
      %v8489 = vld [vmem:[%s467 + $0x138] sm:$0xff]
      %v8490 = vld [vmem:[%s467 + $0x140] sm:$0xff]
      %v8491 = vld [vmem:[%s467 + $0x148] sm:$0xff]
      %v8492 = vld [vmem:[%s467 + $0x150] sm:$0xff]
      %v8493 = vld [vmem:[%s467 + $0x158] sm:$0xff]
      %v8494 = vld [vmem:[%s467 + $0x160] sm:$0xff]
      %v8495 = vld [vmem:[%s467 + $0x168] sm:$0xff]
      %v8496 = vld [vmem:[%s467 + $0x170] sm:$0xff]
      %v8497 = vld [vmem:[%s467 + $0x178] sm:$0xff]
      %v8498 = vld [vmem:[%s467 + $0x180] sm:$0xff]
      %v8499 = vld [vmem:[%s467 + $0x188] sm:$0xff]
      %v8500 = vld [vmem:[%s467 + $0x190] sm:$0xff]
      %v8501 = vld [vmem:[%s467 + $0x198] sm:$0xff]
      %v8502 = vld [vmem:[%s467 + $0x1a0] sm:$0xff]
      %v8503 = vld [vmem:[%s467 + $0x1a8] sm:$0xff]
      %v8504 = vld [vmem:[%s467 + $0x1b0] sm:$0xff]
      %v8505 = vld [vmem:[%s467 + $0x1b8] sm:$0xff]
      %v8506 = vld [vmem:[%s467 + $0x1c0] sm:$0xff]
      %v8507 = vld [vmem:[%s467 + $0x1c8] sm:$0xff]
      %v8508 = vld [vmem:[%s467 + $0x1d0] sm:$0xff]
      %v8509 = vld [vmem:[%s467 + $0x1d8] sm:$0xff]
      %v8510 = vld [vmem:[%s467 + $0x1e0] sm:$0xff]
      %v8511 = vld [vmem:[%s467 + $0x1e8] sm:$0xff]
      %v8512 = vld [vmem:[%s467 + $0x1f0] sm:$0xff]
      %v8513 = vld [vmem:[%s467 + $0x1f8] sm:$0xff]
      %v8514 = vadd.f32 %v8434, %v8482
      %v8515 = vadd.f32 %v8466, %v8483
      %v8516 = vadd.f32 %v8435, %v8484
      %v8517 = vadd.f32 %v8467, %v8485
      %v8518 = vadd.f32 %v8436, %v8486
      %v8519 = vadd.f32 %v8468, %v8487
      %v8520 = vadd.f32 %v8437, %v8488
      %v8521 = vadd.f32 %v8469, %v8489
      %v8522 = vadd.f32 %v8438, %v8490
      %v8523 = vadd.f32 %v8470, %v8491
      %v8524 = vadd.f32 %v8439, %v8492
      %v8525 = vadd.f32 %v8471, %v8493
      %v8526 = vadd.f32 %v8440, %v8494
      %v8527 = vadd.f32 %v8472, %v8495
      %v8528 = vadd.f32 %v8441, %v8496
      %v8529 = vadd.f32 %v8473, %v8497
      %v8530 = vadd.f32 %v8442, %v8498
      %v8531 = vadd.f32 %v8474, %v8499
      %v8532 = vadd.f32 %v8443, %v8500
      %v8533 = vadd.f32 %v8475, %v8501
      %v8534 = vadd.f32 %v8444, %v8502
      %v8535 = vadd.f32 %v8476, %v8503
      %v8536 = vadd.f32 %v8445, %v8504
      %v8537 = vadd.f32 %v8477, %v8505
      %v8538 = vadd.f32 %v8446, %v8506
      %v8539 = vadd.f32 %v8478, %v8507
      %v8540 = vadd.f32 %v8447, %v8508
      %v8541 = vadd.f32 %v8479, %v8509
      %v8542 = vadd.f32 %v8448, %v8510
      %v8543 = vadd.f32 %v8480, %v8511
      %v8544 = vadd.f32 %v8449, %v8512
      %v8545 = vadd.f32 %v8481, %v8513
      %v8546 = vmax.f32 %v8514, 0.0
      %v8547 = vmax.f32 %v8515, 0.0
      %v8548 = vmax.f32 %v8516, 0.0
      %v8549 = vmax.f32 %v8517, 0.0
      %v8550 = vmax.f32 %v8518, 0.0
      %v8551 = vmax.f32 %v8519, 0.0
      %v8552 = vmax.f32 %v8520, 0.0
      %v8553 = vmax.f32 %v8521, 0.0
      %v8554 = vmax.f32 %v8522, 0.0
      %v8555 = vmax.f32 %v8523, 0.0
      %v8556 = vmax.f32 %v8524, 0.0
      %v8557 = vmax.f32 %v8525, 0.0
      %v8558 = vmax.f32 %v8526, 0.0
      %v8559 = vmax.f32 %v8527, 0.0
      %v8560 = vmax.f32 %v8528, 0.0
      %v8561 = vmax.f32 %v8529, 0.0
      %v8562 = vmax.f32 %v8530, 0.0
      %v8563 = vmax.f32 %v8531, 0.0
      %v8564 = vmax.f32 %v8532, 0.0
      %v8565 = vmax.f32 %v8533, 0.0
      %v8566 = vmax.f32 %v8534, 0.0
      %v8567 = vmax.f32 %v8535, 0.0
      %v8568 = vmax.f32 %v8536, 0.0
      %v8569 = vmax.f32 %v8537, 0.0
      %v8570 = vmax.f32 %v8538, 0.0
      %v8571 = vmax.f32 %v8539, 0.0
      %v8572 = vmax.f32 %v8540, 0.0
      %v8573 = vmax.f32 %v8541, 0.0
      %v8574 = vmax.f32 %v8542, 0.0
      %v8575 = vmax.f32 %v8543, 0.0
      %v8576 = vmax.f32 %v8544, 0.0
      %v8577 = vmax.f32 %v8545, 0.0
      %8578 = vst [vmem:[%s474 + $0x100] sm:$0xff] %v8546
      %8579 = vst [vmem:[%s474 + $0x108] sm:$0xff] %v8547
      %8580 = vst [vmem:[%s474 + $0x110] sm:$0xff] %v8548
      %8581 = vst [vmem:[%s474 + $0x118] sm:$0xff] %v8549
      %8582 = vst [vmem:[%s474 + $0x120] sm:$0xff] %v8550
      %8583 = vst [vmem:[%s474 + $0x128] sm:$0xff] %v8551
      %8584 = vst [vmem:[%s474 + $0x130] sm:$0xff] %v8552
      %8585 = vst [vmem:[%s474 + $0x138] sm:$0xff] %v8553
      %8586 = vst [vmem:[%s474 + $0x140] sm:$0xff] %v8554
      %8587 = vst [vmem:[%s474 + $0x148] sm:$0xff] %v8555
      %8588 = vst [vmem:[%s474 + $0x150] sm:$0xff] %v8556
      %8589 = vst [vmem:[%s474 + $0x158] sm:$0xff] %v8557
      %8590 = vst [vmem:[%s474 + $0x160] sm:$0xff] %v8558
      %8591 = vst [vmem:[%s474 + $0x168] sm:$0xff] %v8559
      %8592 = vst [vmem:[%s474 + $0x170] sm:$0xff] %v8560
      %8593 = vst [vmem:[%s474 + $0x178] sm:$0xff] %v8561
      %8594 = vst [vmem:[%s474 + $0x180] sm:$0xff] %v8562
      %8595 = vst [vmem:[%s474 + $0x188] sm:$0xff] %v8563
      %8596 = vst [vmem:[%s474 + $0x190] sm:$0xff] %v8564
      %8597 = vst [vmem:[%s474 + $0x198] sm:$0xff] %v8565
      %8598 = vst [vmem:[%s474 + $0x1a0] sm:$0xff] %v8566
      %8599 = vst [vmem:[%s474 + $0x1a8] sm:$0xff] %v8567
      %8600 = vst [vmem:[%s474 + $0x1b0] sm:$0xff] %v8568
      %8601 = vst [vmem:[%s474 + $0x1b8] sm:$0xff] %v8569
      %8602 = vst [vmem:[%s474 + $0x1c0] sm:$0xff] %v8570
      %8603 = vst [vmem:[%s474 + $0x1c8] sm:$0xff] %v8571
      %8604 = vst [vmem:[%s474 + $0x1d0] sm:$0xff] %v8572
      %8605 = vst [vmem:[%s474 + $0x1d8] sm:$0xff] %v8573
      %8606 = vst [vmem:[%s474 + $0x1e0] sm:$0xff] %v8574
      %8607 = vst [vmem:[%s474 + $0x1e8] sm:$0xff] %v8575
      %8608 = vst [vmem:[%s474 + $0x1f0] sm:$0xff] %v8576
      %8609 = vst [vmem:[%s474 + $0x1f8] sm:$0xff] %v8577
      %v8610 = vld [vmem:[#allocation4] sm:$0xff]
      %v8611 = vld [vmem:[#allocation4 + $0x8] sm:$0xff]
      %v8612 = vld [vmem:[#allocation4 + $0x10] sm:$0xff]
      %v8613 = vld [vmem:[#allocation4 + $0x18] sm:$0xff]
      %v8614 = vld [vmem:[#allocation4 + $0x20] sm:$0xff]
      %v8615 = vld [vmem:[#allocation4 + $0x28] sm:$0xff]
      %v8616 = vld [vmem:[#allocation4 + $0x30] sm:$0xff]
      %v8617 = vld [vmem:[#allocation4 + $0x38] sm:$0xff]
      %v8618 = vld [vmem:[#allocation4 + $0x40] sm:$0xff]
      %v8619 = vld [vmem:[#allocation4 + $0x48] sm:$0xff]
      %v8620 = vld [vmem:[#allocation4 + $0x50] sm:$0xff]
      %v8621 = vld [vmem:[#allocation4 + $0x58] sm:$0xff]
      %v8622 = vld [vmem:[#allocation4 + $0x60] sm:$0xff]
      %v8623 = vld [vmem:[#allocation4 + $0x68] sm:$0xff]
      %v8624 = vld [vmem:[#allocation4 + $0x70] sm:$0xff]
      %v8625 = vld [vmem:[#allocation4 + $0x78] sm:$0xff]
      %v8626 = vld [vmem:[%s7 + $0x8] sm:$0xf]
      %v8627 = vld [vmem:[%s7 + $0x18] sm:$0xf]
      %v8628 = vld [vmem:[%s7 + $0x28] sm:$0xf]
      %v8629 = vld [vmem:[%s7 + $0x38] sm:$0xf]
      %v8630 = vld [vmem:[%s7 + $0x48] sm:$0xf]
      %v8631 = vld [vmem:[%s7 + $0x58] sm:$0xf]
      %v8632 = vld [vmem:[%s7 + $0x68] sm:$0xf]
      %v8633 = vld [vmem:[%s7 + $0x78] sm:$0xf]
      %v8634 = vld [vmem:[%s7 + $0x88] sm:$0xf]
      %v8635 = vld [vmem:[%s7 + $0x98] sm:$0xf]
      %v8636 = vld [vmem:[%s7 + $0xa8] sm:$0xf]
      %v8637 = vld [vmem:[%s7 + $0xb8] sm:$0xf]
      %v8638 = vld [vmem:[%s7 + $0xc8] sm:$0xf]
      %v8639 = vld [vmem:[%s7 + $0xd8] sm:$0xf]
      %v8640 = vld [vmem:[%s7 + $0xe8] sm:$0xf]
      %v8641 = vld [vmem:[%s7 + $0xf8] sm:$0xf]
      %v8658 = vunpack.c.l.b16 %v8626
      %v8659 = vunpack.c.l.b16 %v8627
      %v8660 = vunpack.c.l.b16 %v8628
      %v8661 = vunpack.c.l.b16 %v8629
      %v8662 = vunpack.c.l.b16 %v8630
      %v8663 = vunpack.c.l.b16 %v8631
      %v8664 = vunpack.c.l.b16 %v8632
      %v8665 = vunpack.c.l.b16 %v8633
      %v8666 = vunpack.c.l.b16 %v8634
      %v8667 = vunpack.c.l.b16 %v8635
      %v8668 = vunpack.c.l.b16 %v8636
      %v8669 = vunpack.c.l.b16 %v8637
      %v8670 = vunpack.c.l.b16 %v8638
      %v8671 = vunpack.c.l.b16 %v8639
      %v8672 = vunpack.c.l.b16 %v8640
      %v8673 = vunpack.c.l.b16 %v8641
      %v8674 = vpack.c.b16 %v8659, %v8658
      %v8675 = vpack.c.b16 %v8661, %v8660
      %v8676 = vpack.c.b16 %v8663, %v8662
      %v8677 = vpack.c.b16 %v8665, %v8664
      %v8678 = vpack.c.b16 %v8667, %v8666
      %v8679 = vpack.c.b16 %v8669, %v8668
      %v8680 = vpack.c.b16 %v8671, %v8670
      %v8681 = vpack.c.b16 %v8673, %v8672
      %8690 = vmatprep.subr.bf16.mxu0 0
      %8691 = vmatpush1.bf16.msra.mxu0 %v8674
      %8692 = vmatprep.subr.bf16.mxu0 0
      %8693 = vmatpush1.bf16.msra.mxu0 %v8675
      %8694 = vmatprep.subr.bf16.mxu0 0
      %8695 = vmatpush1.bf16.msra.mxu0 %v8676
      %8696 = vmatprep.subr.bf16.mxu0 0
      %8697 = vmatpush1.bf16.msra.mxu0 %v8677
      %8698 = vmatprep.subr.bf16.mxu0 0
      %8699 = vmatpush1.bf16.msra.mxu0 %v8678
      %8700 = vmatprep.subr.bf16.mxu0 0
      %8701 = vmatpush1.bf16.msra.mxu0 %v8679
      %8702 = vmatprep.subr.bf16.mxu0 0
      %8703 = vmatpush1.bf16.msra.mxu0 %v8680
      %8704 = vmatprep.subr.bf16.mxu0 0
      %8705 = vmatpush1.bf16.msra.mxu0 %v8681
      %8706 = vmatprep.subr.bf16.mxu0 0
      %8707 = vmatpush1.bf16.msra.mxu0 0
      %8708 = vmatprep.subr.bf16.mxu0 0
      %8709 = vmatpush1.bf16.msra.mxu0 0
      %8710 = vmatprep.subr.bf16.mxu0 0
      %8711 = vmatpush1.bf16.msra.mxu0 0
      %8712 = vmatprep.subr.bf16.mxu0 0
      %8713 = vmatpush1.bf16.msra.mxu0 0
      %8714 = vmatprep.subr.bf16.mxu0 0
      %8715 = vmatpush1.bf16.msra.mxu0 0
      %8716 = vmatprep.subr.bf16.mxu0 0
      %8717 = vmatpush1.bf16.msra.mxu0 0
      %8718 = vmatprep.subr.bf16.mxu0 0
      %8719 = vmatpush1.bf16.msra.mxu0 0
      %8720 = vmatprep.subr.bf16.mxu0 0
      %8721 = vmatpush1.bf16.msra.mxu0 0
      %8722 = vmatprep.mubr.bf16.mxu0 0
      %8723 = vmatmul.mubr.bf16.gmra.mrb[0].mxu0 %v8610
      %v8724 = vpop.f32.mrb[0].mxu0
      %v8725 = vadd.f32 0.0, %v8724
      %v8726 = vpop.f32.mrb[0].mxu0
      %v8727 = vpop.f32.mrb[0].mxu0
      %v8728 = vadd.f32 0.0, %v8727
      %v8729 = vpop.f32.mrb[0].mxu0
      %8730 = vmatprep.mubr.bf16.mxu0 0
      %8731 = vmatmul.mubr.bf16.gmra.mrb[0].mxu0 %v8611
      %v8732 = vpop.f32.mrb[0].mxu0
      %v8733 = vadd.f32 0.0, %v8732
      %v8734 = vpop.f32.mrb[0].mxu0
      %v8735 = vpop.f32.mrb[0].mxu0
      %v8736 = vadd.f32 0.0, %v8735
      %v8737 = vpop.f32.mrb[0].mxu0
      %8738 = vmatprep.mubr.bf16.mxu0 0
      %8739 = vmatmul.mubr.bf16.gmra.mrb[0].mxu0 %v8612
      %v8740 = vpop.f32.mrb[0].mxu0
      %v8741 = vadd.f32 0.0, %v8740
      %v8742 = vpop.f32.mrb[0].mxu0
      %v8743 = vpop.f32.mrb[0].mxu0
      %v8744 = vadd.f32 0.0, %v8743
      %v8745 = vpop.f32.mrb[0].mxu0
      %8746 = vmatprep.mubr.bf16.mxu0 0
      %8747 = vmatmul.mubr.bf16.gmra.mrb[0].mxu0 %v8613
      %v8748 = vpop.f32.mrb[0].mxu0
      %v8749 = vadd.f32 0.0, %v8748
      %v8750 = vpop.f32.mrb[0].mxu0
      %v8751 = vpop.f32.mrb[0].mxu0
      %v8752 = vadd.f32 0.0, %v8751
      %v8753 = vpop.f32.mrb[0].mxu0
      %8754 = vmatprep.mubr.bf16.mxu0 0
      %8755 = vmatmul.mubr.bf16.gmra.mrb[0].mxu0 %v8614
      %v8756 = vpop.f32.mrb[0].mxu0
      %v8757 = vadd.f32 0.0, %v8756
      %v8758 = vpop.f32.mrb[0].mxu0
      %v8759 = vpop.f32.mrb[0].mxu0
      %v8760 = vadd.f32 0.0, %v8759
      %v8761 = vpop.f32.mrb[0].mxu0
      %8762 = vmatprep.mubr.bf16.mxu0 0
      %8763 = vmatmul.mubr.bf16.gmra.mrb[0].mxu0 %v8615
      %v8764 = vpop.f32.mrb[0].mxu0
      %v8765 = vadd.f32 0.0, %v8764
      %v8766 = vpop.f32.mrb[0].mxu0
      %v8767 = vpop.f32.mrb[0].mxu0
      %v8768 = vadd.f32 0.0, %v8767
      %v8769 = vpop.f32.mrb[0].mxu0
      %8770 = vmatprep.mubr.bf16.mxu0 0
      %8771 = vmatmul.mubr.bf16.gmra.mrb[0].mxu0 %v8616
      %v8772 = vpop.f32.mrb[0].mxu0
      %v8773 = vadd.f32 0.0, %v8772
      %v8774 = vpop.f32.mrb[0].mxu0
      %v8775 = vpop.f32.mrb[0].mxu0
      %v8776 = vadd.f32 0.0, %v8775
      %v8777 = vpop.f32.mrb[0].mxu0
      %8778 = vmatprep.mubr.bf16.mxu0 0
      %8779 = vmatmul.mubr.bf16.gmra.mrb[0].mxu0 %v8617
      %v8780 = vpop.f32.mrb[0].mxu0
      %v8781 = vadd.f32 0.0, %v8780
      %v8782 = vpop.f32.mrb[0].mxu0
      %v8783 = vpop.f32.mrb[0].mxu0
      %v8784 = vadd.f32 0.0, %v8783
      %v8785 = vpop.f32.mrb[0].mxu0
      %8786 = vmatprep.mubr.bf16.mxu0 0
      %8787 = vmatmul.mubr.bf16.gmra.mrb[0].mxu0 %v8618
      %v8788 = vpop.f32.mrb[0].mxu0
      %v8789 = vadd.f32 0.0, %v8788
      %v8790 = vpop.f32.mrb[0].mxu0
      %v8791 = vpop.f32.mrb[0].mxu0
      %v8792 = vadd.f32 0.0, %v8791
      %v8793 = vpop.f32.mrb[0].mxu0
      %8794 = vmatprep.mubr.bf16.mxu0 0
      %8795 = vmatmul.mubr.bf16.gmra.mrb[0].mxu0 %v8619
      %v8796 = vpop.f32.mrb[0].mxu0
      %v8797 = vadd.f32 0.0, %v8796
      %v8798 = vpop.f32.mrb[0].mxu0
      %v8799 = vpop.f32.mrb[0].mxu0
      %v8800 = vadd.f32 0.0, %v8799
      %v8801 = vpop.f32.mrb[0].mxu0
      %8802 = vmatprep.mubr.bf16.mxu0 0
      %8803 = vmatmul.mubr.bf16.gmra.mrb[0].mxu0 %v8620
      %v8804 = vpop.f32.mrb[0].mxu0
      %v8805 = vadd.f32 0.0, %v8804
      %v8806 = vpop.f32.mrb[0].mxu0
      %v8807 = vpop.f32.mrb[0].mxu0
      %v8808 = vadd.f32 0.0, %v8807
      %v8809 = vpop.f32.mrb[0].mxu0
      %8810 = vmatprep.mubr.bf16.mxu0 0
      %8811 = vmatmul.mubr.bf16.gmra.mrb[0].mxu0 %v8621
      %v8812 = vpop.f32.mrb[0].mxu0
      %v8813 = vadd.f32 0.0, %v8812
      %v8814 = vpop.f32.mrb[0].mxu0
      %v8815 = vpop.f32.mrb[0].mxu0
      %v8816 = vadd.f32 0.0, %v8815
      %v8817 = vpop.f32.mrb[0].mxu0
      %8818 = vmatprep.mubr.bf16.mxu0 0
      %8819 = vmatmul.mubr.bf16.gmra.mrb[0].mxu0 %v8622
      %v8820 = vpop.f32.mrb[0].mxu0
      %v8821 = vadd.f32 0.0, %v8820
      %v8822 = vpop.f32.mrb[0].mxu0
      %v8823 = vpop.f32.mrb[0].mxu0
      %v8824 = vadd.f32 0.0, %v8823
      %v8825 = vpop.f32.mrb[0].mxu0
      %8826 = vmatprep.mubr.bf16.mxu0 0
      %8827 = vmatmul.mubr.bf16.gmra.mrb[0].mxu0 %v8623
      %v8828 = vpop.f32.mrb[0].mxu0
      %v8829 = vadd.f32 0.0, %v8828
      %v8830 = vpop.f32.mrb[0].mxu0
      %v8831 = vpop.f32.mrb[0].mxu0
      %v8832 = vadd.f32 0.0, %v8831
      %v8833 = vpop.f32.mrb[0].mxu0
      %8834 = vmatprep.mubr.bf16.mxu0 0
      %8835 = vmatmul.mubr.bf16.gmra.mrb[0].mxu0 %v8624
      %v8836 = vpop.f32.mrb[0].mxu0
      %v8837 = vadd.f32 0.0, %v8836
      %v8838 = vpop.f32.mrb[0].mxu0
      %v8839 = vpop.f32.mrb[0].mxu0
      %v8840 = vadd.f32 0.0, %v8839
      %v8841 = vpop.f32.mrb[0].mxu0
      %8842 = vmatprep.mubr.bf16.mxu0 0
      %8843 = vmatmul.mubr.bf16.gmra.mrb[0].mxu0 %v8625
      %v8844 = vpop.f32.mrb[0].mxu0
      %v8845 = vadd.f32 0.0, %v8844
      %v8846 = vpop.f32.mrb[0].mxu0
      %v8847 = vpop.f32.mrb[0].mxu0
      %v8848 = vadd.f32 0.0, %v8847
      %v8849 = vpop.f32.mrb[0].mxu0
      %8850 = vdwg.mxu0
      %v8851 = vld [vmem:[%s8 + $0x2] sm:$0x1]
      %v8853 = vlaneseq
      %v8854 = vshrl.u32 %v8853, 7
      %v8855 = vsub.s32 0, %v8854
      %v8856 = vrot.slane %v8851, %v8855
      %v8858 = vmul.f32 %v8725, %v8856
      %v8859 = vmul.f32 %v8728, %v8856
      %v8860 = vmul.f32 %v8733, %v8856
      %v8861 = vmul.f32 %v8736, %v8856
      %v8862 = vmul.f32 %v8741, %v8856
      %v8863 = vmul.f32 %v8744, %v8856
      %v8864 = vmul.f32 %v8749, %v8856
      %v8865 = vmul.f32 %v8752, %v8856
      %v8866 = vmul.f32 %v8757, %v8856
      %v8867 = vmul.f32 %v8760, %v8856
      %v8868 = vmul.f32 %v8765, %v8856
      %v8869 = vmul.f32 %v8768, %v8856
      %v8870 = vmul.f32 %v8773, %v8856
      %v8871 = vmul.f32 %v8776, %v8856
      %v8872 = vmul.f32 %v8781, %v8856
      %v8873 = vmul.f32 %v8784, %v8856
      %v8874 = vmul.f32 %v8789, %v8856
      %v8875 = vmul.f32 %v8792, %v8856
      %v8876 = vmul.f32 %v8797, %v8856
      %v8877 = vmul.f32 %v8800, %v8856
      %v8878 = vmul.f32 %v8805, %v8856
      %v8879 = vmul.f32 %v8808, %v8856
      %v8880 = vmul.f32 %v8813, %v8856
      %v8881 = vmul.f32 %v8816, %v8856
      %v8882 = vmul.f32 %v8821, %v8856
      %v8883 = vmul.f32 %v8824, %v8856
      %v8884 = vmul.f32 %v8829, %v8856
      %v8885 = vmul.f32 %v8832, %v8856
      %v8886 = vmul.f32 %v8837, %v8856
      %v8887 = vmul.f32 %v8840, %v8856
      %v8888 = vmul.f32 %v8845, %v8856
      %v8889 = vmul.f32 %v8848, %v8856
      %v8890 = vld [vmem:[%s9 + $0x2] sm:$0x1]
      %v8892 = vlaneseq
      %v8893 = vshrl.u32 %v8892, 7
      %v8894 = vsub.s32 0, %v8893
      %v8895 = vrot.slane %v8890, %v8894
      %v8897 = vadd.f32 %v8858, %v8895
      %v8898 = vadd.f32 %v8859, %v8895
      %v8899 = vadd.f32 %v8860, %v8895
      %v8900 = vadd.f32 %v8861, %v8895
      %v8901 = vadd.f32 %v8862, %v8895
      %v8902 = vadd.f32 %v8863, %v8895
      %v8903 = vadd.f32 %v8864, %v8895
      %v8904 = vadd.f32 %v8865, %v8895
      %v8905 = vadd.f32 %v8866, %v8895
      %v8906 = vadd.f32 %v8867, %v8895
      %v8907 = vadd.f32 %v8868, %v8895
      %v8908 = vadd.f32 %v8869, %v8895
      %v8909 = vadd.f32 %v8870, %v8895
      %v8910 = vadd.f32 %v8871, %v8895
      %v8911 = vadd.f32 %v8872, %v8895
      %v8912 = vadd.f32 %v8873, %v8895
      %v8913 = vadd.f32 %v8874, %v8895
      %v8914 = vadd.f32 %v8875, %v8895
      %v8915 = vadd.f32 %v8876, %v8895
      %v8916 = vadd.f32 %v8877, %v8895
      %v8917 = vadd.f32 %v8878, %v8895
      %v8918 = vadd.f32 %v8879, %v8895
      %v8919 = vadd.f32 %v8880, %v8895
      %v8920 = vadd.f32 %v8881, %v8895
      %v8921 = vadd.f32 %v8882, %v8895
      %v8922 = vadd.f32 %v8883, %v8895
      %v8923 = vadd.f32 %v8884, %v8895
      %v8924 = vadd.f32 %v8885, %v8895
      %v8925 = vadd.f32 %v8886, %v8895
      %v8926 = vadd.f32 %v8887, %v8895
      %v8927 = vadd.f32 %v8888, %v8895
      %v8928 = vadd.f32 %v8889, %v8895
      %v8929 = vlaneseq
      %v8930 = vshrl.u32 %v8929, 7
      %v8931 = vsub.s32 0, %v8930
      %v8932 = vrot.slane %v7530, %v8931
      %v8933 = vmul.f32 %v8897, %v8932
      %v8934 = vmul.f32 %v8898, %v8932
      %v8935 = vmul.f32 %v8899, %v8932
      %v8936 = vmul.f32 %v8900, %v8932
      %v8937 = vmul.f32 %v8901, %v8932
      %v8938 = vmul.f32 %v8902, %v8932
      %v8939 = vmul.f32 %v8903, %v8932
      %v8940 = vmul.f32 %v8904, %v8932
      %v8941 = vmul.f32 %v8905, %v8932
      %v8942 = vmul.f32 %v8906, %v8932
      %v8943 = vmul.f32 %v8907, %v8932
      %v8944 = vmul.f32 %v8908, %v8932
      %v8945 = vmul.f32 %v8909, %v8932
      %v8946 = vmul.f32 %v8910, %v8932
      %v8947 = vmul.f32 %v8911, %v8932
      %v8948 = vmul.f32 %v8912, %v8932
      %v8949 = vmul.f32 %v8913, %v8932
      %v8950 = vmul.f32 %v8914, %v8932
      %v8951 = vmul.f32 %v8915, %v8932
      %v8952 = vmul.f32 %v8916, %v8932
      %v8953 = vmul.f32 %v8917, %v8932
      %v8954 = vmul.f32 %v8918, %v8932
      %v8955 = vmul.f32 %v8919, %v8932
      %v8956 = vmul.f32 %v8920, %v8932
      %v8957 = vmul.f32 %v8921, %v8932
      %v8958 = vmul.f32 %v8922, %v8932
      %v8959 = vmul.f32 %v8923, %v8932
      %v8960 = vmul.f32 %v8924, %v8932
      %v8961 = vmul.f32 %v8925, %v8932
      %v8962 = vmul.f32 %v8926, %v8932
      %v8963 = vmul.f32 %v8927, %v8932
      %v8964 = vmul.f32 %v8928, %v8932
      %8965 = vxpose.xlu0.b32.start [1/16] %v8933, 128
      %8966 = vxpose.xlu0.b32.cont [2/16] %v8934, 128
      %8967 = vxpose.xlu0.b32.cont [3/16] %v8935, 128
      %8968 = vxpose.xlu0.b32.cont [4/16] %v8936, 128
      %8969 = vxpose.xlu0.b32.cont [5/16] %v8937, 128
      %8970 = vxpose.xlu0.b32.cont [6/16] %v8938, 128
      %8971 = vxpose.xlu0.b32.cont [7/16] %v8939, 128
      %8972 = vxpose.xlu0.b32.cont [8/16] %v8940, 128
      %8973 = vxpose.xlu0.b32.cont [9/16] %v8941, 128
      %8974 = vxpose.xlu0.b32.cont [10/16] %v8942, 128
      %8975 = vxpose.xlu0.b32.cont [11/16] %v8943, 128
      %8976 = vxpose.xlu0.b32.cont [12/16] %v8944, 128
      %8977 = vxpose.xlu0.b32.cont [13/16] %v8945, 128
      %8978 = vxpose.xlu0.b32.cont [14/16] %v8946, 128
      %8979 = vxpose.xlu0.b32.cont [15/16] %v8947, 128
      %8980 = vxpose.xlu0.b32.end [16/16] %v8948, 128
      %v8981 = vpop.trf.xlu0
      %v8982 = vpop.trf.xlu0
      %v8983 = vpop.trf.xlu0
      %v8984 = vpop.trf.xlu0
      %v8985 = vpop.trf.xlu0
      %v8986 = vpop.trf.xlu0
      %v8987 = vpop.trf.xlu0
      %v8988 = vpop.trf.xlu0
      %v8989 = vpop.trf.xlu0
      %v8990 = vpop.trf.xlu0
      %v8991 = vpop.trf.xlu0
      %v8992 = vpop.trf.xlu0
      %v8993 = vpop.trf.xlu0
      %v8994 = vpop.trf.xlu0
      %v8995 = vpop.trf.xlu0
      %v8996 = vpop.trf.xlu0
      %8997 = vxpose.xlu0.b32.start [1/16] %v8949, 128
      %8998 = vxpose.xlu0.b32.cont [2/16] %v8950, 128
      %8999 = vxpose.xlu0.b32.cont [3/16] %v8951, 128
      %9000 = vxpose.xlu0.b32.cont [4/16] %v8952, 128
      %9001 = vxpose.xlu0.b32.cont [5/16] %v8953, 128
      %9002 = vxpose.xlu0.b32.cont [6/16] %v8954, 128
      %9003 = vxpose.xlu0.b32.cont [7/16] %v8955, 128
      %9004 = vxpose.xlu0.b32.cont [8/16] %v8956, 128
      %9005 = vxpose.xlu0.b32.cont [9/16] %v8957, 128
      %9006 = vxpose.xlu0.b32.cont [10/16] %v8958, 128
      %9007 = vxpose.xlu0.b32.cont [11/16] %v8959, 128
      %9008 = vxpose.xlu0.b32.cont [12/16] %v8960, 128
      %9009 = vxpose.xlu0.b32.cont [13/16] %v8961, 128
      %9010 = vxpose.xlu0.b32.cont [14/16] %v8962, 128
      %9011 = vxpose.xlu0.b32.cont [15/16] %v8963, 128
      %9012 = vxpose.xlu0.b32.end [16/16] %v8964, 128
      %v9013 = vpop.trf.xlu0
      %v9014 = vpop.trf.xlu0
      %v9015 = vpop.trf.xlu0
      %v9016 = vpop.trf.xlu0
      %v9017 = vpop.trf.xlu0
      %v9018 = vpop.trf.xlu0
      %v9019 = vpop.trf.xlu0
      %v9020 = vpop.trf.xlu0
      %v9021 = vpop.trf.xlu0
      %v9022 = vpop.trf.xlu0
      %v9023 = vpop.trf.xlu0
      %v9024 = vpop.trf.xlu0
      %v9025 = vpop.trf.xlu0
      %v9026 = vpop.trf.xlu0
      %v9027 = vpop.trf.xlu0
      %v9028 = vpop.trf.xlu0
      %v9029 = vld [vmem:[%s467 + $0x200] sm:$0xff]
      %v9030 = vld [vmem:[%s467 + $0x208] sm:$0xff]
      %v9031 = vld [vmem:[%s467 + $0x210] sm:$0xff]
      %v9032 = vld [vmem:[%s467 + $0x218] sm:$0xff]
      %v9033 = vld [vmem:[%s467 + $0x220] sm:$0xff]
      %v9034 = vld [vmem:[%s467 + $0x228] sm:$0xff]
      %v9035 = vld [vmem:[%s467 + $0x230] sm:$0xff]
      %v9036 = vld [vmem:[%s467 + $0x238] sm:$0xff]
      %v9037 = vld [vmem:[%s467 + $0x240] sm:$0xff]
      %v9038 = vld [vmem:[%s467 + $0x248] sm:$0xff]
      %v9039 = vld [vmem:[%s467 + $0x250] sm:$0xff]
      %v9040 = vld [vmem:[%s467 + $0x258] sm:$0xff]
      %v9041 = vld [vmem:[%s467 + $0x260] sm:$0xff]
      %v9042 = vld [vmem:[%s467 + $0x268] sm:$0xff]
      %v9043 = vld [vmem:[%s467 + $0x270] sm:$0xff]
      %v9044 = vld [vmem:[%s467 + $0x278] sm:$0xff]
      %v9045 = vld [vmem:[%s467 + $0x280] sm:$0xff]
      %v9046 = vld [vmem:[%s467 + $0x288] sm:$0xff]
      %v9047 = vld [vmem:[%s467 + $0x290] sm:$0xff]
      %v9048 = vld [vmem:[%s467 + $0x298] sm:$0xff]
      %v9049 = vld [vmem:[%s467 + $0x2a0] sm:$0xff]
      %v9050 = vld [vmem:[%s467 + $0x2a8] sm:$0xff]
      %v9051 = vld [vmem:[%s467 + $0x2b0] sm:$0xff]
      %v9052 = vld [vmem:[%s467 + $0x2b8] sm:$0xff]
      %v9053 = vld [vmem:[%s467 + $0x2c0] sm:$0xff]
      %v9054 = vld [vmem:[%s467 + $0x2c8] sm:$0xff]
      %v9055 = vld [vmem:[%s467 + $0x2d0] sm:$0xff]
      %v9056 = vld [vmem:[%s467 + $0x2d8] sm:$0xff]
      %v9057 = vld [vmem:[%s467 + $0x2e0] sm:$0xff]
      %v9058 = vld [vmem:[%s467 + $0x2e8] sm:$0xff]
      %v9059 = vld [vmem:[%s467 + $0x2f0] sm:$0xff]
      %v9060 = vld [vmem:[%s467 + $0x2f8] sm:$0xff]
      %v9061 = vadd.f32 %v8981, %v9029
      %v9062 = vadd.f32 %v9013, %v9030
      %v9063 = vadd.f32 %v8982, %v9031
      %v9064 = vadd.f32 %v9014, %v9032
      %v9065 = vadd.f32 %v8983, %v9033
      %v9066 = vadd.f32 %v9015, %v9034
      %v9067 = vadd.f32 %v8984, %v9035
      %v9068 = vadd.f32 %v9016, %v9036
      %v9069 = vadd.f32 %v8985, %v9037
      %v9070 = vadd.f32 %v9017, %v9038
      %v9071 = vadd.f32 %v8986, %v9039
      %v9072 = vadd.f32 %v9018, %v9040
      %v9073 = vadd.f32 %v8987, %v9041
      %v9074 = vadd.f32 %v9019, %v9042
      %v9075 = vadd.f32 %v8988, %v9043
      %v9076 = vadd.f32 %v9020, %v9044
      %v9077 = vadd.f32 %v8989, %v9045
      %v9078 = vadd.f32 %v9021, %v9046
      %v9079 = vadd.f32 %v8990, %v9047
      %v9080 = vadd.f32 %v9022, %v9048
      %v9081 = vadd.f32 %v8991, %v9049
      %v9082 = vadd.f32 %v9023, %v9050
      %v9083 = vadd.f32 %v8992, %v9051
      %v9084 = vadd.f32 %v9024, %v9052
      %v9085 = vadd.f32 %v8993, %v9053
      %v9086 = vadd.f32 %v9025, %v9054
      %v9087 = vadd.f32 %v8994, %v9055
      %v9088 = vadd.f32 %v9026, %v9056
      %v9089 = vadd.f32 %v8995, %v9057
      %v9090 = vadd.f32 %v9027, %v9058
      %v9091 = vadd.f32 %v8996, %v9059
      %v9092 = vadd.f32 %v9028, %v9060
      %v9093 = vmax.f32 %v9061, 0.0
      %v9094 = vmax.f32 %v9062, 0.0
      %v9095 = vmax.f32 %v9063, 0.0
      %v9096 = vmax.f32 %v9064, 0.0
      %v9097 = vmax.f32 %v9065, 0.0
      %v9098 = vmax.f32 %v9066, 0.0
      %v9099 = vmax.f32 %v9067, 0.0
      %v9100 = vmax.f32 %v9068, 0.0
      %v9101 = vmax.f32 %v9069, 0.0
      %v9102 = vmax.f32 %v9070, 0.0
      %v9103 = vmax.f32 %v9071, 0.0
      %v9104 = vmax.f32 %v9072, 0.0
      %v9105 = vmax.f32 %v9073, 0.0
      %v9106 = vmax.f32 %v9074, 0.0
      %v9107 = vmax.f32 %v9075, 0.0
      %v9108 = vmax.f32 %v9076, 0.0
      %v9109 = vmax.f32 %v9077, 0.0
      %v9110 = vmax.f32 %v9078, 0.0
      %v9111 = vmax.f32 %v9079, 0.0
      %v9112 = vmax.f32 %v9080, 0.0
      %v9113 = vmax.f32 %v9081, 0.0
      %v9114 = vmax.f32 %v9082, 0.0
      %v9115 = vmax.f32 %v9083, 0.0
      %v9116 = vmax.f32 %v9084, 0.0
      %v9117 = vmax.f32 %v9085, 0.0
      %v9118 = vmax.f32 %v9086, 0.0
      %v9119 = vmax.f32 %v9087, 0.0
      %v9120 = vmax.f32 %v9088, 0.0
      %v9121 = vmax.f32 %v9089, 0.0
      %v9122 = vmax.f32 %v9090, 0.0
      %v9123 = vmax.f32 %v9091, 0.0
      %v9124 = vmax.f32 %v9092, 0.0
      %9125 = vst [vmem:[%s474 + $0x200] sm:$0xff] %v9093
      %9126 = vst [vmem:[%s474 + $0x208] sm:$0xff] %v9094
      %9127 = vst [vmem:[%s474 + $0x210] sm:$0xff] %v9095
      %9128 = vst [vmem:[%s474 + $0x218] sm:$0xff] %v9096
      %9129 = vst [vmem:[%s474 + $0x220] sm:$0xff] %v9097
      %9130 = vst [vmem:[%s474 + $0x228] sm:$0xff] %v9098
      %9131 = vst [vmem:[%s474 + $0x230] sm:$0xff] %v9099
      %9132 = vst [vmem:[%s474 + $0x238] sm:$0xff] %v9100
      %9133 = vst [vmem:[%s474 + $0x240] sm:$0xff] %v9101
      %9134 = vst [vmem:[%s474 + $0x248] sm:$0xff] %v9102
      %9135 = vst [vmem:[%s474 + $0x250] sm:$0xff] %v9103
      %9136 = vst [vmem:[%s474 + $0x258] sm:$0xff] %v9104
      %9137 = vst [vmem:[%s474 + $0x260] sm:$0xff] %v9105
      %9138 = vst [vmem:[%s474 + $0x268] sm:$0xff] %v9106
      %9139 = vst [vmem:[%s474 + $0x270] sm:$0xff] %v9107
      %9140 = vst [vmem:[%s474 + $0x278] sm:$0xff] %v9108
      %9141 = vst [vmem:[%s474 + $0x280] sm:$0xff] %v9109
      %9142 = vst [vmem:[%s474 + $0x288] sm:$0xff] %v9110
      %9143 = vst [vmem:[%s474 + $0x290] sm:$0xff] %v9111
      %9144 = vst [vmem:[%s474 + $0x298] sm:$0xff] %v9112
      %9145 = vst [vmem:[%s474 + $0x2a0] sm:$0xff] %v9113
      %9146 = vst [vmem:[%s474 + $0x2a8] sm:$0xff] %v9114
      %9147 = vst [vmem:[%s474 + $0x2b0] sm:$0xff] %v9115
      %9148 = vst [vmem:[%s474 + $0x2b8] sm:$0xff] %v9116
      %9149 = vst [vmem:[%s474 + $0x2c0] sm:$0xff] %v9117
      %9150 = vst [vmem:[%s474 + $0x2c8] sm:$0xff] %v9118
      %9151 = vst [vmem:[%s474 + $0x2d0] sm:$0xff] %v9119
      %9152 = vst [vmem:[%s474 + $0x2d8] sm:$0xff] %v9120
      %9153 = vst [vmem:[%s474 + $0x2e0] sm:$0xff] %v9121
      %9154 = vst [vmem:[%s474 + $0x2e8] sm:$0xff] %v9122
      %9155 = vst [vmem:[%s474 + $0x2f0] sm:$0xff] %v9123
      %9156 = vst [vmem:[%s474 + $0x2f8] sm:$0xff] %v9124
      %v9157 = vld [vmem:[#allocation4] sm:$0xff]
      %v9158 = vld [vmem:[#allocation4 + $0x8] sm:$0xff]
      %v9159 = vld [vmem:[#allocation4 + $0x10] sm:$0xff]
      %v9160 = vld [vmem:[#allocation4 + $0x18] sm:$0xff]
      %v9161 = vld [vmem:[#allocation4 + $0x20] sm:$0xff]
      %v9162 = vld [vmem:[#allocation4 + $0x28] sm:$0xff]
      %v9163 = vld [vmem:[#allocation4 + $0x30] sm:$0xff]
      %v9164 = vld [vmem:[#allocation4 + $0x38] sm:$0xff]
      %v9165 = vld [vmem:[#allocation4 + $0x40] sm:$0xff]
      %v9166 = vld [vmem:[#allocation4 + $0x48] sm:$0xff]
      %v9167 = vld [vmem:[#allocation4 + $0x50] sm:$0xff]
      %v9168 = vld [vmem:[#allocation4 + $0x58] sm:$0xff]
      %v9169 = vld [vmem:[#allocation4 + $0x60] sm:$0xff]
      %v9170 = vld [vmem:[#allocation4 + $0x68] sm:$0xff]
      %v9171 = vld [vmem:[#allocation4 + $0x70] sm:$0xff]
      %v9172 = vld [vmem:[#allocation4 + $0x78] sm:$0xff]
      %v9173 = vld [vmem:[%s7 + $0xc] sm:$0xf]
      %v9174 = vld [vmem:[%s7 + $0x1c] sm:$0xf]
      %v9175 = vld [vmem:[%s7 + $0x2c] sm:$0xf]
      %v9176 = vld [vmem:[%s7 + $0x3c] sm:$0xf]
      %v9177 = vld [vmem:[%s7 + $0x4c] sm:$0xf]
      %v9178 = vld [vmem:[%s7 + $0x5c] sm:$0xf]
      %v9179 = vld [vmem:[%s7 + $0x6c] sm:$0xf]
      %v9180 = vld [vmem:[%s7 + $0x7c] sm:$0xf]
      %v9181 = vld [vmem:[%s7 + $0x8c] sm:$0xf]
      %v9182 = vld [vmem:[%s7 + $0x9c] sm:$0xf]
      %v9183 = vld [vmem:[%s7 + $0xac] sm:$0xf]
      %v9184 = vld [vmem:[%s7 + $0xbc] sm:$0xf]
      %v9185 = vld [vmem:[%s7 + $0xcc] sm:$0xf]
      %v9186 = vld [vmem:[%s7 + $0xdc] sm:$0xf]
      %v9187 = vld [vmem:[%s7 + $0xec] sm:$0xf]
      %v9188 = vld [vmem:[%s7 + $0xfc] sm:$0xf]
      %v9205 = vunpack.c.l.b16 %v9173
      %v9206 = vunpack.c.l.b16 %v9174
      %v9207 = vunpack.c.l.b16 %v9175
      %v9208 = vunpack.c.l.b16 %v9176
      %v9209 = vunpack.c.l.b16 %v9177
      %v9210 = vunpack.c.l.b16 %v9178
      %v9211 = vunpack.c.l.b16 %v9179
      %v9212 = vunpack.c.l.b16 %v9180
      %v9213 = vunpack.c.l.b16 %v9181
      %v9214 = vunpack.c.l.b16 %v9182
      %v9215 = vunpack.c.l.b16 %v9183
      %v9216 = vunpack.c.l.b16 %v9184
      %v9217 = vunpack.c.l.b16 %v9185
      %v9218 = vunpack.c.l.b16 %v9186
      %v9219 = vunpack.c.l.b16 %v9187
      %v9220 = vunpack.c.l.b16 %v9188
      %v9221 = vpack.c.b16 %v9206, %v9205
      %v9222 = vpack.c.b16 %v9208, %v9207
      %v9223 = vpack.c.b16 %v9210, %v9209
      %v9224 = vpack.c.b16 %v9212, %v9211
      %v9225 = vpack.c.b16 %v9214, %v9213
      %v9226 = vpack.c.b16 %v9216, %v9215
      %v9227 = vpack.c.b16 %v9218, %v9217
      %v9228 = vpack.c.b16 %v9220, %v9219
      %9237 = vmatprep.subr.bf16.mxu0 0
      %9238 = vmatpush1.bf16.msra.mxu0 %v9221
      %9239 = vmatprep.subr.bf16.mxu0 0
      %9240 = vmatpush1.bf16.msra.mxu0 %v9222
      %9241 = vmatprep.subr.bf16.mxu0 0
      %9242 = vmatpush1.bf16.msra.mxu0 %v9223
      %9243 = vmatprep.subr.bf16.mxu0 0
      %9244 = vmatpush1.bf16.msra.mxu0 %v9224
      %9245 = vmatprep.subr.bf16.mxu0 0
      %9246 = vmatpush1.bf16.msra.mxu0 %v9225
      %9247 = vmatprep.subr.bf16.mxu0 0
      %9248 = vmatpush1.bf16.msra.mxu0 %v9226
      %9249 = vmatprep.subr.bf16.mxu0 0
      %9250 = vmatpush1.bf16.msra.mxu0 %v9227
      %9251 = vmatprep.subr.bf16.mxu0 0
      %9252 = vmatpush1.bf16.msra.mxu0 %v9228
      %9253 = vmatprep.subr.bf16.mxu0 0
      %9254 = vmatpush1.bf16.msra.mxu0 0
      %9255 = vmatprep.subr.bf16.mxu0 0
      %9256 = vmatpush1.bf16.msra.mxu0 0
      %9257 = vmatprep.subr.bf16.mxu0 0
      %9258 = vmatpush1.bf16.msra.mxu0 0
      %9259 = vmatprep.subr.bf16.mxu0 0
      %9260 = vmatpush1.bf16.msra.mxu0 0
      %9261 = vmatprep.subr.bf16.mxu0 0
      %9262 = vmatpush1.bf16.msra.mxu0 0
      %9263 = vmatprep.subr.bf16.mxu0 0
      %9264 = vmatpush1.bf16.msra.mxu0 0
      %9265 = vmatprep.subr.bf16.mxu0 0
      %9266 = vmatpush1.bf16.msra.mxu0 0
      %9267 = vmatprep.subr.bf16.mxu0 0
      %9268 = vmatpush1.bf16.msra.mxu0 0
      %9269 = vmatprep.mubr.bf16.mxu0 0
      %9270 = vmatmul.mubr.bf16.gmra.mrb[0].mxu0 %v9157
      %v9271 = vpop.f32.mrb[0].mxu0
      %v9272 = vadd.f32 0.0, %v9271
      %v9273 = vpop.f32.mrb[0].mxu0
      %v9274 = vpop.f32.mrb[0].mxu0
      %v9275 = vadd.f32 0.0, %v9274
      %v9276 = vpop.f32.mrb[0].mxu0
      %9277 = vmatprep.mubr.bf16.mxu0 0
      %9278 = vmatmul.mubr.bf16.gmra.mrb[0].mxu0 %v9158
      %v9279 = vpop.f32.mrb[0].mxu0
      %v9280 = vadd.f32 0.0, %v9279
      %v9281 = vpop.f32.mrb[0].mxu0
      %v9282 = vpop.f32.mrb[0].mxu0
      %v9283 = vadd.f32 0.0, %v9282
      %v9284 = vpop.f32.mrb[0].mxu0
      %9285 = vmatprep.mubr.bf16.mxu0 0
      %9286 = vmatmul.mubr.bf16.gmra.mrb[0].mxu0 %v9159
      %v9287 = vpop.f32.mrb[0].mxu0
      %v9288 = vadd.f32 0.0, %v9287
      %v9289 = vpop.f32.mrb[0].mxu0
      %v9290 = vpop.f32.mrb[0].mxu0
      %v9291 = vadd.f32 0.0, %v9290
      %v9292 = vpop.f32.mrb[0].mxu0
      %9293 = vmatprep.mubr.bf16.mxu0 0
      %9294 = vmatmul.mubr.bf16.gmra.mrb[0].mxu0 %v9160
      %v9295 = vpop.f32.mrb[0].mxu0
      %v9296 = vadd.f32 0.0, %v9295
      %v9297 = vpop.f32.mrb[0].mxu0
      %v9298 = vpop.f32.mrb[0].mxu0
      %v9299 = vadd.f32 0.0, %v9298
      %v9300 = vpop.f32.mrb[0].mxu0
      %9301 = vmatprep.mubr.bf16.mxu0 0
      %9302 = vmatmul.mubr.bf16.gmra.mrb[0].mxu0 %v9161
      %v9303 = vpop.f32.mrb[0].mxu0
      %v9304 = vadd.f32 0.0, %v9303
      %v9305 = vpop.f32.mrb[0].mxu0
      %v9306 = vpop.f32.mrb[0].mxu0
      %v9307 = vadd.f32 0.0, %v9306
      %v9308 = vpop.f32.mrb[0].mxu0
      %9309 = vmatprep.mubr.bf16.mxu0 0
      %9310 = vmatmul.mubr.bf16.gmra.mrb[0].mxu0 %v9162
      %v9311 = vpop.f32.mrb[0].mxu0
      %v9312 = vadd.f32 0.0, %v9311
      %v9313 = vpop.f32.mrb[0].mxu0
      %v9314 = vpop.f32.mrb[0].mxu0
      %v9315 = vadd.f32 0.0, %v9314
      %v9316 = vpop.f32.mrb[0].mxu0
      %9317 = vmatprep.mubr.bf16.mxu0 0
      %9318 = vmatmul.mubr.bf16.gmra.mrb[0].mxu0 %v9163
      %v9319 = vpop.f32.mrb[0].mxu0
      %v9320 = vadd.f32 0.0, %v9319
      %v9321 = vpop.f32.mrb[0].mxu0
      %v9322 = vpop.f32.mrb[0].mxu0
      %v9323 = vadd.f32 0.0, %v9322
      %v9324 = vpop.f32.mrb[0].mxu0
      %9325 = vmatprep.mubr.bf16.mxu0 0
      %9326 = vmatmul.mubr.bf16.gmra.mrb[0].mxu0 %v9164
      %v9327 = vpop.f32.mrb[0].mxu0
      %v9328 = vadd.f32 0.0, %v9327
      %v9329 = vpop.f32.mrb[0].mxu0
      %v9330 = vpop.f32.mrb[0].mxu0
      %v9331 = vadd.f32 0.0, %v9330
      %v9332 = vpop.f32.mrb[0].mxu0
      %9333 = vmatprep.mubr.bf16.mxu0 0
      %9334 = vmatmul.mubr.bf16.gmra.mrb[0].mxu0 %v9165
      %v9335 = vpop.f32.mrb[0].mxu0
      %v9336 = vadd.f32 0.0, %v9335
      %v9337 = vpop.f32.mrb[0].mxu0
      %v9338 = vpop.f32.mrb[0].mxu0
      %v9339 = vadd.f32 0.0, %v9338
      %v9340 = vpop.f32.mrb[0].mxu0
      %9341 = vmatprep.mubr.bf16.mxu0 0
      %9342 = vmatmul.mubr.bf16.gmra.mrb[0].mxu0 %v9166
      %v9343 = vpop.f32.mrb[0].mxu0
      %v9344 = vadd.f32 0.0, %v9343
      %v9345 = vpop.f32.mrb[0].mxu0
      %v9346 = vpop.f32.mrb[0].mxu0
      %v9347 = vadd.f32 0.0, %v9346
      %v9348 = vpop.f32.mrb[0].mxu0
      %9349 = vmatprep.mubr.bf16.mxu0 0
      %9350 = vmatmul.mubr.bf16.gmra.mrb[0].mxu0 %v9167
      %v9351 = vpop.f32.mrb[0].mxu0
      %v9352 = vadd.f32 0.0, %v9351
      %v9353 = vpop.f32.mrb[0].mxu0
      %v9354 = vpop.f32.mrb[0].mxu0
      %v9355 = vadd.f32 0.0, %v9354
      %v9356 = vpop.f32.mrb[0].mxu0
      %9357 = vmatprep.mubr.bf16.mxu0 0
      %9358 = vmatmul.mubr.bf16.gmra.mrb[0].mxu0 %v9168
      %v9359 = vpop.f32.mrb[0].mxu0
      %v9360 = vadd.f32 0.0, %v9359
      %v9361 = vpop.f32.mrb[0].mxu0
      %v9362 = vpop.f32.mrb[0].mxu0
      %v9363 = vadd.f32 0.0, %v9362
      %v9364 = vpop.f32.mrb[0].mxu0
      %9365 = vmatprep.mubr.bf16.mxu0 0
      %9366 = vmatmul.mubr.bf16.gmra.mrb[0].mxu0 %v9169
      %v9367 = vpop.f32.mrb[0].mxu0
      %v9368 = vadd.f32 0.0, %v9367
      %v9369 = vpop.f32.mrb[0].mxu0
      %v9370 = vpop.f32.mrb[0].mxu0
      %v9371 = vadd.f32 0.0, %v9370
      %v9372 = vpop.f32.mrb[0].mxu0
      %9373 = vmatprep.mubr.bf16.mxu0 0
      %9374 = vmatmul.mubr.bf16.gmra.mrb[0].mxu0 %v9170
      %v9375 = vpop.f32.mrb[0].mxu0
      %v9376 = vadd.f32 0.0, %v9375
      %v9377 = vpop.f32.mrb[0].mxu0
      %v9378 = vpop.f32.mrb[0].mxu0
      %v9379 = vadd.f32 0.0, %v9378
      %v9380 = vpop.f32.mrb[0].mxu0
      %9381 = vmatprep.mubr.bf16.mxu0 0
      %9382 = vmatmul.mubr.bf16.gmra.mrb[0].mxu0 %v9171
      %v9383 = vpop.f32.mrb[0].mxu0
      %v9384 = vadd.f32 0.0, %v9383
      %v9385 = vpop.f32.mrb[0].mxu0
      %v9386 = vpop.f32.mrb[0].mxu0
      %v9387 = vadd.f32 0.0, %v9386
      %v9388 = vpop.f32.mrb[0].mxu0
      %9389 = vmatprep.mubr.bf16.mxu0 0
      %9390 = vmatmul.mubr.bf16.gmra.mrb[0].mxu0 %v9172
      %v9391 = vpop.f32.mrb[0].mxu0
      %v9392 = vadd.f32 0.0, %v9391
      %v9393 = vpop.f32.mrb[0].mxu0
      %v9394 = vpop.f32.mrb[0].mxu0
      %v9395 = vadd.f32 0.0, %v9394
      %v9396 = vpop.f32.mrb[0].mxu0
      %9397 = vdwg.mxu0
      %v9398 = vld [vmem:[%s8 + $0x3] sm:$0x1]
      %v9400 = vlaneseq
      %v9401 = vshrl.u32 %v9400, 7
      %v9402 = vsub.s32 0, %v9401
      %v9403 = vrot.slane %v9398, %v9402
      %v9405 = vmul.f32 %v9272, %v9403
      %v9406 = vmul.f32 %v9275, %v9403
      %v9407 = vmul.f32 %v9280, %v9403
      %v9408 = vmul.f32 %v9283, %v9403
      %v9409 = vmul.f32 %v9288, %v9403
      %v9410 = vmul.f32 %v9291, %v9403
      %v9411 = vmul.f32 %v9296, %v9403
      %v9412 = vmul.f32 %v9299, %v9403
      %v9413 = vmul.f32 %v9304, %v9403
      %v9414 = vmul.f32 %v9307, %v9403
      %v9415 = vmul.f32 %v9312, %v9403
      %v9416 = vmul.f32 %v9315, %v9403
      %v9417 = vmul.f32 %v9320, %v9403
      %v9418 = vmul.f32 %v9323, %v9403
      %v9419 = vmul.f32 %v9328, %v9403
      %v9420 = vmul.f32 %v9331, %v9403
      %v9421 = vmul.f32 %v9336, %v9403
      %v9422 = vmul.f32 %v9339, %v9403
      %v9423 = vmul.f32 %v9344, %v9403
      %v9424 = vmul.f32 %v9347, %v9403
      %v9425 = vmul.f32 %v9352, %v9403
      %v9426 = vmul.f32 %v9355, %v9403
      %v9427 = vmul.f32 %v9360, %v9403
      %v9428 = vmul.f32 %v9363, %v9403
      %v9429 = vmul.f32 %v9368, %v9403
      %v9430 = vmul.f32 %v9371, %v9403
      %v9431 = vmul.f32 %v9376, %v9403
      %v9432 = vmul.f32 %v9379, %v9403
      %v9433 = vmul.f32 %v9384, %v9403
      %v9434 = vmul.f32 %v9387, %v9403
      %v9435 = vmul.f32 %v9392, %v9403
      %v9436 = vmul.f32 %v9395, %v9403
      %v9437 = vld [vmem:[%s9 + $0x3] sm:$0x1]
      %v9439 = vlaneseq
      %v9440 = vshrl.u32 %v9439, 7
      %v9441 = vsub.s32 0, %v9440
      %v9442 = vrot.slane %v9437, %v9441
      %v9444 = vadd.f32 %v9405, %v9442
      %v9445 = vadd.f32 %v9406, %v9442
      %v9446 = vadd.f32 %v9407, %v9442
      %v9447 = vadd.f32 %v9408, %v9442
      %v9448 = vadd.f32 %v9409, %v9442
      %v9449 = vadd.f32 %v9410, %v9442
      %v9450 = vadd.f32 %v9411, %v9442
      %v9451 = vadd.f32 %v9412, %v9442
      %v9452 = vadd.f32 %v9413, %v9442
      %v9453 = vadd.f32 %v9414, %v9442
      %v9454 = vadd.f32 %v9415, %v9442
      %v9455 = vadd.f32 %v9416, %v9442
      %v9456 = vadd.f32 %v9417, %v9442
      %v9457 = vadd.f32 %v9418, %v9442
      %v9458 = vadd.f32 %v9419, %v9442
      %v9459 = vadd.f32 %v9420, %v9442
      %v9460 = vadd.f32 %v9421, %v9442
      %v9461 = vadd.f32 %v9422, %v9442
      %v9462 = vadd.f32 %v9423, %v9442
      %v9463 = vadd.f32 %v9424, %v9442
      %v9464 = vadd.f32 %v9425, %v9442
      %v9465 = vadd.f32 %v9426, %v9442
      %v9466 = vadd.f32 %v9427, %v9442
      %v9467 = vadd.f32 %v9428, %v9442
      %v9468 = vadd.f32 %v9429, %v9442
      %v9469 = vadd.f32 %v9430, %v9442
      %v9470 = vadd.f32 %v9431, %v9442
      %v9471 = vadd.f32 %v9432, %v9442
      %v9472 = vadd.f32 %v9433, %v9442
      %v9473 = vadd.f32 %v9434, %v9442
      %v9474 = vadd.f32 %v9435, %v9442
      %v9475 = vadd.f32 %v9436, %v9442
      %v9476 = vlaneseq
      %v9477 = vshrl.u32 %v9476, 7
      %v9478 = vsub.s32 0, %v9477
      %v9479 = vrot.slane %v7531, %v9478
      %v9480 = vmul.f32 %v9444, %v9479
      %v9481 = vmul.f32 %v9445, %v9479
      %v9482 = vmul.f32 %v9446, %v9479
      %v9483 = vmul.f32 %v9447, %v9479
      %v9484 = vmul.f32 %v9448, %v9479
      %v9485 = vmul.f32 %v9449, %v9479
      %v9486 = vmul.f32 %v9450, %v9479
      %v9487 = vmul.f32 %v9451, %v9479
      %v9488 = vmul.f32 %v9452, %v9479
      %v9489 = vmul.f32 %v9453, %v9479
      %v9490 = vmul.f32 %v9454, %v9479
      %v9491 = vmul.f32 %v9455, %v9479
      %v9492 = vmul.f32 %v9456, %v9479
      %v9493 = vmul.f32 %v9457, %v9479
      %v9494 = vmul.f32 %v9458, %v9479
      %v9495 = vmul.f32 %v9459, %v9479
      %v9496 = vmul.f32 %v9460, %v9479
      %v9497 = vmul.f32 %v9461, %v9479
      %v9498 = vmul.f32 %v9462, %v9479
      %v9499 = vmul.f32 %v9463, %v9479
      %v9500 = vmul.f32 %v9464, %v9479
      %v9501 = vmul.f32 %v9465, %v9479
      %v9502 = vmul.f32 %v9466, %v9479
      %v9503 = vmul.f32 %v9467, %v9479
      %v9504 = vmul.f32 %v9468, %v9479
      %v9505 = vmul.f32 %v9469, %v9479
      %v9506 = vmul.f32 %v9470, %v9479
      %v9507 = vmul.f32 %v9471, %v9479
      %v9508 = vmul.f32 %v9472, %v9479
      %v9509 = vmul.f32 %v9473, %v9479
      %v9510 = vmul.f32 %v9474, %v9479
      %v9511 = vmul.f32 %v9475, %v9479
      %9512 = vxpose.xlu0.b32.start [1/16] %v9480, 128
      %9513 = vxpose.xlu0.b32.cont [2/16] %v9481, 128
      %9514 = vxpose.xlu0.b32.cont [3/16] %v9482, 128
      %9515 = vxpose.xlu0.b32.cont [4/16] %v9483, 128
      %9516 = vxpose.xlu0.b32.cont [5/16] %v9484, 128
      %9517 = vxpose.xlu0.b32.cont [6/16] %v9485, 128
      %9518 = vxpose.xlu0.b32.cont [7/16] %v9486, 128
      %9519 = vxpose.xlu0.b32.cont [8/16] %v9487, 128
      %9520 = vxpose.xlu0.b32.cont [9/16] %v9488, 128
      %9521 = vxpose.xlu0.b32.cont [10/16] %v9489, 128
      %9522 = vxpose.xlu0.b32.cont [11/16] %v9490, 128
      %9523 = vxpose.xlu0.b32.cont [12/16] %v9491, 128
      %9524 = vxpose.xlu0.b32.cont [13/16] %v9492, 128
      %9525 = vxpose.xlu0.b32.cont [14/16] %v9493, 128
      %9526 = vxpose.xlu0.b32.cont [15/16] %v9494, 128
      %9527 = vxpose.xlu0.b32.end [16/16] %v9495, 128
      %v9528 = vpop.trf.xlu0
      %v9529 = vpop.trf.xlu0
      %v9530 = vpop.trf.xlu0
      %v9531 = vpop.trf.xlu0
      %v9532 = vpop.trf.xlu0
      %v9533 = vpop.trf.xlu0
      %v9534 = vpop.trf.xlu0
      %v9535 = vpop.trf.xlu0
      %v9536 = vpop.trf.xlu0
      %v9537 = vpop.trf.xlu0
      %v9538 = vpop.trf.xlu0
      %v9539 = vpop.trf.xlu0
      %v9540 = vpop.trf.xlu0
      %v9541 = vpop.trf.xlu0
      %v9542 = vpop.trf.xlu0
      %v9543 = vpop.trf.xlu0
      %9544 = vxpose.xlu0.b32.start [1/16] %v9496, 128
      %9545 = vxpose.xlu0.b32.cont [2/16] %v9497, 128
      %9546 = vxpose.xlu0.b32.cont [3/16] %v9498, 128
      %9547 = vxpose.xlu0.b32.cont [4/16] %v9499, 128
      %9548 = vxpose.xlu0.b32.cont [5/16] %v9500, 128
      %9549 = vxpose.xlu0.b32.cont [6/16] %v9501, 128
      %9550 = vxpose.xlu0.b32.cont [7/16] %v9502, 128
      %9551 = vxpose.xlu0.b32.cont [8/16] %v9503, 128
      %9552 = vxpose.xlu0.b32.cont [9/16] %v9504, 128
      %9553 = vxpose.xlu0.b32.cont [10/16] %v9505, 128
      %9554 = vxpose.xlu0.b32.cont [11/16] %v9506, 128
      %9555 = vxpose.xlu0.b32.cont [12/16] %v9507, 128
      %9556 = vxpose.xlu0.b32.cont [13/16] %v9508, 128
      %9557 = vxpose.xlu0.b32.cont [14/16] %v9509, 128
      %9558 = vxpose.xlu0.b32.cont [15/16] %v9510, 128
      %9559 = vxpose.xlu0.b32.end [16/16] %v9511, 128
      %v9560 = vpop.trf.xlu0
      %v9561 = vpop.trf.xlu0
      %v9562 = vpop.trf.xlu0
      %v9563 = vpop.trf.xlu0
      %v9564 = vpop.trf.xlu0
      %v9565 = vpop.trf.xlu0
      %v9566 = vpop.trf.xlu0
      %v9567 = vpop.trf.xlu0
      %v9568 = vpop.trf.xlu0
      %v9569 = vpop.trf.xlu0
      %v9570 = vpop.trf.xlu0
      %v9571 = vpop.trf.xlu0
      %v9572 = vpop.trf.xlu0
      %v9573 = vpop.trf.xlu0
      %v9574 = vpop.trf.xlu0
      %v9575 = vpop.trf.xlu0
      %v9576 = vld [vmem:[%s467 + $0x300] sm:$0xff]
      %v9577 = vld [vmem:[%s467 + $0x308] sm:$0xff]
      %v9578 = vld [vmem:[%s467 + $0x310] sm:$0xff]
      %v9579 = vld [vmem:[%s467 + $0x318] sm:$0xff]
      %v9580 = vld [vmem:[%s467 + $0x320] sm:$0xff]
      %v9581 = vld [vmem:[%s467 + $0x328] sm:$0xff]
      %v9582 = vld [vmem:[%s467 + $0x330] sm:$0xff]
      %v9583 = vld [vmem:[%s467 + $0x338] sm:$0xff]
      %v9584 = vld [vmem:[%s467 + $0x340] sm:$0xff]
      %v9585 = vld [vmem:[%s467 + $0x348] sm:$0xff]
      %v9586 = vld [vmem:[%s467 + $0x350] sm:$0xff]
      %v9587 = vld [vmem:[%s467 + $0x358] sm:$0xff]
      %v9588 = vld [vmem:[%s467 + $0x360] sm:$0xff]
      %v9589 = vld [vmem:[%s467 + $0x368] sm:$0xff]
      %v9590 = vld [vmem:[%s467 + $0x370] sm:$0xff]
      %v9591 = vld [vmem:[%s467 + $0x378] sm:$0xff]
      %v9592 = vld [vmem:[%s467 + $0x380] sm:$0xff]
      %v9593 = vld [vmem:[%s467 + $0x388] sm:$0xff]
      %v9594 = vld [vmem:[%s467 + $0x390] sm:$0xff]
      %v9595 = vld [vmem:[%s467 + $0x398] sm:$0xff]
      %v9596 = vld [vmem:[%s467 + $0x3a0] sm:$0xff]
      %v9597 = vld [vmem:[%s467 + $0x3a8] sm:$0xff]
      %v9598 = vld [vmem:[%s467 + $0x3b0] sm:$0xff]
      %v9599 = vld [vmem:[%s467 + $0x3b8] sm:$0xff]
      %v9600 = vld [vmem:[%s467 + $0x3c0] sm:$0xff]
      %v9601 = vld [vmem:[%s467 + $0x3c8] sm:$0xff]
      %v9602 = vld [vmem:[%s467 + $0x3d0] sm:$0xff]
      %v9603 = vld [vmem:[%s467 + $0x3d8] sm:$0xff]
      %v9604 = vld [vmem:[%s467 + $0x3e0] sm:$0xff]
      %v9605 = vld [vmem:[%s467 + $0x3e8] sm:$0xff]
      %v9606 = vld [vmem:[%s467 + $0x3f0] sm:$0xff]
      %v9607 = vld [vmem:[%s467 + $0x3f8] sm:$0xff]
      %v9608 = vadd.f32 %v9528, %v9576
      %v9609 = vadd.f32 %v9560, %v9577
      %v9610 = vadd.f32 %v9529, %v9578
      %v9611 = vadd.f32 %v9561, %v9579
      %v9612 = vadd.f32 %v9530, %v9580
      %v9613 = vadd.f32 %v9562, %v9581
      %v9614 = vadd.f32 %v9531, %v9582
      %v9615 = vadd.f32 %v9563, %v9583
      %v9616 = vadd.f32 %v9532, %v9584
      %v9617 = vadd.f32 %v9564, %v9585
      %v9618 = vadd.f32 %v9533, %v9586
      %v9619 = vadd.f32 %v9565, %v9587
      %v9620 = vadd.f32 %v9534, %v9588
      %v9621 = vadd.f32 %v9566, %v9589
      %v9622 = vadd.f32 %v9535, %v9590
      %v9623 = vadd.f32 %v9567, %v9591
      %v9624 = vadd.f32 %v9536, %v9592
      %v9625 = vadd.f32 %v9568, %v9593
      %v9626 = vadd.f32 %v9537, %v9594
      %v9627 = vadd.f32 %v9569, %v9595
      %v9628 = vadd.f32 %v9538, %v9596
      %v9629 = vadd.f32 %v9570, %v9597
      %v9630 = vadd.f32 %v9539, %v9598
      %v9631 = vadd.f32 %v9571, %v9599
      %v9632 = vadd.f32 %v9540, %v9600
      %v9633 = vadd.f32 %v9572, %v9601
      %v9634 = vadd.f32 %v9541, %v9602
      %v9635 = vadd.f32 %v9573, %v9603
      %v9636 = vadd.f32 %v9542, %v9604
      %v9637 = vadd.f32 %v9574, %v9605
      %v9638 = vadd.f32 %v9543, %v9606
      %v9639 = vadd.f32 %v9575, %v9607
      %v9640 = vmax.f32 %v9608, 0.0
      %v9641 = vmax.f32 %v9609, 0.0
      %v9642 = vmax.f32 %v9610, 0.0
      %v9643 = vmax.f32 %v9611, 0.0
      %v9644 = vmax.f32 %v9612, 0.0
      %v9645 = vmax.f32 %v9613, 0.0
      %v9646 = vmax.f32 %v9614, 0.0
      %v9647 = vmax.f32 %v9615, 0.0
      %v9648 = vmax.f32 %v9616, 0.0
      %v9649 = vmax.f32 %v9617, 0.0
      %v9650 = vmax.f32 %v9618, 0.0
      %v9651 = vmax.f32 %v9619, 0.0
      %v9652 = vmax.f32 %v9620, 0.0
      %v9653 = vmax.f32 %v9621, 0.0
      %v9654 = vmax.f32 %v9622, 0.0
      %v9655 = vmax.f32 %v9623, 0.0
      %v9656 = vmax.f32 %v9624, 0.0
      %v9657 = vmax.f32 %v9625, 0.0
      %v9658 = vmax.f32 %v9626, 0.0
      %v9659 = vmax.f32 %v9627, 0.0
      %v9660 = vmax.f32 %v9628, 0.0
      %v9661 = vmax.f32 %v9629, 0.0
      %v9662 = vmax.f32 %v9630, 0.0
      %v9663 = vmax.f32 %v9631, 0.0
      %v9664 = vmax.f32 %v9632, 0.0
      %v9665 = vmax.f32 %v9633, 0.0
      %v9666 = vmax.f32 %v9634, 0.0
      %v9667 = vmax.f32 %v9635, 0.0
      %v9668 = vmax.f32 %v9636, 0.0
      %v9669 = vmax.f32 %v9637, 0.0
      %v9670 = vmax.f32 %v9638, 0.0
      %v9671 = vmax.f32 %v9639, 0.0
      %9672 = vst [vmem:[%s474 + $0x300] sm:$0xff] %v9640
      %9673 = vst [vmem:[%s474 + $0x308] sm:$0xff] %v9641
      %9674 = vst [vmem:[%s474 + $0x310] sm:$0xff] %v9642
      %9675 = vst [vmem:[%s474 + $0x318] sm:$0xff] %v9643
      %9676 = vst [vmem:[%s474 + $0x320] sm:$0xff] %v9644
      %9677 = vst [vmem:[%s474 + $0x328] sm:$0xff] %v9645
      %9678 = vst [vmem:[%s474 + $0x330] sm:$0xff] %v9646
      %9679 = vst [vmem:[%s474 + $0x338] sm:$0xff] %v9647
      %9680 = vst [vmem:[%s474 + $0x340] sm:$0xff] %v9648
      %9681 = vst [vmem:[%s474 + $0x348] sm:$0xff] %v9649
      %9682 = vst [vmem:[%s474 + $0x350] sm:$0xff] %v9650
      %9683 = vst [vmem:[%s474 + $0x358] sm:$0xff] %v9651
      %9684 = vst [vmem:[%s474 + $0x360] sm:$0xff] %v9652
      %9685 = vst [vmem:[%s474 + $0x368] sm:$0xff] %v9653
      %9686 = vst [vmem:[%s474 + $0x370] sm:$0xff] %v9654
      %9687 = vst [vmem:[%s474 + $0x378] sm:$0xff] %v9655
      %9688 = vst [vmem:[%s474 + $0x380] sm:$0xff] %v9656
      %9689 = vst [vmem:[%s474 + $0x388] sm:$0xff] %v9657
      %9690 = vst [vmem:[%s474 + $0x390] sm:$0xff] %v9658
      %9691 = vst [vmem:[%s474 + $0x398] sm:$0xff] %v9659
      %9692 = vst [vmem:[%s474 + $0x3a0] sm:$0xff] %v9660
      %9693 = vst [vmem:[%s474 + $0x3a8] sm:$0xff] %v9661
      %9694 = vst [vmem:[%s474 + $0x3b0] sm:$0xff] %v9662
      %9695 = vst [vmem:[%s474 + $0x3b8] sm:$0xff] %v9663
      %9696 = vst [vmem:[%s474 + $0x3c0] sm:$0xff] %v9664
      %9697 = vst [vmem:[%s474 + $0x3c8] sm:$0xff] %v9665
      %9698 = vst [vmem:[%s474 + $0x3d0] sm:$0xff] %v9666
      %9699 = vst [vmem:[%s474 + $0x3d8] sm:$0xff] %v9667
      %9700 = vst [vmem:[%s474 + $0x3e0] sm:$0xff] %v9668
      %9701 = vst [vmem:[%s474 + $0x3e8] sm:$0xff] %v9669
      %9702 = vst [vmem:[%s474 + $0x3f0] sm:$0xff] %v9670
      %9703 = vst [vmem:[%s474 + $0x3f8] sm:$0xff] %v9671
      %s9704 = smul.u32 64, %s25
      %p9705 = scmp.lt.s32.totalorder %s9704, 127
      %s9706 = scalar_select %p9705, %s9704, 127
      %s9707 = smul.addr %s9706, 2
      %s9708 = smul.addr %s9707, 8
      %s9709 = scalar_lea.vmem %s14, %s9708
      // Predicated region
      $region77: #{_lambda_.1} parent=75 // pred_check
        %p9710 = pneg %p342
      $region78: #{_lambda_.1} parent=75 // pred_check_branch
        %9712 = sbr.rel (%p9710) target = $region80
      $region79: #{_lambda_.1} parent=75 // pred_region
        %s9713 = smul.u32 64, %s25
      $region80: #{_lambda_.1} parent=75 // pred_fallthru
        _
    $region76: #{_lambda_.1} parent=5 // pred_fallthru
      _
    %p9714 = scmp.le.s32.totalorder 2, %s20
    // Predicated region
    $region81: #{_lambda_.1} parent=5 // pred_check
      %p9715 = pneg %p9714
    $region82: #{_lambda_.1} parent=5 // pred_check_branch
      %9717 = sbr.rel (%p9715) target = $region84
    $region83: #{_lambda_.1} parent=5 // pred_region
      %s9718 = ssub.s32 %s20, 2
      // Predicated region
      $region85: #{_lambda_.1} parent=83 // pred_check
        %p9719 = pneg %p348
      $region86: #{_lambda_.1} parent=83 // pred_check_branch
        %9721 = sbr.rel (%p9719) target = $region88
      $region87: #{_lambda_.1} parent=83 // pred_region
        %s9722 = smul.u32 64, %s26
        %p9723 = scmp.lt.s32.totalorder %s9722, 127
        %s9724 = scalar_select %p9723, %s9722, 127
        %s9725 = smul.addr %s9724, 2
        %s9726 = smul.addr %s9725, 8
        %s9727 = scalar_lea.vmem %s14, %s9726
      $region88: #{_lambda_.1} parent=83 // pred_fallthru
        _
    $region84: #{_lambda_.1} parent=5 // pred_fallthru
      _
  $region6: #{_lambda_.1} parent=0 // loop_footer
    %s24 = sadd.s32 1, %s20
  $region7: #{_lambda_.1} parent=0 // loop_footer_branch
    %19 = sbr.rel target = $region3
  $region8: #{_lambda_.1} parent=0 // loop_exit
    _

</llo_original>
